<compile_context>
chip_gen: v6e
topology: v6e:2x2x1
jax: 0.10.0
libtpu: 0.0.40
codegen_flags: <defaults>
</compile_context>

<pallas_src>
import jax
import jax.numpy as jnp
from jax.experimental import pallas as pl
from jax.experimental.pallas import tpu as pltpu


DIM = 1024                     # module asserts dim == 1024
MULTIPLIER = 6
N_OUT = MULTIPLIER * DIM
CHUNKS_PER_TILE = 3            # 2 grid steps x 3 chunks -> one step per v7x TC
NUM_TILES = MULTIPLIER // CHUNKS_PER_TILE
TN = CHUNKS_PER_TILE * DIM     # 3072 output columns per weight tile (6 MiB bf16)


def _double_modulation_kernel(x_ref, w_ref, b_ref, o_ref):
    # x_ref: (B, D)                 full vec, resident across grid steps
    # w_ref: (1, D, TN)             contiguous bf16 weight tile for this step
    # b_ref: (MULTIPLIER, 1, D)     full bias, resident (constant index_map)
    # o_ref: (CHUNKS_PER_TILE, B, D) output chunk rows for this step
    j = pl.program_id(0)

    x = x_ref[...].astype(jnp.float32)
    xs = (x * jax.nn.sigmoid(x)).astype(w_ref.dtype)        # SiLU (EUP/VPU), bf16 for MXU

    # bf16 x bf16 -> f32 accumulate on the MXU.
    acc = jnp.dot(xs, w_ref[0], preferred_element_type=jnp.float32)   # (B, TN)

    # Resident bias: dynamic slice along the leading (non-tiled) axis.
    b = b_ref[pl.ds(j * CHUNKS_PER_TILE, CHUNKS_PER_TILE)]  # (3, 1, D)

    for k in range(CHUNKS_PER_TILE):                        # static unroll, lane-dense stores
        o_ref[k, :, :] = (acc[:, k * DIM:(k + 1) * DIM]
                          + b[k].astype(jnp.float32)).astype(o_ref.dtype)


def pack_weight(w_t):
    """Pack the transposed weight (D, 6*D) into (NUM_TILES, D, TN) contiguous tiles.

    NOTE: this must start from the already-transposed (D, 6*D) tensor
    (i.e. PyTorch's lin.weight.T). Reshaping PyTorch's native (6*D, D) weight
    directly would silently permute the chunks. One-time layout transform at
    parameter-load time.
    """
    w_t = jnp.asarray(w_t)
    assert w_t.shape == (DIM, N_OUT)
    return w_t.reshape(DIM, NUM_TILES, TN).transpose(1, 0, 2)


def double_modulation(vec, w_tiles, bias):
    """vec: (B, D); w_tiles: (NUM_TILES, D, TN) (ideally bf16, from pack_weight);
    bias: (6*D,). Returns 6 tensors of shape (B, 1, D)."""
    B, D = vec.shape
    assert D == DIM
    assert w_tiles.shape == (NUM_TILES, DIM, TN)
    assert bias.shape == (N_OUT,)

    bias3d = bias.astype(jnp.float32).reshape(MULTIPLIER, 1, DIM)

    cost = pl.CostEstimate(
        flops=2 * B * DIM * N_OUT,
        transcendentals=NUM_TILES * B * DIM,                 # SiLU recomputed per tile
        bytes_accessed=(w_tiles.size * w_tiles.dtype.itemsize   # dominant weight stream
                        + vec.size * vec.dtype.itemsize          # vec fetched once (resident)
                        + bias3d.size * bias3d.dtype.itemsize
                        + B * N_OUT * vec.dtype.itemsize),
    )

    out = pl.pallas_call(
        _double_modulation_kernel,
        out_shape=jax.ShapeDtypeStruct((MULTIPLIER, B, DIM), vec.dtype),
        grid_spec=pltpu.PrefetchScalarGridSpec(
            num_scalar_prefetch=0,
            grid=(NUM_TILES,),                                    # 2 contiguous weight tiles
            in_specs=[
                pl.BlockSpec((B, DIM), lambda j: (0, 0)),         # full vec, resident
                pl.BlockSpec((1, DIM, TN), lambda j: (j, 0, 0)),  # contiguous 6 MiB bf16 slab
                pl.BlockSpec((MULTIPLIER, 1, DIM), lambda j: (0, 0, 0)),  # full bias, resident
            ],
            out_specs=pl.BlockSpec((CHUNKS_PER_TILE, B, DIM),
                                   lambda j: (j, 0, 0)),          # 3 chunk rows per step
        ),
        compiler_params=pltpu.CompilerParams(
            dimension_semantics=("parallel",),        # v7x: one grid step per TensorCore
            vmem_limit_bytes=32 * 1024 * 1024,        # 12 MiB weight double-buffer + slack
        ),
        cost_estimate=cost,
    )(vec, w_tiles, bias3d)

    # out[i] is a contiguous leading-axis slice of a tiny (6, B, D) array.
    return tuple(out[i][:, None, :] for i in range(MULTIPLIER))


def _reference(vec, w_t, bias):
    # Mirrors the kernel math: SiLU in f32, activations rounded to the weight
    # dtype (bf16) before the matmul, f32 accumulation.
    xs = vec.astype(jnp.float32)
    xs = xs * jax.nn.sigmoid(xs)
    xs = xs.astype(w_t.dtype).astype(jnp.float32)
    out = jnp.dot(xs, w_t.astype(jnp.float32),
                  precision=jax.lax.Precision.HIGHEST) + bias.astype(jnp.float32)
    out = out[:, None, :].astype(vec.dtype)
    return tuple(out[:, :, i * DIM:(i + 1) * DIM] for i in range(MULTIPLIER))


if __name__ == "__main__":
    key = jax.random.PRNGKey(0)
    k_vec, k_w, k_b = jax.random.split(key, 3)

    B = 2
    vec = jax.random.normal(k_vec, (B, DIM), dtype=jnp.float32)

    # Deterministic synthetic parameters for Linear(DIM, 6*DIM, bias=True).
    # PyTorch stores weight as (6*DIM, DIM); we work from the transposed
    # (DIM, 6*DIM) tensor, stored in bf16 (halves the dominant HBM stream),
    # then pack it once into contiguous per-step tiles.
    bound = 1.0 / (DIM ** 0.5)
    w_t = jax.random.uniform(k_w, (DIM, N_OUT), dtype=jnp.float32,
                             minval=-bound, maxval=bound).astype(jnp.bfloat16)
    bias = jax.random.uniform(k_b, (N_OUT,), dtype=jnp.float32,
                              minval=-bound, maxval=bound)

    w_tiles = jax.block_until_ready(pack_weight(w_t))

    outs = jax.block_until_ready(double_modulation(vec, w_tiles, bias))

    refs = _reference(vec, w_t, bias)
    for o, r in zip(outs, refs):
        assert o.shape == (B, 1, DIM), o.shape
        assert jnp.allclose(o, r, atol=2e-3, rtol=2e-3), \
            float(jnp.max(jnp.abs(o.astype(jnp.float32) - r.astype(jnp.float32))))

    print("KERNEL_OK")
</pallas_src>

<mosaic_0001>
module attributes {stable_mosaic.version = 11 : i64} {
  func.func @_double_modulation_kernel(%arg0: i32, %arg1: memref<2x1024xf32, #tpu.memory_space<vmem>>, %arg2: memref<1x1024x3072xbf16, #tpu.memory_space<vmem>>, %arg3: memref<6x1x1024xf32, #tpu.memory_space<vmem>>, %arg4: memref<3x2x1024xf32, #tpu.memory_space<vmem>>) attributes {dimension_semantics = [#tpu.dimension_semantics<parallel>], iteration_bounds = array<i64: 2>, scalar_prefetch = 0 : i64, scratch_operands = 0 : i64, tpu.core_type = #tpu.core_type<tc>, window_params = [{pipeline_mode = #tpu.pipeline_mode<synchronous>, transform_indices = @transform_0, window_bounds = array<i64: 2, 1024>}, {transform_indices = @transform_1, window_bounds = array<i64: 1, 1024, 3072>}, {pipeline_mode = #tpu.pipeline_mode<synchronous>, transform_indices = @transform_2, window_bounds = array<i64: 6, 1, 1024>}, {transform_indices = @transform_3, window_bounds = array<i64: 3, 2, 1024>}]} {
    %c0 = arith.constant 0 : index
    %c0_0 = arith.constant 0 : index
    %0 = vector.load %arg1[%c0, %c0_0] : memref<2x1024xf32, #tpu.memory_space<vmem>>, vector<2x1024xf32>
    %1 = arith.negf %0 : vector<2x1024xf32>
    %2 = math.exp %1 : vector<2x1024xf32>
    %cst = arith.constant 1.000000e+00 : f32
    %3 = vector.broadcast %cst : f32 to vector<2x1024xf32>
    %4 = arith.addf %3, %2 : vector<2x1024xf32>
    %5 = arith.divf %3, %4 : vector<2x1024xf32>
    %6 = arith.mulf %0, %5 : vector<2x1024xf32>
    %7 = arith.truncf %6 : vector<2x1024xf32> to vector<2x1024xbf16>
    %c0_1 = arith.constant 0 : index
    %c0_2 = arith.constant 0 : index
    %c0_3 = arith.constant 0 : index
    %8 = vector.load %arg2[%c0_1, %c0_2, %c0_3] : memref<1x1024x3072xbf16, #tpu.memory_space<vmem>>, vector<1x1024x3072xbf16>
    %9 = vector.shape_cast %8 : vector<1x1024x3072xbf16> to vector<1024x3072xbf16>
    %cst_4 = arith.constant dense<0.000000e+00> : vector<2x3072xf32>
    %10 = tpu.matmul %7, %9, %cst_4 {dimension_numbers = #tpu.dot_dimension_numbers<[1], [0], [0], [1], [0, 0, 1, 1], [], []>} : vector<2x1024xbf16>, vector<1024x3072xbf16>, vector<2x3072xf32> -> vector<2x3072xf32>
    %c3_i32 = arith.constant 3 : i32
    %11 = arith.muli %arg0, %c3_i32 : i32
    %12 = arith.index_cast %11 : i32 to index
    %c0_5 = arith.constant 0 : index
    %c0_6 = arith.constant 0 : index
    %13 = vector.load %arg3[%12, %c0_5, %c0_6] : memref<6x1x1024xf32, #tpu.memory_space<vmem>>, vector<3x1x1024xf32>
    %14 = vector.extract_strided_slice %10 {offsets = [0, 0], sizes = [2, 1024], strides = [1, 1]} : vector<2x3072xf32> to vector<2x1024xf32>
    %15 = vector.extract_strided_slice %13 {offsets = [0, 0, 0], sizes = [1, 1, 1024], strides = [1, 1, 1]} : vector<3x1x1024xf32> to vector<1x1x1024xf32>
    %16 = vector.shape_cast %15 : vector<1x1x1024xf32> to vector<1x1024xf32>
    %17 = vector.broadcast %16 : vector<1x1024xf32> to vector<2x1024xf32>
    %18 = arith.addf %14, %17 : vector<2x1024xf32>
    %c0_7 = arith.constant 0 : index
    %c0_8 = arith.constant 0 : index
    %c0_9 = arith.constant 0 : index
    %19 = vector.load %arg4[%c0_7, %c0_8, %c0_9] : memref<3x2x1024xf32, #tpu.memory_space<vmem>>, vector<1x2x1024xf32>
    %20 = vector.shape_cast %19 : vector<1x2x1024xf32> to vector<2x1024xf32>
    %21 = vector.shape_cast %18 : vector<2x1024xf32> to vector<1x2x1024xf32>
    tpu.vector_store %arg4[%c0_7, %c0_8, %c0_9], %21 {strides = array<i32>} : memref<3x2x1024xf32, #tpu.memory_space<vmem>>, vector<1x2x1024xf32>,
    %22 = vector.extract_strided_slice %10 {offsets = [0, 1024], sizes = [2, 1024], strides = [1, 1]} : vector<2x3072xf32> to vector<2x1024xf32>
    %23 = vector.extract_strided_slice %13 {offsets = [1, 0, 0], sizes = [1, 1, 1024], strides = [1, 1, 1]} : vector<3x1x1024xf32> to vector<1x1x1024xf32>
    %24 = vector.shape_cast %23 : vector<1x1x1024xf32> to vector<1x1024xf32>
    %25 = vector.broadcast %24 : vector<1x1024xf32> to vector<2x1024xf32>
    %26 = arith.addf %22, %25 : vector<2x1024xf32>
    %c1 = arith.constant 1 : index
    %c0_10 = arith.constant 0 : index
    %c0_11 = arith.constant 0 : index
    %27 = vector.load %arg4[%c1, %c0_10, %c0_11] : memref<3x2x1024xf32, #tpu.memory_space<vmem>>, vector<1x2x1024xf32>
    %28 = vector.shape_cast %27 : vector<1x2x1024xf32> to vector<2x1024xf32>
    %29 = vector.shape_cast %26 : vector<2x1024xf32> to vector<1x2x1024xf32>
    tpu.vector_store %arg4[%c1, %c0_10, %c0_11], %29 {strides = array<i32>} : memref<3x2x1024xf32, #tpu.memory_space<vmem>>, vector<1x2x1024xf32>,
    %30 = vector.extract_strided_slice %10 {offsets = [0, 2048], sizes = [2, 1024], strides = [1, 1]} : vector<2x3072xf32> to vector<2x1024xf32>
    %31 = vector.extract_strided_slice %13 {offsets = [2, 0, 0], sizes = [1, 1, 1024], strides = [1, 1, 1]} : vector<3x1x1024xf32> to vector<1x1x1024xf32>
    %32 = vector.shape_cast %31 : vector<1x1x1024xf32> to vector<1x1024xf32>
    %33 = vector.broadcast %32 : vector<1x1024xf32> to vector<2x1024xf32>
    %34 = arith.addf %30, %33 : vector<2x1024xf32>
    %c2 = arith.constant 2 : index
    %c0_12 = arith.constant 0 : index
    %c0_13 = arith.constant 0 : index
    %35 = vector.load %arg4[%c2, %c0_12, %c0_13] : memref<3x2x1024xf32, #tpu.memory_space<vmem>>, vector<1x2x1024xf32>
    %36 = vector.shape_cast %35 : vector<1x2x1024xf32> to vector<2x1024xf32>
    %37 = vector.shape_cast %34 : vector<2x1024xf32> to vector<1x2x1024xf32>
    tpu.vector_store %arg4[%c2, %c0_12, %c0_13], %37 {strides = array<i32>} : memref<3x2x1024xf32, #tpu.memory_space<vmem>>, vector<1x2x1024xf32>,
    return
  }
  func.func @transform_0(%arg0: i32) -> (i32, i32) {
    %c0_i32 = arith.constant 0 : i32
    %c0_i32_0 = arith.constant 0 : i32
    %c0_i32_1 = arith.constant 0 : i32
    return %c0_i32, %c0_i32_0 : i32, i32
  }
  func.func @transform_1(%arg0: i32) -> (i32, i32, i32) {
    %c0_i32 = arith.constant 0 : i32
    %c0_i32_0 = arith.constant 0 : i32
    %c0_i32_1 = arith.constant 0 : i32
    return %arg0, %c0_i32, %c0_i32_0 : i32, i32, i32
  }
  func.func @transform_2(%arg0: i32) -> (i32, i32, i32) {
    %c0_i32 = arith.constant 0 : i32
    %c0_i32_0 = arith.constant 0 : i32
    %c0_i32_1 = arith.constant 0 : i32
    %c0_i32_2 = arith.constant 0 : i32
    return %c0_i32, %c0_i32_0, %c0_i32_1 : i32, i32, i32
  }
  func.func @transform_3(%arg0: i32) -> (i32, i32, i32) {
    %c0_i32 = arith.constant 0 : i32
    %c0_i32_0 = arith.constant 0 : i32
    %c0_i32_1 = arith.constant 0 : i32
    return %arg0, %c0_i32, %c0_i32_0 : i32, i32, i32
  }
}

</mosaic_0001>

<llo_original>
// kernel: tpu_custom_call.1
$region0: #{tpu_custom_call.1}
  #allocation0 [shape = 'u32[]', space=smem, size = 0x4, offset = 0x4, fixed_abs, tag = 'smem constant byte address 0x4 - core index']
  #allocation1 [shape = 'u32[144,128]{1,0:T(1,128)}', space=vmem, size = 0x12000, scoped, tag = 'internal scratch']
  %s0 = inlined_call_operand.hbm [shape: f32[2,1024], index: 0, kind: input, shape index: {}]
  %s1 = inlined_call_operand.hbm [shape: bf16[2,1024,3072], index: 1, kind: input, shape index: {}]
  %s2 = inlined_call_operand.hbm [shape: f32[6,1,1024], index: 2, kind: input, shape index: {}]
  %s3 = inlined_call_operand.hbm [shape: f32[6,2,1024], index: 3, kind: output, shape index: {}]
  %s4 = sld [smem:[#allocation0]]
  $region57: #{tpu_custom_call.1} parent=0
    _
  %s6 = ssub.s32 1, %s4
  %s7 = scalar_select 0, %s6, %s4
  $region1: #{tpu_custom_call.1} parent=0
    #allocation2 [shape = 'u8[8192]{0}', space=vmem, size = 0x2000, scoped, tag = 'input window, operand 0, single buffered']
    #allocation3 [shape = 's32[2]{0}', space=sflag, size = 0x8, scoped, tag = 'scoped memory for tpu_custom_call.1']
    #allocation4 [shape = 's32[2]{0}', space=sflag, size = 0x8, scoped, tag = 'scoped memory for tpu_custom_call.1']
    #allocation5 [shape = 'u8[12582912]{0}', space=vmem, size = 0xc00000, scoped, tag = 'input window, operand 1']
    #allocation6 [shape = 's32[2]{0}', space=sflag, size = 0x8, scoped, tag = 'scoped memory for tpu_custom_call.1']
    #allocation7 [shape = 'u8[24576]{0}', space=vmem, size = 0x6000, scoped, tag = 'input window, operand 2, single buffered']
    #allocation8 [shape = 'u8[49152]{0}', space=vmem, size = 0xc000, scoped, tag = 'output window, operand 0']
    %8 = vsyncpa [#allocation3], 0
    %9 = vsyncpa [#allocation6], 0
    %s10 = scalar_lea.sflag [#allocation6], 1
    %11 = vsyncpa %s10, 0
    %12 = vsyncpa [#allocation4], 0
    %s13 = scalar_lea.sflag [#allocation4], 1
    %14 = vsyncpa %s13, 0
    loop: start=0, step=1, limit=4
    $region2: #{tpu_custom_call.1} parent=1 // loop_pre_header
      _
    $region3: #{tpu_custom_call.1} parent=1 // loop_header
      %s16 = sphi 0, %s20
      %p17 = scmp.ge.s32.totalorder %s16, 4
      %s24 = sphi 0, %s24
      %s26 = sphi 0, %s24
      %s27 = sphi 0, %s26
      %s41 = sphi 0, %s27
      %s47 = sphi 0, %s49
      %s50 = sphi 0, %s47
      %s51 = sphi 0, %s50
      %s67 = sphi 0, %s51
      %s71 = sphi 0, %s71
      %s73 = sphi 0, %s71
      %s74 = sphi 0, %s73
      %s88 = sphi 0, %s74
      %s94 = sphi 0, %s96
      %s97 = sphi 0, %s94
      %s98 = sphi 0, %s97
      %s114 = sphi 0, %s98
    $region4: #{tpu_custom_call.1} parent=1 // loop_header_branch
      %19 = sbr.rel (%p17) target = $region8
    $region5: #{tpu_custom_call.1} parent=1 // loop_body
      %s21 = ssub.s32 %s16, 1
      %s22 = ssub.s32 %s16, 2
      %s23 = sadd.s32 %s16, 1
      %s25 = sadd.s32 %s24, 1
      %p28 = scmp.eq.s32.totalorder %s16, 1
      %p29 = scmp.ne.s32.totalorder %s24, %s26
      %p30 = scmp.eq.s32.totalorder %s16, 0
      %p31 = por %p29, %p30
      %p32 = scmp.ne.s32.totalorder %s24, %s26
      %p33 = scmp.eq.s32.totalorder %s21, 1
      %p34 = por %p32, %p33
      %p35 = scmp.ne.s32.totalorder %s26, %s27
      %p36 = scmp.eq.s32.totalorder %s21, 0
      %p37 = por %p35, %p36
      %p38 = scmp.ne.s32.totalorder %s26, %s27
      %p39 = scmp.eq.s32.totalorder %s22, 1
      %p40 = por %p38, %p39
      %p42 = scmp.ne.s32.totalorder %s27, %s41
      %p43 = scmp.eq.s32.totalorder %s22, 0
      %p44 = por %p42, %p43
      %s45 = ssub.s32 %s16, %s23
      %p46 = scmp.eq.s32.totalorder %s45, 0
      %s48 = sadd.s32 %s47, 1
      %s49 = scalar_select %p46, %s47, %s48
      %p52 = pneg %p46
      %p53 = scmp.eq.s32.totalorder %s16, 1
      %p54 = por %p52, %p53
      %p55 = scmp.ne.s32.totalorder %s47, %s50
      %p56 = scmp.eq.s32.totalorder %s16, 0
      %p57 = por %p55, %p56
      %p58 = scmp.ne.s32.totalorder %s47, %s50
      %p59 = scmp.eq.s32.totalorder %s21, 1
      %p60 = por %p58, %p59
      %p61 = scmp.ne.s32.totalorder %s50, %s51
      %p62 = scmp.eq.s32.totalorder %s21, 0
      %p63 = por %p61, %p62
      %p64 = scmp.ne.s32.totalorder %s50, %s51
      %p65 = scmp.eq.s32.totalorder %s22, 1
      %p66 = por %p64, %p65
      %p68 = scmp.ne.s32.totalorder %s51, %s67
      %p69 = scmp.eq.s32.totalorder %s22, 0
      %p70 = por %p68, %p69
      %s72 = sadd.s32 %s71, 1
      %p75 = scmp.eq.s32.totalorder %s16, 1
      %p76 = scmp.ne.s32.totalorder %s71, %s73
      %p77 = scmp.eq.s32.totalorder %s16, 0
      %p78 = por %p76, %p77
      %p79 = scmp.ne.s32.totalorder %s71, %s73
      %p80 = scmp.eq.s32.totalorder %s21, 1
      %p81 = por %p79, %p80
      %p82 = scmp.ne.s32.totalorder %s73, %s74
      %p83 = scmp.eq.s32.totalorder %s21, 0
      %p84 = por %p82, %p83
      %p85 = scmp.ne.s32.totalorder %s73, %s74
      %p86 = scmp.eq.s32.totalorder %s22, 1
      %p87 = por %p85, %p86
      %p89 = scmp.ne.s32.totalorder %s74, %s88
      %p90 = scmp.eq.s32.totalorder %s22, 0
      %p91 = por %p89, %p90
      %s92 = ssub.s32 %s16, %s23
      %p93 = scmp.eq.s32.totalorder %s92, 0
      %s95 = sadd.s32 %s94, 1
      %s96 = scalar_select %p93, %s94, %s95
      %p99 = pneg %p93
      %p100 = scmp.eq.s32.totalorder %s16, 1
      %p101 = por %p99, %p100
      %p102 = scmp.ne.s32.totalorder %s94, %s97
      %p103 = scmp.eq.s32.totalorder %s16, 0
      %p104 = por %p102, %p103
      %p105 = scmp.ne.s32.totalorder %s94, %s97
      %p106 = scmp.eq.s32.totalorder %s21, 1
      %p107 = por %p105, %p106
      %p108 = scmp.ne.s32.totalorder %s97, %s98
      %p109 = scmp.eq.s32.totalorder %s21, 0
      %p110 = por %p108, %p109
      %p111 = scmp.ne.s32.totalorder %s97, %s98
      %p112 = scmp.eq.s32.totalorder %s22, 1
      %p113 = por %p111, %p112
      %p115 = scmp.ne.s32.totalorder %s98, %s114
      %p116 = scmp.eq.s32.totalorder %s22, 0
      %p117 = por %p115, %p116
      %p118 = scmp.le.s32.totalorder 1, %s16
      %p119 = scmp.lt.s32.totalorder %s16, 3
      %p120 = pnand %p118, %p119
      %p121 = pneg %p120
      // Predicated region
      $region9: #{tpu_custom_call.1} parent=5 // pred_check
        _
      $region10: #{tpu_custom_call.1} parent=5 // pred_check_branch
        %123 = sbr.rel (%p120) target = $region12
      $region11: #{tpu_custom_call.1} parent=5 // pred_region
        %s124 = ssub.s32 %s16, 1
        // Predicated region
        $region13: #{tpu_custom_call.1} parent=11 // pred_check
          %p125 = pneg %p37
        $region14: #{tpu_custom_call.1} parent=11 // pred_check_branch
          %127 = sbr.rel (%p125) target = $region16
        $region15: #{tpu_custom_call.1} parent=11 // pred_region
          %s129 = ssub.s32 256, 256
          %130 = vsyncadd [#allocation3], %s129
          %s132 = sshll.u32 [#allocation2], 4
          %s133 = int_to_ptr.vmem [resolvable:$true] %s132
          %135 = dma.hbm_to_vmem [thread:$0]  %s0, 256, %s133, [#allocation3]
        $region16: #{tpu_custom_call.1} parent=11 // pred_fallthru
          _
        // Predicated region
        $region17: #{tpu_custom_call.1} parent=11 // pred_check
          %p136 = pneg %p84
        $region18: #{tpu_custom_call.1} parent=11 // pred_check_branch
          %138 = sbr.rel (%p136) target = $region20
        $region19: #{tpu_custom_call.1} parent=11 // pred_region
          %s140 = ssub.s32 768, 768
          %141 = vsyncadd [#allocation6], %s140
          %s142 = sshll.u32 [#allocation7], 4
          %s143 = int_to_ptr.vmem [resolvable:$true] %s142
          %148 = dma.hbm_to_vmem [thread:$0]  %s2, 768, %s143, [#allocation6], 128, 128, 8
        $region20: #{tpu_custom_call.1} parent=11 // pred_fallthru
          _
      $region12: #{tpu_custom_call.1} parent=5 // pred_fallthru
        _
      %p149 = scmp.lt.s32.totalorder %s16, 2
      // Predicated region
      $region21: #{tpu_custom_call.1} parent=5 // pred_check
        %p150 = pneg %p149
      $region22: #{tpu_custom_call.1} parent=5 // pred_check_branch
        %152 = sbr.rel (%p150) target = $region24
      $region23: #{tpu_custom_call.1} parent=5 // pred_region
        // Predicated region
        $region25: #{tpu_custom_call.1} parent=23 // pred_check
          %p153 = pneg %p57
        $region26: #{tpu_custom_call.1} parent=23 // pred_check_branch
          %155 = sbr.rel (%p153) target = $region28
        $region27: #{tpu_custom_call.1} parent=23 // pred_region
          %s156 = sand.u32 %s16, 1
          %s157 = scalar_lea.sflag [#allocation6], %s156
          %s158 = sand.u32 %s47, 1
          %s159 = smul.addr %s158, 12288
          %s160 = scalar_lea.vmem [#allocation5], %s159
          %s162 = ssub.s32 196608, 196608
          %163 = vsyncadd %s157, %s162
          %s164 = smul.addr %s16, 3072
          %s165 = smul.addr %s164, 64
          %s166 = scalar_lea.hbm %s1, %s165
          %s167 = sshll.u32 %s160, 4
          %s168 = int_to_ptr.vmem [resolvable:$true] %s167
          %173 = dma.hbm_to_vmem [thread:$0]  %s166, 196608, %s168, %s157, 1536, 1536, 96
        $region28: #{tpu_custom_call.1} parent=23 // pred_fallthru
          _
      $region24: #{tpu_custom_call.1} parent=5 // pred_fallthru
        _
      %p174 = scmp.le.s32.totalorder 1, %s16
      %p175 = scmp.lt.s32.totalorder %s16, 3
      %p176 = pnand %p174, %p175
      %p177 = pneg %p176
      // Predicated region
      $region29: #{tpu_custom_call.1} parent=5 // pred_check
        _
      $region30: #{tpu_custom_call.1} parent=5 // pred_check_branch
        %179 = sbr.rel (%p176) target = $region32
      $region31: #{tpu_custom_call.1} parent=5 // pred_region
        %s180 = ssub.s32 %s16, 1
        // Predicated region
        $region33: #{tpu_custom_call.1} parent=31 // pred_check
          %p181 = pneg %p37
        $region34: #{tpu_custom_call.1} parent=31 // pred_check_branch
          %183 = sbr.rel (%p181) target = $region36
        $region35: #{tpu_custom_call.1} parent=31 // pred_region
          %184 = dma.done [#allocation3], 256
        $region36: #{tpu_custom_call.1} parent=31 // pred_fallthru
          _
        %s185 = sand.u32 %s21, 1
        %s186 = scalar_lea.sflag [#allocation6], %s185
        %s187 = sand.u32 %s50, 1
        %s188 = smul.addr %s187, 12288
        %s189 = scalar_lea.vmem [#allocation5], %s188
        // Predicated region
        $region37: #{tpu_custom_call.1} parent=31 // pred_check
          %p190 = pneg %p63
        $region38: #{tpu_custom_call.1} parent=31 // pred_check_branch
          %192 = sbr.rel (%p190) target = $region40
        $region39: #{tpu_custom_call.1} parent=31 // pred_region
          %193 = dma.done %s186, 196608
        $region40: #{tpu_custom_call.1} parent=31 // pred_fallthru
          _
        // Predicated region
        $region41: #{tpu_custom_call.1} parent=31 // pred_check
          %p194 = pneg %p84
        $region42: #{tpu_custom_call.1} parent=31 // pred_check_branch
          %196 = sbr.rel (%p194) target = $region44
        $region43: #{tpu_custom_call.1} parent=31 // pred_region
          %197 = dma.done [#allocation6], 768
        $region44: #{tpu_custom_call.1} parent=31 // pred_fallthru
          _
        %p198 = pneg %p37
        %p199 = pneg %p34
        %s200 = sand.u32 %s21, 1
        %s201 = scalar_lea.sflag [#allocation6], %s200
        %s202 = sand.u32 %s50, 1
        %s203 = smul.addr %s202, 12288
        %s204 = scalar_lea.vmem [#allocation5], %s203
        %p205 = pneg %p63
        %p206 = pneg %p60
        %p207 = pneg %p84
        %p208 = pneg %p81
        %p209 = pneg %p110
        %p210 = pneg %p107
        %s211 = sand.u32 %s97, 1
        %s212 = scalar_lea.sflag [#allocation4], %s211
        %s213 = sand.u32 %s97, 1
        %s214 = smul.addr %s213, 48
        %s215 = scalar_lea.vmem [#allocation8], %s214
        %s216 = smul.u32 3, %s21
        %v217 = vld [vmem:[#allocation2] sm:$0xff]
        %v218 = vld [vmem:[#allocation2 + $0x8] sm:$0xff]
        %v219 = vxor.u32 %v217, 2147483648
        %v220 = vxor.u32 %v218, 2147483648
        %v221 = vmul.f32 %v219, 1.442695
        %v222 = vpow.pop %v221
        %v223 = vmul.f32 %v220, 1.442695
        %v224 = vpow.pop %v223
        %v225 = vadd.f32 %v222, 1.0
        %v226 = vadd.f32 %v224, 1.0
        %v227 = vrcp.pop %v225
        %v228 = vmul.f32 1.0, %v227
        %v229 = vrcp.pop %v226
        %v230 = vmul.f32 1.0, %v229
        %v231 = vmul.f32 %v217, %v228
        %v232 = vmul.f32 %v218, %v230
        %v235 = vcombine.high %v231, %v231
        %v237 = vunpack.c.l.s4 1983009808
        %v238 = vunpack.c.0.s8 %v237
        %v239 = vlaneseq
        %v240 = vshrl.u32 %v239, 7
        %v241 = vsub.s32 %v238, %v240
        %v242 = vrot.slane %v231, %v241
        %v244 = vunpack.c.l.s4 1983009808
        %v245 = vunpack.c.0.s8 %v244
        %v246 = vlaneseq
        %v247 = vshrl.u32 %v246, 7
        %v248 = vsub.s32 %v245, %v247
        %v249 = vrot.slane %v235, %v248
        %v250 = vcombine.high %v242, %v242
        %v251 = vcombine.high %v249, %v249
        %v252 = vcombine.high %v232, %v232
        %v254 = vunpack.c.l.s4 1983009808
        %v255 = vunpack.c.0.s8 %v254
        %v256 = vlaneseq
        %v257 = vshrl.u32 %v256, 7
        %v258 = vsub.s32 %v255, %v257
        %v259 = vrot.slane %v232, %v258
        %v261 = vunpack.c.l.s4 1983009808
        %v262 = vunpack.c.0.s8 %v261
        %v263 = vlaneseq
        %v264 = vshrl.u32 %v263, 7
        %v265 = vsub.s32 %v262, %v264
        %v266 = vrot.slane %v252, %v265
        %v267 = vcombine.high %v259, %v259
        %v268 = vcombine.high %v266, %v266
        %v277 = vpack.c.bf16 %v242, %v242
        %v278 = vpack.c.bf16 %v250, %v250
        %v279 = vpack.c.bf16 %v249, %v249
        %v280 = vpack.c.bf16 %v251, %v251
        %v281 = vpack.c.bf16 %v259, %v259
        %v282 = vpack.c.bf16 %v267, %v267
        %v283 = vpack.c.bf16 %v266, %v266
        %v284 = vpack.c.bf16 %v268, %v268
        %v285 = vld [vmem:[%s189] sm:$0xff]
        %v286 = vld [vmem:[%s189 + $0x8] sm:$0xff]
        %v287 = vld [vmem:[%s189 + $0x10] sm:$0xff]
        %v288 = vld [vmem:[%s189 + $0x18] sm:$0xff]
        %v289 = vld [vmem:[%s189 + $0x20] sm:$0xff]
        %v290 = vld [vmem:[%s189 + $0x28] sm:$0xff]
        %v291 = vld [vmem:[%s189 + $0x30] sm:$0xff]
        %v292 = vld [vmem:[%s189 + $0x38] sm:$0xff]
        %v293 = vld [vmem:[%s189 + $0x40] sm:$0xff]
        %v294 = vld [vmem:[%s189 + $0x48] sm:$0xff]
        %v295 = vld [vmem:[%s189 + $0x50] sm:$0xff]
        %v296 = vld [vmem:[%s189 + $0x58] sm:$0xff]
        %v297 = vld [vmem:[%s189 + $0x60] sm:$0xff]
        %v298 = vld [vmem:[%s189 + $0x68] sm:$0xff]
        %v299 = vld [vmem:[%s189 + $0x70] sm:$0xff]
        %v300 = vld [vmem:[%s189 + $0x78] sm:$0xff]
        %v301 = vld [vmem:[%s189 + $0x80] sm:$0xff]
        %v302 = vld [vmem:[%s189 + $0x88] sm:$0xff]
        %v303 = vld [vmem:[%s189 + $0x90] sm:$0xff]
        %v304 = vld [vmem:[%s189 + $0x98] sm:$0xff]
        %v305 = vld [vmem:[%s189 + $0xa0] sm:$0xff]
        %v306 = vld [vmem:[%s189 + $0xa8] sm:$0xff]
        %v307 = vld [vmem:[%s189 + $0xb0] sm:$0xff]
        %v308 = vld [vmem:[%s189 + $0xb8] sm:$0xff]
        %v309 = vld [vmem:[%s189 + $0xc0] sm:$0xff]
        %v310 = vld [vmem:[%s189 + $0xc8] sm:$0xff]
        %v311 = vld [vmem:[%s189 + $0xd0] sm:$0xff]
        %v312 = vld [vmem:[%s189 + $0xd8] sm:$0xff]
        %v313 = vld [vmem:[%s189 + $0xe0] sm:$0xff]
        %v314 = vld [vmem:[%s189 + $0xe8] sm:$0xff]
        %v315 = vld [vmem:[%s189 + $0xf0] sm:$0xff]
        %v316 = vld [vmem:[%s189 + $0xf8] sm:$0xff]
        %v317 = vld [vmem:[%s189 + $0x100] sm:$0xff]
        %v318 = vld [vmem:[%s189 + $0x108] sm:$0xff]
        %v319 = vld [vmem:[%s189 + $0x110] sm:$0xff]
        %v320 = vld [vmem:[%s189 + $0x118] sm:$0xff]
        %v321 = vld [vmem:[%s189 + $0x120] sm:$0xff]
        %v322 = vld [vmem:[%s189 + $0x128] sm:$0xff]
        %v323 = vld [vmem:[%s189 + $0x130] sm:$0xff]
        %v324 = vld [vmem:[%s189 + $0x138] sm:$0xff]
        %v325 = vld [vmem:[%s189 + $0x140] sm:$0xff]
        %v326 = vld [vmem:[%s189 + $0x148] sm:$0xff]
        %v327 = vld [vmem:[%s189 + $0x150] sm:$0xff]
        %v328 = vld [vmem:[%s189 + $0x158] sm:$0xff]
        %v329 = vld [vmem:[%s189 + $0x160] sm:$0xff]
        %v330 = vld [vmem:[%s189 + $0x168] sm:$0xff]
        %v331 = vld [vmem:[%s189 + $0x170] sm:$0xff]
        %v332 = vld [vmem:[%s189 + $0x178] sm:$0xff]
        %v333 = vld [vmem:[%s189 + $0x180] sm:$0xff]
        %v334 = vld [vmem:[%s189 + $0x188] sm:$0xff]
        %v335 = vld [vmem:[%s189 + $0x190] sm:$0xff]
        %v336 = vld [vmem:[%s189 + $0x198] sm:$0xff]
        %v337 = vld [vmem:[%s189 + $0x1a0] sm:$0xff]
        %v338 = vld [vmem:[%s189 + $0x1a8] sm:$0xff]
        %v339 = vld [vmem:[%s189 + $0x1b0] sm:$0xff]
        %v340 = vld [vmem:[%s189 + $0x1b8] sm:$0xff]
        %v341 = vld [vmem:[%s189 + $0x1c0] sm:$0xff]
        %v342 = vld [vmem:[%s189 + $0x1c8] sm:$0xff]
        %v343 = vld [vmem:[%s189 + $0x1d0] sm:$0xff]
        %v344 = vld [vmem:[%s189 + $0x1d8] sm:$0xff]
        %v345 = vld [vmem:[%s189 + $0x1e0] sm:$0xff]
        %v346 = vld [vmem:[%s189 + $0x1e8] sm:$0xff]
        %v347 = vld [vmem:[%s189 + $0x1f0] sm:$0xff]
        %v348 = vld [vmem:[%s189 + $0x1f8] sm:$0xff]
        %v349 = vld [vmem:[%s189 + $0x200] sm:$0xff]
        %v350 = vld [vmem:[%s189 + $0x208] sm:$0xff]
        %v351 = vld [vmem:[%s189 + $0x210] sm:$0xff]
        %v352 = vld [vmem:[%s189 + $0x218] sm:$0xff]
        %v353 = vld [vmem:[%s189 + $0x220] sm:$0xff]
        %v354 = vld [vmem:[%s189 + $0x228] sm:$0xff]
        %v355 = vld [vmem:[%s189 + $0x230] sm:$0xff]
        %v356 = vld [vmem:[%s189 + $0x238] sm:$0xff]
        %v357 = vld [vmem:[%s189 + $0x240] sm:$0xff]
        %v358 = vld [vmem:[%s189 + $0x248] sm:$0xff]
        %v359 = vld [vmem:[%s189 + $0x250] sm:$0xff]
        %v360 = vld [vmem:[%s189 + $0x258] sm:$0xff]
        %v361 = vld [vmem:[%s189 + $0x260] sm:$0xff]
        %v362 = vld [vmem:[%s189 + $0x268] sm:$0xff]
        %v363 = vld [vmem:[%s189 + $0x270] sm:$0xff]
        %v364 = vld [vmem:[%s189 + $0x278] sm:$0xff]
        %v365 = vld [vmem:[%s189 + $0x280] sm:$0xff]
        %v366 = vld [vmem:[%s189 + $0x288] sm:$0xff]
        %v367 = vld [vmem:[%s189 + $0x290] sm:$0xff]
        %v368 = vld [vmem:[%s189 + $0x298] sm:$0xff]
        %v369 = vld [vmem:[%s189 + $0x2a0] sm:$0xff]
        %v370 = vld [vmem:[%s189 + $0x2a8] sm:$0xff]
        %v371 = vld [vmem:[%s189 + $0x2b0] sm:$0xff]
        %v372 = vld [vmem:[%s189 + $0x2b8] sm:$0xff]
        %v373 = vld [vmem:[%s189 + $0x2c0] sm:$0xff]
        %v374 = vld [vmem:[%s189 + $0x2c8] sm:$0xff]
        %v375 = vld [vmem:[%s189 + $0x2d0] sm:$0xff]
        %v376 = vld [vmem:[%s189 + $0x2d8] sm:$0xff]
        %v377 = vld [vmem:[%s189 + $0x2e0] sm:$0xff]
        %v378 = vld [vmem:[%s189 + $0x2e8] sm:$0xff]
        %v379 = vld [vmem:[%s189 + $0x2f0] sm:$0xff]
        %v380 = vld [vmem:[%s189 + $0x2f8] sm:$0xff]
        %v381 = vld [vmem:[%s189 + $0x300] sm:$0xff]
        %v382 = vld [vmem:[%s189 + $0x308] sm:$0xff]
        %v383 = vld [vmem:[%s189 + $0x310] sm:$0xff]
        %v384 = vld [vmem:[%s189 + $0x318] sm:$0xff]
        %v385 = vld [vmem:[%s189 + $0x320] sm:$0xff]
        %v386 = vld [vmem:[%s189 + $0x328] sm:$0xff]
        %v387 = vld [vmem:[%s189 + $0x330] sm:$0xff]
        %v388 = vld [vmem:[%s189 + $0x338] sm:$0xff]
        %v389 = vld [vmem:[%s189 + $0x340] sm:$0xff]
        %v390 = vld [vmem:[%s189 + $0x348] sm:$0xff]
        %v391 = vld [vmem:[%s189 + $0x350] sm:$0xff]
        %v392 = vld [vmem:[%s189 + $0x358] sm:$0xff]
        %v393 = vld [vmem:[%s189 + $0x360] sm:$0xff]
        %v394 = vld [vmem:[%s189 + $0x368] sm:$0xff]
        %v395 = vld [vmem:[%s189 + $0x370] sm:$0xff]
        %v396 = vld [vmem:[%s189 + $0x378] sm:$0xff]
        %v397 = vld [vmem:[%s189 + $0x380] sm:$0xff]
        %v398 = vld [vmem:[%s189 + $0x388] sm:$0xff]
        %v399 = vld [vmem:[%s189 + $0x390] sm:$0xff]
        %v400 = vld [vmem:[%s189 + $0x398] sm:$0xff]
        %v401 = vld [vmem:[%s189 + $0x3a0] sm:$0xff]
        %v402 = vld [vmem:[%s189 + $0x3a8] sm:$0xff]
        %v403 = vld [vmem:[%s189 + $0x3b0] sm:$0xff]
        %v404 = vld [vmem:[%s189 + $0x3b8] sm:$0xff]
        %v405 = vld [vmem:[%s189 + $0x3c0] sm:$0xff]
        %v406 = vld [vmem:[%s189 + $0x3c8] sm:$0xff]
        %v407 = vld [vmem:[%s189 + $0x3d0] sm:$0xff]
        %v408 = vld [vmem:[%s189 + $0x3d8] sm:$0xff]
        %v409 = vld [vmem:[%s189 + $0x3e0] sm:$0xff]
        %v410 = vld [vmem:[%s189 + $0x3e8] sm:$0xff]
        %v411 = vld [vmem:[%s189 + $0x3f0] sm:$0xff]
        %v412 = vld [vmem:[%s189 + $0x3f8] sm:$0xff]
        %v413 = vld [vmem:[%s189 + $0x400] sm:$0xff]
        %v414 = vld [vmem:[%s189 + $0x408] sm:$0xff]
        %v415 = vld [vmem:[%s189 + $0x410] sm:$0xff]
        %v416 = vld [vmem:[%s189 + $0x418] sm:$0xff]
        %v417 = vld [vmem:[%s189 + $0x420] sm:$0xff]
        %v418 = vld [vmem:[%s189 + $0x428] sm:$0xff]
        %v419 = vld [vmem:[%s189 + $0x430] sm:$0xff]
        %v420 = vld [vmem:[%s189 + $0x438] sm:$0xff]
        %v421 = vld [vmem:[%s189 + $0x440] sm:$0xff]
        %v422 = vld [vmem:[%s189 + $0x448] sm:$0xff]
        %v423 = vld [vmem:[%s189 + $0x450] sm:$0xff]
        %v424 = vld [vmem:[%s189 + $0x458] sm:$0xff]
        %v425 = vld [vmem:[%s189 + $0x460] sm:$0xff]
        %v426 = vld [vmem:[%s189 + $0x468] sm:$0xff]
        %v427 = vld [vmem:[%s189 + $0x470] sm:$0xff]
        %v428 = vld [vmem:[%s189 + $0x478] sm:$0xff]
        %v429 = vld [vmem:[%s189 + $0x480] sm:$0xff]
        %v430 = vld [vmem:[%s189 + $0x488] sm:$0xff]
        %v431 = vld [vmem:[%s189 + $0x490] sm:$0xff]
        %v432 = vld [vmem:[%s189 + $0x498] sm:$0xff]
        %v433 = vld [vmem:[%s189 + $0x4a0] sm:$0xff]
        %v434 = vld [vmem:[%s189 + $0x4a8] sm:$0xff]
        %v435 = vld [vmem:[%s189 + $0x4b0] sm:$0xff]
        %v436 = vld [vmem:[%s189 + $0x4b8] sm:$0xff]
        %v437 = vld [vmem:[%s189 + $0x4c0] sm:$0xff]
        %v438 = vld [vmem:[%s189 + $0x4c8] sm:$0xff]
        %v439 = vld [vmem:[%s189 + $0x4d0] sm:$0xff]
        %v440 = vld [vmem:[%s189 + $0x4d8] sm:$0xff]
        %v441 = vld [vmem:[%s189 + $0x4e0] sm:$0xff]
        %v442 = vld [vmem:[%s189 + $0x4e8] sm:$0xff]
        %v443 = vld [vmem:[%s189 + $0x4f0] sm:$0xff]
        %v444 = vld [vmem:[%s189 + $0x4f8] sm:$0xff]
        %v445 = vld [vmem:[%s189 + $0x500] sm:$0xff]
        %v446 = vld [vmem:[%s189 + $0x508] sm:$0xff]
        %v447 = vld [vmem:[%s189 + $0x510] sm:$0xff]
        %v448 = vld [vmem:[%s189 + $0x518] sm:$0xff]
        %v449 = vld [vmem:[%s189 + $0x520] sm:$0xff]
        %v450 = vld [vmem:[%s189 + $0x528] sm:$0xff]
        %v451 = vld [vmem:[%s189 + $0x530] sm:$0xff]
        %v452 = vld [vmem:[%s189 + $0x538] sm:$0xff]
        %v453 = vld [vmem:[%s189 + $0x540] sm:$0xff]
        %v454 = vld [vmem:[%s189 + $0x548] sm:$0xff]
        %v455 = vld [vmem:[%s189 + $0x550] sm:$0xff]
        %v456 = vld [vmem:[%s189 + $0x558] sm:$0xff]
        %v457 = vld [vmem:[%s189 + $0x560] sm:$0xff]
        %v458 = vld [vmem:[%s189 + $0x568] sm:$0xff]
        %v459 = vld [vmem:[%s189 + $0x570] sm:$0xff]
        %v460 = vld [vmem:[%s189 + $0x578] sm:$0xff]
        %v461 = vld [vmem:[%s189 + $0x580] sm:$0xff]
        %v462 = vld [vmem:[%s189 + $0x588] sm:$0xff]
        %v463 = vld [vmem:[%s189 + $0x590] sm:$0xff]
        %v464 = vld [vmem:[%s189 + $0x598] sm:$0xff]
        %v465 = vld [vmem:[%s189 + $0x5a0] sm:$0xff]
        %v466 = vld [vmem:[%s189 + $0x5a8] sm:$0xff]
        %v467 = vld [vmem:[%s189 + $0x5b0] sm:$0xff]
        %v468 = vld [vmem:[%s189 + $0x5b8] sm:$0xff]
        %v469 = vld [vmem:[%s189 + $0x5c0] sm:$0xff]
        %v470 = vld [vmem:[%s189 + $0x5c8] sm:$0xff]
        %v471 = vld [vmem:[%s189 + $0x5d0] sm:$0xff]
        %v472 = vld [vmem:[%s189 + $0x5d8] sm:$0xff]
        %v473 = vld [vmem:[%s189 + $0x5e0] sm:$0xff]
        %v474 = vld [vmem:[%s189 + $0x5e8] sm:$0xff]
        %v475 = vld [vmem:[%s189 + $0x5f0] sm:$0xff]
        %v476 = vld [vmem:[%s189 + $0x5f8] sm:$0xff]
        %v477 = vld [vmem:[%s189 + $0x600] sm:$0xff]
        %v478 = vld [vmem:[%s189 + $0x608] sm:$0xff]
        %v479 = vld [vmem:[%s189 + $0x610] sm:$0xff]
        %v480 = vld [vmem:[%s189 + $0x618] sm:$0xff]
        %v481 = vld [vmem:[%s189 + $0x620] sm:$0xff]
        %v482 = vld [vmem:[%s189 + $0x628] sm:$0xff]
        %v483 = vld [vmem:[%s189 + $0x630] sm:$0xff]
        %v484 = vld [vmem:[%s189 + $0x638] sm:$0xff]
        %v485 = vld [vmem:[%s189 + $0x640] sm:$0xff]
        %v486 = vld [vmem:[%s189 + $0x648] sm:$0xff]
        %v487 = vld [vmem:[%s189 + $0x650] sm:$0xff]
        %v488 = vld [vmem:[%s189 + $0x658] sm:$0xff]
        %v489 = vld [vmem:[%s189 + $0x660] sm:$0xff]
        %v490 = vld [vmem:[%s189 + $0x668] sm:$0xff]
        %v491 = vld [vmem:[%s189 + $0x670] sm:$0xff]
        %v492 = vld [vmem:[%s189 + $0x678] sm:$0xff]
        %v493 = vld [vmem:[%s189 + $0x680] sm:$0xff]
        %v494 = vld [vmem:[%s189 + $0x688] sm:$0xff]
        %v495 = vld [vmem:[%s189 + $0x690] sm:$0xff]
        %v496 = vld [vmem:[%s189 + $0x698] sm:$0xff]
        %v497 = vld [vmem:[%s189 + $0x6a0] sm:$0xff]
        %v498 = vld [vmem:[%s189 + $0x6a8] sm:$0xff]
        %v499 = vld [vmem:[%s189 + $0x6b0] sm:$0xff]
        %v500 = vld [vmem:[%s189 + $0x6b8] sm:$0xff]
        %v501 = vld [vmem:[%s189 + $0x6c0] sm:$0xff]
        %v502 = vld [vmem:[%s189 + $0x6c8] sm:$0xff]
        %v503 = vld [vmem:[%s189 + $0x6d0] sm:$0xff]
        %v504 = vld [vmem:[%s189 + $0x6d8] sm:$0xff]
        %v505 = vld [vmem:[%s189 + $0x6e0] sm:$0xff]
        %v506 = vld [vmem:[%s189 + $0x6e8] sm:$0xff]
        %v507 = vld [vmem:[%s189 + $0x6f0] sm:$0xff]
        %v508 = vld [vmem:[%s189 + $0x6f8] sm:$0xff]
        %v509 = vld [vmem:[%s189 + $0x700] sm:$0xff]
        %v510 = vld [vmem:[%s189 + $0x708] sm:$0xff]
        %v511 = vld [vmem:[%s189 + $0x710] sm:$0xff]
        %v512 = vld [vmem:[%s189 + $0x718] sm:$0xff]
        %v513 = vld [vmem:[%s189 + $0x720] sm:$0xff]
        %v514 = vld [vmem:[%s189 + $0x728] sm:$0xff]
        %v515 = vld [vmem:[%s189 + $0x730] sm:$0xff]
        %v516 = vld [vmem:[%s189 + $0x738] sm:$0xff]
        %v517 = vld [vmem:[%s189 + $0x740] sm:$0xff]
        %v518 = vld [vmem:[%s189 + $0x748] sm:$0xff]
        %v519 = vld [vmem:[%s189 + $0x750] sm:$0xff]
        %v520 = vld [vmem:[%s189 + $0x758] sm:$0xff]
        %v521 = vld [vmem:[%s189 + $0x760] sm:$0xff]
        %v522 = vld [vmem:[%s189 + $0x768] sm:$0xff]
        %v523 = vld [vmem:[%s189 + $0x770] sm:$0xff]
        %v524 = vld [vmem:[%s189 + $0x778] sm:$0xff]
        %v525 = vld [vmem:[%s189 + $0x780] sm:$0xff]
        %v526 = vld [vmem:[%s189 + $0x788] sm:$0xff]
        %v527 = vld [vmem:[%s189 + $0x790] sm:$0xff]
        %v528 = vld [vmem:[%s189 + $0x798] sm:$0xff]
        %v529 = vld [vmem:[%s189 + $0x7a0] sm:$0xff]
        %v530 = vld [vmem:[%s189 + $0x7a8] sm:$0xff]
        %v531 = vld [vmem:[%s189 + $0x7b0] sm:$0xff]
        %v532 = vld [vmem:[%s189 + $0x7b8] sm:$0xff]
        %v533 = vld [vmem:[%s189 + $0x7c0] sm:$0xff]
        %v534 = vld [vmem:[%s189 + $0x7c8] sm:$0xff]
        %v535 = vld [vmem:[%s189 + $0x7d0] sm:$0xff]
        %v536 = vld [vmem:[%s189 + $0x7d8] sm:$0xff]
        %v537 = vld [vmem:[%s189 + $0x7e0] sm:$0xff]
        %v538 = vld [vmem:[%s189 + $0x7e8] sm:$0xff]
        %v539 = vld [vmem:[%s189 + $0x7f0] sm:$0xff]
        %v540 = vld [vmem:[%s189 + $0x7f8] sm:$0xff]
        %v541 = vld [vmem:[%s189 + $0x800] sm:$0xff]
        %v542 = vld [vmem:[%s189 + $0x808] sm:$0xff]
        %v543 = vld [vmem:[%s189 + $0x810] sm:$0xff]
        %v544 = vld [vmem:[%s189 + $0x818] sm:$0xff]
        %v545 = vld [vmem:[%s189 + $0x820] sm:$0xff]
        %v546 = vld [vmem:[%s189 + $0x828] sm:$0xff]
        %v547 = vld [vmem:[%s189 + $0x830] sm:$0xff]
        %v548 = vld [vmem:[%s189 + $0x838] sm:$0xff]
        %v549 = vld [vmem:[%s189 + $0x840] sm:$0xff]
        %v550 = vld [vmem:[%s189 + $0x848] sm:$0xff]
        %v551 = vld [vmem:[%s189 + $0x850] sm:$0xff]
        %v552 = vld [vmem:[%s189 + $0x858] sm:$0xff]
        %v553 = vld [vmem:[%s189 + $0x860] sm:$0xff]
        %v554 = vld [vmem:[%s189 + $0x868] sm:$0xff]
        %v555 = vld [vmem:[%s189 + $0x870] sm:$0xff]
        %v556 = vld [vmem:[%s189 + $0x878] sm:$0xff]
        %v557 = vld [vmem:[%s189 + $0x880] sm:$0xff]
        %v558 = vld [vmem:[%s189 + $0x888] sm:$0xff]
        %v559 = vld [vmem:[%s189 + $0x890] sm:$0xff]
        %v560 = vld [vmem:[%s189 + $0x898] sm:$0xff]
        %v561 = vld [vmem:[%s189 + $0x8a0] sm:$0xff]
        %v562 = vld [vmem:[%s189 + $0x8a8] sm:$0xff]
        %v563 = vld [vmem:[%s189 + $0x8b0] sm:$0xff]
        %v564 = vld [vmem:[%s189 + $0x8b8] sm:$0xff]
        %v565 = vld [vmem:[%s189 + $0x8c0] sm:$0xff]
        %v566 = vld [vmem:[%s189 + $0x8c8] sm:$0xff]
        %v567 = vld [vmem:[%s189 + $0x8d0] sm:$0xff]
        %v568 = vld [vmem:[%s189 + $0x8d8] sm:$0xff]
        %v569 = vld [vmem:[%s189 + $0x8e0] sm:$0xff]
        %v570 = vld [vmem:[%s189 + $0x8e8] sm:$0xff]
        %v571 = vld [vmem:[%s189 + $0x8f0] sm:$0xff]
        %v572 = vld [vmem:[%s189 + $0x8f8] sm:$0xff]
        %v573 = vld [vmem:[%s189 + $0x900] sm:$0xff]
        %v574 = vld [vmem:[%s189 + $0x908] sm:$0xff]
        %v575 = vld [vmem:[%s189 + $0x910] sm:$0xff]
        %v576 = vld [vmem:[%s189 + $0x918] sm:$0xff]
        %v577 = vld [vmem:[%s189 + $0x920] sm:$0xff]
        %v578 = vld [vmem:[%s189 + $0x928] sm:$0xff]
        %v579 = vld [vmem:[%s189 + $0x930] sm:$0xff]
        %v580 = vld [vmem:[%s189 + $0x938] sm:$0xff]
        %v581 = vld [vmem:[%s189 + $0x940] sm:$0xff]
        %v582 = vld [vmem:[%s189 + $0x948] sm:$0xff]
        %v583 = vld [vmem:[%s189 + $0x950] sm:$0xff]
        %v584 = vld [vmem:[%s189 + $0x958] sm:$0xff]
        %v585 = vld [vmem:[%s189 + $0x960] sm:$0xff]
        %v586 = vld [vmem:[%s189 + $0x968] sm:$0xff]
        %v587 = vld [vmem:[%s189 + $0x970] sm:$0xff]
        %v588 = vld [vmem:[%s189 + $0x978] sm:$0xff]
        %v589 = vld [vmem:[%s189 + $0x980] sm:$0xff]
        %v590 = vld [vmem:[%s189 + $0x988] sm:$0xff]
        %v591 = vld [vmem:[%s189 + $0x990] sm:$0xff]
        %v592 = vld [vmem:[%s189 + $0x998] sm:$0xff]
        %v593 = vld [vmem:[%s189 + $0x9a0] sm:$0xff]
        %v594 = vld [vmem:[%s189 + $0x9a8] sm:$0xff]
        %v595 = vld [vmem:[%s189 + $0x9b0] sm:$0xff]
        %v596 = vld [vmem:[%s189 + $0x9b8] sm:$0xff]
        %v597 = vld [vmem:[%s189 + $0x9c0] sm:$0xff]
        %v598 = vld [vmem:[%s189 + $0x9c8] sm:$0xff]
        %v599 = vld [vmem:[%s189 + $0x9d0] sm:$0xff]
        %v600 = vld [vmem:[%s189 + $0x9d8] sm:$0xff]
        %v601 = vld [vmem:[%s189 + $0x9e0] sm:$0xff]
        %v602 = vld [vmem:[%s189 + $0x9e8] sm:$0xff]
        %v603 = vld [vmem:[%s189 + $0x9f0] sm:$0xff]
        %v604 = vld [vmem:[%s189 + $0x9f8] sm:$0xff]
        %v605 = vld [vmem:[%s189 + $0xa00] sm:$0xff]
        %v606 = vld [vmem:[%s189 + $0xa08] sm:$0xff]
        %v607 = vld [vmem:[%s189 + $0xa10] sm:$0xff]
        %v608 = vld [vmem:[%s189 + $0xa18] sm:$0xff]
        %v609 = vld [vmem:[%s189 + $0xa20] sm:$0xff]
        %v610 = vld [vmem:[%s189 + $0xa28] sm:$0xff]
        %v611 = vld [vmem:[%s189 + $0xa30] sm:$0xff]
        %v612 = vld [vmem:[%s189 + $0xa38] sm:$0xff]
        %v613 = vld [vmem:[%s189 + $0xa40] sm:$0xff]
        %v614 = vld [vmem:[%s189 + $0xa48] sm:$0xff]
        %v615 = vld [vmem:[%s189 + $0xa50] sm:$0xff]
        %v616 = vld [vmem:[%s189 + $0xa58] sm:$0xff]
        %v617 = vld [vmem:[%s189 + $0xa60] sm:$0xff]
        %v618 = vld [vmem:[%s189 + $0xa68] sm:$0xff]
        %v619 = vld [vmem:[%s189 + $0xa70] sm:$0xff]
        %v620 = vld [vmem:[%s189 + $0xa78] sm:$0xff]
        %v621 = vld [vmem:[%s189 + $0xa80] sm:$0xff]
        %v622 = vld [vmem:[%s189 + $0xa88] sm:$0xff]
        %v623 = vld [vmem:[%s189 + $0xa90] sm:$0xff]
        %v624 = vld [vmem:[%s189 + $0xa98] sm:$0xff]
        %v625 = vld [vmem:[%s189 + $0xaa0] sm:$0xff]
        %v626 = vld [vmem:[%s189 + $0xaa8] sm:$0xff]
        %v627 = vld [vmem:[%s189 + $0xab0] sm:$0xff]
        %v628 = vld [vmem:[%s189 + $0xab8] sm:$0xff]
        %v629 = vld [vmem:[%s189 + $0xac0] sm:$0xff]
        %v630 = vld [vmem:[%s189 + $0xac8] sm:$0xff]
        %v631 = vld [vmem:[%s189 + $0xad0] sm:$0xff]
        %v632 = vld [vmem:[%s189 + $0xad8] sm:$0xff]
        %v633 = vld [vmem:[%s189 + $0xae0] sm:$0xff]
        %v634 = vld [vmem:[%s189 + $0xae8] sm:$0xff]
        %v635 = vld [vmem:[%s189 + $0xaf0] sm:$0xff]
        %v636 = vld [vmem:[%s189 + $0xaf8] sm:$0xff]
        %v637 = vld [vmem:[%s189 + $0xb00] sm:$0xff]
        %v638 = vld [vmem:[%s189 + $0xb08] sm:$0xff]
        %v639 = vld [vmem:[%s189 + $0xb10] sm:$0xff]
        %v640 = vld [vmem:[%s189 + $0xb18] sm:$0xff]
        %v641 = vld [vmem:[%s189 + $0xb20] sm:$0xff]
        %v642 = vld [vmem:[%s189 + $0xb28] sm:$0xff]
        %v643 = vld [vmem:[%s189 + $0xb30] sm:$0xff]
        %v644 = vld [vmem:[%s189 + $0xb38] sm:$0xff]
        %v645 = vld [vmem:[%s189 + $0xb40] sm:$0xff]
        %v646 = vld [vmem:[%s189 + $0xb48] sm:$0xff]
        %v647 = vld [vmem:[%s189 + $0xb50] sm:$0xff]
        %v648 = vld [vmem:[%s189 + $0xb58] sm:$0xff]
        %v649 = vld [vmem:[%s189 + $0xb60] sm:$0xff]
        %v650 = vld [vmem:[%s189 + $0xb68] sm:$0xff]
        %v651 = vld [vmem:[%s189 + $0xb70] sm:$0xff]
        %v652 = vld [vmem:[%s189 + $0xb78] sm:$0xff]
        %v653 = vld [vmem:[%s189 + $0xb80] sm:$0xff]
        %v654 = vld [vmem:[%s189 + $0xb88] sm:$0xff]
        %v655 = vld [vmem:[%s189 + $0xb90] sm:$0xff]
        %v656 = vld [vmem:[%s189 + $0xb98] sm:$0xff]
        %v657 = vld [vmem:[%s189 + $0xba0] sm:$0xff]
        %v658 = vld [vmem:[%s189 + $0xba8] sm:$0xff]
        %v659 = vld [vmem:[%s189 + $0xbb0] sm:$0xff]
        %v660 = vld [vmem:[%s189 + $0xbb8] sm:$0xff]
        %v661 = vld [vmem:[%s189 + $0xbc0] sm:$0xff]
        %v662 = vld [vmem:[%s189 + $0xbc8] sm:$0xff]
        %v663 = vld [vmem:[%s189 + $0xbd0] sm:$0xff]
        %v664 = vld [vmem:[%s189 + $0xbd8] sm:$0xff]
        %v665 = vld [vmem:[%s189 + $0xbe0] sm:$0xff]
        %v666 = vld [vmem:[%s189 + $0xbe8] sm:$0xff]
        %v667 = vld [vmem:[%s189 + $0xbf0] sm:$0xff]
        %v668 = vld [vmem:[%s189 + $0xbf8] sm:$0xff]
        %v669 = vld [vmem:[%s189 + $0xc00] sm:$0xff]
        %v670 = vld [vmem:[%s189 + $0xc08] sm:$0xff]
        %v671 = vld [vmem:[%s189 + $0xc10] sm:$0xff]
        %v672 = vld [vmem:[%s189 + $0xc18] sm:$0xff]
        %v673 = vld [vmem:[%s189 + $0xc20] sm:$0xff]
        %v674 = vld [vmem:[%s189 + $0xc28] sm:$0xff]
        %v675 = vld [vmem:[%s189 + $0xc30] sm:$0xff]
        %v676 = vld [vmem:[%s189 + $0xc38] sm:$0xff]
        %v677 = vld [vmem:[%s189 + $0xc40] sm:$0xff]
        %v678 = vld [vmem:[%s189 + $0xc48] sm:$0xff]
        %v679 = vld [vmem:[%s189 + $0xc50] sm:$0xff]
        %v680 = vld [vmem:[%s189 + $0xc58] sm:$0xff]
        %v681 = vld [vmem:[%s189 + $0xc60] sm:$0xff]
        %v682 = vld [vmem:[%s189 + $0xc68] sm:$0xff]
        %v683 = vld [vmem:[%s189 + $0xc70] sm:$0xff]
        %v684 = vld [vmem:[%s189 + $0xc78] sm:$0xff]
        %v685 = vld [vmem:[%s189 + $0xc80] sm:$0xff]
        %v686 = vld [vmem:[%s189 + $0xc88] sm:$0xff]
        %v687 = vld [vmem:[%s189 + $0xc90] sm:$0xff]
        %v688 = vld [vmem:[%s189 + $0xc98] sm:$0xff]
        %v689 = vld [vmem:[%s189 + $0xca0] sm:$0xff]
        %v690 = vld [vmem:[%s189 + $0xca8] sm:$0xff]
        %v691 = vld [vmem:[%s189 + $0xcb0] sm:$0xff]
        %v692 = vld [vmem:[%s189 + $0xcb8] sm:$0xff]
        %v693 = vld [vmem:[%s189 + $0xcc0] sm:$0xff]
        %v694 = vld [vmem:[%s189 + $0xcc8] sm:$0xff]
        %v695 = vld [vmem:[%s189 + $0xcd0] sm:$0xff]
        %v696 = vld [vmem:[%s189 + $0xcd8] sm:$0xff]
        %v697 = vld [vmem:[%s189 + $0xce0] sm:$0xff]
        %v698 = vld [vmem:[%s189 + $0xce8] sm:$0xff]
        %v699 = vld [vmem:[%s189 + $0xcf0] sm:$0xff]
        %v700 = vld [vmem:[%s189 + $0xcf8] sm:$0xff]
        %v701 = vld [vmem:[%s189 + $0xd00] sm:$0xff]
        %v702 = vld [vmem:[%s189 + $0xd08] sm:$0xff]
        %v703 = vld [vmem:[%s189 + $0xd10] sm:$0xff]
        %v704 = vld [vmem:[%s189 + $0xd18] sm:$0xff]
        %v705 = vld [vmem:[%s189 + $0xd20] sm:$0xff]
        %v706 = vld [vmem:[%s189 + $0xd28] sm:$0xff]
        %v707 = vld [vmem:[%s189 + $0xd30] sm:$0xff]
        %v708 = vld [vmem:[%s189 + $0xd38] sm:$0xff]
        %v709 = vld [vmem:[%s189 + $0xd40] sm:$0xff]
        %v710 = vld [vmem:[%s189 + $0xd48] sm:$0xff]
        %v711 = vld [vmem:[%s189 + $0xd50] sm:$0xff]
        %v712 = vld [vmem:[%s189 + $0xd58] sm:$0xff]
        %v713 = vld [vmem:[%s189 + $0xd60] sm:$0xff]
        %v714 = vld [vmem:[%s189 + $0xd68] sm:$0xff]
        %v715 = vld [vmem:[%s189 + $0xd70] sm:$0xff]
        %v716 = vld [vmem:[%s189 + $0xd78] sm:$0xff]
        %v717 = vld [vmem:[%s189 + $0xd80] sm:$0xff]
        %v718 = vld [vmem:[%s189 + $0xd88] sm:$0xff]
        %v719 = vld [vmem:[%s189 + $0xd90] sm:$0xff]
        %v720 = vld [vmem:[%s189 + $0xd98] sm:$0xff]
        %v721 = vld [vmem:[%s189 + $0xda0] sm:$0xff]
        %v722 = vld [vmem:[%s189 + $0xda8] sm:$0xff]
        %v723 = vld [vmem:[%s189 + $0xdb0] sm:$0xff]
        %v724 = vld [vmem:[%s189 + $0xdb8] sm:$0xff]
        %v725 = vld [vmem:[%s189 + $0xdc0] sm:$0xff]
        %v726 = vld [vmem:[%s189 + $0xdc8] sm:$0xff]
        %v727 = vld [vmem:[%s189 + $0xdd0] sm:$0xff]
        %v728 = vld [vmem:[%s189 + $0xdd8] sm:$0xff]
        %v729 = vld [vmem:[%s189 + $0xde0] sm:$0xff]
        %v730 = vld [vmem:[%s189 + $0xde8] sm:$0xff]
        %v731 = vld [vmem:[%s189 + $0xdf0] sm:$0xff]
        %v732 = vld [vmem:[%s189 + $0xdf8] sm:$0xff]
        %v733 = vld [vmem:[%s189 + $0xe00] sm:$0xff]
        %v734 = vld [vmem:[%s189 + $0xe08] sm:$0xff]
        %v735 = vld [vmem:[%s189 + $0xe10] sm:$0xff]
        %v736 = vld [vmem:[%s189 + $0xe18] sm:$0xff]
        %v737 = vld [vmem:[%s189 + $0xe20] sm:$0xff]
        %v738 = vld [vmem:[%s189 + $0xe28] sm:$0xff]
        %v739 = vld [vmem:[%s189 + $0xe30] sm:$0xff]
        %v740 = vld [vmem:[%s189 + $0xe38] sm:$0xff]
        %v741 = vld [vmem:[%s189 + $0xe40] sm:$0xff]
        %v742 = vld [vmem:[%s189 + $0xe48] sm:$0xff]
        %v743 = vld [vmem:[%s189 + $0xe50] sm:$0xff]
        %v744 = vld [vmem:[%s189 + $0xe58] sm:$0xff]
        %v745 = vld [vmem:[%s189 + $0xe60] sm:$0xff]
        %v746 = vld [vmem:[%s189 + $0xe68] sm:$0xff]
        %v747 = vld [vmem:[%s189 + $0xe70] sm:$0xff]
        %v748 = vld [vmem:[%s189 + $0xe78] sm:$0xff]
        %v749 = vld [vmem:[%s189 + $0xe80] sm:$0xff]
        %v750 = vld [vmem:[%s189 + $0xe88] sm:$0xff]
        %v751 = vld [vmem:[%s189 + $0xe90] sm:$0xff]
        %v752 = vld [vmem:[%s189 + $0xe98] sm:$0xff]
        %v753 = vld [vmem:[%s189 + $0xea0] sm:$0xff]
        %v754 = vld [vmem:[%s189 + $0xea8] sm:$0xff]
        %v755 = vld [vmem:[%s189 + $0xeb0] sm:$0xff]
        %v756 = vld [vmem:[%s189 + $0xeb8] sm:$0xff]
        %v757 = vld [vmem:[%s189 + $0xec0] sm:$0xff]
        %v758 = vld [vmem:[%s189 + $0xec8] sm:$0xff]
        %v759 = vld [vmem:[%s189 + $0xed0] sm:$0xff]
        %v760 = vld [vmem:[%s189 + $0xed8] sm:$0xff]
        %v761 = vld [vmem:[%s189 + $0xee0] sm:$0xff]
        %v762 = vld [vmem:[%s189 + $0xee8] sm:$0xff]
        %v763 = vld [vmem:[%s189 + $0xef0] sm:$0xff]
        %v764 = vld [vmem:[%s189 + $0xef8] sm:$0xff]
        %v765 = vld [vmem:[%s189 + $0xf00] sm:$0xff]
        %v766 = vld [vmem:[%s189 + $0xf08] sm:$0xff]
        %v767 = vld [vmem:[%s189 + $0xf10] sm:$0xff]
        %v768 = vld [vmem:[%s189 + $0xf18] sm:$0xff]
        %v769 = vld [vmem:[%s189 + $0xf20] sm:$0xff]
        %v770 = vld [vmem:[%s189 + $0xf28] sm:$0xff]
        %v771 = vld [vmem:[%s189 + $0xf30] sm:$0xff]
        %v772 = vld [vmem:[%s189 + $0xf38] sm:$0xff]
        %v773 = vld [vmem:[%s189 + $0xf40] sm:$0xff]
        %v774 = vld [vmem:[%s189 + $0xf48] sm:$0xff]
        %v775 = vld [vmem:[%s189 + $0xf50] sm:$0xff]
        %v776 = vld [vmem:[%s189 + $0xf58] sm:$0xff]
        %v777 = vld [vmem:[%s189 + $0xf60] sm:$0xff]
        %v778 = vld [vmem:[%s189 + $0xf68] sm:$0xff]
        %v779 = vld [vmem:[%s189 + $0xf70] sm:$0xff]
        %v780 = vld [vmem:[%s189 + $0xf78] sm:$0xff]
        %v781 = vld [vmem:[%s189 + $0xf80] sm:$0xff]
        %v782 = vld [vmem:[%s189 + $0xf88] sm:$0xff]
        %v783 = vld [vmem:[%s189 + $0xf90] sm:$0xff]
        %v784 = vld [vmem:[%s189 + $0xf98] sm:$0xff]
        %v785 = vld [vmem:[%s189 + $0xfa0] sm:$0xff]
        %v786 = vld [vmem:[%s189 + $0xfa8] sm:$0xff]
        %v787 = vld [vmem:[%s189 + $0xfb0] sm:$0xff]
        %v788 = vld [vmem:[%s189 + $0xfb8] sm:$0xff]
        %v789 = vld [vmem:[%s189 + $0xfc0] sm:$0xff]
        %v790 = vld [vmem:[%s189 + $0xfc8] sm:$0xff]
        %v791 = vld [vmem:[%s189 + $0xfd0] sm:$0xff]
        %v792 = vld [vmem:[%s189 + $0xfd8] sm:$0xff]
        %v793 = vld [vmem:[%s189 + $0xfe0] sm:$0xff]
        %v794 = vld [vmem:[%s189 + $0xfe8] sm:$0xff]
        %v795 = vld [vmem:[%s189 + $0xff0] sm:$0xff]
        %v796 = vld [vmem:[%s189 + $0xff8] sm:$0xff]
        %v797 = vld [vmem:[%s189 + $0x1000] sm:$0xff]
        %v798 = vld [vmem:[%s189 + $0x1008] sm:$0xff]
        %v799 = vld [vmem:[%s189 + $0x1010] sm:$0xff]
        %v800 = vld [vmem:[%s189 + $0x1018] sm:$0xff]
        %v801 = vld [vmem:[%s189 + $0x1020] sm:$0xff]
        %v802 = vld [vmem:[%s189 + $0x1028] sm:$0xff]
        %v803 = vld [vmem:[%s189 + $0x1030] sm:$0xff]
        %v804 = vld [vmem:[%s189 + $0x1038] sm:$0xff]
        %v805 = vld [vmem:[%s189 + $0x1040] sm:$0xff]
        %v806 = vld [vmem:[%s189 + $0x1048] sm:$0xff]
        %v807 = vld [vmem:[%s189 + $0x1050] sm:$0xff]
        %v808 = vld [vmem:[%s189 + $0x1058] sm:$0xff]
        %v809 = vld [vmem:[%s189 + $0x1060] sm:$0xff]
        %v810 = vld [vmem:[%s189 + $0x1068] sm:$0xff]
        %v811 = vld [vmem:[%s189 + $0x1070] sm:$0xff]
        %v812 = vld [vmem:[%s189 + $0x1078] sm:$0xff]
        %v813 = vld [vmem:[%s189 + $0x1080] sm:$0xff]
        %v814 = vld [vmem:[%s189 + $0x1088] sm:$0xff]
        %v815 = vld [vmem:[%s189 + $0x1090] sm:$0xff]
        %v816 = vld [vmem:[%s189 + $0x1098] sm:$0xff]
        %v817 = vld [vmem:[%s189 + $0x10a0] sm:$0xff]
        %v818 = vld [vmem:[%s189 + $0x10a8] sm:$0xff]
        %v819 = vld [vmem:[%s189 + $0x10b0] sm:$0xff]
        %v820 = vld [vmem:[%s189 + $0x10b8] sm:$0xff]
        %v821 = vld [vmem:[%s189 + $0x10c0] sm:$0xff]
        %v822 = vld [vmem:[%s189 + $0x10c8] sm:$0xff]
        %v823 = vld [vmem:[%s189 + $0x10d0] sm:$0xff]
        %v824 = vld [vmem:[%s189 + $0x10d8] sm:$0xff]
        %v825 = vld [vmem:[%s189 + $0x10e0] sm:$0xff]
        %v826 = vld [vmem:[%s189 + $0x10e8] sm:$0xff]
        %v827 = vld [vmem:[%s189 + $0x10f0] sm:$0xff]
        %v828 = vld [vmem:[%s189 + $0x10f8] sm:$0xff]
        %v829 = vld [vmem:[%s189 + $0x1100] sm:$0xff]
        %v830 = vld [vmem:[%s189 + $0x1108] sm:$0xff]
        %v831 = vld [vmem:[%s189 + $0x1110] sm:$0xff]
        %v832 = vld [vmem:[%s189 + $0x1118] sm:$0xff]
        %v833 = vld [vmem:[%s189 + $0x1120] sm:$0xff]
        %v834 = vld [vmem:[%s189 + $0x1128] sm:$0xff]
        %v835 = vld [vmem:[%s189 + $0x1130] sm:$0xff]
        %v836 = vld [vmem:[%s189 + $0x1138] sm:$0xff]
        %v837 = vld [vmem:[%s189 + $0x1140] sm:$0xff]
        %v838 = vld [vmem:[%s189 + $0x1148] sm:$0xff]
        %v839 = vld [vmem:[%s189 + $0x1150] sm:$0xff]
        %v840 = vld [vmem:[%s189 + $0x1158] sm:$0xff]
        %v841 = vld [vmem:[%s189 + $0x1160] sm:$0xff]
        %v842 = vld [vmem:[%s189 + $0x1168] sm:$0xff]
        %v843 = vld [vmem:[%s189 + $0x1170] sm:$0xff]
        %v844 = vld [vmem:[%s189 + $0x1178] sm:$0xff]
        %v845 = vld [vmem:[%s189 + $0x1180] sm:$0xff]
        %v846 = vld [vmem:[%s189 + $0x1188] sm:$0xff]
        %v847 = vld [vmem:[%s189 + $0x1190] sm:$0xff]
        %v848 = vld [vmem:[%s189 + $0x1198] sm:$0xff]
        %v849 = vld [vmem:[%s189 + $0x11a0] sm:$0xff]
        %v850 = vld [vmem:[%s189 + $0x11a8] sm:$0xff]
        %v851 = vld [vmem:[%s189 + $0x11b0] sm:$0xff]
        %v852 = vld [vmem:[%s189 + $0x11b8] sm:$0xff]
        %v853 = vld [vmem:[%s189 + $0x11c0] sm:$0xff]
        %v854 = vld [vmem:[%s189 + $0x11c8] sm:$0xff]
        %v855 = vld [vmem:[%s189 + $0x11d0] sm:$0xff]
        %v856 = vld [vmem:[%s189 + $0x11d8] sm:$0xff]
        %v857 = vld [vmem:[%s189 + $0x11e0] sm:$0xff]
        %v858 = vld [vmem:[%s189 + $0x11e8] sm:$0xff]
        %v859 = vld [vmem:[%s189 + $0x11f0] sm:$0xff]
        %v860 = vld [vmem:[%s189 + $0x11f8] sm:$0xff]
        %v861 = vld [vmem:[%s189 + $0x1200] sm:$0xff]
        %v862 = vld [vmem:[%s189 + $0x1208] sm:$0xff]
        %v863 = vld [vmem:[%s189 + $0x1210] sm:$0xff]
        %v864 = vld [vmem:[%s189 + $0x1218] sm:$0xff]
        %v865 = vld [vmem:[%s189 + $0x1220] sm:$0xff]
        %v866 = vld [vmem:[%s189 + $0x1228] sm:$0xff]
        %v867 = vld [vmem:[%s189 + $0x1230] sm:$0xff]
        %v868 = vld [vmem:[%s189 + $0x1238] sm:$0xff]
        %v869 = vld [vmem:[%s189 + $0x1240] sm:$0xff]
        %v870 = vld [vmem:[%s189 + $0x1248] sm:$0xff]
        %v871 = vld [vmem:[%s189 + $0x1250] sm:$0xff]
        %v872 = vld [vmem:[%s189 + $0x1258] sm:$0xff]
        %v873 = vld [vmem:[%s189 + $0x1260] sm:$0xff]
        %v874 = vld [vmem:[%s189 + $0x1268] sm:$0xff]
        %v875 = vld [vmem:[%s189 + $0x1270] sm:$0xff]
        %v876 = vld [vmem:[%s189 + $0x1278] sm:$0xff]
        %v877 = vld [vmem:[%s189 + $0x1280] sm:$0xff]
        %v878 = vld [vmem:[%s189 + $0x1288] sm:$0xff]
        %v879 = vld [vmem:[%s189 + $0x1290] sm:$0xff]
        %v880 = vld [vmem:[%s189 + $0x1298] sm:$0xff]
        %v881 = vld [vmem:[%s189 + $0x12a0] sm:$0xff]
        %v882 = vld [vmem:[%s189 + $0x12a8] sm:$0xff]
        %v883 = vld [vmem:[%s189 + $0x12b0] sm:$0xff]
        %v884 = vld [vmem:[%s189 + $0x12b8] sm:$0xff]
        %v885 = vld [vmem:[%s189 + $0x12c0] sm:$0xff]
        %v886 = vld [vmem:[%s189 + $0x12c8] sm:$0xff]
        %v887 = vld [vmem:[%s189 + $0x12d0] sm:$0xff]
        %v888 = vld [vmem:[%s189 + $0x12d8] sm:$0xff]
        %v889 = vld [vmem:[%s189 + $0x12e0] sm:$0xff]
        %v890 = vld [vmem:[%s189 + $0x12e8] sm:$0xff]
        %v891 = vld [vmem:[%s189 + $0x12f0] sm:$0xff]
        %v892 = vld [vmem:[%s189 + $0x12f8] sm:$0xff]
        %v893 = vld [vmem:[%s189 + $0x1300] sm:$0xff]
        %v894 = vld [vmem:[%s189 + $0x1308] sm:$0xff]
        %v895 = vld [vmem:[%s189 + $0x1310] sm:$0xff]
        %v896 = vld [vmem:[%s189 + $0x1318] sm:$0xff]
        %v897 = vld [vmem:[%s189 + $0x1320] sm:$0xff]
        %v898 = vld [vmem:[%s189 + $0x1328] sm:$0xff]
        %v899 = vld [vmem:[%s189 + $0x1330] sm:$0xff]
        %v900 = vld [vmem:[%s189 + $0x1338] sm:$0xff]
        %v901 = vld [vmem:[%s189 + $0x1340] sm:$0xff]
        %v902 = vld [vmem:[%s189 + $0x1348] sm:$0xff]
        %v903 = vld [vmem:[%s189 + $0x1350] sm:$0xff]
        %v904 = vld [vmem:[%s189 + $0x1358] sm:$0xff]
        %v905 = vld [vmem:[%s189 + $0x1360] sm:$0xff]
        %v906 = vld [vmem:[%s189 + $0x1368] sm:$0xff]
        %v907 = vld [vmem:[%s189 + $0x1370] sm:$0xff]
        %v908 = vld [vmem:[%s189 + $0x1378] sm:$0xff]
        %v909 = vld [vmem:[%s189 + $0x1380] sm:$0xff]
        %v910 = vld [vmem:[%s189 + $0x1388] sm:$0xff]
        %v911 = vld [vmem:[%s189 + $0x1390] sm:$0xff]
        %v912 = vld [vmem:[%s189 + $0x1398] sm:$0xff]
        %v913 = vld [vmem:[%s189 + $0x13a0] sm:$0xff]
        %v914 = vld [vmem:[%s189 + $0x13a8] sm:$0xff]
        %v915 = vld [vmem:[%s189 + $0x13b0] sm:$0xff]
        %v916 = vld [vmem:[%s189 + $0x13b8] sm:$0xff]
        %v917 = vld [vmem:[%s189 + $0x13c0] sm:$0xff]
        %v918 = vld [vmem:[%s189 + $0x13c8] sm:$0xff]
        %v919 = vld [vmem:[%s189 + $0x13d0] sm:$0xff]
        %v920 = vld [vmem:[%s189 + $0x13d8] sm:$0xff]
        %v921 = vld [vmem:[%s189 + $0x13e0] sm:$0xff]
        %v922 = vld [vmem:[%s189 + $0x13e8] sm:$0xff]
        %v923 = vld [vmem:[%s189 + $0x13f0] sm:$0xff]
        %v924 = vld [vmem:[%s189 + $0x13f8] sm:$0xff]
        %v925 = vld [vmem:[%s189 + $0x1400] sm:$0xff]
        %v926 = vld [vmem:[%s189 + $0x1408] sm:$0xff]
        %v927 = vld [vmem:[%s189 + $0x1410] sm:$0xff]
        %v928 = vld [vmem:[%s189 + $0x1418] sm:$0xff]
        %v929 = vld [vmem:[%s189 + $0x1420] sm:$0xff]
        %v930 = vld [vmem:[%s189 + $0x1428] sm:$0xff]
        %v931 = vld [vmem:[%s189 + $0x1430] sm:$0xff]
        %v932 = vld [vmem:[%s189 + $0x1438] sm:$0xff]
        %v933 = vld [vmem:[%s189 + $0x1440] sm:$0xff]
        %v934 = vld [vmem:[%s189 + $0x1448] sm:$0xff]
        %v935 = vld [vmem:[%s189 + $0x1450] sm:$0xff]
        %v936 = vld [vmem:[%s189 + $0x1458] sm:$0xff]
        %v937 = vld [vmem:[%s189 + $0x1460] sm:$0xff]
        %v938 = vld [vmem:[%s189 + $0x1468] sm:$0xff]
        %v939 = vld [vmem:[%s189 + $0x1470] sm:$0xff]
        %v940 = vld [vmem:[%s189 + $0x1478] sm:$0xff]
        %v941 = vld [vmem:[%s189 + $0x1480] sm:$0xff]
        %v942 = vld [vmem:[%s189 + $0x1488] sm:$0xff]
        %v943 = vld [vmem:[%s189 + $0x1490] sm:$0xff]
        %v944 = vld [vmem:[%s189 + $0x1498] sm:$0xff]
        %v945 = vld [vmem:[%s189 + $0x14a0] sm:$0xff]
        %v946 = vld [vmem:[%s189 + $0x14a8] sm:$0xff]
        %v947 = vld [vmem:[%s189 + $0x14b0] sm:$0xff]
        %v948 = vld [vmem:[%s189 + $0x14b8] sm:$0xff]
        %v949 = vld [vmem:[%s189 + $0x14c0] sm:$0xff]
        %v950 = vld [vmem:[%s189 + $0x14c8] sm:$0xff]
        %v951 = vld [vmem:[%s189 + $0x14d0] sm:$0xff]
        %v952 = vld [vmem:[%s189 + $0x14d8] sm:$0xff]
        %v953 = vld [vmem:[%s189 + $0x14e0] sm:$0xff]
        %v954 = vld [vmem:[%s189 + $0x14e8] sm:$0xff]
        %v955 = vld [vmem:[%s189 + $0x14f0] sm:$0xff]
        %v956 = vld [vmem:[%s189 + $0x14f8] sm:$0xff]
        %v957 = vld [vmem:[%s189 + $0x1500] sm:$0xff]
        %v958 = vld [vmem:[%s189 + $0x1508] sm:$0xff]
        %v959 = vld [vmem:[%s189 + $0x1510] sm:$0xff]
        %v960 = vld [vmem:[%s189 + $0x1518] sm:$0xff]
        %v961 = vld [vmem:[%s189 + $0x1520] sm:$0xff]
        %v962 = vld [vmem:[%s189 + $0x1528] sm:$0xff]
        %v963 = vld [vmem:[%s189 + $0x1530] sm:$0xff]
        %v964 = vld [vmem:[%s189 + $0x1538] sm:$0xff]
        %v965 = vld [vmem:[%s189 + $0x1540] sm:$0xff]
        %v966 = vld [vmem:[%s189 + $0x1548] sm:$0xff]
        %v967 = vld [vmem:[%s189 + $0x1550] sm:$0xff]
        %v968 = vld [vmem:[%s189 + $0x1558] sm:$0xff]
        %v969 = vld [vmem:[%s189 + $0x1560] sm:$0xff]
        %v970 = vld [vmem:[%s189 + $0x1568] sm:$0xff]
        %v971 = vld [vmem:[%s189 + $0x1570] sm:$0xff]
        %v972 = vld [vmem:[%s189 + $0x1578] sm:$0xff]
        %v973 = vld [vmem:[%s189 + $0x1580] sm:$0xff]
        %v974 = vld [vmem:[%s189 + $0x1588] sm:$0xff]
        %v975 = vld [vmem:[%s189 + $0x1590] sm:$0xff]
        %v976 = vld [vmem:[%s189 + $0x1598] sm:$0xff]
        %v977 = vld [vmem:[%s189 + $0x15a0] sm:$0xff]
        %v978 = vld [vmem:[%s189 + $0x15a8] sm:$0xff]
        %v979 = vld [vmem:[%s189 + $0x15b0] sm:$0xff]
        %v980 = vld [vmem:[%s189 + $0x15b8] sm:$0xff]
        %v981 = vld [vmem:[%s189 + $0x15c0] sm:$0xff]
        %v982 = vld [vmem:[%s189 + $0x15c8] sm:$0xff]
        %v983 = vld [vmem:[%s189 + $0x15d0] sm:$0xff]
        %v984 = vld [vmem:[%s189 + $0x15d8] sm:$0xff]
        %v985 = vld [vmem:[%s189 + $0x15e0] sm:$0xff]
        %v986 = vld [vmem:[%s189 + $0x15e8] sm:$0xff]
        %v987 = vld [vmem:[%s189 + $0x15f0] sm:$0xff]
        %v988 = vld [vmem:[%s189 + $0x15f8] sm:$0xff]
        %v989 = vld [vmem:[%s189 + $0x1600] sm:$0xff]
        %v990 = vld [vmem:[%s189 + $0x1608] sm:$0xff]
        %v991 = vld [vmem:[%s189 + $0x1610] sm:$0xff]
        %v992 = vld [vmem:[%s189 + $0x1618] sm:$0xff]
        %v993 = vld [vmem:[%s189 + $0x1620] sm:$0xff]
        %v994 = vld [vmem:[%s189 + $0x1628] sm:$0xff]
        %v995 = vld [vmem:[%s189 + $0x1630] sm:$0xff]
        %v996 = vld [vmem:[%s189 + $0x1638] sm:$0xff]
        %v997 = vld [vmem:[%s189 + $0x1640] sm:$0xff]
        %v998 = vld [vmem:[%s189 + $0x1648] sm:$0xff]
        %v999 = vld [vmem:[%s189 + $0x1650] sm:$0xff]
        %v1000 = vld [vmem:[%s189 + $0x1658] sm:$0xff]
        %v1001 = vld [vmem:[%s189 + $0x1660] sm:$0xff]
        %v1002 = vld [vmem:[%s189 + $0x1668] sm:$0xff]
        %v1003 = vld [vmem:[%s189 + $0x1670] sm:$0xff]
        %v1004 = vld [vmem:[%s189 + $0x1678] sm:$0xff]
        %v1005 = vld [vmem:[%s189 + $0x1680] sm:$0xff]
        %v1006 = vld [vmem:[%s189 + $0x1688] sm:$0xff]
        %v1007 = vld [vmem:[%s189 + $0x1690] sm:$0xff]
        %v1008 = vld [vmem:[%s189 + $0x1698] sm:$0xff]
        %v1009 = vld [vmem:[%s189 + $0x16a0] sm:$0xff]
        %v1010 = vld [vmem:[%s189 + $0x16a8] sm:$0xff]
        %v1011 = vld [vmem:[%s189 + $0x16b0] sm:$0xff]
        %v1012 = vld [vmem:[%s189 + $0x16b8] sm:$0xff]
        %v1013 = vld [vmem:[%s189 + $0x16c0] sm:$0xff]
        %v1014 = vld [vmem:[%s189 + $0x16c8] sm:$0xff]
        %v1015 = vld [vmem:[%s189 + $0x16d0] sm:$0xff]
        %v1016 = vld [vmem:[%s189 + $0x16d8] sm:$0xff]
        %v1017 = vld [vmem:[%s189 + $0x16e0] sm:$0xff]
        %v1018 = vld [vmem:[%s189 + $0x16e8] sm:$0xff]
        %v1019 = vld [vmem:[%s189 + $0x16f0] sm:$0xff]
        %v1020 = vld [vmem:[%s189 + $0x16f8] sm:$0xff]
        %v1021 = vld [vmem:[%s189 + $0x1700] sm:$0xff]
        %v1022 = vld [vmem:[%s189 + $0x1708] sm:$0xff]
        %v1023 = vld [vmem:[%s189 + $0x1710] sm:$0xff]
        %v1024 = vld [vmem:[%s189 + $0x1718] sm:$0xff]
        %v1025 = vld [vmem:[%s189 + $0x1720] sm:$0xff]
        %v1026 = vld [vmem:[%s189 + $0x1728] sm:$0xff]
        %v1027 = vld [vmem:[%s189 + $0x1730] sm:$0xff]
        %v1028 = vld [vmem:[%s189 + $0x1738] sm:$0xff]
        %v1029 = vld [vmem:[%s189 + $0x1740] sm:$0xff]
        %v1030 = vld [vmem:[%s189 + $0x1748] sm:$0xff]
        %v1031 = vld [vmem:[%s189 + $0x1750] sm:$0xff]
        %v1032 = vld [vmem:[%s189 + $0x1758] sm:$0xff]
        %v1033 = vld [vmem:[%s189 + $0x1760] sm:$0xff]
        %v1034 = vld [vmem:[%s189 + $0x1768] sm:$0xff]
        %v1035 = vld [vmem:[%s189 + $0x1770] sm:$0xff]
        %v1036 = vld [vmem:[%s189 + $0x1778] sm:$0xff]
        %v1037 = vld [vmem:[%s189 + $0x1780] sm:$0xff]
        %v1038 = vld [vmem:[%s189 + $0x1788] sm:$0xff]
        %v1039 = vld [vmem:[%s189 + $0x1790] sm:$0xff]
        %v1040 = vld [vmem:[%s189 + $0x1798] sm:$0xff]
        %v1041 = vld [vmem:[%s189 + $0x17a0] sm:$0xff]
        %v1042 = vld [vmem:[%s189 + $0x17a8] sm:$0xff]
        %v1043 = vld [vmem:[%s189 + $0x17b0] sm:$0xff]
        %v1044 = vld [vmem:[%s189 + $0x17b8] sm:$0xff]
        %v1045 = vld [vmem:[%s189 + $0x17c0] sm:$0xff]
        %v1046 = vld [vmem:[%s189 + $0x17c8] sm:$0xff]
        %v1047 = vld [vmem:[%s189 + $0x17d0] sm:$0xff]
        %v1048 = vld [vmem:[%s189 + $0x17d8] sm:$0xff]
        %v1049 = vld [vmem:[%s189 + $0x17e0] sm:$0xff]
        %v1050 = vld [vmem:[%s189 + $0x17e8] sm:$0xff]
        %v1051 = vld [vmem:[%s189 + $0x17f0] sm:$0xff]
        %v1052 = vld [vmem:[%s189 + $0x17f8] sm:$0xff]
        %v1053 = vld [vmem:[%s189 + $0x1800] sm:$0xff]
        %v1054 = vld [vmem:[%s189 + $0x1808] sm:$0xff]
        %v1055 = vld [vmem:[%s189 + $0x1810] sm:$0xff]
        %v1056 = vld [vmem:[%s189 + $0x1818] sm:$0xff]
        %v1057 = vld [vmem:[%s189 + $0x1820] sm:$0xff]
        %v1058 = vld [vmem:[%s189 + $0x1828] sm:$0xff]
        %v1059 = vld [vmem:[%s189 + $0x1830] sm:$0xff]
        %v1060 = vld [vmem:[%s189 + $0x1838] sm:$0xff]
        %v1061 = vld [vmem:[%s189 + $0x1840] sm:$0xff]
        %v1062 = vld [vmem:[%s189 + $0x1848] sm:$0xff]
        %v1063 = vld [vmem:[%s189 + $0x1850] sm:$0xff]
        %v1064 = vld [vmem:[%s189 + $0x1858] sm:$0xff]
        %v1065 = vld [vmem:[%s189 + $0x1860] sm:$0xff]
        %v1066 = vld [vmem:[%s189 + $0x1868] sm:$0xff]
        %v1067 = vld [vmem:[%s189 + $0x1870] sm:$0xff]
        %v1068 = vld [vmem:[%s189 + $0x1878] sm:$0xff]
        %v1069 = vld [vmem:[%s189 + $0x1880] sm:$0xff]
        %v1070 = vld [vmem:[%s189 + $0x1888] sm:$0xff]
        %v1071 = vld [vmem:[%s189 + $0x1890] sm:$0xff]
        %v1072 = vld [vmem:[%s189 + $0x1898] sm:$0xff]
        %v1073 = vld [vmem:[%s189 + $0x18a0] sm:$0xff]
        %v1074 = vld [vmem:[%s189 + $0x18a8] sm:$0xff]
        %v1075 = vld [vmem:[%s189 + $0x18b0] sm:$0xff]
        %v1076 = vld [vmem:[%s189 + $0x18b8] sm:$0xff]
        %v1077 = vld [vmem:[%s189 + $0x18c0] sm:$0xff]
        %v1078 = vld [vmem:[%s189 + $0x18c8] sm:$0xff]
        %v1079 = vld [vmem:[%s189 + $0x18d0] sm:$0xff]
        %v1080 = vld [vmem:[%s189 + $0x18d8] sm:$0xff]
        %v1081 = vld [vmem:[%s189 + $0x18e0] sm:$0xff]
        %v1082 = vld [vmem:[%s189 + $0x18e8] sm:$0xff]
        %v1083 = vld [vmem:[%s189 + $0x18f0] sm:$0xff]
        %v1084 = vld [vmem:[%s189 + $0x18f8] sm:$0xff]
        %v1085 = vld [vmem:[%s189 + $0x1900] sm:$0xff]
        %v1086 = vld [vmem:[%s189 + $0x1908] sm:$0xff]
        %v1087 = vld [vmem:[%s189 + $0x1910] sm:$0xff]
        %v1088 = vld [vmem:[%s189 + $0x1918] sm:$0xff]
        %v1089 = vld [vmem:[%s189 + $0x1920] sm:$0xff]
        %v1090 = vld [vmem:[%s189 + $0x1928] sm:$0xff]
        %v1091 = vld [vmem:[%s189 + $0x1930] sm:$0xff]
        %v1092 = vld [vmem:[%s189 + $0x1938] sm:$0xff]
        %v1093 = vld [vmem:[%s189 + $0x1940] sm:$0xff]
        %v1094 = vld [vmem:[%s189 + $0x1948] sm:$0xff]
        %v1095 = vld [vmem:[%s189 + $0x1950] sm:$0xff]
        %v1096 = vld [vmem:[%s189 + $0x1958] sm:$0xff]
        %v1097 = vld [vmem:[%s189 + $0x1960] sm:$0xff]
        %v1098 = vld [vmem:[%s189 + $0x1968] sm:$0xff]
        %v1099 = vld [vmem:[%s189 + $0x1970] sm:$0xff]
        %v1100 = vld [vmem:[%s189 + $0x1978] sm:$0xff]
        %v1101 = vld [vmem:[%s189 + $0x1980] sm:$0xff]
        %v1102 = vld [vmem:[%s189 + $0x1988] sm:$0xff]
        %v1103 = vld [vmem:[%s189 + $0x1990] sm:$0xff]
        %v1104 = vld [vmem:[%s189 + $0x1998] sm:$0xff]
        %v1105 = vld [vmem:[%s189 + $0x19a0] sm:$0xff]
        %v1106 = vld [vmem:[%s189 + $0x19a8] sm:$0xff]
        %v1107 = vld [vmem:[%s189 + $0x19b0] sm:$0xff]
        %v1108 = vld [vmem:[%s189 + $0x19b8] sm:$0xff]
        %v1109 = vld [vmem:[%s189 + $0x19c0] sm:$0xff]
        %v1110 = vld [vmem:[%s189 + $0x19c8] sm:$0xff]
        %v1111 = vld [vmem:[%s189 + $0x19d0] sm:$0xff]
        %v1112 = vld [vmem:[%s189 + $0x19d8] sm:$0xff]
        %v1113 = vld [vmem:[%s189 + $0x19e0] sm:$0xff]
        %v1114 = vld [vmem:[%s189 + $0x19e8] sm:$0xff]
        %v1115 = vld [vmem:[%s189 + $0x19f0] sm:$0xff]
        %v1116 = vld [vmem:[%s189 + $0x19f8] sm:$0xff]
        %v1117 = vld [vmem:[%s189 + $0x1a00] sm:$0xff]
        %v1118 = vld [vmem:[%s189 + $0x1a08] sm:$0xff]
        %v1119 = vld [vmem:[%s189 + $0x1a10] sm:$0xff]
        %v1120 = vld [vmem:[%s189 + $0x1a18] sm:$0xff]
        %v1121 = vld [vmem:[%s189 + $0x1a20] sm:$0xff]
        %v1122 = vld [vmem:[%s189 + $0x1a28] sm:$0xff]
        %v1123 = vld [vmem:[%s189 + $0x1a30] sm:$0xff]
        %v1124 = vld [vmem:[%s189 + $0x1a38] sm:$0xff]
        %v1125 = vld [vmem:[%s189 + $0x1a40] sm:$0xff]
        %v1126 = vld [vmem:[%s189 + $0x1a48] sm:$0xff]
        %v1127 = vld [vmem:[%s189 + $0x1a50] sm:$0xff]
        %v1128 = vld [vmem:[%s189 + $0x1a58] sm:$0xff]
        %v1129 = vld [vmem:[%s189 + $0x1a60] sm:$0xff]
        %v1130 = vld [vmem:[%s189 + $0x1a68] sm:$0xff]
        %v1131 = vld [vmem:[%s189 + $0x1a70] sm:$0xff]
        %v1132 = vld [vmem:[%s189 + $0x1a78] sm:$0xff]
        %v1133 = vld [vmem:[%s189 + $0x1a80] sm:$0xff]
        %v1134 = vld [vmem:[%s189 + $0x1a88] sm:$0xff]
        %v1135 = vld [vmem:[%s189 + $0x1a90] sm:$0xff]
        %v1136 = vld [vmem:[%s189 + $0x1a98] sm:$0xff]
        %v1137 = vld [vmem:[%s189 + $0x1aa0] sm:$0xff]
        %v1138 = vld [vmem:[%s189 + $0x1aa8] sm:$0xff]
        %v1139 = vld [vmem:[%s189 + $0x1ab0] sm:$0xff]
        %v1140 = vld [vmem:[%s189 + $0x1ab8] sm:$0xff]
        %v1141 = vld [vmem:[%s189 + $0x1ac0] sm:$0xff]
        %v1142 = vld [vmem:[%s189 + $0x1ac8] sm:$0xff]
        %v1143 = vld [vmem:[%s189 + $0x1ad0] sm:$0xff]
        %v1144 = vld [vmem:[%s189 + $0x1ad8] sm:$0xff]
        %v1145 = vld [vmem:[%s189 + $0x1ae0] sm:$0xff]
        %v1146 = vld [vmem:[%s189 + $0x1ae8] sm:$0xff]
        %v1147 = vld [vmem:[%s189 + $0x1af0] sm:$0xff]
        %v1148 = vld [vmem:[%s189 + $0x1af8] sm:$0xff]
        %v1149 = vld [vmem:[%s189 + $0x1b00] sm:$0xff]
        %v1150 = vld [vmem:[%s189 + $0x1b08] sm:$0xff]
        %v1151 = vld [vmem:[%s189 + $0x1b10] sm:$0xff]
        %v1152 = vld [vmem:[%s189 + $0x1b18] sm:$0xff]
        %v1153 = vld [vmem:[%s189 + $0x1b20] sm:$0xff]
        %v1154 = vld [vmem:[%s189 + $0x1b28] sm:$0xff]
        %v1155 = vld [vmem:[%s189 + $0x1b30] sm:$0xff]
        %v1156 = vld [vmem:[%s189 + $0x1b38] sm:$0xff]
        %v1157 = vld [vmem:[%s189 + $0x1b40] sm:$0xff]
        %v1158 = vld [vmem:[%s189 + $0x1b48] sm:$0xff]
        %v1159 = vld [vmem:[%s189 + $0x1b50] sm:$0xff]
        %v1160 = vld [vmem:[%s189 + $0x1b58] sm:$0xff]
        %v1161 = vld [vmem:[%s189 + $0x1b60] sm:$0xff]
        %v1162 = vld [vmem:[%s189 + $0x1b68] sm:$0xff]
        %v1163 = vld [vmem:[%s189 + $0x1b70] sm:$0xff]
        %v1164 = vld [vmem:[%s189 + $0x1b78] sm:$0xff]
        %v1165 = vld [vmem:[%s189 + $0x1b80] sm:$0xff]
        %v1166 = vld [vmem:[%s189 + $0x1b88] sm:$0xff]
        %v1167 = vld [vmem:[%s189 + $0x1b90] sm:$0xff]
        %v1168 = vld [vmem:[%s189 + $0x1b98] sm:$0xff]
        %v1169 = vld [vmem:[%s189 + $0x1ba0] sm:$0xff]
        %v1170 = vld [vmem:[%s189 + $0x1ba8] sm:$0xff]
        %v1171 = vld [vmem:[%s189 + $0x1bb0] sm:$0xff]
        %v1172 = vld [vmem:[%s189 + $0x1bb8] sm:$0xff]
        %v1173 = vld [vmem:[%s189 + $0x1bc0] sm:$0xff]
        %v1174 = vld [vmem:[%s189 + $0x1bc8] sm:$0xff]
        %v1175 = vld [vmem:[%s189 + $0x1bd0] sm:$0xff]
        %v1176 = vld [vmem:[%s189 + $0x1bd8] sm:$0xff]
        %v1177 = vld [vmem:[%s189 + $0x1be0] sm:$0xff]
        %v1178 = vld [vmem:[%s189 + $0x1be8] sm:$0xff]
        %v1179 = vld [vmem:[%s189 + $0x1bf0] sm:$0xff]
        %v1180 = vld [vmem:[%s189 + $0x1bf8] sm:$0xff]
        %v1181 = vld [vmem:[%s189 + $0x1c00] sm:$0xff]
        %v1182 = vld [vmem:[%s189 + $0x1c08] sm:$0xff]
        %v1183 = vld [vmem:[%s189 + $0x1c10] sm:$0xff]
        %v1184 = vld [vmem:[%s189 + $0x1c18] sm:$0xff]
        %v1185 = vld [vmem:[%s189 + $0x1c20] sm:$0xff]
        %v1186 = vld [vmem:[%s189 + $0x1c28] sm:$0xff]
        %v1187 = vld [vmem:[%s189 + $0x1c30] sm:$0xff]
        %v1188 = vld [vmem:[%s189 + $0x1c38] sm:$0xff]
        %v1189 = vld [vmem:[%s189 + $0x1c40] sm:$0xff]
        %v1190 = vld [vmem:[%s189 + $0x1c48] sm:$0xff]
        %v1191 = vld [vmem:[%s189 + $0x1c50] sm:$0xff]
        %v1192 = vld [vmem:[%s189 + $0x1c58] sm:$0xff]
        %v1193 = vld [vmem:[%s189 + $0x1c60] sm:$0xff]
        %v1194 = vld [vmem:[%s189 + $0x1c68] sm:$0xff]
        %v1195 = vld [vmem:[%s189 + $0x1c70] sm:$0xff]
        %v1196 = vld [vmem:[%s189 + $0x1c78] sm:$0xff]
        %v1197 = vld [vmem:[%s189 + $0x1c80] sm:$0xff]
        %v1198 = vld [vmem:[%s189 + $0x1c88] sm:$0xff]
        %v1199 = vld [vmem:[%s189 + $0x1c90] sm:$0xff]
        %v1200 = vld [vmem:[%s189 + $0x1c98] sm:$0xff]
        %v1201 = vld [vmem:[%s189 + $0x1ca0] sm:$0xff]
        %v1202 = vld [vmem:[%s189 + $0x1ca8] sm:$0xff]
        %v1203 = vld [vmem:[%s189 + $0x1cb0] sm:$0xff]
        %v1204 = vld [vmem:[%s189 + $0x1cb8] sm:$0xff]
        %v1205 = vld [vmem:[%s189 + $0x1cc0] sm:$0xff]
        %v1206 = vld [vmem:[%s189 + $0x1cc8] sm:$0xff]
        %v1207 = vld [vmem:[%s189 + $0x1cd0] sm:$0xff]
        %v1208 = vld [vmem:[%s189 + $0x1cd8] sm:$0xff]
        %v1209 = vld [vmem:[%s189 + $0x1ce0] sm:$0xff]
        %v1210 = vld [vmem:[%s189 + $0x1ce8] sm:$0xff]
        %v1211 = vld [vmem:[%s189 + $0x1cf0] sm:$0xff]
        %v1212 = vld [vmem:[%s189 + $0x1cf8] sm:$0xff]
        %v1213 = vld [vmem:[%s189 + $0x1d00] sm:$0xff]
        %v1214 = vld [vmem:[%s189 + $0x1d08] sm:$0xff]
        %v1215 = vld [vmem:[%s189 + $0x1d10] sm:$0xff]
        %v1216 = vld [vmem:[%s189 + $0x1d18] sm:$0xff]
        %v1217 = vld [vmem:[%s189 + $0x1d20] sm:$0xff]
        %v1218 = vld [vmem:[%s189 + $0x1d28] sm:$0xff]
        %v1219 = vld [vmem:[%s189 + $0x1d30] sm:$0xff]
        %v1220 = vld [vmem:[%s189 + $0x1d38] sm:$0xff]
        %v1221 = vld [vmem:[%s189 + $0x1d40] sm:$0xff]
        %v1222 = vld [vmem:[%s189 + $0x1d48] sm:$0xff]
        %v1223 = vld [vmem:[%s189 + $0x1d50] sm:$0xff]
        %v1224 = vld [vmem:[%s189 + $0x1d58] sm:$0xff]
        %v1225 = vld [vmem:[%s189 + $0x1d60] sm:$0xff]
        %v1226 = vld [vmem:[%s189 + $0x1d68] sm:$0xff]
        %v1227 = vld [vmem:[%s189 + $0x1d70] sm:$0xff]
        %v1228 = vld [vmem:[%s189 + $0x1d78] sm:$0xff]
        %v1229 = vld [vmem:[%s189 + $0x1d80] sm:$0xff]
        %v1230 = vld [vmem:[%s189 + $0x1d88] sm:$0xff]
        %v1231 = vld [vmem:[%s189 + $0x1d90] sm:$0xff]
        %v1232 = vld [vmem:[%s189 + $0x1d98] sm:$0xff]
        %v1233 = vld [vmem:[%s189 + $0x1da0] sm:$0xff]
        %v1234 = vld [vmem:[%s189 + $0x1da8] sm:$0xff]
        %v1235 = vld [vmem:[%s189 + $0x1db0] sm:$0xff]
        %v1236 = vld [vmem:[%s189 + $0x1db8] sm:$0xff]
        %v1237 = vld [vmem:[%s189 + $0x1dc0] sm:$0xff]
        %v1238 = vld [vmem:[%s189 + $0x1dc8] sm:$0xff]
        %v1239 = vld [vmem:[%s189 + $0x1dd0] sm:$0xff]
        %v1240 = vld [vmem:[%s189 + $0x1dd8] sm:$0xff]
        %v1241 = vld [vmem:[%s189 + $0x1de0] sm:$0xff]
        %v1242 = vld [vmem:[%s189 + $0x1de8] sm:$0xff]
        %v1243 = vld [vmem:[%s189 + $0x1df0] sm:$0xff]
        %v1244 = vld [vmem:[%s189 + $0x1df8] sm:$0xff]
        %v1245 = vld [vmem:[%s189 + $0x1e00] sm:$0xff]
        %v1246 = vld [vmem:[%s189 + $0x1e08] sm:$0xff]
        %v1247 = vld [vmem:[%s189 + $0x1e10] sm:$0xff]
        %v1248 = vld [vmem:[%s189 + $0x1e18] sm:$0xff]
        %v1249 = vld [vmem:[%s189 + $0x1e20] sm:$0xff]
        %v1250 = vld [vmem:[%s189 + $0x1e28] sm:$0xff]
        %v1251 = vld [vmem:[%s189 + $0x1e30] sm:$0xff]
        %v1252 = vld [vmem:[%s189 + $0x1e38] sm:$0xff]
        %v1253 = vld [vmem:[%s189 + $0x1e40] sm:$0xff]
        %v1254 = vld [vmem:[%s189 + $0x1e48] sm:$0xff]
        %v1255 = vld [vmem:[%s189 + $0x1e50] sm:$0xff]
        %v1256 = vld [vmem:[%s189 + $0x1e58] sm:$0xff]
        %v1257 = vld [vmem:[%s189 + $0x1e60] sm:$0xff]
        %v1258 = vld [vmem:[%s189 + $0x1e68] sm:$0xff]
        %v1259 = vld [vmem:[%s189 + $0x1e70] sm:$0xff]
        %v1260 = vld [vmem:[%s189 + $0x1e78] sm:$0xff]
        %v1261 = vld [vmem:[%s189 + $0x1e80] sm:$0xff]
        %v1262 = vld [vmem:[%s189 + $0x1e88] sm:$0xff]
        %v1263 = vld [vmem:[%s189 + $0x1e90] sm:$0xff]
        %v1264 = vld [vmem:[%s189 + $0x1e98] sm:$0xff]
        %v1265 = vld [vmem:[%s189 + $0x1ea0] sm:$0xff]
        %v1266 = vld [vmem:[%s189 + $0x1ea8] sm:$0xff]
        %v1267 = vld [vmem:[%s189 + $0x1eb0] sm:$0xff]
        %v1268 = vld [vmem:[%s189 + $0x1eb8] sm:$0xff]
        %v1269 = vld [vmem:[%s189 + $0x1ec0] sm:$0xff]
        %v1270 = vld [vmem:[%s189 + $0x1ec8] sm:$0xff]
        %v1271 = vld [vmem:[%s189 + $0x1ed0] sm:$0xff]
        %v1272 = vld [vmem:[%s189 + $0x1ed8] sm:$0xff]
        %v1273 = vld [vmem:[%s189 + $0x1ee0] sm:$0xff]
        %v1274 = vld [vmem:[%s189 + $0x1ee8] sm:$0xff]
        %v1275 = vld [vmem:[%s189 + $0x1ef0] sm:$0xff]
        %v1276 = vld [vmem:[%s189 + $0x1ef8] sm:$0xff]
        %v1277 = vld [vmem:[%s189 + $0x1f00] sm:$0xff]
        %v1278 = vld [vmem:[%s189 + $0x1f08] sm:$0xff]
        %v1279 = vld [vmem:[%s189 + $0x1f10] sm:$0xff]
        %v1280 = vld [vmem:[%s189 + $0x1f18] sm:$0xff]
        %v1281 = vld [vmem:[%s189 + $0x1f20] sm:$0xff]
        %v1282 = vld [vmem:[%s189 + $0x1f28] sm:$0xff]
        %v1283 = vld [vmem:[%s189 + $0x1f30] sm:$0xff]
        %v1284 = vld [vmem:[%s189 + $0x1f38] sm:$0xff]
        %v1285 = vld [vmem:[%s189 + $0x1f40] sm:$0xff]
        %v1286 = vld [vmem:[%s189 + $0x1f48] sm:$0xff]
        %v1287 = vld [vmem:[%s189 + $0x1f50] sm:$0xff]
        %v1288 = vld [vmem:[%s189 + $0x1f58] sm:$0xff]
        %v1289 = vld [vmem:[%s189 + $0x1f60] sm:$0xff]
        %v1290 = vld [vmem:[%s189 + $0x1f68] sm:$0xff]
        %v1291 = vld [vmem:[%s189 + $0x1f70] sm:$0xff]
        %v1292 = vld [vmem:[%s189 + $0x1f78] sm:$0xff]
        %v1293 = vld [vmem:[%s189 + $0x1f80] sm:$0xff]
        %v1294 = vld [vmem:[%s189 + $0x1f88] sm:$0xff]
        %v1295 = vld [vmem:[%s189 + $0x1f90] sm:$0xff]
        %v1296 = vld [vmem:[%s189 + $0x1f98] sm:$0xff]
        %v1297 = vld [vmem:[%s189 + $0x1fa0] sm:$0xff]
        %v1298 = vld [vmem:[%s189 + $0x1fa8] sm:$0xff]
        %v1299 = vld [vmem:[%s189 + $0x1fb0] sm:$0xff]
        %v1300 = vld [vmem:[%s189 + $0x1fb8] sm:$0xff]
        %v1301 = vld [vmem:[%s189 + $0x1fc0] sm:$0xff]
        %v1302 = vld [vmem:[%s189 + $0x1fc8] sm:$0xff]
        %v1303 = vld [vmem:[%s189 + $0x1fd0] sm:$0xff]
        %v1304 = vld [vmem:[%s189 + $0x1fd8] sm:$0xff]
        %v1305 = vld [vmem:[%s189 + $0x1fe0] sm:$0xff]
        %v1306 = vld [vmem:[%s189 + $0x1fe8] sm:$0xff]
        %v1307 = vld [vmem:[%s189 + $0x1ff0] sm:$0xff]
        %v1308 = vld [vmem:[%s189 + $0x1ff8] sm:$0xff]
        %v1309 = vld [vmem:[%s189 + $0x2000] sm:$0xff]
        %v1310 = vld [vmem:[%s189 + $0x2008] sm:$0xff]
        %v1311 = vld [vmem:[%s189 + $0x2010] sm:$0xff]
        %v1312 = vld [vmem:[%s189 + $0x2018] sm:$0xff]
        %v1313 = vld [vmem:[%s189 + $0x2020] sm:$0xff]
        %v1314 = vld [vmem:[%s189 + $0x2028] sm:$0xff]
        %v1315 = vld [vmem:[%s189 + $0x2030] sm:$0xff]
        %v1316 = vld [vmem:[%s189 + $0x2038] sm:$0xff]
        %v1317 = vld [vmem:[%s189 + $0x2040] sm:$0xff]
        %v1318 = vld [vmem:[%s189 + $0x2048] sm:$0xff]
        %v1319 = vld [vmem:[%s189 + $0x2050] sm:$0xff]
        %v1320 = vld [vmem:[%s189 + $0x2058] sm:$0xff]
        %v1321 = vld [vmem:[%s189 + $0x2060] sm:$0xff]
        %v1322 = vld [vmem:[%s189 + $0x2068] sm:$0xff]
        %v1323 = vld [vmem:[%s189 + $0x2070] sm:$0xff]
        %v1324 = vld [vmem:[%s189 + $0x2078] sm:$0xff]
        %v1325 = vld [vmem:[%s189 + $0x2080] sm:$0xff]
        %v1326 = vld [vmem:[%s189 + $0x2088] sm:$0xff]
        %v1327 = vld [vmem:[%s189 + $0x2090] sm:$0xff]
        %v1328 = vld [vmem:[%s189 + $0x2098] sm:$0xff]
        %v1329 = vld [vmem:[%s189 + $0x20a0] sm:$0xff]
        %v1330 = vld [vmem:[%s189 + $0x20a8] sm:$0xff]
        %v1331 = vld [vmem:[%s189 + $0x20b0] sm:$0xff]
        %v1332 = vld [vmem:[%s189 + $0x20b8] sm:$0xff]
        %v1333 = vld [vmem:[%s189 + $0x20c0] sm:$0xff]
        %v1334 = vld [vmem:[%s189 + $0x20c8] sm:$0xff]
        %v1335 = vld [vmem:[%s189 + $0x20d0] sm:$0xff]
        %v1336 = vld [vmem:[%s189 + $0x20d8] sm:$0xff]
        %v1337 = vld [vmem:[%s189 + $0x20e0] sm:$0xff]
        %v1338 = vld [vmem:[%s189 + $0x20e8] sm:$0xff]
        %v1339 = vld [vmem:[%s189 + $0x20f0] sm:$0xff]
        %v1340 = vld [vmem:[%s189 + $0x20f8] sm:$0xff]
        %v1341 = vld [vmem:[%s189 + $0x2100] sm:$0xff]
        %v1342 = vld [vmem:[%s189 + $0x2108] sm:$0xff]
        %v1343 = vld [vmem:[%s189 + $0x2110] sm:$0xff]
        %v1344 = vld [vmem:[%s189 + $0x2118] sm:$0xff]
        %v1345 = vld [vmem:[%s189 + $0x2120] sm:$0xff]
        %v1346 = vld [vmem:[%s189 + $0x2128] sm:$0xff]
        %v1347 = vld [vmem:[%s189 + $0x2130] sm:$0xff]
        %v1348 = vld [vmem:[%s189 + $0x2138] sm:$0xff]
        %v1349 = vld [vmem:[%s189 + $0x2140] sm:$0xff]
        %v1350 = vld [vmem:[%s189 + $0x2148] sm:$0xff]
        %v1351 = vld [vmem:[%s189 + $0x2150] sm:$0xff]
        %v1352 = vld [vmem:[%s189 + $0x2158] sm:$0xff]
        %v1353 = vld [vmem:[%s189 + $0x2160] sm:$0xff]
        %v1354 = vld [vmem:[%s189 + $0x2168] sm:$0xff]
        %v1355 = vld [vmem:[%s189 + $0x2170] sm:$0xff]
        %v1356 = vld [vmem:[%s189 + $0x2178] sm:$0xff]
        %v1357 = vld [vmem:[%s189 + $0x2180] sm:$0xff]
        %v1358 = vld [vmem:[%s189 + $0x2188] sm:$0xff]
        %v1359 = vld [vmem:[%s189 + $0x2190] sm:$0xff]
        %v1360 = vld [vmem:[%s189 + $0x2198] sm:$0xff]
        %v1361 = vld [vmem:[%s189 + $0x21a0] sm:$0xff]
        %v1362 = vld [vmem:[%s189 + $0x21a8] sm:$0xff]
        %v1363 = vld [vmem:[%s189 + $0x21b0] sm:$0xff]
        %v1364 = vld [vmem:[%s189 + $0x21b8] sm:$0xff]
        %v1365 = vld [vmem:[%s189 + $0x21c0] sm:$0xff]
        %v1366 = vld [vmem:[%s189 + $0x21c8] sm:$0xff]
        %v1367 = vld [vmem:[%s189 + $0x21d0] sm:$0xff]
        %v1368 = vld [vmem:[%s189 + $0x21d8] sm:$0xff]
        %v1369 = vld [vmem:[%s189 + $0x21e0] sm:$0xff]
        %v1370 = vld [vmem:[%s189 + $0x21e8] sm:$0xff]
        %v1371 = vld [vmem:[%s189 + $0x21f0] sm:$0xff]
        %v1372 = vld [vmem:[%s189 + $0x21f8] sm:$0xff]
        %v1373 = vld [vmem:[%s189 + $0x2200] sm:$0xff]
        %v1374 = vld [vmem:[%s189 + $0x2208] sm:$0xff]
        %v1375 = vld [vmem:[%s189 + $0x2210] sm:$0xff]
        %v1376 = vld [vmem:[%s189 + $0x2218] sm:$0xff]
        %v1377 = vld [vmem:[%s189 + $0x2220] sm:$0xff]
        %v1378 = vld [vmem:[%s189 + $0x2228] sm:$0xff]
        %v1379 = vld [vmem:[%s189 + $0x2230] sm:$0xff]
        %v1380 = vld [vmem:[%s189 + $0x2238] sm:$0xff]
        %v1381 = vld [vmem:[%s189 + $0x2240] sm:$0xff]
        %v1382 = vld [vmem:[%s189 + $0x2248] sm:$0xff]
        %v1383 = vld [vmem:[%s189 + $0x2250] sm:$0xff]
        %v1384 = vld [vmem:[%s189 + $0x2258] sm:$0xff]
        %v1385 = vld [vmem:[%s189 + $0x2260] sm:$0xff]
        %v1386 = vld [vmem:[%s189 + $0x2268] sm:$0xff]
        %v1387 = vld [vmem:[%s189 + $0x2270] sm:$0xff]
        %v1388 = vld [vmem:[%s189 + $0x2278] sm:$0xff]
        %v1389 = vld [vmem:[%s189 + $0x2280] sm:$0xff]
        %v1390 = vld [vmem:[%s189 + $0x2288] sm:$0xff]
        %v1391 = vld [vmem:[%s189 + $0x2290] sm:$0xff]
        %v1392 = vld [vmem:[%s189 + $0x2298] sm:$0xff]
        %v1393 = vld [vmem:[%s189 + $0x22a0] sm:$0xff]
        %v1394 = vld [vmem:[%s189 + $0x22a8] sm:$0xff]
        %v1395 = vld [vmem:[%s189 + $0x22b0] sm:$0xff]
        %v1396 = vld [vmem:[%s189 + $0x22b8] sm:$0xff]
        %v1397 = vld [vmem:[%s189 + $0x22c0] sm:$0xff]
        %v1398 = vld [vmem:[%s189 + $0x22c8] sm:$0xff]
        %v1399 = vld [vmem:[%s189 + $0x22d0] sm:$0xff]
        %v1400 = vld [vmem:[%s189 + $0x22d8] sm:$0xff]
        %v1401 = vld [vmem:[%s189 + $0x22e0] sm:$0xff]
        %v1402 = vld [vmem:[%s189 + $0x22e8] sm:$0xff]
        %v1403 = vld [vmem:[%s189 + $0x22f0] sm:$0xff]
        %v1404 = vld [vmem:[%s189 + $0x22f8] sm:$0xff]
        %v1405 = vld [vmem:[%s189 + $0x2300] sm:$0xff]
        %v1406 = vld [vmem:[%s189 + $0x2308] sm:$0xff]
        %v1407 = vld [vmem:[%s189 + $0x2310] sm:$0xff]
        %v1408 = vld [vmem:[%s189 + $0x2318] sm:$0xff]
        %v1409 = vld [vmem:[%s189 + $0x2320] sm:$0xff]
        %v1410 = vld [vmem:[%s189 + $0x2328] sm:$0xff]
        %v1411 = vld [vmem:[%s189 + $0x2330] sm:$0xff]
        %v1412 = vld [vmem:[%s189 + $0x2338] sm:$0xff]
        %v1413 = vld [vmem:[%s189 + $0x2340] sm:$0xff]
        %v1414 = vld [vmem:[%s189 + $0x2348] sm:$0xff]
        %v1415 = vld [vmem:[%s189 + $0x2350] sm:$0xff]
        %v1416 = vld [vmem:[%s189 + $0x2358] sm:$0xff]
        %v1417 = vld [vmem:[%s189 + $0x2360] sm:$0xff]
        %v1418 = vld [vmem:[%s189 + $0x2368] sm:$0xff]
        %v1419 = vld [vmem:[%s189 + $0x2370] sm:$0xff]
        %v1420 = vld [vmem:[%s189 + $0x2378] sm:$0xff]
        %v1421 = vld [vmem:[%s189 + $0x2380] sm:$0xff]
        %v1422 = vld [vmem:[%s189 + $0x2388] sm:$0xff]
        %v1423 = vld [vmem:[%s189 + $0x2390] sm:$0xff]
        %v1424 = vld [vmem:[%s189 + $0x2398] sm:$0xff]
        %v1425 = vld [vmem:[%s189 + $0x23a0] sm:$0xff]
        %v1426 = vld [vmem:[%s189 + $0x23a8] sm:$0xff]
        %v1427 = vld [vmem:[%s189 + $0x23b0] sm:$0xff]
        %v1428 = vld [vmem:[%s189 + $0x23b8] sm:$0xff]
        %v1429 = vld [vmem:[%s189 + $0x23c0] sm:$0xff]
        %v1430 = vld [vmem:[%s189 + $0x23c8] sm:$0xff]
        %v1431 = vld [vmem:[%s189 + $0x23d0] sm:$0xff]
        %v1432 = vld [vmem:[%s189 + $0x23d8] sm:$0xff]
        %v1433 = vld [vmem:[%s189 + $0x23e0] sm:$0xff]
        %v1434 = vld [vmem:[%s189 + $0x23e8] sm:$0xff]
        %v1435 = vld [vmem:[%s189 + $0x23f0] sm:$0xff]
        %v1436 = vld [vmem:[%s189 + $0x23f8] sm:$0xff]
        %v1437 = vld [vmem:[%s189 + $0x2400] sm:$0xff]
        %v1438 = vld [vmem:[%s189 + $0x2408] sm:$0xff]
        %v1439 = vld [vmem:[%s189 + $0x2410] sm:$0xff]
        %v1440 = vld [vmem:[%s189 + $0x2418] sm:$0xff]
        %v1441 = vld [vmem:[%s189 + $0x2420] sm:$0xff]
        %v1442 = vld [vmem:[%s189 + $0x2428] sm:$0xff]
        %v1443 = vld [vmem:[%s189 + $0x2430] sm:$0xff]
        %v1444 = vld [vmem:[%s189 + $0x2438] sm:$0xff]
        %v1445 = vld [vmem:[%s189 + $0x2440] sm:$0xff]
        %v1446 = vld [vmem:[%s189 + $0x2448] sm:$0xff]
        %v1447 = vld [vmem:[%s189 + $0x2450] sm:$0xff]
        %v1448 = vld [vmem:[%s189 + $0x2458] sm:$0xff]
        %v1449 = vld [vmem:[%s189 + $0x2460] sm:$0xff]
        %v1450 = vld [vmem:[%s189 + $0x2468] sm:$0xff]
        %v1451 = vld [vmem:[%s189 + $0x2470] sm:$0xff]
        %v1452 = vld [vmem:[%s189 + $0x2478] sm:$0xff]
        %v1453 = vld [vmem:[%s189 + $0x2480] sm:$0xff]
        %v1454 = vld [vmem:[%s189 + $0x2488] sm:$0xff]
        %v1455 = vld [vmem:[%s189 + $0x2490] sm:$0xff]
        %v1456 = vld [vmem:[%s189 + $0x2498] sm:$0xff]
        %v1457 = vld [vmem:[%s189 + $0x24a0] sm:$0xff]
        %v1458 = vld [vmem:[%s189 + $0x24a8] sm:$0xff]
        %v1459 = vld [vmem:[%s189 + $0x24b0] sm:$0xff]
        %v1460 = vld [vmem:[%s189 + $0x24b8] sm:$0xff]
        %v1461 = vld [vmem:[%s189 + $0x24c0] sm:$0xff]
        %v1462 = vld [vmem:[%s189 + $0x24c8] sm:$0xff]
        %v1463 = vld [vmem:[%s189 + $0x24d0] sm:$0xff]
        %v1464 = vld [vmem:[%s189 + $0x24d8] sm:$0xff]
        %v1465 = vld [vmem:[%s189 + $0x24e0] sm:$0xff]
        %v1466 = vld [vmem:[%s189 + $0x24e8] sm:$0xff]
        %v1467 = vld [vmem:[%s189 + $0x24f0] sm:$0xff]
        %v1468 = vld [vmem:[%s189 + $0x24f8] sm:$0xff]
        %v1469 = vld [vmem:[%s189 + $0x2500] sm:$0xff]
        %v1470 = vld [vmem:[%s189 + $0x2508] sm:$0xff]
        %v1471 = vld [vmem:[%s189 + $0x2510] sm:$0xff]
        %v1472 = vld [vmem:[%s189 + $0x2518] sm:$0xff]
        %v1473 = vld [vmem:[%s189 + $0x2520] sm:$0xff]
        %v1474 = vld [vmem:[%s189 + $0x2528] sm:$0xff]
        %v1475 = vld [vmem:[%s189 + $0x2530] sm:$0xff]
        %v1476 = vld [vmem:[%s189 + $0x2538] sm:$0xff]
        %v1477 = vld [vmem:[%s189 + $0x2540] sm:$0xff]
        %v1478 = vld [vmem:[%s189 + $0x2548] sm:$0xff]
        %v1479 = vld [vmem:[%s189 + $0x2550] sm:$0xff]
        %v1480 = vld [vmem:[%s189 + $0x2558] sm:$0xff]
        %v1481 = vld [vmem:[%s189 + $0x2560] sm:$0xff]
        %v1482 = vld [vmem:[%s189 + $0x2568] sm:$0xff]
        %v1483 = vld [vmem:[%s189 + $0x2570] sm:$0xff]
        %v1484 = vld [vmem:[%s189 + $0x2578] sm:$0xff]
        %v1485 = vld [vmem:[%s189 + $0x2580] sm:$0xff]
        %v1486 = vld [vmem:[%s189 + $0x2588] sm:$0xff]
        %v1487 = vld [vmem:[%s189 + $0x2590] sm:$0xff]
        %v1488 = vld [vmem:[%s189 + $0x2598] sm:$0xff]
        %v1489 = vld [vmem:[%s189 + $0x25a0] sm:$0xff]
        %v1490 = vld [vmem:[%s189 + $0x25a8] sm:$0xff]
        %v1491 = vld [vmem:[%s189 + $0x25b0] sm:$0xff]
        %v1492 = vld [vmem:[%s189 + $0x25b8] sm:$0xff]
        %v1493 = vld [vmem:[%s189 + $0x25c0] sm:$0xff]
        %v1494 = vld [vmem:[%s189 + $0x25c8] sm:$0xff]
        %v1495 = vld [vmem:[%s189 + $0x25d0] sm:$0xff]
        %v1496 = vld [vmem:[%s189 + $0x25d8] sm:$0xff]
        %v1497 = vld [vmem:[%s189 + $0x25e0] sm:$0xff]
        %v1498 = vld [vmem:[%s189 + $0x25e8] sm:$0xff]
        %v1499 = vld [vmem:[%s189 + $0x25f0] sm:$0xff]
        %v1500 = vld [vmem:[%s189 + $0x25f8] sm:$0xff]
        %v1501 = vld [vmem:[%s189 + $0x2600] sm:$0xff]
        %v1502 = vld [vmem:[%s189 + $0x2608] sm:$0xff]
        %v1503 = vld [vmem:[%s189 + $0x2610] sm:$0xff]
        %v1504 = vld [vmem:[%s189 + $0x2618] sm:$0xff]
        %v1505 = vld [vmem:[%s189 + $0x2620] sm:$0xff]
        %v1506 = vld [vmem:[%s189 + $0x2628] sm:$0xff]
        %v1507 = vld [vmem:[%s189 + $0x2630] sm:$0xff]
        %v1508 = vld [vmem:[%s189 + $0x2638] sm:$0xff]
        %v1509 = vld [vmem:[%s189 + $0x2640] sm:$0xff]
        %v1510 = vld [vmem:[%s189 + $0x2648] sm:$0xff]
        %v1511 = vld [vmem:[%s189 + $0x2650] sm:$0xff]
        %v1512 = vld [vmem:[%s189 + $0x2658] sm:$0xff]
        %v1513 = vld [vmem:[%s189 + $0x2660] sm:$0xff]
        %v1514 = vld [vmem:[%s189 + $0x2668] sm:$0xff]
        %v1515 = vld [vmem:[%s189 + $0x2670] sm:$0xff]
        %v1516 = vld [vmem:[%s189 + $0x2678] sm:$0xff]
        %v1517 = vld [vmem:[%s189 + $0x2680] sm:$0xff]
        %v1518 = vld [vmem:[%s189 + $0x2688] sm:$0xff]
        %v1519 = vld [vmem:[%s189 + $0x2690] sm:$0xff]
        %v1520 = vld [vmem:[%s189 + $0x2698] sm:$0xff]
        %v1521 = vld [vmem:[%s189 + $0x26a0] sm:$0xff]
        %v1522 = vld [vmem:[%s189 + $0x26a8] sm:$0xff]
        %v1523 = vld [vmem:[%s189 + $0x26b0] sm:$0xff]
        %v1524 = vld [vmem:[%s189 + $0x26b8] sm:$0xff]
        %v1525 = vld [vmem:[%s189 + $0x26c0] sm:$0xff]
        %v1526 = vld [vmem:[%s189 + $0x26c8] sm:$0xff]
        %v1527 = vld [vmem:[%s189 + $0x26d0] sm:$0xff]
        %v1528 = vld [vmem:[%s189 + $0x26d8] sm:$0xff]
        %v1529 = vld [vmem:[%s189 + $0x26e0] sm:$0xff]
        %v1530 = vld [vmem:[%s189 + $0x26e8] sm:$0xff]
        %v1531 = vld [vmem:[%s189 + $0x26f0] sm:$0xff]
        %v1532 = vld [vmem:[%s189 + $0x26f8] sm:$0xff]
        %v1533 = vld [vmem:[%s189 + $0x2700] sm:$0xff]
        %v1534 = vld [vmem:[%s189 + $0x2708] sm:$0xff]
        %v1535 = vld [vmem:[%s189 + $0x2710] sm:$0xff]
        %v1536 = vld [vmem:[%s189 + $0x2718] sm:$0xff]
        %v1537 = vld [vmem:[%s189 + $0x2720] sm:$0xff]
        %v1538 = vld [vmem:[%s189 + $0x2728] sm:$0xff]
        %v1539 = vld [vmem:[%s189 + $0x2730] sm:$0xff]
        %v1540 = vld [vmem:[%s189 + $0x2738] sm:$0xff]
        %v1541 = vld [vmem:[%s189 + $0x2740] sm:$0xff]
        %v1542 = vld [vmem:[%s189 + $0x2748] sm:$0xff]
        %v1543 = vld [vmem:[%s189 + $0x2750] sm:$0xff]
        %v1544 = vld [vmem:[%s189 + $0x2758] sm:$0xff]
        %v1545 = vld [vmem:[%s189 + $0x2760] sm:$0xff]
        %v1546 = vld [vmem:[%s189 + $0x2768] sm:$0xff]
        %v1547 = vld [vmem:[%s189 + $0x2770] sm:$0xff]
        %v1548 = vld [vmem:[%s189 + $0x2778] sm:$0xff]
        %v1549 = vld [vmem:[%s189 + $0x2780] sm:$0xff]
        %v1550 = vld [vmem:[%s189 + $0x2788] sm:$0xff]
        %v1551 = vld [vmem:[%s189 + $0x2790] sm:$0xff]
        %v1552 = vld [vmem:[%s189 + $0x2798] sm:$0xff]
        %v1553 = vld [vmem:[%s189 + $0x27a0] sm:$0xff]
        %v1554 = vld [vmem:[%s189 + $0x27a8] sm:$0xff]
        %v1555 = vld [vmem:[%s189 + $0x27b0] sm:$0xff]
        %v1556 = vld [vmem:[%s189 + $0x27b8] sm:$0xff]
        %v1557 = vld [vmem:[%s189 + $0x27c0] sm:$0xff]
        %v1558 = vld [vmem:[%s189 + $0x27c8] sm:$0xff]
        %v1559 = vld [vmem:[%s189 + $0x27d0] sm:$0xff]
        %v1560 = vld [vmem:[%s189 + $0x27d8] sm:$0xff]
        %v1561 = vld [vmem:[%s189 + $0x27e0] sm:$0xff]
        %v1562 = vld [vmem:[%s189 + $0x27e8] sm:$0xff]
        %v1563 = vld [vmem:[%s189 + $0x27f0] sm:$0xff]
        %v1564 = vld [vmem:[%s189 + $0x27f8] sm:$0xff]
        %v1565 = vld [vmem:[%s189 + $0x2800] sm:$0xff]
        %v1566 = vld [vmem:[%s189 + $0x2808] sm:$0xff]
        %v1567 = vld [vmem:[%s189 + $0x2810] sm:$0xff]
        %v1568 = vld [vmem:[%s189 + $0x2818] sm:$0xff]
        %v1569 = vld [vmem:[%s189 + $0x2820] sm:$0xff]
        %v1570 = vld [vmem:[%s189 + $0x2828] sm:$0xff]
        %v1571 = vld [vmem:[%s189 + $0x2830] sm:$0xff]
        %v1572 = vld [vmem:[%s189 + $0x2838] sm:$0xff]
        %v1573 = vld [vmem:[%s189 + $0x2840] sm:$0xff]
        %v1574 = vld [vmem:[%s189 + $0x2848] sm:$0xff]
        %v1575 = vld [vmem:[%s189 + $0x2850] sm:$0xff]
        %v1576 = vld [vmem:[%s189 + $0x2858] sm:$0xff]
        %v1577 = vld [vmem:[%s189 + $0x2860] sm:$0xff]
        %v1578 = vld [vmem:[%s189 + $0x2868] sm:$0xff]
        %v1579 = vld [vmem:[%s189 + $0x2870] sm:$0xff]
        %v1580 = vld [vmem:[%s189 + $0x2878] sm:$0xff]
        %v1581 = vld [vmem:[%s189 + $0x2880] sm:$0xff]
        %v1582 = vld [vmem:[%s189 + $0x2888] sm:$0xff]
        %v1583 = vld [vmem:[%s189 + $0x2890] sm:$0xff]
        %v1584 = vld [vmem:[%s189 + $0x2898] sm:$0xff]
        %v1585 = vld [vmem:[%s189 + $0x28a0] sm:$0xff]
        %v1586 = vld [vmem:[%s189 + $0x28a8] sm:$0xff]
        %v1587 = vld [vmem:[%s189 + $0x28b0] sm:$0xff]
        %v1588 = vld [vmem:[%s189 + $0x28b8] sm:$0xff]
        %v1589 = vld [vmem:[%s189 + $0x28c0] sm:$0xff]
        %v1590 = vld [vmem:[%s189 + $0x28c8] sm:$0xff]
        %v1591 = vld [vmem:[%s189 + $0x28d0] sm:$0xff]
        %v1592 = vld [vmem:[%s189 + $0x28d8] sm:$0xff]
        %v1593 = vld [vmem:[%s189 + $0x28e0] sm:$0xff]
        %v1594 = vld [vmem:[%s189 + $0x28e8] sm:$0xff]
        %v1595 = vld [vmem:[%s189 + $0x28f0] sm:$0xff]
        %v1596 = vld [vmem:[%s189 + $0x28f8] sm:$0xff]
        %v1597 = vld [vmem:[%s189 + $0x2900] sm:$0xff]
        %v1598 = vld [vmem:[%s189 + $0x2908] sm:$0xff]
        %v1599 = vld [vmem:[%s189 + $0x2910] sm:$0xff]
        %v1600 = vld [vmem:[%s189 + $0x2918] sm:$0xff]
        %v1601 = vld [vmem:[%s189 + $0x2920] sm:$0xff]
        %v1602 = vld [vmem:[%s189 + $0x2928] sm:$0xff]
        %v1603 = vld [vmem:[%s189 + $0x2930] sm:$0xff]
        %v1604 = vld [vmem:[%s189 + $0x2938] sm:$0xff]
        %v1605 = vld [vmem:[%s189 + $0x2940] sm:$0xff]
        %v1606 = vld [vmem:[%s189 + $0x2948] sm:$0xff]
        %v1607 = vld [vmem:[%s189 + $0x2950] sm:$0xff]
        %v1608 = vld [vmem:[%s189 + $0x2958] sm:$0xff]
        %v1609 = vld [vmem:[%s189 + $0x2960] sm:$0xff]
        %v1610 = vld [vmem:[%s189 + $0x2968] sm:$0xff]
        %v1611 = vld [vmem:[%s189 + $0x2970] sm:$0xff]
        %v1612 = vld [vmem:[%s189 + $0x2978] sm:$0xff]
        %v1613 = vld [vmem:[%s189 + $0x2980] sm:$0xff]
        %v1614 = vld [vmem:[%s189 + $0x2988] sm:$0xff]
        %v1615 = vld [vmem:[%s189 + $0x2990] sm:$0xff]
        %v1616 = vld [vmem:[%s189 + $0x2998] sm:$0xff]
        %v1617 = vld [vmem:[%s189 + $0x29a0] sm:$0xff]
        %v1618 = vld [vmem:[%s189 + $0x29a8] sm:$0xff]
        %v1619 = vld [vmem:[%s189 + $0x29b0] sm:$0xff]
        %v1620 = vld [vmem:[%s189 + $0x29b8] sm:$0xff]
        %v1621 = vld [vmem:[%s189 + $0x29c0] sm:$0xff]
        %v1622 = vld [vmem:[%s189 + $0x29c8] sm:$0xff]
        %v1623 = vld [vmem:[%s189 + $0x29d0] sm:$0xff]
        %v1624 = vld [vmem:[%s189 + $0x29d8] sm:$0xff]
        %v1625 = vld [vmem:[%s189 + $0x29e0] sm:$0xff]
        %v1626 = vld [vmem:[%s189 + $0x29e8] sm:$0xff]
        %v1627 = vld [vmem:[%s189 + $0x29f0] sm:$0xff]
        %v1628 = vld [vmem:[%s189 + $0x29f8] sm:$0xff]
        %v1629 = vld [vmem:[%s189 + $0x2a00] sm:$0xff]
        %v1630 = vld [vmem:[%s189 + $0x2a08] sm:$0xff]
        %v1631 = vld [vmem:[%s189 + $0x2a10] sm:$0xff]
        %v1632 = vld [vmem:[%s189 + $0x2a18] sm:$0xff]
        %v1633 = vld [vmem:[%s189 + $0x2a20] sm:$0xff]
        %v1634 = vld [vmem:[%s189 + $0x2a28] sm:$0xff]
        %v1635 = vld [vmem:[%s189 + $0x2a30] sm:$0xff]
        %v1636 = vld [vmem:[%s189 + $0x2a38] sm:$0xff]
        %v1637 = vld [vmem:[%s189 + $0x2a40] sm:$0xff]
        %v1638 = vld [vmem:[%s189 + $0x2a48] sm:$0xff]
        %v1639 = vld [vmem:[%s189 + $0x2a50] sm:$0xff]
        %v1640 = vld [vmem:[%s189 + $0x2a58] sm:$0xff]
        %v1641 = vld [vmem:[%s189 + $0x2a60] sm:$0xff]
        %v1642 = vld [vmem:[%s189 + $0x2a68] sm:$0xff]
        %v1643 = vld [vmem:[%s189 + $0x2a70] sm:$0xff]
        %v1644 = vld [vmem:[%s189 + $0x2a78] sm:$0xff]
        %v1645 = vld [vmem:[%s189 + $0x2a80] sm:$0xff]
        %v1646 = vld [vmem:[%s189 + $0x2a88] sm:$0xff]
        %v1647 = vld [vmem:[%s189 + $0x2a90] sm:$0xff]
        %v1648 = vld [vmem:[%s189 + $0x2a98] sm:$0xff]
        %v1649 = vld [vmem:[%s189 + $0x2aa0] sm:$0xff]
        %v1650 = vld [vmem:[%s189 + $0x2aa8] sm:$0xff]
        %v1651 = vld [vmem:[%s189 + $0x2ab0] sm:$0xff]
        %v1652 = vld [vmem:[%s189 + $0x2ab8] sm:$0xff]
        %v1653 = vld [vmem:[%s189 + $0x2ac0] sm:$0xff]
        %v1654 = vld [vmem:[%s189 + $0x2ac8] sm:$0xff]
        %v1655 = vld [vmem:[%s189 + $0x2ad0] sm:$0xff]
        %v1656 = vld [vmem:[%s189 + $0x2ad8] sm:$0xff]
        %v1657 = vld [vmem:[%s189 + $0x2ae0] sm:$0xff]
        %v1658 = vld [vmem:[%s189 + $0x2ae8] sm:$0xff]
        %v1659 = vld [vmem:[%s189 + $0x2af0] sm:$0xff]
        %v1660 = vld [vmem:[%s189 + $0x2af8] sm:$0xff]
        %v1661 = vld [vmem:[%s189 + $0x2b00] sm:$0xff]
        %v1662 = vld [vmem:[%s189 + $0x2b08] sm:$0xff]
        %v1663 = vld [vmem:[%s189 + $0x2b10] sm:$0xff]
        %v1664 = vld [vmem:[%s189 + $0x2b18] sm:$0xff]
        %v1665 = vld [vmem:[%s189 + $0x2b20] sm:$0xff]
        %v1666 = vld [vmem:[%s189 + $0x2b28] sm:$0xff]
        %v1667 = vld [vmem:[%s189 + $0x2b30] sm:$0xff]
        %v1668 = vld [vmem:[%s189 + $0x2b38] sm:$0xff]
        %v1669 = vld [vmem:[%s189 + $0x2b40] sm:$0xff]
        %v1670 = vld [vmem:[%s189 + $0x2b48] sm:$0xff]
        %v1671 = vld [vmem:[%s189 + $0x2b50] sm:$0xff]
        %v1672 = vld [vmem:[%s189 + $0x2b58] sm:$0xff]
        %v1673 = vld [vmem:[%s189 + $0x2b60] sm:$0xff]
        %v1674 = vld [vmem:[%s189 + $0x2b68] sm:$0xff]
        %v1675 = vld [vmem:[%s189 + $0x2b70] sm:$0xff]
        %v1676 = vld [vmem:[%s189 + $0x2b78] sm:$0xff]
        %v1677 = vld [vmem:[%s189 + $0x2b80] sm:$0xff]
        %v1678 = vld [vmem:[%s189 + $0x2b88] sm:$0xff]
        %v1679 = vld [vmem:[%s189 + $0x2b90] sm:$0xff]
        %v1680 = vld [vmem:[%s189 + $0x2b98] sm:$0xff]
        %v1681 = vld [vmem:[%s189 + $0x2ba0] sm:$0xff]
        %v1682 = vld [vmem:[%s189 + $0x2ba8] sm:$0xff]
        %v1683 = vld [vmem:[%s189 + $0x2bb0] sm:$0xff]
        %v1684 = vld [vmem:[%s189 + $0x2bb8] sm:$0xff]
        %v1685 = vld [vmem:[%s189 + $0x2bc0] sm:$0xff]
        %v1686 = vld [vmem:[%s189 + $0x2bc8] sm:$0xff]
        %v1687 = vld [vmem:[%s189 + $0x2bd0] sm:$0xff]
        %v1688 = vld [vmem:[%s189 + $0x2bd8] sm:$0xff]
        %v1689 = vld [vmem:[%s189 + $0x2be0] sm:$0xff]
        %v1690 = vld [vmem:[%s189 + $0x2be8] sm:$0xff]
        %v1691 = vld [vmem:[%s189 + $0x2bf0] sm:$0xff]
        %v1692 = vld [vmem:[%s189 + $0x2bf8] sm:$0xff]
        %v1693 = vld [vmem:[%s189 + $0x2c00] sm:$0xff]
        %v1694 = vld [vmem:[%s189 + $0x2c08] sm:$0xff]
        %v1695 = vld [vmem:[%s189 + $0x2c10] sm:$0xff]
        %v1696 = vld [vmem:[%s189 + $0x2c18] sm:$0xff]
        %v1697 = vld [vmem:[%s189 + $0x2c20] sm:$0xff]
        %v1698 = vld [vmem:[%s189 + $0x2c28] sm:$0xff]
        %v1699 = vld [vmem:[%s189 + $0x2c30] sm:$0xff]
        %v1700 = vld [vmem:[%s189 + $0x2c38] sm:$0xff]
        %v1701 = vld [vmem:[%s189 + $0x2c40] sm:$0xff]
        %v1702 = vld [vmem:[%s189 + $0x2c48] sm:$0xff]
        %v1703 = vld [vmem:[%s189 + $0x2c50] sm:$0xff]
        %v1704 = vld [vmem:[%s189 + $0x2c58] sm:$0xff]
        %v1705 = vld [vmem:[%s189 + $0x2c60] sm:$0xff]
        %v1706 = vld [vmem:[%s189 + $0x2c68] sm:$0xff]
        %v1707 = vld [vmem:[%s189 + $0x2c70] sm:$0xff]
        %v1708 = vld [vmem:[%s189 + $0x2c78] sm:$0xff]
        %v1709 = vld [vmem:[%s189 + $0x2c80] sm:$0xff]
        %v1710 = vld [vmem:[%s189 + $0x2c88] sm:$0xff]
        %v1711 = vld [vmem:[%s189 + $0x2c90] sm:$0xff]
        %v1712 = vld [vmem:[%s189 + $0x2c98] sm:$0xff]
        %v1713 = vld [vmem:[%s189 + $0x2ca0] sm:$0xff]
        %v1714 = vld [vmem:[%s189 + $0x2ca8] sm:$0xff]
        %v1715 = vld [vmem:[%s189 + $0x2cb0] sm:$0xff]
        %v1716 = vld [vmem:[%s189 + $0x2cb8] sm:$0xff]
        %v1717 = vld [vmem:[%s189 + $0x2cc0] sm:$0xff]
        %v1718 = vld [vmem:[%s189 + $0x2cc8] sm:$0xff]
        %v1719 = vld [vmem:[%s189 + $0x2cd0] sm:$0xff]
        %v1720 = vld [vmem:[%s189 + $0x2cd8] sm:$0xff]
        %v1721 = vld [vmem:[%s189 + $0x2ce0] sm:$0xff]
        %v1722 = vld [vmem:[%s189 + $0x2ce8] sm:$0xff]
        %v1723 = vld [vmem:[%s189 + $0x2cf0] sm:$0xff]
        %v1724 = vld [vmem:[%s189 + $0x2cf8] sm:$0xff]
        %v1725 = vld [vmem:[%s189 + $0x2d00] sm:$0xff]
        %v1726 = vld [vmem:[%s189 + $0x2d08] sm:$0xff]
        %v1727 = vld [vmem:[%s189 + $0x2d10] sm:$0xff]
        %v1728 = vld [vmem:[%s189 + $0x2d18] sm:$0xff]
        %v1729 = vld [vmem:[%s189 + $0x2d20] sm:$0xff]
        %v1730 = vld [vmem:[%s189 + $0x2d28] sm:$0xff]
        %v1731 = vld [vmem:[%s189 + $0x2d30] sm:$0xff]
        %v1732 = vld [vmem:[%s189 + $0x2d38] sm:$0xff]
        %v1733 = vld [vmem:[%s189 + $0x2d40] sm:$0xff]
        %v1734 = vld [vmem:[%s189 + $0x2d48] sm:$0xff]
        %v1735 = vld [vmem:[%s189 + $0x2d50] sm:$0xff]
        %v1736 = vld [vmem:[%s189 + $0x2d58] sm:$0xff]
        %v1737 = vld [vmem:[%s189 + $0x2d60] sm:$0xff]
        %v1738 = vld [vmem:[%s189 + $0x2d68] sm:$0xff]
        %v1739 = vld [vmem:[%s189 + $0x2d70] sm:$0xff]
        %v1740 = vld [vmem:[%s189 + $0x2d78] sm:$0xff]
        %v1741 = vld [vmem:[%s189 + $0x2d80] sm:$0xff]
        %v1742 = vld [vmem:[%s189 + $0x2d88] sm:$0xff]
        %v1743 = vld [vmem:[%s189 + $0x2d90] sm:$0xff]
        %v1744 = vld [vmem:[%s189 + $0x2d98] sm:$0xff]
        %v1745 = vld [vmem:[%s189 + $0x2da0] sm:$0xff]
        %v1746 = vld [vmem:[%s189 + $0x2da8] sm:$0xff]
        %v1747 = vld [vmem:[%s189 + $0x2db0] sm:$0xff]
        %v1748 = vld [vmem:[%s189 + $0x2db8] sm:$0xff]
        %v1749 = vld [vmem:[%s189 + $0x2dc0] sm:$0xff]
        %v1750 = vld [vmem:[%s189 + $0x2dc8] sm:$0xff]
        %v1751 = vld [vmem:[%s189 + $0x2dd0] sm:$0xff]
        %v1752 = vld [vmem:[%s189 + $0x2dd8] sm:$0xff]
        %v1753 = vld [vmem:[%s189 + $0x2de0] sm:$0xff]
        %v1754 = vld [vmem:[%s189 + $0x2de8] sm:$0xff]
        %v1755 = vld [vmem:[%s189 + $0x2df0] sm:$0xff]
        %v1756 = vld [vmem:[%s189 + $0x2df8] sm:$0xff]
        %v1757 = vld [vmem:[%s189 + $0x2e00] sm:$0xff]
        %v1758 = vld [vmem:[%s189 + $0x2e08] sm:$0xff]
        %v1759 = vld [vmem:[%s189 + $0x2e10] sm:$0xff]
        %v1760 = vld [vmem:[%s189 + $0x2e18] sm:$0xff]
        %v1761 = vld [vmem:[%s189 + $0x2e20] sm:$0xff]
        %v1762 = vld [vmem:[%s189 + $0x2e28] sm:$0xff]
        %v1763 = vld [vmem:[%s189 + $0x2e30] sm:$0xff]
        %v1764 = vld [vmem:[%s189 + $0x2e38] sm:$0xff]
        %v1765 = vld [vmem:[%s189 + $0x2e40] sm:$0xff]
        %v1766 = vld [vmem:[%s189 + $0x2e48] sm:$0xff]
        %v1767 = vld [vmem:[%s189 + $0x2e50] sm:$0xff]
        %v1768 = vld [vmem:[%s189 + $0x2e58] sm:$0xff]
        %v1769 = vld [vmem:[%s189 + $0x2e60] sm:$0xff]
        %v1770 = vld [vmem:[%s189 + $0x2e68] sm:$0xff]
        %v1771 = vld [vmem:[%s189 + $0x2e70] sm:$0xff]
        %v1772 = vld [vmem:[%s189 + $0x2e78] sm:$0xff]
        %v1773 = vld [vmem:[%s189 + $0x2e80] sm:$0xff]
        %v1774 = vld [vmem:[%s189 + $0x2e88] sm:$0xff]
        %v1775 = vld [vmem:[%s189 + $0x2e90] sm:$0xff]
        %v1776 = vld [vmem:[%s189 + $0x2e98] sm:$0xff]
        %v1777 = vld [vmem:[%s189 + $0x2ea0] sm:$0xff]
        %v1778 = vld [vmem:[%s189 + $0x2ea8] sm:$0xff]
        %v1779 = vld [vmem:[%s189 + $0x2eb0] sm:$0xff]
        %v1780 = vld [vmem:[%s189 + $0x2eb8] sm:$0xff]
        %v1781 = vld [vmem:[%s189 + $0x2ec0] sm:$0xff]
        %v1782 = vld [vmem:[%s189 + $0x2ec8] sm:$0xff]
        %v1783 = vld [vmem:[%s189 + $0x2ed0] sm:$0xff]
        %v1784 = vld [vmem:[%s189 + $0x2ed8] sm:$0xff]
        %v1785 = vld [vmem:[%s189 + $0x2ee0] sm:$0xff]
        %v1786 = vld [vmem:[%s189 + $0x2ee8] sm:$0xff]
        %v1787 = vld [vmem:[%s189 + $0x2ef0] sm:$0xff]
        %v1788 = vld [vmem:[%s189 + $0x2ef8] sm:$0xff]
        %v1789 = vld [vmem:[%s189 + $0x2f00] sm:$0xff]
        %v1790 = vld [vmem:[%s189 + $0x2f08] sm:$0xff]
        %v1791 = vld [vmem:[%s189 + $0x2f10] sm:$0xff]
        %v1792 = vld [vmem:[%s189 + $0x2f18] sm:$0xff]
        %v1793 = vld [vmem:[%s189 + $0x2f20] sm:$0xff]
        %v1794 = vld [vmem:[%s189 + $0x2f28] sm:$0xff]
        %v1795 = vld [vmem:[%s189 + $0x2f30] sm:$0xff]
        %v1796 = vld [vmem:[%s189 + $0x2f38] sm:$0xff]
        %v1797 = vld [vmem:[%s189 + $0x2f40] sm:$0xff]
        %v1798 = vld [vmem:[%s189 + $0x2f48] sm:$0xff]
        %v1799 = vld [vmem:[%s189 + $0x2f50] sm:$0xff]
        %v1800 = vld [vmem:[%s189 + $0x2f58] sm:$0xff]
        %v1801 = vld [vmem:[%s189 + $0x2f60] sm:$0xff]
        %v1802 = vld [vmem:[%s189 + $0x2f68] sm:$0xff]
        %v1803 = vld [vmem:[%s189 + $0x2f70] sm:$0xff]
        %v1804 = vld [vmem:[%s189 + $0x2f78] sm:$0xff]
        %v1805 = vld [vmem:[%s189 + $0x2f80] sm:$0xff]
        %v1806 = vld [vmem:[%s189 + $0x2f88] sm:$0xff]
        %v1807 = vld [vmem:[%s189 + $0x2f90] sm:$0xff]
        %v1808 = vld [vmem:[%s189 + $0x2f98] sm:$0xff]
        %v1809 = vld [vmem:[%s189 + $0x2fa0] sm:$0xff]
        %v1810 = vld [vmem:[%s189 + $0x2fa8] sm:$0xff]
        %v1811 = vld [vmem:[%s189 + $0x2fb0] sm:$0xff]
        %v1812 = vld [vmem:[%s189 + $0x2fb8] sm:$0xff]
        %v1813 = vld [vmem:[%s189 + $0x2fc0] sm:$0xff]
        %v1814 = vld [vmem:[%s189 + $0x2fc8] sm:$0xff]
        %v1815 = vld [vmem:[%s189 + $0x2fd0] sm:$0xff]
        %v1816 = vld [vmem:[%s189 + $0x2fd8] sm:$0xff]
        %v1817 = vld [vmem:[%s189 + $0x2fe0] sm:$0xff]
        %v1818 = vld [vmem:[%s189 + $0x2fe8] sm:$0xff]
        %v1819 = vld [vmem:[%s189 + $0x2ff0] sm:$0xff]
        %v1820 = vld [vmem:[%s189 + $0x2ff8] sm:$0xff]
        %v3357 = vunpack.c.l.b16 %v285
        %v3358 = vunpack.c.h.b16 %v285
        %v3359 = vunpack.c.l.b16 %v286
        %v3360 = vunpack.c.h.b16 %v286
        %v3361 = vunpack.c.l.b16 %v287
        %v3362 = vunpack.c.h.b16 %v287
        %v3363 = vunpack.c.l.b16 %v288
        %v3364 = vunpack.c.h.b16 %v288
        %v3365 = vunpack.c.l.b16 %v289
        %v3366 = vunpack.c.h.b16 %v289
        %v3367 = vunpack.c.l.b16 %v290
        %v3368 = vunpack.c.h.b16 %v290
        %v3369 = vunpack.c.l.b16 %v291
        %v3370 = vunpack.c.h.b16 %v291
        %v3371 = vunpack.c.l.b16 %v292
        %v3372 = vunpack.c.h.b16 %v292
        %v3373 = vunpack.c.l.b16 %v293
        %v3374 = vunpack.c.h.b16 %v293
        %v3375 = vunpack.c.l.b16 %v294
        %v3376 = vunpack.c.h.b16 %v294
        %v3377 = vunpack.c.l.b16 %v295
        %v3378 = vunpack.c.h.b16 %v295
        %v3379 = vunpack.c.l.b16 %v296
        %v3380 = vunpack.c.h.b16 %v296
        %v3381 = vunpack.c.l.b16 %v297
        %v3382 = vunpack.c.h.b16 %v297
        %v3383 = vunpack.c.l.b16 %v298
        %v3384 = vunpack.c.h.b16 %v298
        %v3385 = vunpack.c.l.b16 %v299
        %v3386 = vunpack.c.h.b16 %v299
        %v3387 = vunpack.c.l.b16 %v300
        %v3388 = vunpack.c.h.b16 %v300
        %v3389 = vunpack.c.l.b16 %v301
        %v3390 = vunpack.c.h.b16 %v301
        %v3391 = vunpack.c.l.b16 %v302
        %v3392 = vunpack.c.h.b16 %v302
        %v3393 = vunpack.c.l.b16 %v303
        %v3394 = vunpack.c.h.b16 %v303
        %v3395 = vunpack.c.l.b16 %v304
        %v3396 = vunpack.c.h.b16 %v304
        %v3397 = vunpack.c.l.b16 %v305
        %v3398 = vunpack.c.h.b16 %v305
        %v3399 = vunpack.c.l.b16 %v306
        %v3400 = vunpack.c.h.b16 %v306
        %v3401 = vunpack.c.l.b16 %v307
        %v3402 = vunpack.c.h.b16 %v307
        %v3403 = vunpack.c.l.b16 %v308
        %v3404 = vunpack.c.h.b16 %v308
        %v3405 = vunpack.c.l.b16 %v309
        %v3406 = vunpack.c.h.b16 %v309
        %v3407 = vunpack.c.l.b16 %v310
        %v3408 = vunpack.c.h.b16 %v310
        %v3409 = vunpack.c.l.b16 %v311
        %v3410 = vunpack.c.h.b16 %v311
        %v3411 = vunpack.c.l.b16 %v312
        %v3412 = vunpack.c.h.b16 %v312
        %v3413 = vunpack.c.l.b16 %v313
        %v3414 = vunpack.c.h.b16 %v313
        %v3415 = vunpack.c.l.b16 %v314
        %v3416 = vunpack.c.h.b16 %v314
        %v3417 = vunpack.c.l.b16 %v315
        %v3418 = vunpack.c.h.b16 %v315
        %v3419 = vunpack.c.l.b16 %v316
        %v3420 = vunpack.c.h.b16 %v316
        %v3421 = vunpack.c.l.b16 %v317
        %v3422 = vunpack.c.h.b16 %v317
        %v3423 = vunpack.c.l.b16 %v318
        %v3424 = vunpack.c.h.b16 %v318
        %v3425 = vunpack.c.l.b16 %v319
        %v3426 = vunpack.c.h.b16 %v319
        %v3427 = vunpack.c.l.b16 %v320
        %v3428 = vunpack.c.h.b16 %v320
        %v3429 = vunpack.c.l.b16 %v321
        %v3430 = vunpack.c.h.b16 %v321
        %v3431 = vunpack.c.l.b16 %v322
        %v3432 = vunpack.c.h.b16 %v322
        %v3433 = vunpack.c.l.b16 %v323
        %v3434 = vunpack.c.h.b16 %v323
        %v3435 = vunpack.c.l.b16 %v324
        %v3436 = vunpack.c.h.b16 %v324
        %v3437 = vunpack.c.l.b16 %v325
        %v3438 = vunpack.c.h.b16 %v325
        %v3439 = vunpack.c.l.b16 %v326
        %v3440 = vunpack.c.h.b16 %v326
        %v3441 = vunpack.c.l.b16 %v327
        %v3442 = vunpack.c.h.b16 %v327
        %v3443 = vunpack.c.l.b16 %v328
        %v3444 = vunpack.c.h.b16 %v328
        %v3445 = vunpack.c.l.b16 %v329
        %v3446 = vunpack.c.h.b16 %v329
        %v3447 = vunpack.c.l.b16 %v330
        %v3448 = vunpack.c.h.b16 %v330
        %v3449 = vunpack.c.l.b16 %v331
        %v3450 = vunpack.c.h.b16 %v331
        %v3451 = vunpack.c.l.b16 %v332
        %v3452 = vunpack.c.h.b16 %v332
        %v3453 = vunpack.c.l.b16 %v333
        %v3454 = vunpack.c.h.b16 %v333
        %v3455 = vunpack.c.l.b16 %v334
        %v3456 = vunpack.c.h.b16 %v334
        %v3457 = vunpack.c.l.b16 %v335
        %v3458 = vunpack.c.h.b16 %v335
        %v3459 = vunpack.c.l.b16 %v336
        %v3460 = vunpack.c.h.b16 %v336
        %v3461 = vunpack.c.l.b16 %v337
        %v3462 = vunpack.c.h.b16 %v337
        %v3463 = vunpack.c.l.b16 %v338
        %v3464 = vunpack.c.h.b16 %v338
        %v3465 = vunpack.c.l.b16 %v339
        %v3466 = vunpack.c.h.b16 %v339
        %v3467 = vunpack.c.l.b16 %v340
        %v3468 = vunpack.c.h.b16 %v340
        %v3469 = vunpack.c.l.b16 %v341
        %v3470 = vunpack.c.h.b16 %v341
        %v3471 = vunpack.c.l.b16 %v342
        %v3472 = vunpack.c.h.b16 %v342
        %v3473 = vunpack.c.l.b16 %v343
        %v3474 = vunpack.c.h.b16 %v343
        %v3475 = vunpack.c.l.b16 %v344
        %v3476 = vunpack.c.h.b16 %v344
        %v3477 = vunpack.c.l.b16 %v345
        %v3478 = vunpack.c.h.b16 %v345
        %v3479 = vunpack.c.l.b16 %v346
        %v3480 = vunpack.c.h.b16 %v346
        %v3481 = vunpack.c.l.b16 %v347
        %v3482 = vunpack.c.h.b16 %v347
        %v3483 = vunpack.c.l.b16 %v348
        %v3484 = vunpack.c.h.b16 %v348
        %v3485 = vunpack.c.l.b16 %v349
        %v3486 = vunpack.c.h.b16 %v349
        %v3487 = vunpack.c.l.b16 %v350
        %v3488 = vunpack.c.h.b16 %v350
        %v3489 = vunpack.c.l.b16 %v351
        %v3490 = vunpack.c.h.b16 %v351
        %v3491 = vunpack.c.l.b16 %v352
        %v3492 = vunpack.c.h.b16 %v352
        %v3493 = vunpack.c.l.b16 %v353
        %v3494 = vunpack.c.h.b16 %v353
        %v3495 = vunpack.c.l.b16 %v354
        %v3496 = vunpack.c.h.b16 %v354
        %v3497 = vunpack.c.l.b16 %v355
        %v3498 = vunpack.c.h.b16 %v355
        %v3499 = vunpack.c.l.b16 %v356
        %v3500 = vunpack.c.h.b16 %v356
        %v3501 = vunpack.c.l.b16 %v357
        %v3502 = vunpack.c.h.b16 %v357
        %v3503 = vunpack.c.l.b16 %v358
        %v3504 = vunpack.c.h.b16 %v358
        %v3505 = vunpack.c.l.b16 %v359
        %v3506 = vunpack.c.h.b16 %v359
        %v3507 = vunpack.c.l.b16 %v360
        %v3508 = vunpack.c.h.b16 %v360
        %v3509 = vunpack.c.l.b16 %v361
        %v3510 = vunpack.c.h.b16 %v361
        %v3511 = vunpack.c.l.b16 %v362
        %v3512 = vunpack.c.h.b16 %v362
        %v3513 = vunpack.c.l.b16 %v363
        %v3514 = vunpack.c.h.b16 %v363
        %v3515 = vunpack.c.l.b16 %v364
        %v3516 = vunpack.c.h.b16 %v364
        %v3517 = vunpack.c.l.b16 %v365
        %v3518 = vunpack.c.h.b16 %v365
        %v3519 = vunpack.c.l.b16 %v366
        %v3520 = vunpack.c.h.b16 %v366
        %v3521 = vunpack.c.l.b16 %v367
        %v3522 = vunpack.c.h.b16 %v367
        %v3523 = vunpack.c.l.b16 %v368
        %v3524 = vunpack.c.h.b16 %v368
        %v3525 = vunpack.c.l.b16 %v369
        %v3526 = vunpack.c.h.b16 %v369
        %v3527 = vunpack.c.l.b16 %v370
        %v3528 = vunpack.c.h.b16 %v370
        %v3529 = vunpack.c.l.b16 %v371
        %v3530 = vunpack.c.h.b16 %v371
        %v3531 = vunpack.c.l.b16 %v372
        %v3532 = vunpack.c.h.b16 %v372
        %v3533 = vunpack.c.l.b16 %v373
        %v3534 = vunpack.c.h.b16 %v373
        %v3535 = vunpack.c.l.b16 %v374
        %v3536 = vunpack.c.h.b16 %v374
        %v3537 = vunpack.c.l.b16 %v375
        %v3538 = vunpack.c.h.b16 %v375
        %v3539 = vunpack.c.l.b16 %v376
        %v3540 = vunpack.c.h.b16 %v376
        %v3541 = vunpack.c.l.b16 %v377
        %v3542 = vunpack.c.h.b16 %v377
        %v3543 = vunpack.c.l.b16 %v378
        %v3544 = vunpack.c.h.b16 %v378
        %v3545 = vunpack.c.l.b16 %v379
        %v3546 = vunpack.c.h.b16 %v379
        %v3547 = vunpack.c.l.b16 %v380
        %v3548 = vunpack.c.h.b16 %v380
        %v3549 = vunpack.c.l.b16 %v381
        %v3550 = vunpack.c.h.b16 %v381
        %v3551 = vunpack.c.l.b16 %v382
        %v3552 = vunpack.c.h.b16 %v382
        %v3553 = vunpack.c.l.b16 %v383
        %v3554 = vunpack.c.h.b16 %v383
        %v3555 = vunpack.c.l.b16 %v384
        %v3556 = vunpack.c.h.b16 %v384
        %v3557 = vunpack.c.l.b16 %v385
        %v3558 = vunpack.c.h.b16 %v385
        %v3559 = vunpack.c.l.b16 %v386
        %v3560 = vunpack.c.h.b16 %v386
        %v3561 = vunpack.c.l.b16 %v387
        %v3562 = vunpack.c.h.b16 %v387
        %v3563 = vunpack.c.l.b16 %v388
        %v3564 = vunpack.c.h.b16 %v388
        %v3565 = vunpack.c.l.b16 %v389
        %v3566 = vunpack.c.h.b16 %v389
        %v3567 = vunpack.c.l.b16 %v390
        %v3568 = vunpack.c.h.b16 %v390
        %v3569 = vunpack.c.l.b16 %v391
        %v3570 = vunpack.c.h.b16 %v391
        %v3571 = vunpack.c.l.b16 %v392
        %v3572 = vunpack.c.h.b16 %v392
        %v3573 = vunpack.c.l.b16 %v393
        %v3574 = vunpack.c.h.b16 %v393
        %v3575 = vunpack.c.l.b16 %v394
        %v3576 = vunpack.c.h.b16 %v394
        %v3577 = vunpack.c.l.b16 %v395
        %v3578 = vunpack.c.h.b16 %v395
        %v3579 = vunpack.c.l.b16 %v396
        %v3580 = vunpack.c.h.b16 %v396
        %v3581 = vunpack.c.l.b16 %v397
        %v3582 = vunpack.c.h.b16 %v397
        %v3583 = vunpack.c.l.b16 %v398
        %v3584 = vunpack.c.h.b16 %v398
        %v3585 = vunpack.c.l.b16 %v399
        %v3586 = vunpack.c.h.b16 %v399
        %v3587 = vunpack.c.l.b16 %v400
        %v3588 = vunpack.c.h.b16 %v400
        %v3589 = vunpack.c.l.b16 %v401
        %v3590 = vunpack.c.h.b16 %v401
        %v3591 = vunpack.c.l.b16 %v402
        %v3592 = vunpack.c.h.b16 %v402
        %v3593 = vunpack.c.l.b16 %v403
        %v3594 = vunpack.c.h.b16 %v403
        %v3595 = vunpack.c.l.b16 %v404
        %v3596 = vunpack.c.h.b16 %v404
        %v3597 = vunpack.c.l.b16 %v405
        %v3598 = vunpack.c.h.b16 %v405
        %v3599 = vunpack.c.l.b16 %v406
        %v3600 = vunpack.c.h.b16 %v406
        %v3601 = vunpack.c.l.b16 %v407
        %v3602 = vunpack.c.h.b16 %v407
        %v3603 = vunpack.c.l.b16 %v408
        %v3604 = vunpack.c.h.b16 %v408
        %v3605 = vunpack.c.l.b16 %v409
        %v3606 = vunpack.c.h.b16 %v409
        %v3607 = vunpack.c.l.b16 %v410
        %v3608 = vunpack.c.h.b16 %v410
        %v3609 = vunpack.c.l.b16 %v411
        %v3610 = vunpack.c.h.b16 %v411
        %v3611 = vunpack.c.l.b16 %v412
        %v3612 = vunpack.c.h.b16 %v412
        %v3613 = vunpack.c.l.b16 %v413
        %v3614 = vunpack.c.h.b16 %v413
        %v3615 = vunpack.c.l.b16 %v414
        %v3616 = vunpack.c.h.b16 %v414
        %v3617 = vunpack.c.l.b16 %v415
        %v3618 = vunpack.c.h.b16 %v415
        %v3619 = vunpack.c.l.b16 %v416
        %v3620 = vunpack.c.h.b16 %v416
        %v3621 = vunpack.c.l.b16 %v417
        %v3622 = vunpack.c.h.b16 %v417
        %v3623 = vunpack.c.l.b16 %v418
        %v3624 = vunpack.c.h.b16 %v418
        %v3625 = vunpack.c.l.b16 %v419
        %v3626 = vunpack.c.h.b16 %v419
        %v3627 = vunpack.c.l.b16 %v420
        %v3628 = vunpack.c.h.b16 %v420
        %v3629 = vunpack.c.l.b16 %v421
        %v3630 = vunpack.c.h.b16 %v421
        %v3631 = vunpack.c.l.b16 %v422
        %v3632 = vunpack.c.h.b16 %v422
        %v3633 = vunpack.c.l.b16 %v423
        %v3634 = vunpack.c.h.b16 %v423
        %v3635 = vunpack.c.l.b16 %v424
        %v3636 = vunpack.c.h.b16 %v424
        %v3637 = vunpack.c.l.b16 %v425
        %v3638 = vunpack.c.h.b16 %v425
        %v3639 = vunpack.c.l.b16 %v426
        %v3640 = vunpack.c.h.b16 %v426
        %v3641 = vunpack.c.l.b16 %v427
        %v3642 = vunpack.c.h.b16 %v427
        %v3643 = vunpack.c.l.b16 %v428
        %v3644 = vunpack.c.h.b16 %v428
        %v3645 = vunpack.c.l.b16 %v429
        %v3646 = vunpack.c.h.b16 %v429
        %v3647 = vunpack.c.l.b16 %v430
        %v3648 = vunpack.c.h.b16 %v430
        %v3649 = vunpack.c.l.b16 %v431
        %v3650 = vunpack.c.h.b16 %v431
        %v3651 = vunpack.c.l.b16 %v432
        %v3652 = vunpack.c.h.b16 %v432
        %v3653 = vunpack.c.l.b16 %v433
        %v3654 = vunpack.c.h.b16 %v433
        %v3655 = vunpack.c.l.b16 %v434
        %v3656 = vunpack.c.h.b16 %v434
        %v3657 = vunpack.c.l.b16 %v435
        %v3658 = vunpack.c.h.b16 %v435
        %v3659 = vunpack.c.l.b16 %v436
        %v3660 = vunpack.c.h.b16 %v436
        %v3661 = vunpack.c.l.b16 %v437
        %v3662 = vunpack.c.h.b16 %v437
        %v3663 = vunpack.c.l.b16 %v438
        %v3664 = vunpack.c.h.b16 %v438
        %v3665 = vunpack.c.l.b16 %v439
        %v3666 = vunpack.c.h.b16 %v439
        %v3667 = vunpack.c.l.b16 %v440
        %v3668 = vunpack.c.h.b16 %v440
        %v3669 = vunpack.c.l.b16 %v441
        %v3670 = vunpack.c.h.b16 %v441
        %v3671 = vunpack.c.l.b16 %v442
        %v3672 = vunpack.c.h.b16 %v442
        %v3673 = vunpack.c.l.b16 %v443
        %v3674 = vunpack.c.h.b16 %v443
        %v3675 = vunpack.c.l.b16 %v444
        %v3676 = vunpack.c.h.b16 %v444
        %v3677 = vunpack.c.l.b16 %v445
        %v3678 = vunpack.c.h.b16 %v445
        %v3679 = vunpack.c.l.b16 %v446
        %v3680 = vunpack.c.h.b16 %v446
        %v3681 = vunpack.c.l.b16 %v447
        %v3682 = vunpack.c.h.b16 %v447
        %v3683 = vunpack.c.l.b16 %v448
        %v3684 = vunpack.c.h.b16 %v448
        %v3685 = vunpack.c.l.b16 %v449
        %v3686 = vunpack.c.h.b16 %v449
        %v3687 = vunpack.c.l.b16 %v450
        %v3688 = vunpack.c.h.b16 %v450
        %v3689 = vunpack.c.l.b16 %v451
        %v3690 = vunpack.c.h.b16 %v451
        %v3691 = vunpack.c.l.b16 %v452
        %v3692 = vunpack.c.h.b16 %v452
        %v3693 = vunpack.c.l.b16 %v453
        %v3694 = vunpack.c.h.b16 %v453
        %v3695 = vunpack.c.l.b16 %v454
        %v3696 = vunpack.c.h.b16 %v454
        %v3697 = vunpack.c.l.b16 %v455
        %v3698 = vunpack.c.h.b16 %v455
        %v3699 = vunpack.c.l.b16 %v456
        %v3700 = vunpack.c.h.b16 %v456
        %v3701 = vunpack.c.l.b16 %v457
        %v3702 = vunpack.c.h.b16 %v457
        %v3703 = vunpack.c.l.b16 %v458
        %v3704 = vunpack.c.h.b16 %v458
        %v3705 = vunpack.c.l.b16 %v459
        %v3706 = vunpack.c.h.b16 %v459
        %v3707 = vunpack.c.l.b16 %v460
        %v3708 = vunpack.c.h.b16 %v460
        %v3709 = vunpack.c.l.b16 %v461
        %v3710 = vunpack.c.h.b16 %v461
        %v3711 = vunpack.c.l.b16 %v462
        %v3712 = vunpack.c.h.b16 %v462
        %v3713 = vunpack.c.l.b16 %v463
        %v3714 = vunpack.c.h.b16 %v463
        %v3715 = vunpack.c.l.b16 %v464
        %v3716 = vunpack.c.h.b16 %v464
        %v3717 = vunpack.c.l.b16 %v465
        %v3718 = vunpack.c.h.b16 %v465
        %v3719 = vunpack.c.l.b16 %v466
        %v3720 = vunpack.c.h.b16 %v466
        %v3721 = vunpack.c.l.b16 %v467
        %v3722 = vunpack.c.h.b16 %v467
        %v3723 = vunpack.c.l.b16 %v468
        %v3724 = vunpack.c.h.b16 %v468
        %v3725 = vunpack.c.l.b16 %v469
        %v3726 = vunpack.c.h.b16 %v469
        %v3727 = vunpack.c.l.b16 %v470
        %v3728 = vunpack.c.h.b16 %v470
        %v3729 = vunpack.c.l.b16 %v471
        %v3730 = vunpack.c.h.b16 %v471
        %v3731 = vunpack.c.l.b16 %v472
        %v3732 = vunpack.c.h.b16 %v472
        %v3733 = vunpack.c.l.b16 %v473
        %v3734 = vunpack.c.h.b16 %v473
        %v3735 = vunpack.c.l.b16 %v474
        %v3736 = vunpack.c.h.b16 %v474
        %v3737 = vunpack.c.l.b16 %v475
        %v3738 = vunpack.c.h.b16 %v475
        %v3739 = vunpack.c.l.b16 %v476
        %v3740 = vunpack.c.h.b16 %v476
        %v3741 = vunpack.c.l.b16 %v477
        %v3742 = vunpack.c.h.b16 %v477
        %v3743 = vunpack.c.l.b16 %v478
        %v3744 = vunpack.c.h.b16 %v478
        %v3745 = vunpack.c.l.b16 %v479
        %v3746 = vunpack.c.h.b16 %v479
        %v3747 = vunpack.c.l.b16 %v480
        %v3748 = vunpack.c.h.b16 %v480
        %v3749 = vunpack.c.l.b16 %v481
        %v3750 = vunpack.c.h.b16 %v481
        %v3751 = vunpack.c.l.b16 %v482
        %v3752 = vunpack.c.h.b16 %v482
        %v3753 = vunpack.c.l.b16 %v483
        %v3754 = vunpack.c.h.b16 %v483
        %v3755 = vunpack.c.l.b16 %v484
        %v3756 = vunpack.c.h.b16 %v484
        %v3757 = vunpack.c.l.b16 %v485
        %v3758 = vunpack.c.h.b16 %v485
        %v3759 = vunpack.c.l.b16 %v486
        %v3760 = vunpack.c.h.b16 %v486
        %v3761 = vunpack.c.l.b16 %v487
        %v3762 = vunpack.c.h.b16 %v487
        %v3763 = vunpack.c.l.b16 %v488
        %v3764 = vunpack.c.h.b16 %v488
        %v3765 = vunpack.c.l.b16 %v489
        %v3766 = vunpack.c.h.b16 %v489
        %v3767 = vunpack.c.l.b16 %v490
        %v3768 = vunpack.c.h.b16 %v490
        %v3769 = vunpack.c.l.b16 %v491
        %v3770 = vunpack.c.h.b16 %v491
        %v3771 = vunpack.c.l.b16 %v492
        %v3772 = vunpack.c.h.b16 %v492
        %v3773 = vunpack.c.l.b16 %v493
        %v3774 = vunpack.c.h.b16 %v493
        %v3775 = vunpack.c.l.b16 %v494
        %v3776 = vunpack.c.h.b16 %v494
        %v3777 = vunpack.c.l.b16 %v495
        %v3778 = vunpack.c.h.b16 %v495
        %v3779 = vunpack.c.l.b16 %v496
        %v3780 = vunpack.c.h.b16 %v496
        %v3781 = vunpack.c.l.b16 %v497
        %v3782 = vunpack.c.h.b16 %v497
        %v3783 = vunpack.c.l.b16 %v498
        %v3784 = vunpack.c.h.b16 %v498
        %v3785 = vunpack.c.l.b16 %v499
        %v3786 = vunpack.c.h.b16 %v499
        %v3787 = vunpack.c.l.b16 %v500
        %v3788 = vunpack.c.h.b16 %v500
        %v3789 = vunpack.c.l.b16 %v501
        %v3790 = vunpack.c.h.b16 %v501
        %v3791 = vunpack.c.l.b16 %v502
        %v3792 = vunpack.c.h.b16 %v502
        %v3793 = vunpack.c.l.b16 %v503
        %v3794 = vunpack.c.h.b16 %v503
        %v3795 = vunpack.c.l.b16 %v504
        %v3796 = vunpack.c.h.b16 %v504
        %v3797 = vunpack.c.l.b16 %v505
        %v3798 = vunpack.c.h.b16 %v505
        %v3799 = vunpack.c.l.b16 %v506
        %v3800 = vunpack.c.h.b16 %v506
        %v3801 = vunpack.c.l.b16 %v507
        %v3802 = vunpack.c.h.b16 %v507
        %v3803 = vunpack.c.l.b16 %v508
        %v3804 = vunpack.c.h.b16 %v508
        %v3805 = vunpack.c.l.b16 %v509
        %v3806 = vunpack.c.h.b16 %v509
        %v3807 = vunpack.c.l.b16 %v510
        %v3808 = vunpack.c.h.b16 %v510
        %v3809 = vunpack.c.l.b16 %v511
        %v3810 = vunpack.c.h.b16 %v511
        %v3811 = vunpack.c.l.b16 %v512
        %v3812 = vunpack.c.h.b16 %v512
        %v3813 = vunpack.c.l.b16 %v513
        %v3814 = vunpack.c.h.b16 %v513
        %v3815 = vunpack.c.l.b16 %v514
        %v3816 = vunpack.c.h.b16 %v514
        %v3817 = vunpack.c.l.b16 %v515
        %v3818 = vunpack.c.h.b16 %v515
        %v3819 = vunpack.c.l.b16 %v516
        %v3820 = vunpack.c.h.b16 %v516
        %v3821 = vunpack.c.l.b16 %v517
        %v3822 = vunpack.c.h.b16 %v517
        %v3823 = vunpack.c.l.b16 %v518
        %v3824 = vunpack.c.h.b16 %v518
        %v3825 = vunpack.c.l.b16 %v519
        %v3826 = vunpack.c.h.b16 %v519
        %v3827 = vunpack.c.l.b16 %v520
        %v3828 = vunpack.c.h.b16 %v520
        %v3829 = vunpack.c.l.b16 %v521
        %v3830 = vunpack.c.h.b16 %v521
        %v3831 = vunpack.c.l.b16 %v522
        %v3832 = vunpack.c.h.b16 %v522
        %v3833 = vunpack.c.l.b16 %v523
        %v3834 = vunpack.c.h.b16 %v523
        %v3835 = vunpack.c.l.b16 %v524
        %v3836 = vunpack.c.h.b16 %v524
        %v3837 = vunpack.c.l.b16 %v525
        %v3838 = vunpack.c.h.b16 %v525
        %v3839 = vunpack.c.l.b16 %v526
        %v3840 = vunpack.c.h.b16 %v526
        %v3841 = vunpack.c.l.b16 %v527
        %v3842 = vunpack.c.h.b16 %v527
        %v3843 = vunpack.c.l.b16 %v528
        %v3844 = vunpack.c.h.b16 %v528
        %v3845 = vunpack.c.l.b16 %v529
        %v3846 = vunpack.c.h.b16 %v529
        %v3847 = vunpack.c.l.b16 %v530
        %v3848 = vunpack.c.h.b16 %v530
        %v3849 = vunpack.c.l.b16 %v531
        %v3850 = vunpack.c.h.b16 %v531
        %v3851 = vunpack.c.l.b16 %v532
        %v3852 = vunpack.c.h.b16 %v532
        %v3853 = vunpack.c.l.b16 %v533
        %v3854 = vunpack.c.h.b16 %v533
        %v3855 = vunpack.c.l.b16 %v534
        %v3856 = vunpack.c.h.b16 %v534
        %v3857 = vunpack.c.l.b16 %v535
        %v3858 = vunpack.c.h.b16 %v535
        %v3859 = vunpack.c.l.b16 %v536
        %v3860 = vunpack.c.h.b16 %v536
        %v3861 = vunpack.c.l.b16 %v537
        %v3862 = vunpack.c.h.b16 %v537
        %v3863 = vunpack.c.l.b16 %v538
        %v3864 = vunpack.c.h.b16 %v538
        %v3865 = vunpack.c.l.b16 %v539
        %v3866 = vunpack.c.h.b16 %v539
        %v3867 = vunpack.c.l.b16 %v540
        %v3868 = vunpack.c.h.b16 %v540
        %v3869 = vunpack.c.l.b16 %v541
        %v3870 = vunpack.c.h.b16 %v541
        %v3871 = vunpack.c.l.b16 %v542
        %v3872 = vunpack.c.h.b16 %v542
        %v3873 = vunpack.c.l.b16 %v543
        %v3874 = vunpack.c.h.b16 %v543
        %v3875 = vunpack.c.l.b16 %v544
        %v3876 = vunpack.c.h.b16 %v544
        %v3877 = vunpack.c.l.b16 %v545
        %v3878 = vunpack.c.h.b16 %v545
        %v3879 = vunpack.c.l.b16 %v546
        %v3880 = vunpack.c.h.b16 %v546
        %v3881 = vunpack.c.l.b16 %v547
        %v3882 = vunpack.c.h.b16 %v547
        %v3883 = vunpack.c.l.b16 %v548
        %v3884 = vunpack.c.h.b16 %v548
        %v3885 = vunpack.c.l.b16 %v549
        %v3886 = vunpack.c.h.b16 %v549
        %v3887 = vunpack.c.l.b16 %v550
        %v3888 = vunpack.c.h.b16 %v550
        %v3889 = vunpack.c.l.b16 %v551
        %v3890 = vunpack.c.h.b16 %v551
        %v3891 = vunpack.c.l.b16 %v552
        %v3892 = vunpack.c.h.b16 %v552
        %v3893 = vunpack.c.l.b16 %v553
        %v3894 = vunpack.c.h.b16 %v553
        %v3895 = vunpack.c.l.b16 %v554
        %v3896 = vunpack.c.h.b16 %v554
        %v3897 = vunpack.c.l.b16 %v555
        %v3898 = vunpack.c.h.b16 %v555
        %v3899 = vunpack.c.l.b16 %v556
        %v3900 = vunpack.c.h.b16 %v556
        %v3901 = vunpack.c.l.b16 %v557
        %v3902 = vunpack.c.h.b16 %v557
        %v3903 = vunpack.c.l.b16 %v558
        %v3904 = vunpack.c.h.b16 %v558
        %v3905 = vunpack.c.l.b16 %v559
        %v3906 = vunpack.c.h.b16 %v559
        %v3907 = vunpack.c.l.b16 %v560
        %v3908 = vunpack.c.h.b16 %v560
        %v3909 = vunpack.c.l.b16 %v561
        %v3910 = vunpack.c.h.b16 %v561
        %v3911 = vunpack.c.l.b16 %v562
        %v3912 = vunpack.c.h.b16 %v562
        %v3913 = vunpack.c.l.b16 %v563
        %v3914 = vunpack.c.h.b16 %v563
        %v3915 = vunpack.c.l.b16 %v564
        %v3916 = vunpack.c.h.b16 %v564
        %v3917 = vunpack.c.l.b16 %v565
        %v3918 = vunpack.c.h.b16 %v565
        %v3919 = vunpack.c.l.b16 %v566
        %v3920 = vunpack.c.h.b16 %v566
        %v3921 = vunpack.c.l.b16 %v567
        %v3922 = vunpack.c.h.b16 %v567
        %v3923 = vunpack.c.l.b16 %v568
        %v3924 = vunpack.c.h.b16 %v568
        %v3925 = vunpack.c.l.b16 %v569
        %v3926 = vunpack.c.h.b16 %v569
        %v3927 = vunpack.c.l.b16 %v570
        %v3928 = vunpack.c.h.b16 %v570
        %v3929 = vunpack.c.l.b16 %v571
        %v3930 = vunpack.c.h.b16 %v571
        %v3931 = vunpack.c.l.b16 %v572
        %v3932 = vunpack.c.h.b16 %v572
        %v3933 = vunpack.c.l.b16 %v573
        %v3934 = vunpack.c.h.b16 %v573
        %v3935 = vunpack.c.l.b16 %v574
        %v3936 = vunpack.c.h.b16 %v574
        %v3937 = vunpack.c.l.b16 %v575
        %v3938 = vunpack.c.h.b16 %v575
        %v3939 = vunpack.c.l.b16 %v576
        %v3940 = vunpack.c.h.b16 %v576
        %v3941 = vunpack.c.l.b16 %v577
        %v3942 = vunpack.c.h.b16 %v577
        %v3943 = vunpack.c.l.b16 %v578
        %v3944 = vunpack.c.h.b16 %v578
        %v3945 = vunpack.c.l.b16 %v579
        %v3946 = vunpack.c.h.b16 %v579
        %v3947 = vunpack.c.l.b16 %v580
        %v3948 = vunpack.c.h.b16 %v580
        %v3949 = vunpack.c.l.b16 %v581
        %v3950 = vunpack.c.h.b16 %v581
        %v3951 = vunpack.c.l.b16 %v582
        %v3952 = vunpack.c.h.b16 %v582
        %v3953 = vunpack.c.l.b16 %v583
        %v3954 = vunpack.c.h.b16 %v583
        %v3955 = vunpack.c.l.b16 %v584
        %v3956 = vunpack.c.h.b16 %v584
        %v3957 = vunpack.c.l.b16 %v585
        %v3958 = vunpack.c.h.b16 %v585
        %v3959 = vunpack.c.l.b16 %v586
        %v3960 = vunpack.c.h.b16 %v586
        %v3961 = vunpack.c.l.b16 %v587
        %v3962 = vunpack.c.h.b16 %v587
        %v3963 = vunpack.c.l.b16 %v588
        %v3964 = vunpack.c.h.b16 %v588
        %v3965 = vunpack.c.l.b16 %v589
        %v3966 = vunpack.c.h.b16 %v589
        %v3967 = vunpack.c.l.b16 %v590
        %v3968 = vunpack.c.h.b16 %v590
        %v3969 = vunpack.c.l.b16 %v591
        %v3970 = vunpack.c.h.b16 %v591
        %v3971 = vunpack.c.l.b16 %v592
        %v3972 = vunpack.c.h.b16 %v592
        %v3973 = vunpack.c.l.b16 %v593
        %v3974 = vunpack.c.h.b16 %v593
        %v3975 = vunpack.c.l.b16 %v594
        %v3976 = vunpack.c.h.b16 %v594
        %v3977 = vunpack.c.l.b16 %v595
        %v3978 = vunpack.c.h.b16 %v595
        %v3979 = vunpack.c.l.b16 %v596
        %v3980 = vunpack.c.h.b16 %v596
        %v3981 = vunpack.c.l.b16 %v597
        %v3982 = vunpack.c.h.b16 %v597
        %v3983 = vunpack.c.l.b16 %v598
        %v3984 = vunpack.c.h.b16 %v598
        %v3985 = vunpack.c.l.b16 %v599
        %v3986 = vunpack.c.h.b16 %v599
        %v3987 = vunpack.c.l.b16 %v600
        %v3988 = vunpack.c.h.b16 %v600
        %v3989 = vunpack.c.l.b16 %v601
        %v3990 = vunpack.c.h.b16 %v601
        %v3991 = vunpack.c.l.b16 %v602
        %v3992 = vunpack.c.h.b16 %v602
        %v3993 = vunpack.c.l.b16 %v603
        %v3994 = vunpack.c.h.b16 %v603
        %v3995 = vunpack.c.l.b16 %v604
        %v3996 = vunpack.c.h.b16 %v604
        %v3997 = vunpack.c.l.b16 %v605
        %v3998 = vunpack.c.h.b16 %v605
        %v3999 = vunpack.c.l.b16 %v606
        %v4000 = vunpack.c.h.b16 %v606
        %v4001 = vunpack.c.l.b16 %v607
        %v4002 = vunpack.c.h.b16 %v607
        %v4003 = vunpack.c.l.b16 %v608
        %v4004 = vunpack.c.h.b16 %v608
        %v4005 = vunpack.c.l.b16 %v609
        %v4006 = vunpack.c.h.b16 %v609
        %v4007 = vunpack.c.l.b16 %v610
        %v4008 = vunpack.c.h.b16 %v610
        %v4009 = vunpack.c.l.b16 %v611
        %v4010 = vunpack.c.h.b16 %v611
        %v4011 = vunpack.c.l.b16 %v612
        %v4012 = vunpack.c.h.b16 %v612
        %v4013 = vunpack.c.l.b16 %v613
        %v4014 = vunpack.c.h.b16 %v613
        %v4015 = vunpack.c.l.b16 %v614
        %v4016 = vunpack.c.h.b16 %v614
        %v4017 = vunpack.c.l.b16 %v615
        %v4018 = vunpack.c.h.b16 %v615
        %v4019 = vunpack.c.l.b16 %v616
        %v4020 = vunpack.c.h.b16 %v616
        %v4021 = vunpack.c.l.b16 %v617
        %v4022 = vunpack.c.h.b16 %v617
        %v4023 = vunpack.c.l.b16 %v618
        %v4024 = vunpack.c.h.b16 %v618
        %v4025 = vunpack.c.l.b16 %v619
        %v4026 = vunpack.c.h.b16 %v619
        %v4027 = vunpack.c.l.b16 %v620
        %v4028 = vunpack.c.h.b16 %v620
        %v4029 = vunpack.c.l.b16 %v621
        %v4030 = vunpack.c.h.b16 %v621
        %v4031 = vunpack.c.l.b16 %v622
        %v4032 = vunpack.c.h.b16 %v622
        %v4033 = vunpack.c.l.b16 %v623
        %v4034 = vunpack.c.h.b16 %v623
        %v4035 = vunpack.c.l.b16 %v624
        %v4036 = vunpack.c.h.b16 %v624
        %v4037 = vunpack.c.l.b16 %v625
        %v4038 = vunpack.c.h.b16 %v625
        %v4039 = vunpack.c.l.b16 %v626
        %v4040 = vunpack.c.h.b16 %v626
        %v4041 = vunpack.c.l.b16 %v627
        %v4042 = vunpack.c.h.b16 %v627
        %v4043 = vunpack.c.l.b16 %v628
        %v4044 = vunpack.c.h.b16 %v628
        %v4045 = vunpack.c.l.b16 %v629
        %v4046 = vunpack.c.h.b16 %v629
        %v4047 = vunpack.c.l.b16 %v630
        %v4048 = vunpack.c.h.b16 %v630
        %v4049 = vunpack.c.l.b16 %v631
        %v4050 = vunpack.c.h.b16 %v631
        %v4051 = vunpack.c.l.b16 %v632
        %v4052 = vunpack.c.h.b16 %v632
        %v4053 = vunpack.c.l.b16 %v633
        %v4054 = vunpack.c.h.b16 %v633
        %v4055 = vunpack.c.l.b16 %v634
        %v4056 = vunpack.c.h.b16 %v634
        %v4057 = vunpack.c.l.b16 %v635
        %v4058 = vunpack.c.h.b16 %v635
        %v4059 = vunpack.c.l.b16 %v636
        %v4060 = vunpack.c.h.b16 %v636
        %v4061 = vunpack.c.l.b16 %v637
        %v4062 = vunpack.c.h.b16 %v637
        %v4063 = vunpack.c.l.b16 %v638
        %v4064 = vunpack.c.h.b16 %v638
        %v4065 = vunpack.c.l.b16 %v639
        %v4066 = vunpack.c.h.b16 %v639
        %v4067 = vunpack.c.l.b16 %v640
        %v4068 = vunpack.c.h.b16 %v640
        %v4069 = vunpack.c.l.b16 %v641
        %v4070 = vunpack.c.h.b16 %v641
        %v4071 = vunpack.c.l.b16 %v642
        %v4072 = vunpack.c.h.b16 %v642
        %v4073 = vunpack.c.l.b16 %v643
        %v4074 = vunpack.c.h.b16 %v643
        %v4075 = vunpack.c.l.b16 %v644
        %v4076 = vunpack.c.h.b16 %v644
        %v4077 = vunpack.c.l.b16 %v645
        %v4078 = vunpack.c.h.b16 %v645
        %v4079 = vunpack.c.l.b16 %v646
        %v4080 = vunpack.c.h.b16 %v646
        %v4081 = vunpack.c.l.b16 %v647
        %v4082 = vunpack.c.h.b16 %v647
        %v4083 = vunpack.c.l.b16 %v648
        %v4084 = vunpack.c.h.b16 %v648
        %v4085 = vunpack.c.l.b16 %v649
        %v4086 = vunpack.c.h.b16 %v649
        %v4087 = vunpack.c.l.b16 %v650
        %v4088 = vunpack.c.h.b16 %v650
        %v4089 = vunpack.c.l.b16 %v651
        %v4090 = vunpack.c.h.b16 %v651
        %v4091 = vunpack.c.l.b16 %v652
        %v4092 = vunpack.c.h.b16 %v652
        %v4093 = vunpack.c.l.b16 %v653
        %v4094 = vunpack.c.h.b16 %v653
        %v4095 = vunpack.c.l.b16 %v654
        %v4096 = vunpack.c.h.b16 %v654
        %v4097 = vunpack.c.l.b16 %v655
        %v4098 = vunpack.c.h.b16 %v655
        %v4099 = vunpack.c.l.b16 %v656
        %v4100 = vunpack.c.h.b16 %v656
        %v4101 = vunpack.c.l.b16 %v657
        %v4102 = vunpack.c.h.b16 %v657
        %v4103 = vunpack.c.l.b16 %v658
        %v4104 = vunpack.c.h.b16 %v658
        %v4105 = vunpack.c.l.b16 %v659
        %v4106 = vunpack.c.h.b16 %v659
        %v4107 = vunpack.c.l.b16 %v660
        %v4108 = vunpack.c.h.b16 %v660
        %v4109 = vunpack.c.l.b16 %v661
        %v4110 = vunpack.c.h.b16 %v661
        %v4111 = vunpack.c.l.b16 %v662
        %v4112 = vunpack.c.h.b16 %v662
        %v4113 = vunpack.c.l.b16 %v663
        %v4114 = vunpack.c.h.b16 %v663
        %v4115 = vunpack.c.l.b16 %v664
        %v4116 = vunpack.c.h.b16 %v664
        %v4117 = vunpack.c.l.b16 %v665
        %v4118 = vunpack.c.h.b16 %v665
        %v4119 = vunpack.c.l.b16 %v666
        %v4120 = vunpack.c.h.b16 %v666
        %v4121 = vunpack.c.l.b16 %v667
        %v4122 = vunpack.c.h.b16 %v667
        %v4123 = vunpack.c.l.b16 %v668
        %v4124 = vunpack.c.h.b16 %v668
        %v4125 = vunpack.c.l.b16 %v669
        %v4126 = vunpack.c.h.b16 %v669
        %v4127 = vunpack.c.l.b16 %v670
        %v4128 = vunpack.c.h.b16 %v670
        %v4129 = vunpack.c.l.b16 %v671
        %v4130 = vunpack.c.h.b16 %v671
        %v4131 = vunpack.c.l.b16 %v672
        %v4132 = vunpack.c.h.b16 %v672
        %v4133 = vunpack.c.l.b16 %v673
        %v4134 = vunpack.c.h.b16 %v673
        %v4135 = vunpack.c.l.b16 %v674
        %v4136 = vunpack.c.h.b16 %v674
        %v4137 = vunpack.c.l.b16 %v675
        %v4138 = vunpack.c.h.b16 %v675
        %v4139 = vunpack.c.l.b16 %v676
        %v4140 = vunpack.c.h.b16 %v676
        %v4141 = vunpack.c.l.b16 %v677
        %v4142 = vunpack.c.h.b16 %v677
        %v4143 = vunpack.c.l.b16 %v678
        %v4144 = vunpack.c.h.b16 %v678
        %v4145 = vunpack.c.l.b16 %v679
        %v4146 = vunpack.c.h.b16 %v679
        %v4147 = vunpack.c.l.b16 %v680
        %v4148 = vunpack.c.h.b16 %v680
        %v4149 = vunpack.c.l.b16 %v681
        %v4150 = vunpack.c.h.b16 %v681
        %v4151 = vunpack.c.l.b16 %v682
        %v4152 = vunpack.c.h.b16 %v682
        %v4153 = vunpack.c.l.b16 %v683
        %v4154 = vunpack.c.h.b16 %v683
        %v4155 = vunpack.c.l.b16 %v684
        %v4156 = vunpack.c.h.b16 %v684
        %v4157 = vunpack.c.l.b16 %v685
        %v4158 = vunpack.c.h.b16 %v685
        %v4159 = vunpack.c.l.b16 %v686
        %v4160 = vunpack.c.h.b16 %v686
        %v4161 = vunpack.c.l.b16 %v687
        %v4162 = vunpack.c.h.b16 %v687
        %v4163 = vunpack.c.l.b16 %v688
        %v4164 = vunpack.c.h.b16 %v688
        %v4165 = vunpack.c.l.b16 %v689
        %v4166 = vunpack.c.h.b16 %v689
        %v4167 = vunpack.c.l.b16 %v690
        %v4168 = vunpack.c.h.b16 %v690
        %v4169 = vunpack.c.l.b16 %v691
        %v4170 = vunpack.c.h.b16 %v691
        %v4171 = vunpack.c.l.b16 %v692
        %v4172 = vunpack.c.h.b16 %v692
        %v4173 = vunpack.c.l.b16 %v693
        %v4174 = vunpack.c.h.b16 %v693
        %v4175 = vunpack.c.l.b16 %v694
        %v4176 = vunpack.c.h.b16 %v694
        %v4177 = vunpack.c.l.b16 %v695
        %v4178 = vunpack.c.h.b16 %v695
        %v4179 = vunpack.c.l.b16 %v696
        %v4180 = vunpack.c.h.b16 %v696
        %v4181 = vunpack.c.l.b16 %v697
        %v4182 = vunpack.c.h.b16 %v697
        %v4183 = vunpack.c.l.b16 %v698
        %v4184 = vunpack.c.h.b16 %v698
        %v4185 = vunpack.c.l.b16 %v699
        %v4186 = vunpack.c.h.b16 %v699
        %v4187 = vunpack.c.l.b16 %v700
        %v4188 = vunpack.c.h.b16 %v700
        %v4189 = vunpack.c.l.b16 %v701
        %v4190 = vunpack.c.h.b16 %v701
        %v4191 = vunpack.c.l.b16 %v702
        %v4192 = vunpack.c.h.b16 %v702
        %v4193 = vunpack.c.l.b16 %v703
        %v4194 = vunpack.c.h.b16 %v703
        %v4195 = vunpack.c.l.b16 %v704
        %v4196 = vunpack.c.h.b16 %v704
        %v4197 = vunpack.c.l.b16 %v705
        %v4198 = vunpack.c.h.b16 %v705
        %v4199 = vunpack.c.l.b16 %v706
        %v4200 = vunpack.c.h.b16 %v706
        %v4201 = vunpack.c.l.b16 %v707
        %v4202 = vunpack.c.h.b16 %v707
        %v4203 = vunpack.c.l.b16 %v708
        %v4204 = vunpack.c.h.b16 %v708
        %v4205 = vunpack.c.l.b16 %v709
        %v4206 = vunpack.c.h.b16 %v709
        %v4207 = vunpack.c.l.b16 %v710
        %v4208 = vunpack.c.h.b16 %v710
        %v4209 = vunpack.c.l.b16 %v711
        %v4210 = vunpack.c.h.b16 %v711
        %v4211 = vunpack.c.l.b16 %v712
        %v4212 = vunpack.c.h.b16 %v712
        %v4213 = vunpack.c.l.b16 %v713
        %v4214 = vunpack.c.h.b16 %v713
        %v4215 = vunpack.c.l.b16 %v714
        %v4216 = vunpack.c.h.b16 %v714
        %v4217 = vunpack.c.l.b16 %v715
        %v4218 = vunpack.c.h.b16 %v715
        %v4219 = vunpack.c.l.b16 %v716
        %v4220 = vunpack.c.h.b16 %v716
        %v4221 = vunpack.c.l.b16 %v717
        %v4222 = vunpack.c.h.b16 %v717
        %v4223 = vunpack.c.l.b16 %v718
        %v4224 = vunpack.c.h.b16 %v718
        %v4225 = vunpack.c.l.b16 %v719
        %v4226 = vunpack.c.h.b16 %v719
        %v4227 = vunpack.c.l.b16 %v720
        %v4228 = vunpack.c.h.b16 %v720
        %v4229 = vunpack.c.l.b16 %v721
        %v4230 = vunpack.c.h.b16 %v721
        %v4231 = vunpack.c.l.b16 %v722
        %v4232 = vunpack.c.h.b16 %v722
        %v4233 = vunpack.c.l.b16 %v723
        %v4234 = vunpack.c.h.b16 %v723
        %v4235 = vunpack.c.l.b16 %v724
        %v4236 = vunpack.c.h.b16 %v724
        %v4237 = vunpack.c.l.b16 %v725
        %v4238 = vunpack.c.h.b16 %v725
        %v4239 = vunpack.c.l.b16 %v726
        %v4240 = vunpack.c.h.b16 %v726
        %v4241 = vunpack.c.l.b16 %v727
        %v4242 = vunpack.c.h.b16 %v727
        %v4243 = vunpack.c.l.b16 %v728
        %v4244 = vunpack.c.h.b16 %v728
        %v4245 = vunpack.c.l.b16 %v729
        %v4246 = vunpack.c.h.b16 %v729
        %v4247 = vunpack.c.l.b16 %v730
        %v4248 = vunpack.c.h.b16 %v730
        %v4249 = vunpack.c.l.b16 %v731
        %v4250 = vunpack.c.h.b16 %v731
        %v4251 = vunpack.c.l.b16 %v732
        %v4252 = vunpack.c.h.b16 %v732
        %v4253 = vunpack.c.l.b16 %v733
        %v4254 = vunpack.c.h.b16 %v733
        %v4255 = vunpack.c.l.b16 %v734
        %v4256 = vunpack.c.h.b16 %v734
        %v4257 = vunpack.c.l.b16 %v735
        %v4258 = vunpack.c.h.b16 %v735
        %v4259 = vunpack.c.l.b16 %v736
        %v4260 = vunpack.c.h.b16 %v736
        %v4261 = vunpack.c.l.b16 %v737
        %v4262 = vunpack.c.h.b16 %v737
        %v4263 = vunpack.c.l.b16 %v738
        %v4264 = vunpack.c.h.b16 %v738
        %v4265 = vunpack.c.l.b16 %v739
        %v4266 = vunpack.c.h.b16 %v739
        %v4267 = vunpack.c.l.b16 %v740
        %v4268 = vunpack.c.h.b16 %v740
        %v4269 = vunpack.c.l.b16 %v741
        %v4270 = vunpack.c.h.b16 %v741
        %v4271 = vunpack.c.l.b16 %v742
        %v4272 = vunpack.c.h.b16 %v742
        %v4273 = vunpack.c.l.b16 %v743
        %v4274 = vunpack.c.h.b16 %v743
        %v4275 = vunpack.c.l.b16 %v744
        %v4276 = vunpack.c.h.b16 %v744
        %v4277 = vunpack.c.l.b16 %v745
        %v4278 = vunpack.c.h.b16 %v745
        %v4279 = vunpack.c.l.b16 %v746
        %v4280 = vunpack.c.h.b16 %v746
        %v4281 = vunpack.c.l.b16 %v747
        %v4282 = vunpack.c.h.b16 %v747
        %v4283 = vunpack.c.l.b16 %v748
        %v4284 = vunpack.c.h.b16 %v748
        %v4285 = vunpack.c.l.b16 %v749
        %v4286 = vunpack.c.h.b16 %v749
        %v4287 = vunpack.c.l.b16 %v750
        %v4288 = vunpack.c.h.b16 %v750
        %v4289 = vunpack.c.l.b16 %v751
        %v4290 = vunpack.c.h.b16 %v751
        %v4291 = vunpack.c.l.b16 %v752
        %v4292 = vunpack.c.h.b16 %v752
        %v4293 = vunpack.c.l.b16 %v753
        %v4294 = vunpack.c.h.b16 %v753
        %v4295 = vunpack.c.l.b16 %v754
        %v4296 = vunpack.c.h.b16 %v754
        %v4297 = vunpack.c.l.b16 %v755
        %v4298 = vunpack.c.h.b16 %v755
        %v4299 = vunpack.c.l.b16 %v756
        %v4300 = vunpack.c.h.b16 %v756
        %v4301 = vunpack.c.l.b16 %v757
        %v4302 = vunpack.c.h.b16 %v757
        %v4303 = vunpack.c.l.b16 %v758
        %v4304 = vunpack.c.h.b16 %v758
        %v4305 = vunpack.c.l.b16 %v759
        %v4306 = vunpack.c.h.b16 %v759
        %v4307 = vunpack.c.l.b16 %v760
        %v4308 = vunpack.c.h.b16 %v760
        %v4309 = vunpack.c.l.b16 %v761
        %v4310 = vunpack.c.h.b16 %v761
        %v4311 = vunpack.c.l.b16 %v762
        %v4312 = vunpack.c.h.b16 %v762
        %v4313 = vunpack.c.l.b16 %v763
        %v4314 = vunpack.c.h.b16 %v763
        %v4315 = vunpack.c.l.b16 %v764
        %v4316 = vunpack.c.h.b16 %v764
        %v4317 = vunpack.c.l.b16 %v765
        %v4318 = vunpack.c.h.b16 %v765
        %v4319 = vunpack.c.l.b16 %v766
        %v4320 = vunpack.c.h.b16 %v766
        %v4321 = vunpack.c.l.b16 %v767
        %v4322 = vunpack.c.h.b16 %v767
        %v4323 = vunpack.c.l.b16 %v768
        %v4324 = vunpack.c.h.b16 %v768
        %v4325 = vunpack.c.l.b16 %v769
        %v4326 = vunpack.c.h.b16 %v769
        %v4327 = vunpack.c.l.b16 %v770
        %v4328 = vunpack.c.h.b16 %v770
        %v4329 = vunpack.c.l.b16 %v771
        %v4330 = vunpack.c.h.b16 %v771
        %v4331 = vunpack.c.l.b16 %v772
        %v4332 = vunpack.c.h.b16 %v772
        %v4333 = vunpack.c.l.b16 %v773
        %v4334 = vunpack.c.h.b16 %v773
        %v4335 = vunpack.c.l.b16 %v774
        %v4336 = vunpack.c.h.b16 %v774
        %v4337 = vunpack.c.l.b16 %v775
        %v4338 = vunpack.c.h.b16 %v775
        %v4339 = vunpack.c.l.b16 %v776
        %v4340 = vunpack.c.h.b16 %v776
        %v4341 = vunpack.c.l.b16 %v777
        %v4342 = vunpack.c.h.b16 %v777
        %v4343 = vunpack.c.l.b16 %v778
        %v4344 = vunpack.c.h.b16 %v778
        %v4345 = vunpack.c.l.b16 %v779
        %v4346 = vunpack.c.h.b16 %v779
        %v4347 = vunpack.c.l.b16 %v780
        %v4348 = vunpack.c.h.b16 %v780
        %v4349 = vunpack.c.l.b16 %v781
        %v4350 = vunpack.c.h.b16 %v781
        %v4351 = vunpack.c.l.b16 %v782
        %v4352 = vunpack.c.h.b16 %v782
        %v4353 = vunpack.c.l.b16 %v783
        %v4354 = vunpack.c.h.b16 %v783
        %v4355 = vunpack.c.l.b16 %v784
        %v4356 = vunpack.c.h.b16 %v784
        %v4357 = vunpack.c.l.b16 %v785
        %v4358 = vunpack.c.h.b16 %v785
        %v4359 = vunpack.c.l.b16 %v786
        %v4360 = vunpack.c.h.b16 %v786
        %v4361 = vunpack.c.l.b16 %v787
        %v4362 = vunpack.c.h.b16 %v787
        %v4363 = vunpack.c.l.b16 %v788
        %v4364 = vunpack.c.h.b16 %v788
        %v4365 = vunpack.c.l.b16 %v789
        %v4366 = vunpack.c.h.b16 %v789
        %v4367 = vunpack.c.l.b16 %v790
        %v4368 = vunpack.c.h.b16 %v790
        %v4369 = vunpack.c.l.b16 %v791
        %v4370 = vunpack.c.h.b16 %v791
        %v4371 = vunpack.c.l.b16 %v792
        %v4372 = vunpack.c.h.b16 %v792
        %v4373 = vunpack.c.l.b16 %v793
        %v4374 = vunpack.c.h.b16 %v793
        %v4375 = vunpack.c.l.b16 %v794
        %v4376 = vunpack.c.h.b16 %v794
        %v4377 = vunpack.c.l.b16 %v795
        %v4378 = vunpack.c.h.b16 %v795
        %v4379 = vunpack.c.l.b16 %v796
        %v4380 = vunpack.c.h.b16 %v796
        %v4381 = vunpack.c.l.b16 %v797
        %v4382 = vunpack.c.h.b16 %v797
        %v4383 = vunpack.c.l.b16 %v798
        %v4384 = vunpack.c.h.b16 %v798
        %v4385 = vunpack.c.l.b16 %v799
        %v4386 = vunpack.c.h.b16 %v799
        %v4387 = vunpack.c.l.b16 %v800
        %v4388 = vunpack.c.h.b16 %v800
        %v4389 = vunpack.c.l.b16 %v801
        %v4390 = vunpack.c.h.b16 %v801
        %v4391 = vunpack.c.l.b16 %v802
        %v4392 = vunpack.c.h.b16 %v802
        %v4393 = vunpack.c.l.b16 %v803
        %v4394 = vunpack.c.h.b16 %v803
        %v4395 = vunpack.c.l.b16 %v804
        %v4396 = vunpack.c.h.b16 %v804
        %v4397 = vunpack.c.l.b16 %v805
        %v4398 = vunpack.c.h.b16 %v805
        %v4399 = vunpack.c.l.b16 %v806
        %v4400 = vunpack.c.h.b16 %v806
        %v4401 = vunpack.c.l.b16 %v807
        %v4402 = vunpack.c.h.b16 %v807
        %v4403 = vunpack.c.l.b16 %v808
        %v4404 = vunpack.c.h.b16 %v808
        %v4405 = vunpack.c.l.b16 %v809
        %v4406 = vunpack.c.h.b16 %v809
        %v4407 = vunpack.c.l.b16 %v810
        %v4408 = vunpack.c.h.b16 %v810
        %v4409 = vunpack.c.l.b16 %v811
        %v4410 = vunpack.c.h.b16 %v811
        %v4411 = vunpack.c.l.b16 %v812
        %v4412 = vunpack.c.h.b16 %v812
        %v4413 = vunpack.c.l.b16 %v813
        %v4414 = vunpack.c.h.b16 %v813
        %v4415 = vunpack.c.l.b16 %v814
        %v4416 = vunpack.c.h.b16 %v814
        %v4417 = vunpack.c.l.b16 %v815
        %v4418 = vunpack.c.h.b16 %v815
        %v4419 = vunpack.c.l.b16 %v816
        %v4420 = vunpack.c.h.b16 %v816
        %v4421 = vunpack.c.l.b16 %v817
        %v4422 = vunpack.c.h.b16 %v817
        %v4423 = vunpack.c.l.b16 %v818
        %v4424 = vunpack.c.h.b16 %v818
        %v4425 = vunpack.c.l.b16 %v819
        %v4426 = vunpack.c.h.b16 %v819
        %v4427 = vunpack.c.l.b16 %v820
        %v4428 = vunpack.c.h.b16 %v820
        %v4429 = vunpack.c.l.b16 %v821
        %v4430 = vunpack.c.h.b16 %v821
        %v4431 = vunpack.c.l.b16 %v822
        %v4432 = vunpack.c.h.b16 %v822
        %v4433 = vunpack.c.l.b16 %v823
        %v4434 = vunpack.c.h.b16 %v823
        %v4435 = vunpack.c.l.b16 %v824
        %v4436 = vunpack.c.h.b16 %v824
        %v4437 = vunpack.c.l.b16 %v825
        %v4438 = vunpack.c.h.b16 %v825
        %v4439 = vunpack.c.l.b16 %v826
        %v4440 = vunpack.c.h.b16 %v826
        %v4441 = vunpack.c.l.b16 %v827
        %v4442 = vunpack.c.h.b16 %v827
        %v4443 = vunpack.c.l.b16 %v828
        %v4444 = vunpack.c.h.b16 %v828
        %v4445 = vunpack.c.l.b16 %v829
        %v4446 = vunpack.c.h.b16 %v829
        %v4447 = vunpack.c.l.b16 %v830
        %v4448 = vunpack.c.h.b16 %v830
        %v4449 = vunpack.c.l.b16 %v831
        %v4450 = vunpack.c.h.b16 %v831
        %v4451 = vunpack.c.l.b16 %v832
        %v4452 = vunpack.c.h.b16 %v832
        %v4453 = vunpack.c.l.b16 %v833
        %v4454 = vunpack.c.h.b16 %v833
        %v4455 = vunpack.c.l.b16 %v834
        %v4456 = vunpack.c.h.b16 %v834
        %v4457 = vunpack.c.l.b16 %v835
        %v4458 = vunpack.c.h.b16 %v835
        %v4459 = vunpack.c.l.b16 %v836
        %v4460 = vunpack.c.h.b16 %v836
        %v4461 = vunpack.c.l.b16 %v837
        %v4462 = vunpack.c.h.b16 %v837
        %v4463 = vunpack.c.l.b16 %v838
        %v4464 = vunpack.c.h.b16 %v838
        %v4465 = vunpack.c.l.b16 %v839
        %v4466 = vunpack.c.h.b16 %v839
        %v4467 = vunpack.c.l.b16 %v840
        %v4468 = vunpack.c.h.b16 %v840
        %v4469 = vunpack.c.l.b16 %v841
        %v4470 = vunpack.c.h.b16 %v841
        %v4471 = vunpack.c.l.b16 %v842
        %v4472 = vunpack.c.h.b16 %v842
        %v4473 = vunpack.c.l.b16 %v843
        %v4474 = vunpack.c.h.b16 %v843
        %v4475 = vunpack.c.l.b16 %v844
        %v4476 = vunpack.c.h.b16 %v844
        %v4477 = vunpack.c.l.b16 %v845
        %v4478 = vunpack.c.h.b16 %v845
        %v4479 = vunpack.c.l.b16 %v846
        %v4480 = vunpack.c.h.b16 %v846
        %v4481 = vunpack.c.l.b16 %v847
        %v4482 = vunpack.c.h.b16 %v847
        %v4483 = vunpack.c.l.b16 %v848
        %v4484 = vunpack.c.h.b16 %v848
        %v4485 = vunpack.c.l.b16 %v849
        %v4486 = vunpack.c.h.b16 %v849
        %v4487 = vunpack.c.l.b16 %v850
        %v4488 = vunpack.c.h.b16 %v850
        %v4489 = vunpack.c.l.b16 %v851
        %v4490 = vunpack.c.h.b16 %v851
        %v4491 = vunpack.c.l.b16 %v852
        %v4492 = vunpack.c.h.b16 %v852
        %v4493 = vunpack.c.l.b16 %v853
        %v4494 = vunpack.c.h.b16 %v853
        %v4495 = vunpack.c.l.b16 %v854
        %v4496 = vunpack.c.h.b16 %v854
        %v4497 = vunpack.c.l.b16 %v855
        %v4498 = vunpack.c.h.b16 %v855
        %v4499 = vunpack.c.l.b16 %v856
        %v4500 = vunpack.c.h.b16 %v856
        %v4501 = vunpack.c.l.b16 %v857
        %v4502 = vunpack.c.h.b16 %v857
        %v4503 = vunpack.c.l.b16 %v858
        %v4504 = vunpack.c.h.b16 %v858
        %v4505 = vunpack.c.l.b16 %v859
        %v4506 = vunpack.c.h.b16 %v859
        %v4507 = vunpack.c.l.b16 %v860
        %v4508 = vunpack.c.h.b16 %v860
        %v4509 = vunpack.c.l.b16 %v861
        %v4510 = vunpack.c.h.b16 %v861
        %v4511 = vunpack.c.l.b16 %v862
        %v4512 = vunpack.c.h.b16 %v862
        %v4513 = vunpack.c.l.b16 %v863
        %v4514 = vunpack.c.h.b16 %v863
        %v4515 = vunpack.c.l.b16 %v864
        %v4516 = vunpack.c.h.b16 %v864
        %v4517 = vunpack.c.l.b16 %v865
        %v4518 = vunpack.c.h.b16 %v865
        %v4519 = vunpack.c.l.b16 %v866
        %v4520 = vunpack.c.h.b16 %v866
        %v4521 = vunpack.c.l.b16 %v867
        %v4522 = vunpack.c.h.b16 %v867
        %v4523 = vunpack.c.l.b16 %v868
        %v4524 = vunpack.c.h.b16 %v868
        %v4525 = vunpack.c.l.b16 %v869
        %v4526 = vunpack.c.h.b16 %v869
        %v4527 = vunpack.c.l.b16 %v870
        %v4528 = vunpack.c.h.b16 %v870
        %v4529 = vunpack.c.l.b16 %v871
        %v4530 = vunpack.c.h.b16 %v871
        %v4531 = vunpack.c.l.b16 %v872
        %v4532 = vunpack.c.h.b16 %v872
        %v4533 = vunpack.c.l.b16 %v873
        %v4534 = vunpack.c.h.b16 %v873
        %v4535 = vunpack.c.l.b16 %v874
        %v4536 = vunpack.c.h.b16 %v874
        %v4537 = vunpack.c.l.b16 %v875
        %v4538 = vunpack.c.h.b16 %v875
        %v4539 = vunpack.c.l.b16 %v876
        %v4540 = vunpack.c.h.b16 %v876
        %v4541 = vunpack.c.l.b16 %v877
        %v4542 = vunpack.c.h.b16 %v877
        %v4543 = vunpack.c.l.b16 %v878
        %v4544 = vunpack.c.h.b16 %v878
        %v4545 = vunpack.c.l.b16 %v879
        %v4546 = vunpack.c.h.b16 %v879
        %v4547 = vunpack.c.l.b16 %v880
        %v4548 = vunpack.c.h.b16 %v880
        %v4549 = vunpack.c.l.b16 %v881
        %v4550 = vunpack.c.h.b16 %v881
        %v4551 = vunpack.c.l.b16 %v882
        %v4552 = vunpack.c.h.b16 %v882
        %v4553 = vunpack.c.l.b16 %v883
        %v4554 = vunpack.c.h.b16 %v883
        %v4555 = vunpack.c.l.b16 %v884
        %v4556 = vunpack.c.h.b16 %v884
        %v4557 = vunpack.c.l.b16 %v885
        %v4558 = vunpack.c.h.b16 %v885
        %v4559 = vunpack.c.l.b16 %v886
        %v4560 = vunpack.c.h.b16 %v886
        %v4561 = vunpack.c.l.b16 %v887
        %v4562 = vunpack.c.h.b16 %v887
        %v4563 = vunpack.c.l.b16 %v888
        %v4564 = vunpack.c.h.b16 %v888
        %v4565 = vunpack.c.l.b16 %v889
        %v4566 = vunpack.c.h.b16 %v889
        %v4567 = vunpack.c.l.b16 %v890
        %v4568 = vunpack.c.h.b16 %v890
        %v4569 = vunpack.c.l.b16 %v891
        %v4570 = vunpack.c.h.b16 %v891
        %v4571 = vunpack.c.l.b16 %v892
        %v4572 = vunpack.c.h.b16 %v892
        %v4573 = vunpack.c.l.b16 %v893
        %v4574 = vunpack.c.h.b16 %v893
        %v4575 = vunpack.c.l.b16 %v894
        %v4576 = vunpack.c.h.b16 %v894
        %v4577 = vunpack.c.l.b16 %v895
        %v4578 = vunpack.c.h.b16 %v895
        %v4579 = vunpack.c.l.b16 %v896
        %v4580 = vunpack.c.h.b16 %v896
        %v4581 = vunpack.c.l.b16 %v897
        %v4582 = vunpack.c.h.b16 %v897
        %v4583 = vunpack.c.l.b16 %v898
        %v4584 = vunpack.c.h.b16 %v898
        %v4585 = vunpack.c.l.b16 %v899
        %v4586 = vunpack.c.h.b16 %v899
        %v4587 = vunpack.c.l.b16 %v900
        %v4588 = vunpack.c.h.b16 %v900
        %v4589 = vunpack.c.l.b16 %v901
        %v4590 = vunpack.c.h.b16 %v901
        %v4591 = vunpack.c.l.b16 %v902
        %v4592 = vunpack.c.h.b16 %v902
        %v4593 = vunpack.c.l.b16 %v903
        %v4594 = vunpack.c.h.b16 %v903
        %v4595 = vunpack.c.l.b16 %v904
        %v4596 = vunpack.c.h.b16 %v904
        %v4597 = vunpack.c.l.b16 %v905
        %v4598 = vunpack.c.h.b16 %v905
        %v4599 = vunpack.c.l.b16 %v906
        %v4600 = vunpack.c.h.b16 %v906
        %v4601 = vunpack.c.l.b16 %v907
        %v4602 = vunpack.c.h.b16 %v907
        %v4603 = vunpack.c.l.b16 %v908
        %v4604 = vunpack.c.h.b16 %v908
        %v4605 = vunpack.c.l.b16 %v909
        %v4606 = vunpack.c.h.b16 %v909
        %v4607 = vunpack.c.l.b16 %v910
        %v4608 = vunpack.c.h.b16 %v910
        %v4609 = vunpack.c.l.b16 %v911
        %v4610 = vunpack.c.h.b16 %v911
        %v4611 = vunpack.c.l.b16 %v912
        %v4612 = vunpack.c.h.b16 %v912
        %v4613 = vunpack.c.l.b16 %v913
        %v4614 = vunpack.c.h.b16 %v913
        %v4615 = vunpack.c.l.b16 %v914
        %v4616 = vunpack.c.h.b16 %v914
        %v4617 = vunpack.c.l.b16 %v915
        %v4618 = vunpack.c.h.b16 %v915
        %v4619 = vunpack.c.l.b16 %v916
        %v4620 = vunpack.c.h.b16 %v916
        %v4621 = vunpack.c.l.b16 %v917
        %v4622 = vunpack.c.h.b16 %v917
        %v4623 = vunpack.c.l.b16 %v918
        %v4624 = vunpack.c.h.b16 %v918
        %v4625 = vunpack.c.l.b16 %v919
        %v4626 = vunpack.c.h.b16 %v919
        %v4627 = vunpack.c.l.b16 %v920
        %v4628 = vunpack.c.h.b16 %v920
        %v4629 = vunpack.c.l.b16 %v921
        %v4630 = vunpack.c.h.b16 %v921
        %v4631 = vunpack.c.l.b16 %v922
        %v4632 = vunpack.c.h.b16 %v922
        %v4633 = vunpack.c.l.b16 %v923
        %v4634 = vunpack.c.h.b16 %v923
        %v4635 = vunpack.c.l.b16 %v924
        %v4636 = vunpack.c.h.b16 %v924
        %v4637 = vunpack.c.l.b16 %v925
        %v4638 = vunpack.c.h.b16 %v925
        %v4639 = vunpack.c.l.b16 %v926
        %v4640 = vunpack.c.h.b16 %v926
        %v4641 = vunpack.c.l.b16 %v927
        %v4642 = vunpack.c.h.b16 %v927
        %v4643 = vunpack.c.l.b16 %v928
        %v4644 = vunpack.c.h.b16 %v928
        %v4645 = vunpack.c.l.b16 %v929
        %v4646 = vunpack.c.h.b16 %v929
        %v4647 = vunpack.c.l.b16 %v930
        %v4648 = vunpack.c.h.b16 %v930
        %v4649 = vunpack.c.l.b16 %v931
        %v4650 = vunpack.c.h.b16 %v931
        %v4651 = vunpack.c.l.b16 %v932
        %v4652 = vunpack.c.h.b16 %v932
        %v4653 = vunpack.c.l.b16 %v933
        %v4654 = vunpack.c.h.b16 %v933
        %v4655 = vunpack.c.l.b16 %v934
        %v4656 = vunpack.c.h.b16 %v934
        %v4657 = vunpack.c.l.b16 %v935
        %v4658 = vunpack.c.h.b16 %v935
        %v4659 = vunpack.c.l.b16 %v936
        %v4660 = vunpack.c.h.b16 %v936
        %v4661 = vunpack.c.l.b16 %v937
        %v4662 = vunpack.c.h.b16 %v937
        %v4663 = vunpack.c.l.b16 %v938
        %v4664 = vunpack.c.h.b16 %v938
        %v4665 = vunpack.c.l.b16 %v939
        %v4666 = vunpack.c.h.b16 %v939
        %v4667 = vunpack.c.l.b16 %v940
        %v4668 = vunpack.c.h.b16 %v940
        %v4669 = vunpack.c.l.b16 %v941
        %v4670 = vunpack.c.h.b16 %v941
        %v4671 = vunpack.c.l.b16 %v942
        %v4672 = vunpack.c.h.b16 %v942
        %v4673 = vunpack.c.l.b16 %v943
        %v4674 = vunpack.c.h.b16 %v943
        %v4675 = vunpack.c.l.b16 %v944
        %v4676 = vunpack.c.h.b16 %v944
        %v4677 = vunpack.c.l.b16 %v945
        %v4678 = vunpack.c.h.b16 %v945
        %v4679 = vunpack.c.l.b16 %v946
        %v4680 = vunpack.c.h.b16 %v946
        %v4681 = vunpack.c.l.b16 %v947
        %v4682 = vunpack.c.h.b16 %v947
        %v4683 = vunpack.c.l.b16 %v948
        %v4684 = vunpack.c.h.b16 %v948
        %v4685 = vunpack.c.l.b16 %v949
        %v4686 = vunpack.c.h.b16 %v949
        %v4687 = vunpack.c.l.b16 %v950
        %v4688 = vunpack.c.h.b16 %v950
        %v4689 = vunpack.c.l.b16 %v951
        %v4690 = vunpack.c.h.b16 %v951
        %v4691 = vunpack.c.l.b16 %v952
        %v4692 = vunpack.c.h.b16 %v952
        %v4693 = vunpack.c.l.b16 %v953
        %v4694 = vunpack.c.h.b16 %v953
        %v4695 = vunpack.c.l.b16 %v954
        %v4696 = vunpack.c.h.b16 %v954
        %v4697 = vunpack.c.l.b16 %v955
        %v4698 = vunpack.c.h.b16 %v955
        %v4699 = vunpack.c.l.b16 %v956
        %v4700 = vunpack.c.h.b16 %v956
        %v4701 = vunpack.c.l.b16 %v957
        %v4702 = vunpack.c.h.b16 %v957
        %v4703 = vunpack.c.l.b16 %v958
        %v4704 = vunpack.c.h.b16 %v958
        %v4705 = vunpack.c.l.b16 %v959
        %v4706 = vunpack.c.h.b16 %v959
        %v4707 = vunpack.c.l.b16 %v960
        %v4708 = vunpack.c.h.b16 %v960
        %v4709 = vunpack.c.l.b16 %v961
        %v4710 = vunpack.c.h.b16 %v961
        %v4711 = vunpack.c.l.b16 %v962
        %v4712 = vunpack.c.h.b16 %v962
        %v4713 = vunpack.c.l.b16 %v963
        %v4714 = vunpack.c.h.b16 %v963
        %v4715 = vunpack.c.l.b16 %v964
        %v4716 = vunpack.c.h.b16 %v964
        %v4717 = vunpack.c.l.b16 %v965
        %v4718 = vunpack.c.h.b16 %v965
        %v4719 = vunpack.c.l.b16 %v966
        %v4720 = vunpack.c.h.b16 %v966
        %v4721 = vunpack.c.l.b16 %v967
        %v4722 = vunpack.c.h.b16 %v967
        %v4723 = vunpack.c.l.b16 %v968
        %v4724 = vunpack.c.h.b16 %v968
        %v4725 = vunpack.c.l.b16 %v969
        %v4726 = vunpack.c.h.b16 %v969
        %v4727 = vunpack.c.l.b16 %v970
        %v4728 = vunpack.c.h.b16 %v970
        %v4729 = vunpack.c.l.b16 %v971
        %v4730 = vunpack.c.h.b16 %v971
        %v4731 = vunpack.c.l.b16 %v972
        %v4732 = vunpack.c.h.b16 %v972
        %v4733 = vunpack.c.l.b16 %v973
        %v4734 = vunpack.c.h.b16 %v973
        %v4735 = vunpack.c.l.b16 %v974
        %v4736 = vunpack.c.h.b16 %v974
        %v4737 = vunpack.c.l.b16 %v975
        %v4738 = vunpack.c.h.b16 %v975
        %v4739 = vunpack.c.l.b16 %v976
        %v4740 = vunpack.c.h.b16 %v976
        %v4741 = vunpack.c.l.b16 %v977
        %v4742 = vunpack.c.h.b16 %v977
        %v4743 = vunpack.c.l.b16 %v978
        %v4744 = vunpack.c.h.b16 %v978
        %v4745 = vunpack.c.l.b16 %v979
        %v4746 = vunpack.c.h.b16 %v979
        %v4747 = vunpack.c.l.b16 %v980
        %v4748 = vunpack.c.h.b16 %v980
        %v4749 = vunpack.c.l.b16 %v981
        %v4750 = vunpack.c.h.b16 %v981
        %v4751 = vunpack.c.l.b16 %v982
        %v4752 = vunpack.c.h.b16 %v982
        %v4753 = vunpack.c.l.b16 %v983
        %v4754 = vunpack.c.h.b16 %v983
        %v4755 = vunpack.c.l.b16 %v984
        %v4756 = vunpack.c.h.b16 %v984
        %v4757 = vunpack.c.l.b16 %v985
        %v4758 = vunpack.c.h.b16 %v985
        %v4759 = vunpack.c.l.b16 %v986
        %v4760 = vunpack.c.h.b16 %v986
        %v4761 = vunpack.c.l.b16 %v987
        %v4762 = vunpack.c.h.b16 %v987
        %v4763 = vunpack.c.l.b16 %v988
        %v4764 = vunpack.c.h.b16 %v988
        %v4765 = vunpack.c.l.b16 %v989
        %v4766 = vunpack.c.h.b16 %v989
        %v4767 = vunpack.c.l.b16 %v990
        %v4768 = vunpack.c.h.b16 %v990
        %v4769 = vunpack.c.l.b16 %v991
        %v4770 = vunpack.c.h.b16 %v991
        %v4771 = vunpack.c.l.b16 %v992
        %v4772 = vunpack.c.h.b16 %v992
        %v4773 = vunpack.c.l.b16 %v993
        %v4774 = vunpack.c.h.b16 %v993
        %v4775 = vunpack.c.l.b16 %v994
        %v4776 = vunpack.c.h.b16 %v994
        %v4777 = vunpack.c.l.b16 %v995
        %v4778 = vunpack.c.h.b16 %v995
        %v4779 = vunpack.c.l.b16 %v996
        %v4780 = vunpack.c.h.b16 %v996
        %v4781 = vunpack.c.l.b16 %v997
        %v4782 = vunpack.c.h.b16 %v997
        %v4783 = vunpack.c.l.b16 %v998
        %v4784 = vunpack.c.h.b16 %v998
        %v4785 = vunpack.c.l.b16 %v999
        %v4786 = vunpack.c.h.b16 %v999
        %v4787 = vunpack.c.l.b16 %v1000
        %v4788 = vunpack.c.h.b16 %v1000
        %v4789 = vunpack.c.l.b16 %v1001
        %v4790 = vunpack.c.h.b16 %v1001
        %v4791 = vunpack.c.l.b16 %v1002
        %v4792 = vunpack.c.h.b16 %v1002
        %v4793 = vunpack.c.l.b16 %v1003
        %v4794 = vunpack.c.h.b16 %v1003
        %v4795 = vunpack.c.l.b16 %v1004
        %v4796 = vunpack.c.h.b16 %v1004
        %v4797 = vunpack.c.l.b16 %v1005
        %v4798 = vunpack.c.h.b16 %v1005
        %v4799 = vunpack.c.l.b16 %v1006
        %v4800 = vunpack.c.h.b16 %v1006
        %v4801 = vunpack.c.l.b16 %v1007
        %v4802 = vunpack.c.h.b16 %v1007
        %v4803 = vunpack.c.l.b16 %v1008
        %v4804 = vunpack.c.h.b16 %v1008
        %v4805 = vunpack.c.l.b16 %v1009
        %v4806 = vunpack.c.h.b16 %v1009
        %v4807 = vunpack.c.l.b16 %v1010
        %v4808 = vunpack.c.h.b16 %v1010
        %v4809 = vunpack.c.l.b16 %v1011
        %v4810 = vunpack.c.h.b16 %v1011
        %v4811 = vunpack.c.l.b16 %v1012
        %v4812 = vunpack.c.h.b16 %v1012
        %v4813 = vunpack.c.l.b16 %v1013
        %v4814 = vunpack.c.h.b16 %v1013
        %v4815 = vunpack.c.l.b16 %v1014
        %v4816 = vunpack.c.h.b16 %v1014
        %v4817 = vunpack.c.l.b16 %v1015
        %v4818 = vunpack.c.h.b16 %v1015
        %v4819 = vunpack.c.l.b16 %v1016
        %v4820 = vunpack.c.h.b16 %v1016
        %v4821 = vunpack.c.l.b16 %v1017
        %v4822 = vunpack.c.h.b16 %v1017
        %v4823 = vunpack.c.l.b16 %v1018
        %v4824 = vunpack.c.h.b16 %v1018
        %v4825 = vunpack.c.l.b16 %v1019
        %v4826 = vunpack.c.h.b16 %v1019
        %v4827 = vunpack.c.l.b16 %v1020
        %v4828 = vunpack.c.h.b16 %v1020
        %v4829 = vunpack.c.l.b16 %v1021
        %v4830 = vunpack.c.h.b16 %v1021
        %v4831 = vunpack.c.l.b16 %v1022
        %v4832 = vunpack.c.h.b16 %v1022
        %v4833 = vunpack.c.l.b16 %v1023
        %v4834 = vunpack.c.h.b16 %v1023
        %v4835 = vunpack.c.l.b16 %v1024
        %v4836 = vunpack.c.h.b16 %v1024
        %v4837 = vunpack.c.l.b16 %v1025
        %v4838 = vunpack.c.h.b16 %v1025
        %v4839 = vunpack.c.l.b16 %v1026
        %v4840 = vunpack.c.h.b16 %v1026
        %v4841 = vunpack.c.l.b16 %v1027
        %v4842 = vunpack.c.h.b16 %v1027
        %v4843 = vunpack.c.l.b16 %v1028
        %v4844 = vunpack.c.h.b16 %v1028
        %v4845 = vunpack.c.l.b16 %v1029
        %v4846 = vunpack.c.h.b16 %v1029
        %v4847 = vunpack.c.l.b16 %v1030
        %v4848 = vunpack.c.h.b16 %v1030
        %v4849 = vunpack.c.l.b16 %v1031
        %v4850 = vunpack.c.h.b16 %v1031
        %v4851 = vunpack.c.l.b16 %v1032
        %v4852 = vunpack.c.h.b16 %v1032
        %v4853 = vunpack.c.l.b16 %v1033
        %v4854 = vunpack.c.h.b16 %v1033
        %v4855 = vunpack.c.l.b16 %v1034
        %v4856 = vunpack.c.h.b16 %v1034
        %v4857 = vunpack.c.l.b16 %v1035
        %v4858 = vunpack.c.h.b16 %v1035
        %v4859 = vunpack.c.l.b16 %v1036
        %v4860 = vunpack.c.h.b16 %v1036
        %v4861 = vunpack.c.l.b16 %v1037
        %v4862 = vunpack.c.h.b16 %v1037
        %v4863 = vunpack.c.l.b16 %v1038
        %v4864 = vunpack.c.h.b16 %v1038
        %v4865 = vunpack.c.l.b16 %v1039
        %v4866 = vunpack.c.h.b16 %v1039
        %v4867 = vunpack.c.l.b16 %v1040
        %v4868 = vunpack.c.h.b16 %v1040
        %v4869 = vunpack.c.l.b16 %v1041
        %v4870 = vunpack.c.h.b16 %v1041
        %v4871 = vunpack.c.l.b16 %v1042
        %v4872 = vunpack.c.h.b16 %v1042
        %v4873 = vunpack.c.l.b16 %v1043
        %v4874 = vunpack.c.h.b16 %v1043
        %v4875 = vunpack.c.l.b16 %v1044
        %v4876 = vunpack.c.h.b16 %v1044
        %v4877 = vunpack.c.l.b16 %v1045
        %v4878 = vunpack.c.h.b16 %v1045
        %v4879 = vunpack.c.l.b16 %v1046
        %v4880 = vunpack.c.h.b16 %v1046
        %v4881 = vunpack.c.l.b16 %v1047
        %v4882 = vunpack.c.h.b16 %v1047
        %v4883 = vunpack.c.l.b16 %v1048
        %v4884 = vunpack.c.h.b16 %v1048
        %v4885 = vunpack.c.l.b16 %v1049
        %v4886 = vunpack.c.h.b16 %v1049
        %v4887 = vunpack.c.l.b16 %v1050
        %v4888 = vunpack.c.h.b16 %v1050
        %v4889 = vunpack.c.l.b16 %v1051
        %v4890 = vunpack.c.h.b16 %v1051
        %v4891 = vunpack.c.l.b16 %v1052
        %v4892 = vunpack.c.h.b16 %v1052
        %v4893 = vunpack.c.l.b16 %v1053
        %v4894 = vunpack.c.h.b16 %v1053
        %v4895 = vunpack.c.l.b16 %v1054
        %v4896 = vunpack.c.h.b16 %v1054
        %v4897 = vunpack.c.l.b16 %v1055
        %v4898 = vunpack.c.h.b16 %v1055
        %v4899 = vunpack.c.l.b16 %v1056
        %v4900 = vunpack.c.h.b16 %v1056
        %v4901 = vunpack.c.l.b16 %v1057
        %v4902 = vunpack.c.h.b16 %v1057
        %v4903 = vunpack.c.l.b16 %v1058
        %v4904 = vunpack.c.h.b16 %v1058
        %v4905 = vunpack.c.l.b16 %v1059
        %v4906 = vunpack.c.h.b16 %v1059
        %v4907 = vunpack.c.l.b16 %v1060
        %v4908 = vunpack.c.h.b16 %v1060
        %v4909 = vunpack.c.l.b16 %v1061
        %v4910 = vunpack.c.h.b16 %v1061
        %v4911 = vunpack.c.l.b16 %v1062
        %v4912 = vunpack.c.h.b16 %v1062
        %v4913 = vunpack.c.l.b16 %v1063
        %v4914 = vunpack.c.h.b16 %v1063
        %v4915 = vunpack.c.l.b16 %v1064
        %v4916 = vunpack.c.h.b16 %v1064
        %v4917 = vunpack.c.l.b16 %v1065
        %v4918 = vunpack.c.h.b16 %v1065
        %v4919 = vunpack.c.l.b16 %v1066
        %v4920 = vunpack.c.h.b16 %v1066
        %v4921 = vunpack.c.l.b16 %v1067
        %v4922 = vunpack.c.h.b16 %v1067
        %v4923 = vunpack.c.l.b16 %v1068
        %v4924 = vunpack.c.h.b16 %v1068
        %v4925 = vunpack.c.l.b16 %v1069
        %v4926 = vunpack.c.h.b16 %v1069
        %v4927 = vunpack.c.l.b16 %v1070
        %v4928 = vunpack.c.h.b16 %v1070
        %v4929 = vunpack.c.l.b16 %v1071
        %v4930 = vunpack.c.h.b16 %v1071
        %v4931 = vunpack.c.l.b16 %v1072
        %v4932 = vunpack.c.h.b16 %v1072
        %v4933 = vunpack.c.l.b16 %v1073
        %v4934 = vunpack.c.h.b16 %v1073
        %v4935 = vunpack.c.l.b16 %v1074
        %v4936 = vunpack.c.h.b16 %v1074
        %v4937 = vunpack.c.l.b16 %v1075
        %v4938 = vunpack.c.h.b16 %v1075
        %v4939 = vunpack.c.l.b16 %v1076
        %v4940 = vunpack.c.h.b16 %v1076
        %v4941 = vunpack.c.l.b16 %v1077
        %v4942 = vunpack.c.h.b16 %v1077
        %v4943 = vunpack.c.l.b16 %v1078
        %v4944 = vunpack.c.h.b16 %v1078
        %v4945 = vunpack.c.l.b16 %v1079
        %v4946 = vunpack.c.h.b16 %v1079
        %v4947 = vunpack.c.l.b16 %v1080
        %v4948 = vunpack.c.h.b16 %v1080
        %v4949 = vunpack.c.l.b16 %v1081
        %v4950 = vunpack.c.h.b16 %v1081
        %v4951 = vunpack.c.l.b16 %v1082
        %v4952 = vunpack.c.h.b16 %v1082
        %v4953 = vunpack.c.l.b16 %v1083
        %v4954 = vunpack.c.h.b16 %v1083
        %v4955 = vunpack.c.l.b16 %v1084
        %v4956 = vunpack.c.h.b16 %v1084
        %v4957 = vunpack.c.l.b16 %v1085
        %v4958 = vunpack.c.h.b16 %v1085
        %v4959 = vunpack.c.l.b16 %v1086
        %v4960 = vunpack.c.h.b16 %v1086
        %v4961 = vunpack.c.l.b16 %v1087
        %v4962 = vunpack.c.h.b16 %v1087
        %v4963 = vunpack.c.l.b16 %v1088
        %v4964 = vunpack.c.h.b16 %v1088
        %v4965 = vunpack.c.l.b16 %v1089
        %v4966 = vunpack.c.h.b16 %v1089
        %v4967 = vunpack.c.l.b16 %v1090
        %v4968 = vunpack.c.h.b16 %v1090
        %v4969 = vunpack.c.l.b16 %v1091
        %v4970 = vunpack.c.h.b16 %v1091
        %v4971 = vunpack.c.l.b16 %v1092
        %v4972 = vunpack.c.h.b16 %v1092
        %v4973 = vunpack.c.l.b16 %v1093
        %v4974 = vunpack.c.h.b16 %v1093
        %v4975 = vunpack.c.l.b16 %v1094
        %v4976 = vunpack.c.h.b16 %v1094
        %v4977 = vunpack.c.l.b16 %v1095
        %v4978 = vunpack.c.h.b16 %v1095
        %v4979 = vunpack.c.l.b16 %v1096
        %v4980 = vunpack.c.h.b16 %v1096
        %v4981 = vunpack.c.l.b16 %v1097
        %v4982 = vunpack.c.h.b16 %v1097
        %v4983 = vunpack.c.l.b16 %v1098
        %v4984 = vunpack.c.h.b16 %v1098
        %v4985 = vunpack.c.l.b16 %v1099
        %v4986 = vunpack.c.h.b16 %v1099
        %v4987 = vunpack.c.l.b16 %v1100
        %v4988 = vunpack.c.h.b16 %v1100
        %v4989 = vunpack.c.l.b16 %v1101
        %v4990 = vunpack.c.h.b16 %v1101
        %v4991 = vunpack.c.l.b16 %v1102
        %v4992 = vunpack.c.h.b16 %v1102
        %v4993 = vunpack.c.l.b16 %v1103
        %v4994 = vunpack.c.h.b16 %v1103
        %v4995 = vunpack.c.l.b16 %v1104
        %v4996 = vunpack.c.h.b16 %v1104
        %v4997 = vunpack.c.l.b16 %v1105
        %v4998 = vunpack.c.h.b16 %v1105
        %v4999 = vunpack.c.l.b16 %v1106
        %v5000 = vunpack.c.h.b16 %v1106
        %v5001 = vunpack.c.l.b16 %v1107
        %v5002 = vunpack.c.h.b16 %v1107
        %v5003 = vunpack.c.l.b16 %v1108
        %v5004 = vunpack.c.h.b16 %v1108
        %v5005 = vunpack.c.l.b16 %v1109
        %v5006 = vunpack.c.h.b16 %v1109
        %v5007 = vunpack.c.l.b16 %v1110
        %v5008 = vunpack.c.h.b16 %v1110
        %v5009 = vunpack.c.l.b16 %v1111
        %v5010 = vunpack.c.h.b16 %v1111
        %v5011 = vunpack.c.l.b16 %v1112
        %v5012 = vunpack.c.h.b16 %v1112
        %v5013 = vunpack.c.l.b16 %v1113
        %v5014 = vunpack.c.h.b16 %v1113
        %v5015 = vunpack.c.l.b16 %v1114
        %v5016 = vunpack.c.h.b16 %v1114
        %v5017 = vunpack.c.l.b16 %v1115
        %v5018 = vunpack.c.h.b16 %v1115
        %v5019 = vunpack.c.l.b16 %v1116
        %v5020 = vunpack.c.h.b16 %v1116
        %v5021 = vunpack.c.l.b16 %v1117
        %v5022 = vunpack.c.h.b16 %v1117
        %v5023 = vunpack.c.l.b16 %v1118
        %v5024 = vunpack.c.h.b16 %v1118
        %v5025 = vunpack.c.l.b16 %v1119
        %v5026 = vunpack.c.h.b16 %v1119
        %v5027 = vunpack.c.l.b16 %v1120
        %v5028 = vunpack.c.h.b16 %v1120
        %v5029 = vunpack.c.l.b16 %v1121
        %v5030 = vunpack.c.h.b16 %v1121
        %v5031 = vunpack.c.l.b16 %v1122
        %v5032 = vunpack.c.h.b16 %v1122
        %v5033 = vunpack.c.l.b16 %v1123
        %v5034 = vunpack.c.h.b16 %v1123
        %v5035 = vunpack.c.l.b16 %v1124
        %v5036 = vunpack.c.h.b16 %v1124
        %v5037 = vunpack.c.l.b16 %v1125
        %v5038 = vunpack.c.h.b16 %v1125
        %v5039 = vunpack.c.l.b16 %v1126
        %v5040 = vunpack.c.h.b16 %v1126
        %v5041 = vunpack.c.l.b16 %v1127
        %v5042 = vunpack.c.h.b16 %v1127
        %v5043 = vunpack.c.l.b16 %v1128
        %v5044 = vunpack.c.h.b16 %v1128
        %v5045 = vunpack.c.l.b16 %v1129
        %v5046 = vunpack.c.h.b16 %v1129
        %v5047 = vunpack.c.l.b16 %v1130
        %v5048 = vunpack.c.h.b16 %v1130
        %v5049 = vunpack.c.l.b16 %v1131
        %v5050 = vunpack.c.h.b16 %v1131
        %v5051 = vunpack.c.l.b16 %v1132
        %v5052 = vunpack.c.h.b16 %v1132
        %v5053 = vunpack.c.l.b16 %v1133
        %v5054 = vunpack.c.h.b16 %v1133
        %v5055 = vunpack.c.l.b16 %v1134
        %v5056 = vunpack.c.h.b16 %v1134
        %v5057 = vunpack.c.l.b16 %v1135
        %v5058 = vunpack.c.h.b16 %v1135
        %v5059 = vunpack.c.l.b16 %v1136
        %v5060 = vunpack.c.h.b16 %v1136
        %v5061 = vunpack.c.l.b16 %v1137
        %v5062 = vunpack.c.h.b16 %v1137
        %v5063 = vunpack.c.l.b16 %v1138
        %v5064 = vunpack.c.h.b16 %v1138
        %v5065 = vunpack.c.l.b16 %v1139
        %v5066 = vunpack.c.h.b16 %v1139
        %v5067 = vunpack.c.l.b16 %v1140
        %v5068 = vunpack.c.h.b16 %v1140
        %v5069 = vunpack.c.l.b16 %v1141
        %v5070 = vunpack.c.h.b16 %v1141
        %v5071 = vunpack.c.l.b16 %v1142
        %v5072 = vunpack.c.h.b16 %v1142
        %v5073 = vunpack.c.l.b16 %v1143
        %v5074 = vunpack.c.h.b16 %v1143
        %v5075 = vunpack.c.l.b16 %v1144
        %v5076 = vunpack.c.h.b16 %v1144
        %v5077 = vunpack.c.l.b16 %v1145
        %v5078 = vunpack.c.h.b16 %v1145
        %v5079 = vunpack.c.l.b16 %v1146
        %v5080 = vunpack.c.h.b16 %v1146
        %v5081 = vunpack.c.l.b16 %v1147
        %v5082 = vunpack.c.h.b16 %v1147
        %v5083 = vunpack.c.l.b16 %v1148
        %v5084 = vunpack.c.h.b16 %v1148
        %v5085 = vunpack.c.l.b16 %v1149
        %v5086 = vunpack.c.h.b16 %v1149
        %v5087 = vunpack.c.l.b16 %v1150
        %v5088 = vunpack.c.h.b16 %v1150
        %v5089 = vunpack.c.l.b16 %v1151
        %v5090 = vunpack.c.h.b16 %v1151
        %v5091 = vunpack.c.l.b16 %v1152
        %v5092 = vunpack.c.h.b16 %v1152
        %v5093 = vunpack.c.l.b16 %v1153
        %v5094 = vunpack.c.h.b16 %v1153
        %v5095 = vunpack.c.l.b16 %v1154
        %v5096 = vunpack.c.h.b16 %v1154
        %v5097 = vunpack.c.l.b16 %v1155
        %v5098 = vunpack.c.h.b16 %v1155
        %v5099 = vunpack.c.l.b16 %v1156
        %v5100 = vunpack.c.h.b16 %v1156
        %v5101 = vunpack.c.l.b16 %v1157
        %v5102 = vunpack.c.h.b16 %v1157
        %v5103 = vunpack.c.l.b16 %v1158
        %v5104 = vunpack.c.h.b16 %v1158
        %v5105 = vunpack.c.l.b16 %v1159
        %v5106 = vunpack.c.h.b16 %v1159
        %v5107 = vunpack.c.l.b16 %v1160
        %v5108 = vunpack.c.h.b16 %v1160
        %v5109 = vunpack.c.l.b16 %v1161
        %v5110 = vunpack.c.h.b16 %v1161
        %v5111 = vunpack.c.l.b16 %v1162
        %v5112 = vunpack.c.h.b16 %v1162
        %v5113 = vunpack.c.l.b16 %v1163
        %v5114 = vunpack.c.h.b16 %v1163
        %v5115 = vunpack.c.l.b16 %v1164
        %v5116 = vunpack.c.h.b16 %v1164
        %v5117 = vunpack.c.l.b16 %v1165
        %v5118 = vunpack.c.h.b16 %v1165
        %v5119 = vunpack.c.l.b16 %v1166
        %v5120 = vunpack.c.h.b16 %v1166
        %v5121 = vunpack.c.l.b16 %v1167
        %v5122 = vunpack.c.h.b16 %v1167
        %v5123 = vunpack.c.l.b16 %v1168
        %v5124 = vunpack.c.h.b16 %v1168
        %v5125 = vunpack.c.l.b16 %v1169
        %v5126 = vunpack.c.h.b16 %v1169
        %v5127 = vunpack.c.l.b16 %v1170
        %v5128 = vunpack.c.h.b16 %v1170
        %v5129 = vunpack.c.l.b16 %v1171
        %v5130 = vunpack.c.h.b16 %v1171
        %v5131 = vunpack.c.l.b16 %v1172
        %v5132 = vunpack.c.h.b16 %v1172
        %v5133 = vunpack.c.l.b16 %v1173
        %v5134 = vunpack.c.h.b16 %v1173
        %v5135 = vunpack.c.l.b16 %v1174
        %v5136 = vunpack.c.h.b16 %v1174
        %v5137 = vunpack.c.l.b16 %v1175
        %v5138 = vunpack.c.h.b16 %v1175
        %v5139 = vunpack.c.l.b16 %v1176
        %v5140 = vunpack.c.h.b16 %v1176
        %v5141 = vunpack.c.l.b16 %v1177
        %v5142 = vunpack.c.h.b16 %v1177
        %v5143 = vunpack.c.l.b16 %v1178
        %v5144 = vunpack.c.h.b16 %v1178
        %v5145 = vunpack.c.l.b16 %v1179
        %v5146 = vunpack.c.h.b16 %v1179
        %v5147 = vunpack.c.l.b16 %v1180
        %v5148 = vunpack.c.h.b16 %v1180
        %v5149 = vunpack.c.l.b16 %v1181
        %v5150 = vunpack.c.h.b16 %v1181
        %v5151 = vunpack.c.l.b16 %v1182
        %v5152 = vunpack.c.h.b16 %v1182
        %v5153 = vunpack.c.l.b16 %v1183
        %v5154 = vunpack.c.h.b16 %v1183
        %v5155 = vunpack.c.l.b16 %v1184
        %v5156 = vunpack.c.h.b16 %v1184
        %v5157 = vunpack.c.l.b16 %v1185
        %v5158 = vunpack.c.h.b16 %v1185
        %v5159 = vunpack.c.l.b16 %v1186
        %v5160 = vunpack.c.h.b16 %v1186
        %v5161 = vunpack.c.l.b16 %v1187
        %v5162 = vunpack.c.h.b16 %v1187
        %v5163 = vunpack.c.l.b16 %v1188
        %v5164 = vunpack.c.h.b16 %v1188
        %v5165 = vunpack.c.l.b16 %v1189
        %v5166 = vunpack.c.h.b16 %v1189
        %v5167 = vunpack.c.l.b16 %v1190
        %v5168 = vunpack.c.h.b16 %v1190
        %v5169 = vunpack.c.l.b16 %v1191
        %v5170 = vunpack.c.h.b16 %v1191
        %v5171 = vunpack.c.l.b16 %v1192
        %v5172 = vunpack.c.h.b16 %v1192
        %v5173 = vunpack.c.l.b16 %v1193
        %v5174 = vunpack.c.h.b16 %v1193
        %v5175 = vunpack.c.l.b16 %v1194
        %v5176 = vunpack.c.h.b16 %v1194
        %v5177 = vunpack.c.l.b16 %v1195
        %v5178 = vunpack.c.h.b16 %v1195
        %v5179 = vunpack.c.l.b16 %v1196
        %v5180 = vunpack.c.h.b16 %v1196
        %v5181 = vunpack.c.l.b16 %v1197
        %v5182 = vunpack.c.h.b16 %v1197
        %v5183 = vunpack.c.l.b16 %v1198
        %v5184 = vunpack.c.h.b16 %v1198
        %v5185 = vunpack.c.l.b16 %v1199
        %v5186 = vunpack.c.h.b16 %v1199
        %v5187 = vunpack.c.l.b16 %v1200
        %v5188 = vunpack.c.h.b16 %v1200
        %v5189 = vunpack.c.l.b16 %v1201
        %v5190 = vunpack.c.h.b16 %v1201
        %v5191 = vunpack.c.l.b16 %v1202
        %v5192 = vunpack.c.h.b16 %v1202
        %v5193 = vunpack.c.l.b16 %v1203
        %v5194 = vunpack.c.h.b16 %v1203
        %v5195 = vunpack.c.l.b16 %v1204
        %v5196 = vunpack.c.h.b16 %v1204
        %v5197 = vunpack.c.l.b16 %v1205
        %v5198 = vunpack.c.h.b16 %v1205
        %v5199 = vunpack.c.l.b16 %v1206
        %v5200 = vunpack.c.h.b16 %v1206
        %v5201 = vunpack.c.l.b16 %v1207
        %v5202 = vunpack.c.h.b16 %v1207
        %v5203 = vunpack.c.l.b16 %v1208
        %v5204 = vunpack.c.h.b16 %v1208
        %v5205 = vunpack.c.l.b16 %v1209
        %v5206 = vunpack.c.h.b16 %v1209
        %v5207 = vunpack.c.l.b16 %v1210
        %v5208 = vunpack.c.h.b16 %v1210
        %v5209 = vunpack.c.l.b16 %v1211
        %v5210 = vunpack.c.h.b16 %v1211
        %v5211 = vunpack.c.l.b16 %v1212
        %v5212 = vunpack.c.h.b16 %v1212
        %v5213 = vunpack.c.l.b16 %v1213
        %v5214 = vunpack.c.h.b16 %v1213
        %v5215 = vunpack.c.l.b16 %v1214
        %v5216 = vunpack.c.h.b16 %v1214
        %v5217 = vunpack.c.l.b16 %v1215
        %v5218 = vunpack.c.h.b16 %v1215
        %v5219 = vunpack.c.l.b16 %v1216
        %v5220 = vunpack.c.h.b16 %v1216
        %v5221 = vunpack.c.l.b16 %v1217
        %v5222 = vunpack.c.h.b16 %v1217
        %v5223 = vunpack.c.l.b16 %v1218
        %v5224 = vunpack.c.h.b16 %v1218
        %v5225 = vunpack.c.l.b16 %v1219
        %v5226 = vunpack.c.h.b16 %v1219
        %v5227 = vunpack.c.l.b16 %v1220
        %v5228 = vunpack.c.h.b16 %v1220
        %v5229 = vunpack.c.l.b16 %v1221
        %v5230 = vunpack.c.h.b16 %v1221
        %v5231 = vunpack.c.l.b16 %v1222
        %v5232 = vunpack.c.h.b16 %v1222
        %v5233 = vunpack.c.l.b16 %v1223
        %v5234 = vunpack.c.h.b16 %v1223
        %v5235 = vunpack.c.l.b16 %v1224
        %v5236 = vunpack.c.h.b16 %v1224
        %v5237 = vunpack.c.l.b16 %v1225
        %v5238 = vunpack.c.h.b16 %v1225
        %v5239 = vunpack.c.l.b16 %v1226
        %v5240 = vunpack.c.h.b16 %v1226
        %v5241 = vunpack.c.l.b16 %v1227
        %v5242 = vunpack.c.h.b16 %v1227
        %v5243 = vunpack.c.l.b16 %v1228
        %v5244 = vunpack.c.h.b16 %v1228
        %v5245 = vunpack.c.l.b16 %v1229
        %v5246 = vunpack.c.h.b16 %v1229
        %v5247 = vunpack.c.l.b16 %v1230
        %v5248 = vunpack.c.h.b16 %v1230
        %v5249 = vunpack.c.l.b16 %v1231
        %v5250 = vunpack.c.h.b16 %v1231
        %v5251 = vunpack.c.l.b16 %v1232
        %v5252 = vunpack.c.h.b16 %v1232
        %v5253 = vunpack.c.l.b16 %v1233
        %v5254 = vunpack.c.h.b16 %v1233
        %v5255 = vunpack.c.l.b16 %v1234
        %v5256 = vunpack.c.h.b16 %v1234
        %v5257 = vunpack.c.l.b16 %v1235
        %v5258 = vunpack.c.h.b16 %v1235
        %v5259 = vunpack.c.l.b16 %v1236
        %v5260 = vunpack.c.h.b16 %v1236
        %v5261 = vunpack.c.l.b16 %v1237
        %v5262 = vunpack.c.h.b16 %v1237
        %v5263 = vunpack.c.l.b16 %v1238
        %v5264 = vunpack.c.h.b16 %v1238
        %v5265 = vunpack.c.l.b16 %v1239
        %v5266 = vunpack.c.h.b16 %v1239
        %v5267 = vunpack.c.l.b16 %v1240
        %v5268 = vunpack.c.h.b16 %v1240
        %v5269 = vunpack.c.l.b16 %v1241
        %v5270 = vunpack.c.h.b16 %v1241
        %v5271 = vunpack.c.l.b16 %v1242
        %v5272 = vunpack.c.h.b16 %v1242
        %v5273 = vunpack.c.l.b16 %v1243
        %v5274 = vunpack.c.h.b16 %v1243
        %v5275 = vunpack.c.l.b16 %v1244
        %v5276 = vunpack.c.h.b16 %v1244
        %v5277 = vunpack.c.l.b16 %v1245
        %v5278 = vunpack.c.h.b16 %v1245
        %v5279 = vunpack.c.l.b16 %v1246
        %v5280 = vunpack.c.h.b16 %v1246
        %v5281 = vunpack.c.l.b16 %v1247
        %v5282 = vunpack.c.h.b16 %v1247
        %v5283 = vunpack.c.l.b16 %v1248
        %v5284 = vunpack.c.h.b16 %v1248
        %v5285 = vunpack.c.l.b16 %v1249
        %v5286 = vunpack.c.h.b16 %v1249
        %v5287 = vunpack.c.l.b16 %v1250
        %v5288 = vunpack.c.h.b16 %v1250
        %v5289 = vunpack.c.l.b16 %v1251
        %v5290 = vunpack.c.h.b16 %v1251
        %v5291 = vunpack.c.l.b16 %v1252
        %v5292 = vunpack.c.h.b16 %v1252
        %v5293 = vunpack.c.l.b16 %v1253
        %v5294 = vunpack.c.h.b16 %v1253
        %v5295 = vunpack.c.l.b16 %v1254
        %v5296 = vunpack.c.h.b16 %v1254
        %v5297 = vunpack.c.l.b16 %v1255
        %v5298 = vunpack.c.h.b16 %v1255
        %v5299 = vunpack.c.l.b16 %v1256
        %v5300 = vunpack.c.h.b16 %v1256
        %v5301 = vunpack.c.l.b16 %v1257
        %v5302 = vunpack.c.h.b16 %v1257
        %v5303 = vunpack.c.l.b16 %v1258
        %v5304 = vunpack.c.h.b16 %v1258
        %v5305 = vunpack.c.l.b16 %v1259
        %v5306 = vunpack.c.h.b16 %v1259
        %v5307 = vunpack.c.l.b16 %v1260
        %v5308 = vunpack.c.h.b16 %v1260
        %v5309 = vunpack.c.l.b16 %v1261
        %v5310 = vunpack.c.h.b16 %v1261
        %v5311 = vunpack.c.l.b16 %v1262
        %v5312 = vunpack.c.h.b16 %v1262
        %v5313 = vunpack.c.l.b16 %v1263
        %v5314 = vunpack.c.h.b16 %v1263
        %v5315 = vunpack.c.l.b16 %v1264
        %v5316 = vunpack.c.h.b16 %v1264
        %v5317 = vunpack.c.l.b16 %v1265
        %v5318 = vunpack.c.h.b16 %v1265
        %v5319 = vunpack.c.l.b16 %v1266
        %v5320 = vunpack.c.h.b16 %v1266
        %v5321 = vunpack.c.l.b16 %v1267
        %v5322 = vunpack.c.h.b16 %v1267
        %v5323 = vunpack.c.l.b16 %v1268
        %v5324 = vunpack.c.h.b16 %v1268
        %v5325 = vunpack.c.l.b16 %v1269
        %v5326 = vunpack.c.h.b16 %v1269
        %v5327 = vunpack.c.l.b16 %v1270
        %v5328 = vunpack.c.h.b16 %v1270
        %v5329 = vunpack.c.l.b16 %v1271
        %v5330 = vunpack.c.h.b16 %v1271
        %v5331 = vunpack.c.l.b16 %v1272
        %v5332 = vunpack.c.h.b16 %v1272
        %v5333 = vunpack.c.l.b16 %v1273
        %v5334 = vunpack.c.h.b16 %v1273
        %v5335 = vunpack.c.l.b16 %v1274
        %v5336 = vunpack.c.h.b16 %v1274
        %v5337 = vunpack.c.l.b16 %v1275
        %v5338 = vunpack.c.h.b16 %v1275
        %v5339 = vunpack.c.l.b16 %v1276
        %v5340 = vunpack.c.h.b16 %v1276
        %v5341 = vunpack.c.l.b16 %v1277
        %v5342 = vunpack.c.h.b16 %v1277
        %v5343 = vunpack.c.l.b16 %v1278
        %v5344 = vunpack.c.h.b16 %v1278
        %v5345 = vunpack.c.l.b16 %v1279
        %v5346 = vunpack.c.h.b16 %v1279
        %v5347 = vunpack.c.l.b16 %v1280
        %v5348 = vunpack.c.h.b16 %v1280
        %v5349 = vunpack.c.l.b16 %v1281
        %v5350 = vunpack.c.h.b16 %v1281
        %v5351 = vunpack.c.l.b16 %v1282
        %v5352 = vunpack.c.h.b16 %v1282
        %v5353 = vunpack.c.l.b16 %v1283
        %v5354 = vunpack.c.h.b16 %v1283
        %v5355 = vunpack.c.l.b16 %v1284
        %v5356 = vunpack.c.h.b16 %v1284
        %v5357 = vunpack.c.l.b16 %v1285
        %v5358 = vunpack.c.h.b16 %v1285
        %v5359 = vunpack.c.l.b16 %v1286
        %v5360 = vunpack.c.h.b16 %v1286
        %v5361 = vunpack.c.l.b16 %v1287
        %v5362 = vunpack.c.h.b16 %v1287
        %v5363 = vunpack.c.l.b16 %v1288
        %v5364 = vunpack.c.h.b16 %v1288
        %v5365 = vunpack.c.l.b16 %v1289
        %v5366 = vunpack.c.h.b16 %v1289
        %v5367 = vunpack.c.l.b16 %v1290
        %v5368 = vunpack.c.h.b16 %v1290
        %v5369 = vunpack.c.l.b16 %v1291
        %v5370 = vunpack.c.h.b16 %v1291
        %v5371 = vunpack.c.l.b16 %v1292
        %v5372 = vunpack.c.h.b16 %v1292
        %v5373 = vunpack.c.l.b16 %v1293
        %v5374 = vunpack.c.h.b16 %v1293
        %v5375 = vunpack.c.l.b16 %v1294
        %v5376 = vunpack.c.h.b16 %v1294
        %v5377 = vunpack.c.l.b16 %v1295
        %v5378 = vunpack.c.h.b16 %v1295
        %v5379 = vunpack.c.l.b16 %v1296
        %v5380 = vunpack.c.h.b16 %v1296
        %v5381 = vunpack.c.l.b16 %v1297
        %v5382 = vunpack.c.h.b16 %v1297
        %v5383 = vunpack.c.l.b16 %v1298
        %v5384 = vunpack.c.h.b16 %v1298
        %v5385 = vunpack.c.l.b16 %v1299
        %v5386 = vunpack.c.h.b16 %v1299
        %v5387 = vunpack.c.l.b16 %v1300
        %v5388 = vunpack.c.h.b16 %v1300
        %v5389 = vunpack.c.l.b16 %v1301
        %v5390 = vunpack.c.h.b16 %v1301
        %v5391 = vunpack.c.l.b16 %v1302
        %v5392 = vunpack.c.h.b16 %v1302
        %v5393 = vunpack.c.l.b16 %v1303
        %v5394 = vunpack.c.h.b16 %v1303
        %v5395 = vunpack.c.l.b16 %v1304
        %v5396 = vunpack.c.h.b16 %v1304
        %v5397 = vunpack.c.l.b16 %v1305
        %v5398 = vunpack.c.h.b16 %v1305
        %v5399 = vunpack.c.l.b16 %v1306
        %v5400 = vunpack.c.h.b16 %v1306
        %v5401 = vunpack.c.l.b16 %v1307
        %v5402 = vunpack.c.h.b16 %v1307
        %v5403 = vunpack.c.l.b16 %v1308
        %v5404 = vunpack.c.h.b16 %v1308
        %v5405 = vunpack.c.l.b16 %v1309
        %v5406 = vunpack.c.h.b16 %v1309
        %v5407 = vunpack.c.l.b16 %v1310
        %v5408 = vunpack.c.h.b16 %v1310
        %v5409 = vunpack.c.l.b16 %v1311
        %v5410 = vunpack.c.h.b16 %v1311
        %v5411 = vunpack.c.l.b16 %v1312
        %v5412 = vunpack.c.h.b16 %v1312
        %v5413 = vunpack.c.l.b16 %v1313
        %v5414 = vunpack.c.h.b16 %v1313
        %v5415 = vunpack.c.l.b16 %v1314
        %v5416 = vunpack.c.h.b16 %v1314
        %v5417 = vunpack.c.l.b16 %v1315
        %v5418 = vunpack.c.h.b16 %v1315
        %v5419 = vunpack.c.l.b16 %v1316
        %v5420 = vunpack.c.h.b16 %v1316
        %v5421 = vunpack.c.l.b16 %v1317
        %v5422 = vunpack.c.h.b16 %v1317
        %v5423 = vunpack.c.l.b16 %v1318
        %v5424 = vunpack.c.h.b16 %v1318
        %v5425 = vunpack.c.l.b16 %v1319
        %v5426 = vunpack.c.h.b16 %v1319
        %v5427 = vunpack.c.l.b16 %v1320
        %v5428 = vunpack.c.h.b16 %v1320
        %v5429 = vunpack.c.l.b16 %v1321
        %v5430 = vunpack.c.h.b16 %v1321
        %v5431 = vunpack.c.l.b16 %v1322
        %v5432 = vunpack.c.h.b16 %v1322
        %v5433 = vunpack.c.l.b16 %v1323
        %v5434 = vunpack.c.h.b16 %v1323
        %v5435 = vunpack.c.l.b16 %v1324
        %v5436 = vunpack.c.h.b16 %v1324
        %v5437 = vunpack.c.l.b16 %v1325
        %v5438 = vunpack.c.h.b16 %v1325
        %v5439 = vunpack.c.l.b16 %v1326
        %v5440 = vunpack.c.h.b16 %v1326
        %v5441 = vunpack.c.l.b16 %v1327
        %v5442 = vunpack.c.h.b16 %v1327
        %v5443 = vunpack.c.l.b16 %v1328
        %v5444 = vunpack.c.h.b16 %v1328
        %v5445 = vunpack.c.l.b16 %v1329
        %v5446 = vunpack.c.h.b16 %v1329
        %v5447 = vunpack.c.l.b16 %v1330
        %v5448 = vunpack.c.h.b16 %v1330
        %v5449 = vunpack.c.l.b16 %v1331
        %v5450 = vunpack.c.h.b16 %v1331
        %v5451 = vunpack.c.l.b16 %v1332
        %v5452 = vunpack.c.h.b16 %v1332
        %v5453 = vunpack.c.l.b16 %v1333
        %v5454 = vunpack.c.h.b16 %v1333
        %v5455 = vunpack.c.l.b16 %v1334
        %v5456 = vunpack.c.h.b16 %v1334
        %v5457 = vunpack.c.l.b16 %v1335
        %v5458 = vunpack.c.h.b16 %v1335
        %v5459 = vunpack.c.l.b16 %v1336
        %v5460 = vunpack.c.h.b16 %v1336
        %v5461 = vunpack.c.l.b16 %v1337
        %v5462 = vunpack.c.h.b16 %v1337
        %v5463 = vunpack.c.l.b16 %v1338
        %v5464 = vunpack.c.h.b16 %v1338
        %v5465 = vunpack.c.l.b16 %v1339
        %v5466 = vunpack.c.h.b16 %v1339
        %v5467 = vunpack.c.l.b16 %v1340
        %v5468 = vunpack.c.h.b16 %v1340
        %v5469 = vunpack.c.l.b16 %v1341
        %v5470 = vunpack.c.h.b16 %v1341
        %v5471 = vunpack.c.l.b16 %v1342
        %v5472 = vunpack.c.h.b16 %v1342
        %v5473 = vunpack.c.l.b16 %v1343
        %v5474 = vunpack.c.h.b16 %v1343
        %v5475 = vunpack.c.l.b16 %v1344
        %v5476 = vunpack.c.h.b16 %v1344
        %v5477 = vunpack.c.l.b16 %v1345
        %v5478 = vunpack.c.h.b16 %v1345
        %v5479 = vunpack.c.l.b16 %v1346
        %v5480 = vunpack.c.h.b16 %v1346
        %v5481 = vunpack.c.l.b16 %v1347
        %v5482 = vunpack.c.h.b16 %v1347
        %v5483 = vunpack.c.l.b16 %v1348
        %v5484 = vunpack.c.h.b16 %v1348
        %v5485 = vunpack.c.l.b16 %v1349
        %v5486 = vunpack.c.h.b16 %v1349
        %v5487 = vunpack.c.l.b16 %v1350
        %v5488 = vunpack.c.h.b16 %v1350
        %v5489 = vunpack.c.l.b16 %v1351
        %v5490 = vunpack.c.h.b16 %v1351
        %v5491 = vunpack.c.l.b16 %v1352
        %v5492 = vunpack.c.h.b16 %v1352
        %v5493 = vunpack.c.l.b16 %v1353
        %v5494 = vunpack.c.h.b16 %v1353
        %v5495 = vunpack.c.l.b16 %v1354
        %v5496 = vunpack.c.h.b16 %v1354
        %v5497 = vunpack.c.l.b16 %v1355
        %v5498 = vunpack.c.h.b16 %v1355
        %v5499 = vunpack.c.l.b16 %v1356
        %v5500 = vunpack.c.h.b16 %v1356
        %v5501 = vunpack.c.l.b16 %v1357
        %v5502 = vunpack.c.h.b16 %v1357
        %v5503 = vunpack.c.l.b16 %v1358
        %v5504 = vunpack.c.h.b16 %v1358
        %v5505 = vunpack.c.l.b16 %v1359
        %v5506 = vunpack.c.h.b16 %v1359
        %v5507 = vunpack.c.l.b16 %v1360
        %v5508 = vunpack.c.h.b16 %v1360
        %v5509 = vunpack.c.l.b16 %v1361
        %v5510 = vunpack.c.h.b16 %v1361
        %v5511 = vunpack.c.l.b16 %v1362
        %v5512 = vunpack.c.h.b16 %v1362
        %v5513 = vunpack.c.l.b16 %v1363
        %v5514 = vunpack.c.h.b16 %v1363
        %v5515 = vunpack.c.l.b16 %v1364
        %v5516 = vunpack.c.h.b16 %v1364
        %v5517 = vunpack.c.l.b16 %v1365
        %v5518 = vunpack.c.h.b16 %v1365
        %v5519 = vunpack.c.l.b16 %v1366
        %v5520 = vunpack.c.h.b16 %v1366
        %v5521 = vunpack.c.l.b16 %v1367
        %v5522 = vunpack.c.h.b16 %v1367
        %v5523 = vunpack.c.l.b16 %v1368
        %v5524 = vunpack.c.h.b16 %v1368
        %v5525 = vunpack.c.l.b16 %v1369
        %v5526 = vunpack.c.h.b16 %v1369
        %v5527 = vunpack.c.l.b16 %v1370
        %v5528 = vunpack.c.h.b16 %v1370
        %v5529 = vunpack.c.l.b16 %v1371
        %v5530 = vunpack.c.h.b16 %v1371
        %v5531 = vunpack.c.l.b16 %v1372
        %v5532 = vunpack.c.h.b16 %v1372
        %v5533 = vunpack.c.l.b16 %v1373
        %v5534 = vunpack.c.h.b16 %v1373
        %v5535 = vunpack.c.l.b16 %v1374
        %v5536 = vunpack.c.h.b16 %v1374
        %v5537 = vunpack.c.l.b16 %v1375
        %v5538 = vunpack.c.h.b16 %v1375
        %v5539 = vunpack.c.l.b16 %v1376
        %v5540 = vunpack.c.h.b16 %v1376
        %v5541 = vunpack.c.l.b16 %v1377
        %v5542 = vunpack.c.h.b16 %v1377
        %v5543 = vunpack.c.l.b16 %v1378
        %v5544 = vunpack.c.h.b16 %v1378
        %v5545 = vunpack.c.l.b16 %v1379
        %v5546 = vunpack.c.h.b16 %v1379
        %v5547 = vunpack.c.l.b16 %v1380
        %v5548 = vunpack.c.h.b16 %v1380
        %v5549 = vunpack.c.l.b16 %v1381
        %v5550 = vunpack.c.h.b16 %v1381
        %v5551 = vunpack.c.l.b16 %v1382
        %v5552 = vunpack.c.h.b16 %v1382
        %v5553 = vunpack.c.l.b16 %v1383
        %v5554 = vunpack.c.h.b16 %v1383
        %v5555 = vunpack.c.l.b16 %v1384
        %v5556 = vunpack.c.h.b16 %v1384
        %v5557 = vunpack.c.l.b16 %v1385
        %v5558 = vunpack.c.h.b16 %v1385
        %v5559 = vunpack.c.l.b16 %v1386
        %v5560 = vunpack.c.h.b16 %v1386
        %v5561 = vunpack.c.l.b16 %v1387
        %v5562 = vunpack.c.h.b16 %v1387
        %v5563 = vunpack.c.l.b16 %v1388
        %v5564 = vunpack.c.h.b16 %v1388
        %v5565 = vunpack.c.l.b16 %v1389
        %v5566 = vunpack.c.h.b16 %v1389
        %v5567 = vunpack.c.l.b16 %v1390
        %v5568 = vunpack.c.h.b16 %v1390
        %v5569 = vunpack.c.l.b16 %v1391
        %v5570 = vunpack.c.h.b16 %v1391
        %v5571 = vunpack.c.l.b16 %v1392
        %v5572 = vunpack.c.h.b16 %v1392
        %v5573 = vunpack.c.l.b16 %v1393
        %v5574 = vunpack.c.h.b16 %v1393
        %v5575 = vunpack.c.l.b16 %v1394
        %v5576 = vunpack.c.h.b16 %v1394
        %v5577 = vunpack.c.l.b16 %v1395
        %v5578 = vunpack.c.h.b16 %v1395
        %v5579 = vunpack.c.l.b16 %v1396
        %v5580 = vunpack.c.h.b16 %v1396
        %v5581 = vunpack.c.l.b16 %v1397
        %v5582 = vunpack.c.h.b16 %v1397
        %v5583 = vunpack.c.l.b16 %v1398
        %v5584 = vunpack.c.h.b16 %v1398
        %v5585 = vunpack.c.l.b16 %v1399
        %v5586 = vunpack.c.h.b16 %v1399
        %v5587 = vunpack.c.l.b16 %v1400
        %v5588 = vunpack.c.h.b16 %v1400
        %v5589 = vunpack.c.l.b16 %v1401
        %v5590 = vunpack.c.h.b16 %v1401
        %v5591 = vunpack.c.l.b16 %v1402
        %v5592 = vunpack.c.h.b16 %v1402
        %v5593 = vunpack.c.l.b16 %v1403
        %v5594 = vunpack.c.h.b16 %v1403
        %v5595 = vunpack.c.l.b16 %v1404
        %v5596 = vunpack.c.h.b16 %v1404
        %v5597 = vunpack.c.l.b16 %v1405
        %v5598 = vunpack.c.h.b16 %v1405
        %v5599 = vunpack.c.l.b16 %v1406
        %v5600 = vunpack.c.h.b16 %v1406
        %v5601 = vunpack.c.l.b16 %v1407
        %v5602 = vunpack.c.h.b16 %v1407
        %v5603 = vunpack.c.l.b16 %v1408
        %v5604 = vunpack.c.h.b16 %v1408
        %v5605 = vunpack.c.l.b16 %v1409
        %v5606 = vunpack.c.h.b16 %v1409
        %v5607 = vunpack.c.l.b16 %v1410
        %v5608 = vunpack.c.h.b16 %v1410
        %v5609 = vunpack.c.l.b16 %v1411
        %v5610 = vunpack.c.h.b16 %v1411
        %v5611 = vunpack.c.l.b16 %v1412
        %v5612 = vunpack.c.h.b16 %v1412
        %v5613 = vunpack.c.l.b16 %v1413
        %v5614 = vunpack.c.h.b16 %v1413
        %v5615 = vunpack.c.l.b16 %v1414
        %v5616 = vunpack.c.h.b16 %v1414
        %v5617 = vunpack.c.l.b16 %v1415
        %v5618 = vunpack.c.h.b16 %v1415
        %v5619 = vunpack.c.l.b16 %v1416
        %v5620 = vunpack.c.h.b16 %v1416
        %v5621 = vunpack.c.l.b16 %v1417
        %v5622 = vunpack.c.h.b16 %v1417
        %v5623 = vunpack.c.l.b16 %v1418
        %v5624 = vunpack.c.h.b16 %v1418
        %v5625 = vunpack.c.l.b16 %v1419
        %v5626 = vunpack.c.h.b16 %v1419
        %v5627 = vunpack.c.l.b16 %v1420
        %v5628 = vunpack.c.h.b16 %v1420
        %v5629 = vunpack.c.l.b16 %v1421
        %v5630 = vunpack.c.h.b16 %v1421
        %v5631 = vunpack.c.l.b16 %v1422
        %v5632 = vunpack.c.h.b16 %v1422
        %v5633 = vunpack.c.l.b16 %v1423
        %v5634 = vunpack.c.h.b16 %v1423
        %v5635 = vunpack.c.l.b16 %v1424
        %v5636 = vunpack.c.h.b16 %v1424
        %v5637 = vunpack.c.l.b16 %v1425
        %v5638 = vunpack.c.h.b16 %v1425
        %v5639 = vunpack.c.l.b16 %v1426
        %v5640 = vunpack.c.h.b16 %v1426
        %v5641 = vunpack.c.l.b16 %v1427
        %v5642 = vunpack.c.h.b16 %v1427
        %v5643 = vunpack.c.l.b16 %v1428
        %v5644 = vunpack.c.h.b16 %v1428
        %v5645 = vunpack.c.l.b16 %v1429
        %v5646 = vunpack.c.h.b16 %v1429
        %v5647 = vunpack.c.l.b16 %v1430
        %v5648 = vunpack.c.h.b16 %v1430
        %v5649 = vunpack.c.l.b16 %v1431
        %v5650 = vunpack.c.h.b16 %v1431
        %v5651 = vunpack.c.l.b16 %v1432
        %v5652 = vunpack.c.h.b16 %v1432
        %v5653 = vunpack.c.l.b16 %v1433
        %v5654 = vunpack.c.h.b16 %v1433
        %v5655 = vunpack.c.l.b16 %v1434
        %v5656 = vunpack.c.h.b16 %v1434
        %v5657 = vunpack.c.l.b16 %v1435
        %v5658 = vunpack.c.h.b16 %v1435
        %v5659 = vunpack.c.l.b16 %v1436
        %v5660 = vunpack.c.h.b16 %v1436
        %v5661 = vunpack.c.l.b16 %v1437
        %v5662 = vunpack.c.h.b16 %v1437
        %v5663 = vunpack.c.l.b16 %v1438
        %v5664 = vunpack.c.h.b16 %v1438
        %v5665 = vunpack.c.l.b16 %v1439
        %v5666 = vunpack.c.h.b16 %v1439
        %v5667 = vunpack.c.l.b16 %v1440
        %v5668 = vunpack.c.h.b16 %v1440
        %v5669 = vunpack.c.l.b16 %v1441
        %v5670 = vunpack.c.h.b16 %v1441
        %v5671 = vunpack.c.l.b16 %v1442
        %v5672 = vunpack.c.h.b16 %v1442
        %v5673 = vunpack.c.l.b16 %v1443
        %v5674 = vunpack.c.h.b16 %v1443
        %v5675 = vunpack.c.l.b16 %v1444
        %v5676 = vunpack.c.h.b16 %v1444
        %v5677 = vunpack.c.l.b16 %v1445
        %v5678 = vunpack.c.h.b16 %v1445
        %v5679 = vunpack.c.l.b16 %v1446
        %v5680 = vunpack.c.h.b16 %v1446
        %v5681 = vunpack.c.l.b16 %v1447
        %v5682 = vunpack.c.h.b16 %v1447
        %v5683 = vunpack.c.l.b16 %v1448
        %v5684 = vunpack.c.h.b16 %v1448
        %v5685 = vunpack.c.l.b16 %v1449
        %v5686 = vunpack.c.h.b16 %v1449
        %v5687 = vunpack.c.l.b16 %v1450
        %v5688 = vunpack.c.h.b16 %v1450
        %v5689 = vunpack.c.l.b16 %v1451
        %v5690 = vunpack.c.h.b16 %v1451
        %v5691 = vunpack.c.l.b16 %v1452
        %v5692 = vunpack.c.h.b16 %v1452
        %v5693 = vunpack.c.l.b16 %v1453
        %v5694 = vunpack.c.h.b16 %v1453
        %v5695 = vunpack.c.l.b16 %v1454
        %v5696 = vunpack.c.h.b16 %v1454
        %v5697 = vunpack.c.l.b16 %v1455
        %v5698 = vunpack.c.h.b16 %v1455
        %v5699 = vunpack.c.l.b16 %v1456
        %v5700 = vunpack.c.h.b16 %v1456
        %v5701 = vunpack.c.l.b16 %v1457
        %v5702 = vunpack.c.h.b16 %v1457
        %v5703 = vunpack.c.l.b16 %v1458
        %v5704 = vunpack.c.h.b16 %v1458
        %v5705 = vunpack.c.l.b16 %v1459
        %v5706 = vunpack.c.h.b16 %v1459
        %v5707 = vunpack.c.l.b16 %v1460
        %v5708 = vunpack.c.h.b16 %v1460
        %v5709 = vunpack.c.l.b16 %v1461
        %v5710 = vunpack.c.h.b16 %v1461
        %v5711 = vunpack.c.l.b16 %v1462
        %v5712 = vunpack.c.h.b16 %v1462
        %v5713 = vunpack.c.l.b16 %v1463
        %v5714 = vunpack.c.h.b16 %v1463
        %v5715 = vunpack.c.l.b16 %v1464
        %v5716 = vunpack.c.h.b16 %v1464
        %v5717 = vunpack.c.l.b16 %v1465
        %v5718 = vunpack.c.h.b16 %v1465
        %v5719 = vunpack.c.l.b16 %v1466
        %v5720 = vunpack.c.h.b16 %v1466
        %v5721 = vunpack.c.l.b16 %v1467
        %v5722 = vunpack.c.h.b16 %v1467
        %v5723 = vunpack.c.l.b16 %v1468
        %v5724 = vunpack.c.h.b16 %v1468
        %v5725 = vunpack.c.l.b16 %v1469
        %v5726 = vunpack.c.h.b16 %v1469
        %v5727 = vunpack.c.l.b16 %v1470
        %v5728 = vunpack.c.h.b16 %v1470
        %v5729 = vunpack.c.l.b16 %v1471
        %v5730 = vunpack.c.h.b16 %v1471
        %v5731 = vunpack.c.l.b16 %v1472
        %v5732 = vunpack.c.h.b16 %v1472
        %v5733 = vunpack.c.l.b16 %v1473
        %v5734 = vunpack.c.h.b16 %v1473
        %v5735 = vunpack.c.l.b16 %v1474
        %v5736 = vunpack.c.h.b16 %v1474
        %v5737 = vunpack.c.l.b16 %v1475
        %v5738 = vunpack.c.h.b16 %v1475
        %v5739 = vunpack.c.l.b16 %v1476
        %v5740 = vunpack.c.h.b16 %v1476
        %v5741 = vunpack.c.l.b16 %v1477
        %v5742 = vunpack.c.h.b16 %v1477
        %v5743 = vunpack.c.l.b16 %v1478
        %v5744 = vunpack.c.h.b16 %v1478
        %v5745 = vunpack.c.l.b16 %v1479
        %v5746 = vunpack.c.h.b16 %v1479
        %v5747 = vunpack.c.l.b16 %v1480
        %v5748 = vunpack.c.h.b16 %v1480
        %v5749 = vunpack.c.l.b16 %v1481
        %v5750 = vunpack.c.h.b16 %v1481
        %v5751 = vunpack.c.l.b16 %v1482
        %v5752 = vunpack.c.h.b16 %v1482
        %v5753 = vunpack.c.l.b16 %v1483
        %v5754 = vunpack.c.h.b16 %v1483
        %v5755 = vunpack.c.l.b16 %v1484
        %v5756 = vunpack.c.h.b16 %v1484
        %v5757 = vunpack.c.l.b16 %v1485
        %v5758 = vunpack.c.h.b16 %v1485
        %v5759 = vunpack.c.l.b16 %v1486
        %v5760 = vunpack.c.h.b16 %v1486
        %v5761 = vunpack.c.l.b16 %v1487
        %v5762 = vunpack.c.h.b16 %v1487
        %v5763 = vunpack.c.l.b16 %v1488
        %v5764 = vunpack.c.h.b16 %v1488
        %v5765 = vunpack.c.l.b16 %v1489
        %v5766 = vunpack.c.h.b16 %v1489
        %v5767 = vunpack.c.l.b16 %v1490
        %v5768 = vunpack.c.h.b16 %v1490
        %v5769 = vunpack.c.l.b16 %v1491
        %v5770 = vunpack.c.h.b16 %v1491
        %v5771 = vunpack.c.l.b16 %v1492
        %v5772 = vunpack.c.h.b16 %v1492
        %v5773 = vunpack.c.l.b16 %v1493
        %v5774 = vunpack.c.h.b16 %v1493
        %v5775 = vunpack.c.l.b16 %v1494
        %v5776 = vunpack.c.h.b16 %v1494
        %v5777 = vunpack.c.l.b16 %v1495
        %v5778 = vunpack.c.h.b16 %v1495
        %v5779 = vunpack.c.l.b16 %v1496
        %v5780 = vunpack.c.h.b16 %v1496
        %v5781 = vunpack.c.l.b16 %v1497
        %v5782 = vunpack.c.h.b16 %v1497
        %v5783 = vunpack.c.l.b16 %v1498
        %v5784 = vunpack.c.h.b16 %v1498
        %v5785 = vunpack.c.l.b16 %v1499
        %v5786 = vunpack.c.h.b16 %v1499
        %v5787 = vunpack.c.l.b16 %v1500
        %v5788 = vunpack.c.h.b16 %v1500
        %v5789 = vunpack.c.l.b16 %v1501
        %v5790 = vunpack.c.h.b16 %v1501
        %v5791 = vunpack.c.l.b16 %v1502
        %v5792 = vunpack.c.h.b16 %v1502
        %v5793 = vunpack.c.l.b16 %v1503
        %v5794 = vunpack.c.h.b16 %v1503
        %v5795 = vunpack.c.l.b16 %v1504
        %v5796 = vunpack.c.h.b16 %v1504
        %v5797 = vunpack.c.l.b16 %v1505
        %v5798 = vunpack.c.h.b16 %v1505
        %v5799 = vunpack.c.l.b16 %v1506
        %v5800 = vunpack.c.h.b16 %v1506
        %v5801 = vunpack.c.l.b16 %v1507
        %v5802 = vunpack.c.h.b16 %v1507
        %v5803 = vunpack.c.l.b16 %v1508
        %v5804 = vunpack.c.h.b16 %v1508
        %v5805 = vunpack.c.l.b16 %v1509
        %v5806 = vunpack.c.h.b16 %v1509
        %v5807 = vunpack.c.l.b16 %v1510
        %v5808 = vunpack.c.h.b16 %v1510
        %v5809 = vunpack.c.l.b16 %v1511
        %v5810 = vunpack.c.h.b16 %v1511
        %v5811 = vunpack.c.l.b16 %v1512
        %v5812 = vunpack.c.h.b16 %v1512
        %v5813 = vunpack.c.l.b16 %v1513
        %v5814 = vunpack.c.h.b16 %v1513
        %v5815 = vunpack.c.l.b16 %v1514
        %v5816 = vunpack.c.h.b16 %v1514
        %v5817 = vunpack.c.l.b16 %v1515
        %v5818 = vunpack.c.h.b16 %v1515
        %v5819 = vunpack.c.l.b16 %v1516
        %v5820 = vunpack.c.h.b16 %v1516
        %v5821 = vunpack.c.l.b16 %v1517
        %v5822 = vunpack.c.h.b16 %v1517
        %v5823 = vunpack.c.l.b16 %v1518
        %v5824 = vunpack.c.h.b16 %v1518
        %v5825 = vunpack.c.l.b16 %v1519
        %v5826 = vunpack.c.h.b16 %v1519
        %v5827 = vunpack.c.l.b16 %v1520
        %v5828 = vunpack.c.h.b16 %v1520
        %v5829 = vunpack.c.l.b16 %v1521
        %v5830 = vunpack.c.h.b16 %v1521
        %v5831 = vunpack.c.l.b16 %v1522
        %v5832 = vunpack.c.h.b16 %v1522
        %v5833 = vunpack.c.l.b16 %v1523
        %v5834 = vunpack.c.h.b16 %v1523
        %v5835 = vunpack.c.l.b16 %v1524
        %v5836 = vunpack.c.h.b16 %v1524
        %v5837 = vunpack.c.l.b16 %v1525
        %v5838 = vunpack.c.h.b16 %v1525
        %v5839 = vunpack.c.l.b16 %v1526
        %v5840 = vunpack.c.h.b16 %v1526
        %v5841 = vunpack.c.l.b16 %v1527
        %v5842 = vunpack.c.h.b16 %v1527
        %v5843 = vunpack.c.l.b16 %v1528
        %v5844 = vunpack.c.h.b16 %v1528
        %v5845 = vunpack.c.l.b16 %v1529
        %v5846 = vunpack.c.h.b16 %v1529
        %v5847 = vunpack.c.l.b16 %v1530
        %v5848 = vunpack.c.h.b16 %v1530
        %v5849 = vunpack.c.l.b16 %v1531
        %v5850 = vunpack.c.h.b16 %v1531
        %v5851 = vunpack.c.l.b16 %v1532
        %v5852 = vunpack.c.h.b16 %v1532
        %v5853 = vunpack.c.l.b16 %v1533
        %v5854 = vunpack.c.h.b16 %v1533
        %v5855 = vunpack.c.l.b16 %v1534
        %v5856 = vunpack.c.h.b16 %v1534
        %v5857 = vunpack.c.l.b16 %v1535
        %v5858 = vunpack.c.h.b16 %v1535
        %v5859 = vunpack.c.l.b16 %v1536
        %v5860 = vunpack.c.h.b16 %v1536
        %v5861 = vunpack.c.l.b16 %v1537
        %v5862 = vunpack.c.h.b16 %v1537
        %v5863 = vunpack.c.l.b16 %v1538
        %v5864 = vunpack.c.h.b16 %v1538
        %v5865 = vunpack.c.l.b16 %v1539
        %v5866 = vunpack.c.h.b16 %v1539
        %v5867 = vunpack.c.l.b16 %v1540
        %v5868 = vunpack.c.h.b16 %v1540
        %v5869 = vunpack.c.l.b16 %v1541
        %v5870 = vunpack.c.h.b16 %v1541
        %v5871 = vunpack.c.l.b16 %v1542
        %v5872 = vunpack.c.h.b16 %v1542
        %v5873 = vunpack.c.l.b16 %v1543
        %v5874 = vunpack.c.h.b16 %v1543
        %v5875 = vunpack.c.l.b16 %v1544
        %v5876 = vunpack.c.h.b16 %v1544
        %v5877 = vunpack.c.l.b16 %v1545
        %v5878 = vunpack.c.h.b16 %v1545
        %v5879 = vunpack.c.l.b16 %v1546
        %v5880 = vunpack.c.h.b16 %v1546
        %v5881 = vunpack.c.l.b16 %v1547
        %v5882 = vunpack.c.h.b16 %v1547
        %v5883 = vunpack.c.l.b16 %v1548
        %v5884 = vunpack.c.h.b16 %v1548
        %v5885 = vunpack.c.l.b16 %v1549
        %v5886 = vunpack.c.h.b16 %v1549
        %v5887 = vunpack.c.l.b16 %v1550
        %v5888 = vunpack.c.h.b16 %v1550
        %v5889 = vunpack.c.l.b16 %v1551
        %v5890 = vunpack.c.h.b16 %v1551
        %v5891 = vunpack.c.l.b16 %v1552
        %v5892 = vunpack.c.h.b16 %v1552
        %v5893 = vunpack.c.l.b16 %v1553
        %v5894 = vunpack.c.h.b16 %v1553
        %v5895 = vunpack.c.l.b16 %v1554
        %v5896 = vunpack.c.h.b16 %v1554
        %v5897 = vunpack.c.l.b16 %v1555
        %v5898 = vunpack.c.h.b16 %v1555
        %v5899 = vunpack.c.l.b16 %v1556
        %v5900 = vunpack.c.h.b16 %v1556
        %v5901 = vunpack.c.l.b16 %v1557
        %v5902 = vunpack.c.h.b16 %v1557
        %v5903 = vunpack.c.l.b16 %v1558
        %v5904 = vunpack.c.h.b16 %v1558
        %v5905 = vunpack.c.l.b16 %v1559
        %v5906 = vunpack.c.h.b16 %v1559
        %v5907 = vunpack.c.l.b16 %v1560
        %v5908 = vunpack.c.h.b16 %v1560
        %v5909 = vunpack.c.l.b16 %v1561
        %v5910 = vunpack.c.h.b16 %v1561
        %v5911 = vunpack.c.l.b16 %v1562
        %v5912 = vunpack.c.h.b16 %v1562
        %v5913 = vunpack.c.l.b16 %v1563
        %v5914 = vunpack.c.h.b16 %v1563
        %v5915 = vunpack.c.l.b16 %v1564
        %v5916 = vunpack.c.h.b16 %v1564
        %v5917 = vunpack.c.l.b16 %v1565
        %v5918 = vunpack.c.h.b16 %v1565
        %v5919 = vunpack.c.l.b16 %v1566
        %v5920 = vunpack.c.h.b16 %v1566
        %v5921 = vunpack.c.l.b16 %v1567
        %v5922 = vunpack.c.h.b16 %v1567
        %v5923 = vunpack.c.l.b16 %v1568
        %v5924 = vunpack.c.h.b16 %v1568
        %v5925 = vunpack.c.l.b16 %v1569
        %v5926 = vunpack.c.h.b16 %v1569
        %v5927 = vunpack.c.l.b16 %v1570
        %v5928 = vunpack.c.h.b16 %v1570
        %v5929 = vunpack.c.l.b16 %v1571
        %v5930 = vunpack.c.h.b16 %v1571
        %v5931 = vunpack.c.l.b16 %v1572
        %v5932 = vunpack.c.h.b16 %v1572
        %v5933 = vunpack.c.l.b16 %v1573
        %v5934 = vunpack.c.h.b16 %v1573
        %v5935 = vunpack.c.l.b16 %v1574
        %v5936 = vunpack.c.h.b16 %v1574
        %v5937 = vunpack.c.l.b16 %v1575
        %v5938 = vunpack.c.h.b16 %v1575
        %v5939 = vunpack.c.l.b16 %v1576
        %v5940 = vunpack.c.h.b16 %v1576
        %v5941 = vunpack.c.l.b16 %v1577
        %v5942 = vunpack.c.h.b16 %v1577
        %v5943 = vunpack.c.l.b16 %v1578
        %v5944 = vunpack.c.h.b16 %v1578
        %v5945 = vunpack.c.l.b16 %v1579
        %v5946 = vunpack.c.h.b16 %v1579
        %v5947 = vunpack.c.l.b16 %v1580
        %v5948 = vunpack.c.h.b16 %v1580
        %v5949 = vunpack.c.l.b16 %v1581
        %v5950 = vunpack.c.h.b16 %v1581
        %v5951 = vunpack.c.l.b16 %v1582
        %v5952 = vunpack.c.h.b16 %v1582
        %v5953 = vunpack.c.l.b16 %v1583
        %v5954 = vunpack.c.h.b16 %v1583
        %v5955 = vunpack.c.l.b16 %v1584
        %v5956 = vunpack.c.h.b16 %v1584
        %v5957 = vunpack.c.l.b16 %v1585
        %v5958 = vunpack.c.h.b16 %v1585
        %v5959 = vunpack.c.l.b16 %v1586
        %v5960 = vunpack.c.h.b16 %v1586
        %v5961 = vunpack.c.l.b16 %v1587
        %v5962 = vunpack.c.h.b16 %v1587
        %v5963 = vunpack.c.l.b16 %v1588
        %v5964 = vunpack.c.h.b16 %v1588
        %v5965 = vunpack.c.l.b16 %v1589
        %v5966 = vunpack.c.h.b16 %v1589
        %v5967 = vunpack.c.l.b16 %v1590
        %v5968 = vunpack.c.h.b16 %v1590
        %v5969 = vunpack.c.l.b16 %v1591
        %v5970 = vunpack.c.h.b16 %v1591
        %v5971 = vunpack.c.l.b16 %v1592
        %v5972 = vunpack.c.h.b16 %v1592
        %v5973 = vunpack.c.l.b16 %v1593
        %v5974 = vunpack.c.h.b16 %v1593
        %v5975 = vunpack.c.l.b16 %v1594
        %v5976 = vunpack.c.h.b16 %v1594
        %v5977 = vunpack.c.l.b16 %v1595
        %v5978 = vunpack.c.h.b16 %v1595
        %v5979 = vunpack.c.l.b16 %v1596
        %v5980 = vunpack.c.h.b16 %v1596
        %v5981 = vunpack.c.l.b16 %v1597
        %v5982 = vunpack.c.h.b16 %v1597
        %v5983 = vunpack.c.l.b16 %v1598
        %v5984 = vunpack.c.h.b16 %v1598
        %v5985 = vunpack.c.l.b16 %v1599
        %v5986 = vunpack.c.h.b16 %v1599
        %v5987 = vunpack.c.l.b16 %v1600
        %v5988 = vunpack.c.h.b16 %v1600
        %v5989 = vunpack.c.l.b16 %v1601
        %v5990 = vunpack.c.h.b16 %v1601
        %v5991 = vunpack.c.l.b16 %v1602
        %v5992 = vunpack.c.h.b16 %v1602
        %v5993 = vunpack.c.l.b16 %v1603
        %v5994 = vunpack.c.h.b16 %v1603
        %v5995 = vunpack.c.l.b16 %v1604
        %v5996 = vunpack.c.h.b16 %v1604
        %v5997 = vunpack.c.l.b16 %v1605
        %v5998 = vunpack.c.h.b16 %v1605
        %v5999 = vunpack.c.l.b16 %v1606
        %v6000 = vunpack.c.h.b16 %v1606
        %v6001 = vunpack.c.l.b16 %v1607
        %v6002 = vunpack.c.h.b16 %v1607
        %v6003 = vunpack.c.l.b16 %v1608
        %v6004 = vunpack.c.h.b16 %v1608
        %v6005 = vunpack.c.l.b16 %v1609
        %v6006 = vunpack.c.h.b16 %v1609
        %v6007 = vunpack.c.l.b16 %v1610
        %v6008 = vunpack.c.h.b16 %v1610
        %v6009 = vunpack.c.l.b16 %v1611
        %v6010 = vunpack.c.h.b16 %v1611
        %v6011 = vunpack.c.l.b16 %v1612
        %v6012 = vunpack.c.h.b16 %v1612
        %v6013 = vunpack.c.l.b16 %v1613
        %v6014 = vunpack.c.h.b16 %v1613
        %v6015 = vunpack.c.l.b16 %v1614
        %v6016 = vunpack.c.h.b16 %v1614
        %v6017 = vunpack.c.l.b16 %v1615
        %v6018 = vunpack.c.h.b16 %v1615
        %v6019 = vunpack.c.l.b16 %v1616
        %v6020 = vunpack.c.h.b16 %v1616
        %v6021 = vunpack.c.l.b16 %v1617
        %v6022 = vunpack.c.h.b16 %v1617
        %v6023 = vunpack.c.l.b16 %v1618
        %v6024 = vunpack.c.h.b16 %v1618
        %v6025 = vunpack.c.l.b16 %v1619
        %v6026 = vunpack.c.h.b16 %v1619
        %v6027 = vunpack.c.l.b16 %v1620
        %v6028 = vunpack.c.h.b16 %v1620
        %v6029 = vunpack.c.l.b16 %v1621
        %v6030 = vunpack.c.h.b16 %v1621
        %v6031 = vunpack.c.l.b16 %v1622
        %v6032 = vunpack.c.h.b16 %v1622
        %v6033 = vunpack.c.l.b16 %v1623
        %v6034 = vunpack.c.h.b16 %v1623
        %v6035 = vunpack.c.l.b16 %v1624
        %v6036 = vunpack.c.h.b16 %v1624
        %v6037 = vunpack.c.l.b16 %v1625
        %v6038 = vunpack.c.h.b16 %v1625
        %v6039 = vunpack.c.l.b16 %v1626
        %v6040 = vunpack.c.h.b16 %v1626
        %v6041 = vunpack.c.l.b16 %v1627
        %v6042 = vunpack.c.h.b16 %v1627
        %v6043 = vunpack.c.l.b16 %v1628
        %v6044 = vunpack.c.h.b16 %v1628
        %v6045 = vunpack.c.l.b16 %v1629
        %v6046 = vunpack.c.h.b16 %v1629
        %v6047 = vunpack.c.l.b16 %v1630
        %v6048 = vunpack.c.h.b16 %v1630
        %v6049 = vunpack.c.l.b16 %v1631
        %v6050 = vunpack.c.h.b16 %v1631
        %v6051 = vunpack.c.l.b16 %v1632
        %v6052 = vunpack.c.h.b16 %v1632
        %v6053 = vunpack.c.l.b16 %v1633
        %v6054 = vunpack.c.h.b16 %v1633
        %v6055 = vunpack.c.l.b16 %v1634
        %v6056 = vunpack.c.h.b16 %v1634
        %v6057 = vunpack.c.l.b16 %v1635
        %v6058 = vunpack.c.h.b16 %v1635
        %v6059 = vunpack.c.l.b16 %v1636
        %v6060 = vunpack.c.h.b16 %v1636
        %v6061 = vunpack.c.l.b16 %v1637
        %v6062 = vunpack.c.h.b16 %v1637
        %v6063 = vunpack.c.l.b16 %v1638
        %v6064 = vunpack.c.h.b16 %v1638
        %v6065 = vunpack.c.l.b16 %v1639
        %v6066 = vunpack.c.h.b16 %v1639
        %v6067 = vunpack.c.l.b16 %v1640
        %v6068 = vunpack.c.h.b16 %v1640
        %v6069 = vunpack.c.l.b16 %v1641
        %v6070 = vunpack.c.h.b16 %v1641
        %v6071 = vunpack.c.l.b16 %v1642
        %v6072 = vunpack.c.h.b16 %v1642
        %v6073 = vunpack.c.l.b16 %v1643
        %v6074 = vunpack.c.h.b16 %v1643
        %v6075 = vunpack.c.l.b16 %v1644
        %v6076 = vunpack.c.h.b16 %v1644
        %v6077 = vunpack.c.l.b16 %v1645
        %v6078 = vunpack.c.h.b16 %v1645
        %v6079 = vunpack.c.l.b16 %v1646
        %v6080 = vunpack.c.h.b16 %v1646
        %v6081 = vunpack.c.l.b16 %v1647
        %v6082 = vunpack.c.h.b16 %v1647
        %v6083 = vunpack.c.l.b16 %v1648
        %v6084 = vunpack.c.h.b16 %v1648
        %v6085 = vunpack.c.l.b16 %v1649
        %v6086 = vunpack.c.h.b16 %v1649
        %v6087 = vunpack.c.l.b16 %v1650
        %v6088 = vunpack.c.h.b16 %v1650
        %v6089 = vunpack.c.l.b16 %v1651
        %v6090 = vunpack.c.h.b16 %v1651
        %v6091 = vunpack.c.l.b16 %v1652
        %v6092 = vunpack.c.h.b16 %v1652
        %v6093 = vunpack.c.l.b16 %v1653
        %v6094 = vunpack.c.h.b16 %v1653
        %v6095 = vunpack.c.l.b16 %v1654
        %v6096 = vunpack.c.h.b16 %v1654
        %v6097 = vunpack.c.l.b16 %v1655
        %v6098 = vunpack.c.h.b16 %v1655
        %v6099 = vunpack.c.l.b16 %v1656
        %v6100 = vunpack.c.h.b16 %v1656
        %v6101 = vunpack.c.l.b16 %v1657
        %v6102 = vunpack.c.h.b16 %v1657
        %v6103 = vunpack.c.l.b16 %v1658
        %v6104 = vunpack.c.h.b16 %v1658
        %v6105 = vunpack.c.l.b16 %v1659
        %v6106 = vunpack.c.h.b16 %v1659
        %v6107 = vunpack.c.l.b16 %v1660
        %v6108 = vunpack.c.h.b16 %v1660
        %v6109 = vunpack.c.l.b16 %v1661
        %v6110 = vunpack.c.h.b16 %v1661
        %v6111 = vunpack.c.l.b16 %v1662
        %v6112 = vunpack.c.h.b16 %v1662
        %v6113 = vunpack.c.l.b16 %v1663
        %v6114 = vunpack.c.h.b16 %v1663
        %v6115 = vunpack.c.l.b16 %v1664
        %v6116 = vunpack.c.h.b16 %v1664
        %v6117 = vunpack.c.l.b16 %v1665
        %v6118 = vunpack.c.h.b16 %v1665
        %v6119 = vunpack.c.l.b16 %v1666
        %v6120 = vunpack.c.h.b16 %v1666
        %v6121 = vunpack.c.l.b16 %v1667
        %v6122 = vunpack.c.h.b16 %v1667
        %v6123 = vunpack.c.l.b16 %v1668
        %v6124 = vunpack.c.h.b16 %v1668
        %v6125 = vunpack.c.l.b16 %v1669
        %v6126 = vunpack.c.h.b16 %v1669
        %v6127 = vunpack.c.l.b16 %v1670
        %v6128 = vunpack.c.h.b16 %v1670
        %v6129 = vunpack.c.l.b16 %v1671
        %v6130 = vunpack.c.h.b16 %v1671
        %v6131 = vunpack.c.l.b16 %v1672
        %v6132 = vunpack.c.h.b16 %v1672
        %v6133 = vunpack.c.l.b16 %v1673
        %v6134 = vunpack.c.h.b16 %v1673
        %v6135 = vunpack.c.l.b16 %v1674
        %v6136 = vunpack.c.h.b16 %v1674
        %v6137 = vunpack.c.l.b16 %v1675
        %v6138 = vunpack.c.h.b16 %v1675
        %v6139 = vunpack.c.l.b16 %v1676
        %v6140 = vunpack.c.h.b16 %v1676
        %v6141 = vunpack.c.l.b16 %v1677
        %v6142 = vunpack.c.h.b16 %v1677
        %v6143 = vunpack.c.l.b16 %v1678
        %v6144 = vunpack.c.h.b16 %v1678
        %v6145 = vunpack.c.l.b16 %v1679
        %v6146 = vunpack.c.h.b16 %v1679
        %v6147 = vunpack.c.l.b16 %v1680
        %v6148 = vunpack.c.h.b16 %v1680
        %v6149 = vunpack.c.l.b16 %v1681
        %v6150 = vunpack.c.h.b16 %v1681
        %v6151 = vunpack.c.l.b16 %v1682
        %v6152 = vunpack.c.h.b16 %v1682
        %v6153 = vunpack.c.l.b16 %v1683
        %v6154 = vunpack.c.h.b16 %v1683
        %v6155 = vunpack.c.l.b16 %v1684
        %v6156 = vunpack.c.h.b16 %v1684
        %v6157 = vunpack.c.l.b16 %v1685
        %v6158 = vunpack.c.h.b16 %v1685
        %v6159 = vunpack.c.l.b16 %v1686
        %v6160 = vunpack.c.h.b16 %v1686
        %v6161 = vunpack.c.l.b16 %v1687
        %v6162 = vunpack.c.h.b16 %v1687
        %v6163 = vunpack.c.l.b16 %v1688
        %v6164 = vunpack.c.h.b16 %v1688
        %v6165 = vunpack.c.l.b16 %v1689
        %v6166 = vunpack.c.h.b16 %v1689
        %v6167 = vunpack.c.l.b16 %v1690
        %v6168 = vunpack.c.h.b16 %v1690
        %v6169 = vunpack.c.l.b16 %v1691
        %v6170 = vunpack.c.h.b16 %v1691
        %v6171 = vunpack.c.l.b16 %v1692
        %v6172 = vunpack.c.h.b16 %v1692
        %v6173 = vunpack.c.l.b16 %v1693
        %v6174 = vunpack.c.h.b16 %v1693
        %v6175 = vunpack.c.l.b16 %v1694
        %v6176 = vunpack.c.h.b16 %v1694
        %v6177 = vunpack.c.l.b16 %v1695
        %v6178 = vunpack.c.h.b16 %v1695
        %v6179 = vunpack.c.l.b16 %v1696
        %v6180 = vunpack.c.h.b16 %v1696
        %v6181 = vunpack.c.l.b16 %v1697
        %v6182 = vunpack.c.h.b16 %v1697
        %v6183 = vunpack.c.l.b16 %v1698
        %v6184 = vunpack.c.h.b16 %v1698
        %v6185 = vunpack.c.l.b16 %v1699
        %v6186 = vunpack.c.h.b16 %v1699
        %v6187 = vunpack.c.l.b16 %v1700
        %v6188 = vunpack.c.h.b16 %v1700
        %v6189 = vunpack.c.l.b16 %v1701
        %v6190 = vunpack.c.h.b16 %v1701
        %v6191 = vunpack.c.l.b16 %v1702
        %v6192 = vunpack.c.h.b16 %v1702
        %v6193 = vunpack.c.l.b16 %v1703
        %v6194 = vunpack.c.h.b16 %v1703
        %v6195 = vunpack.c.l.b16 %v1704
        %v6196 = vunpack.c.h.b16 %v1704
        %v6197 = vunpack.c.l.b16 %v1705
        %v6198 = vunpack.c.h.b16 %v1705
        %v6199 = vunpack.c.l.b16 %v1706
        %v6200 = vunpack.c.h.b16 %v1706
        %v6201 = vunpack.c.l.b16 %v1707
        %v6202 = vunpack.c.h.b16 %v1707
        %v6203 = vunpack.c.l.b16 %v1708
        %v6204 = vunpack.c.h.b16 %v1708
        %v6205 = vunpack.c.l.b16 %v1709
        %v6206 = vunpack.c.h.b16 %v1709
        %v6207 = vunpack.c.l.b16 %v1710
        %v6208 = vunpack.c.h.b16 %v1710
        %v6209 = vunpack.c.l.b16 %v1711
        %v6210 = vunpack.c.h.b16 %v1711
        %v6211 = vunpack.c.l.b16 %v1712
        %v6212 = vunpack.c.h.b16 %v1712
        %v6213 = vunpack.c.l.b16 %v1713
        %v6214 = vunpack.c.h.b16 %v1713
        %v6215 = vunpack.c.l.b16 %v1714
        %v6216 = vunpack.c.h.b16 %v1714
        %v6217 = vunpack.c.l.b16 %v1715
        %v6218 = vunpack.c.h.b16 %v1715
        %v6219 = vunpack.c.l.b16 %v1716
        %v6220 = vunpack.c.h.b16 %v1716
        %v6221 = vunpack.c.l.b16 %v1717
        %v6222 = vunpack.c.h.b16 %v1717
        %v6223 = vunpack.c.l.b16 %v1718
        %v6224 = vunpack.c.h.b16 %v1718
        %v6225 = vunpack.c.l.b16 %v1719
        %v6226 = vunpack.c.h.b16 %v1719
        %v6227 = vunpack.c.l.b16 %v1720
        %v6228 = vunpack.c.h.b16 %v1720
        %v6229 = vunpack.c.l.b16 %v1721
        %v6230 = vunpack.c.h.b16 %v1721
        %v6231 = vunpack.c.l.b16 %v1722
        %v6232 = vunpack.c.h.b16 %v1722
        %v6233 = vunpack.c.l.b16 %v1723
        %v6234 = vunpack.c.h.b16 %v1723
        %v6235 = vunpack.c.l.b16 %v1724
        %v6236 = vunpack.c.h.b16 %v1724
        %v6237 = vunpack.c.l.b16 %v1725
        %v6238 = vunpack.c.h.b16 %v1725
        %v6239 = vunpack.c.l.b16 %v1726
        %v6240 = vunpack.c.h.b16 %v1726
        %v6241 = vunpack.c.l.b16 %v1727
        %v6242 = vunpack.c.h.b16 %v1727
        %v6243 = vunpack.c.l.b16 %v1728
        %v6244 = vunpack.c.h.b16 %v1728
        %v6245 = vunpack.c.l.b16 %v1729
        %v6246 = vunpack.c.h.b16 %v1729
        %v6247 = vunpack.c.l.b16 %v1730
        %v6248 = vunpack.c.h.b16 %v1730
        %v6249 = vunpack.c.l.b16 %v1731
        %v6250 = vunpack.c.h.b16 %v1731
        %v6251 = vunpack.c.l.b16 %v1732
        %v6252 = vunpack.c.h.b16 %v1732
        %v6253 = vunpack.c.l.b16 %v1733
        %v6254 = vunpack.c.h.b16 %v1733
        %v6255 = vunpack.c.l.b16 %v1734
        %v6256 = vunpack.c.h.b16 %v1734
        %v6257 = vunpack.c.l.b16 %v1735
        %v6258 = vunpack.c.h.b16 %v1735
        %v6259 = vunpack.c.l.b16 %v1736
        %v6260 = vunpack.c.h.b16 %v1736
        %v6261 = vunpack.c.l.b16 %v1737
        %v6262 = vunpack.c.h.b16 %v1737
        %v6263 = vunpack.c.l.b16 %v1738
        %v6264 = vunpack.c.h.b16 %v1738
        %v6265 = vunpack.c.l.b16 %v1739
        %v6266 = vunpack.c.h.b16 %v1739
        %v6267 = vunpack.c.l.b16 %v1740
        %v6268 = vunpack.c.h.b16 %v1740
        %v6269 = vunpack.c.l.b16 %v1741
        %v6270 = vunpack.c.h.b16 %v1741
        %v6271 = vunpack.c.l.b16 %v1742
        %v6272 = vunpack.c.h.b16 %v1742
        %v6273 = vunpack.c.l.b16 %v1743
        %v6274 = vunpack.c.h.b16 %v1743
        %v6275 = vunpack.c.l.b16 %v1744
        %v6276 = vunpack.c.h.b16 %v1744
        %v6277 = vunpack.c.l.b16 %v1745
        %v6278 = vunpack.c.h.b16 %v1745
        %v6279 = vunpack.c.l.b16 %v1746
        %v6280 = vunpack.c.h.b16 %v1746
        %v6281 = vunpack.c.l.b16 %v1747
        %v6282 = vunpack.c.h.b16 %v1747
        %v6283 = vunpack.c.l.b16 %v1748
        %v6284 = vunpack.c.h.b16 %v1748
        %v6285 = vunpack.c.l.b16 %v1749
        %v6286 = vunpack.c.h.b16 %v1749
        %v6287 = vunpack.c.l.b16 %v1750
        %v6288 = vunpack.c.h.b16 %v1750
        %v6289 = vunpack.c.l.b16 %v1751
        %v6290 = vunpack.c.h.b16 %v1751
        %v6291 = vunpack.c.l.b16 %v1752
        %v6292 = vunpack.c.h.b16 %v1752
        %v6293 = vunpack.c.l.b16 %v1753
        %v6294 = vunpack.c.h.b16 %v1753
        %v6295 = vunpack.c.l.b16 %v1754
        %v6296 = vunpack.c.h.b16 %v1754
        %v6297 = vunpack.c.l.b16 %v1755
        %v6298 = vunpack.c.h.b16 %v1755
        %v6299 = vunpack.c.l.b16 %v1756
        %v6300 = vunpack.c.h.b16 %v1756
        %v6301 = vunpack.c.l.b16 %v1757
        %v6302 = vunpack.c.h.b16 %v1757
        %v6303 = vunpack.c.l.b16 %v1758
        %v6304 = vunpack.c.h.b16 %v1758
        %v6305 = vunpack.c.l.b16 %v1759
        %v6306 = vunpack.c.h.b16 %v1759
        %v6307 = vunpack.c.l.b16 %v1760
        %v6308 = vunpack.c.h.b16 %v1760
        %v6309 = vunpack.c.l.b16 %v1761
        %v6310 = vunpack.c.h.b16 %v1761
        %v6311 = vunpack.c.l.b16 %v1762
        %v6312 = vunpack.c.h.b16 %v1762
        %v6313 = vunpack.c.l.b16 %v1763
        %v6314 = vunpack.c.h.b16 %v1763
        %v6315 = vunpack.c.l.b16 %v1764
        %v6316 = vunpack.c.h.b16 %v1764
        %v6317 = vunpack.c.l.b16 %v1765
        %v6318 = vunpack.c.h.b16 %v1765
        %v6319 = vunpack.c.l.b16 %v1766
        %v6320 = vunpack.c.h.b16 %v1766
        %v6321 = vunpack.c.l.b16 %v1767
        %v6322 = vunpack.c.h.b16 %v1767
        %v6323 = vunpack.c.l.b16 %v1768
        %v6324 = vunpack.c.h.b16 %v1768
        %v6325 = vunpack.c.l.b16 %v1769
        %v6326 = vunpack.c.h.b16 %v1769
        %v6327 = vunpack.c.l.b16 %v1770
        %v6328 = vunpack.c.h.b16 %v1770
        %v6329 = vunpack.c.l.b16 %v1771
        %v6330 = vunpack.c.h.b16 %v1771
        %v6331 = vunpack.c.l.b16 %v1772
        %v6332 = vunpack.c.h.b16 %v1772
        %v6333 = vunpack.c.l.b16 %v1773
        %v6334 = vunpack.c.h.b16 %v1773
        %v6335 = vunpack.c.l.b16 %v1774
        %v6336 = vunpack.c.h.b16 %v1774
        %v6337 = vunpack.c.l.b16 %v1775
        %v6338 = vunpack.c.h.b16 %v1775
        %v6339 = vunpack.c.l.b16 %v1776
        %v6340 = vunpack.c.h.b16 %v1776
        %v6341 = vunpack.c.l.b16 %v1777
        %v6342 = vunpack.c.h.b16 %v1777
        %v6343 = vunpack.c.l.b16 %v1778
        %v6344 = vunpack.c.h.b16 %v1778
        %v6345 = vunpack.c.l.b16 %v1779
        %v6346 = vunpack.c.h.b16 %v1779
        %v6347 = vunpack.c.l.b16 %v1780
        %v6348 = vunpack.c.h.b16 %v1780
        %v6349 = vunpack.c.l.b16 %v1781
        %v6350 = vunpack.c.h.b16 %v1781
        %v6351 = vunpack.c.l.b16 %v1782
        %v6352 = vunpack.c.h.b16 %v1782
        %v6353 = vunpack.c.l.b16 %v1783
        %v6354 = vunpack.c.h.b16 %v1783
        %v6355 = vunpack.c.l.b16 %v1784
        %v6356 = vunpack.c.h.b16 %v1784
        %v6357 = vunpack.c.l.b16 %v1785
        %v6358 = vunpack.c.h.b16 %v1785
        %v6359 = vunpack.c.l.b16 %v1786
        %v6360 = vunpack.c.h.b16 %v1786
        %v6361 = vunpack.c.l.b16 %v1787
        %v6362 = vunpack.c.h.b16 %v1787
        %v6363 = vunpack.c.l.b16 %v1788
        %v6364 = vunpack.c.h.b16 %v1788
        %v6365 = vunpack.c.l.b16 %v1789
        %v6366 = vunpack.c.h.b16 %v1789
        %v6367 = vunpack.c.l.b16 %v1790
        %v6368 = vunpack.c.h.b16 %v1790
        %v6369 = vunpack.c.l.b16 %v1791
        %v6370 = vunpack.c.h.b16 %v1791
        %v6371 = vunpack.c.l.b16 %v1792
        %v6372 = vunpack.c.h.b16 %v1792
        %v6373 = vunpack.c.l.b16 %v1793
        %v6374 = vunpack.c.h.b16 %v1793
        %v6375 = vunpack.c.l.b16 %v1794
        %v6376 = vunpack.c.h.b16 %v1794
        %v6377 = vunpack.c.l.b16 %v1795
        %v6378 = vunpack.c.h.b16 %v1795
        %v6379 = vunpack.c.l.b16 %v1796
        %v6380 = vunpack.c.h.b16 %v1796
        %v6381 = vunpack.c.l.b16 %v1797
        %v6382 = vunpack.c.h.b16 %v1797
        %v6383 = vunpack.c.l.b16 %v1798
        %v6384 = vunpack.c.h.b16 %v1798
        %v6385 = vunpack.c.l.b16 %v1799
        %v6386 = vunpack.c.h.b16 %v1799
        %v6387 = vunpack.c.l.b16 %v1800
        %v6388 = vunpack.c.h.b16 %v1800
        %v6389 = vunpack.c.l.b16 %v1801
        %v6390 = vunpack.c.h.b16 %v1801
        %v6391 = vunpack.c.l.b16 %v1802
        %v6392 = vunpack.c.h.b16 %v1802
        %v6393 = vunpack.c.l.b16 %v1803
        %v6394 = vunpack.c.h.b16 %v1803
        %v6395 = vunpack.c.l.b16 %v1804
        %v6396 = vunpack.c.h.b16 %v1804
        %v6397 = vunpack.c.l.b16 %v1805
        %v6398 = vunpack.c.h.b16 %v1805
        %v6399 = vunpack.c.l.b16 %v1806
        %v6400 = vunpack.c.h.b16 %v1806
        %v6401 = vunpack.c.l.b16 %v1807
        %v6402 = vunpack.c.h.b16 %v1807
        %v6403 = vunpack.c.l.b16 %v1808
        %v6404 = vunpack.c.h.b16 %v1808
        %v6405 = vunpack.c.l.b16 %v1809
        %v6406 = vunpack.c.h.b16 %v1809
        %v6407 = vunpack.c.l.b16 %v1810
        %v6408 = vunpack.c.h.b16 %v1810
        %v6409 = vunpack.c.l.b16 %v1811
        %v6410 = vunpack.c.h.b16 %v1811
        %v6411 = vunpack.c.l.b16 %v1812
        %v6412 = vunpack.c.h.b16 %v1812
        %v6413 = vunpack.c.l.b16 %v1813
        %v6414 = vunpack.c.h.b16 %v1813
        %v6415 = vunpack.c.l.b16 %v1814
        %v6416 = vunpack.c.h.b16 %v1814
        %v6417 = vunpack.c.l.b16 %v1815
        %v6418 = vunpack.c.h.b16 %v1815
        %v6419 = vunpack.c.l.b16 %v1816
        %v6420 = vunpack.c.h.b16 %v1816
        %v6421 = vunpack.c.l.b16 %v1817
        %v6422 = vunpack.c.h.b16 %v1817
        %v6423 = vunpack.c.l.b16 %v1818
        %v6424 = vunpack.c.h.b16 %v1818
        %v6425 = vunpack.c.l.b16 %v1819
        %v6426 = vunpack.c.h.b16 %v1819
        %v6427 = vunpack.c.l.b16 %v1820
        %v6428 = vunpack.c.h.b16 %v1820
        %v6429 = vpack.c.b16 %v3381, %v3357
        %v6430 = vpack.c.b16 %v3382, %v3358
        %v6431 = vpack.c.b16 %v3383, %v3359
        %v6432 = vpack.c.b16 %v3384, %v3360
        %v6433 = vpack.c.b16 %v3385, %v3361
        %v6434 = vpack.c.b16 %v3386, %v3362
        %v6435 = vpack.c.b16 %v3387, %v3363
        %v6436 = vpack.c.b16 %v3388, %v3364
        %v6437 = vpack.c.b16 %v3389, %v3365
        %v6438 = vpack.c.b16 %v3390, %v3366
        %v6439 = vpack.c.b16 %v3391, %v3367
        %v6440 = vpack.c.b16 %v3392, %v3368
        %v6441 = vpack.c.b16 %v3393, %v3369
        %v6442 = vpack.c.b16 %v3394, %v3370
        %v6443 = vpack.c.b16 %v3395, %v3371
        %v6444 = vpack.c.b16 %v3396, %v3372
        %v6445 = vpack.c.b16 %v3397, %v3373
        %v6446 = vpack.c.b16 %v3398, %v3374
        %v6447 = vpack.c.b16 %v3399, %v3375
        %v6448 = vpack.c.b16 %v3400, %v3376
        %v6449 = vpack.c.b16 %v3401, %v3377
        %v6450 = vpack.c.b16 %v3402, %v3378
        %v6451 = vpack.c.b16 %v3403, %v3379
        %v6452 = vpack.c.b16 %v3404, %v3380
        %v6453 = vpack.c.b16 %v3429, %v3405
        %v6454 = vpack.c.b16 %v3430, %v3406
        %v6455 = vpack.c.b16 %v3431, %v3407
        %v6456 = vpack.c.b16 %v3432, %v3408
        %v6457 = vpack.c.b16 %v3433, %v3409
        %v6458 = vpack.c.b16 %v3434, %v3410
        %v6459 = vpack.c.b16 %v3435, %v3411
        %v6460 = vpack.c.b16 %v3436, %v3412
        %v6461 = vpack.c.b16 %v3437, %v3413
        %v6462 = vpack.c.b16 %v3438, %v3414
        %v6463 = vpack.c.b16 %v3439, %v3415
        %v6464 = vpack.c.b16 %v3440, %v3416
        %v6465 = vpack.c.b16 %v3441, %v3417
        %v6466 = vpack.c.b16 %v3442, %v3418
        %v6467 = vpack.c.b16 %v3443, %v3419
        %v6468 = vpack.c.b16 %v3444, %v3420
        %v6469 = vpack.c.b16 %v3445, %v3421
        %v6470 = vpack.c.b16 %v3446, %v3422
        %v6471 = vpack.c.b16 %v3447, %v3423
        %v6472 = vpack.c.b16 %v3448, %v3424
        %v6473 = vpack.c.b16 %v3449, %v3425
        %v6474 = vpack.c.b16 %v3450, %v3426
        %v6475 = vpack.c.b16 %v3451, %v3427
        %v6476 = vpack.c.b16 %v3452, %v3428
        %v6477 = vpack.c.b16 %v3477, %v3453
        %v6478 = vpack.c.b16 %v3478, %v3454
        %v6479 = vpack.c.b16 %v3479, %v3455
        %v6480 = vpack.c.b16 %v3480, %v3456
        %v6481 = vpack.c.b16 %v3481, %v3457
        %v6482 = vpack.c.b16 %v3482, %v3458
        %v6483 = vpack.c.b16 %v3483, %v3459
        %v6484 = vpack.c.b16 %v3484, %v3460
        %v6485 = vpack.c.b16 %v3485, %v3461
        %v6486 = vpack.c.b16 %v3486, %v3462
        %v6487 = vpack.c.b16 %v3487, %v3463
        %v6488 = vpack.c.b16 %v3488, %v3464
        %v6489 = vpack.c.b16 %v3489, %v3465
        %v6490 = vpack.c.b16 %v3490, %v3466
        %v6491 = vpack.c.b16 %v3491, %v3467
        %v6492 = vpack.c.b16 %v3492, %v3468
        %v6493 = vpack.c.b16 %v3493, %v3469
        %v6494 = vpack.c.b16 %v3494, %v3470
        %v6495 = vpack.c.b16 %v3495, %v3471
        %v6496 = vpack.c.b16 %v3496, %v3472
        %v6497 = vpack.c.b16 %v3497, %v3473
        %v6498 = vpack.c.b16 %v3498, %v3474
        %v6499 = vpack.c.b16 %v3499, %v3475
        %v6500 = vpack.c.b16 %v3500, %v3476
        %v6501 = vpack.c.b16 %v3525, %v3501
        %v6502 = vpack.c.b16 %v3526, %v3502
        %v6503 = vpack.c.b16 %v3527, %v3503
        %v6504 = vpack.c.b16 %v3528, %v3504
        %v6505 = vpack.c.b16 %v3529, %v3505
        %v6506 = vpack.c.b16 %v3530, %v3506
        %v6507 = vpack.c.b16 %v3531, %v3507
        %v6508 = vpack.c.b16 %v3532, %v3508
        %v6509 = vpack.c.b16 %v3533, %v3509
        %v6510 = vpack.c.b16 %v3534, %v3510
        %v6511 = vpack.c.b16 %v3535, %v3511
        %v6512 = vpack.c.b16 %v3536, %v3512
        %v6513 = vpack.c.b16 %v3537, %v3513
        %v6514 = vpack.c.b16 %v3538, %v3514
        %v6515 = vpack.c.b16 %v3539, %v3515
        %v6516 = vpack.c.b16 %v3540, %v3516
        %v6517 = vpack.c.b16 %v3541, %v3517
        %v6518 = vpack.c.b16 %v3542, %v3518
        %v6519 = vpack.c.b16 %v3543, %v3519
        %v6520 = vpack.c.b16 %v3544, %v3520
        %v6521 = vpack.c.b16 %v3545, %v3521
        %v6522 = vpack.c.b16 %v3546, %v3522
        %v6523 = vpack.c.b16 %v3547, %v3523
        %v6524 = vpack.c.b16 %v3548, %v3524
        %v6525 = vpack.c.b16 %v3573, %v3549
        %v6526 = vpack.c.b16 %v3574, %v3550
        %v6527 = vpack.c.b16 %v3575, %v3551
        %v6528 = vpack.c.b16 %v3576, %v3552
        %v6529 = vpack.c.b16 %v3577, %v3553
        %v6530 = vpack.c.b16 %v3578, %v3554
        %v6531 = vpack.c.b16 %v3579, %v3555
        %v6532 = vpack.c.b16 %v3580, %v3556
        %v6533 = vpack.c.b16 %v3581, %v3557
        %v6534 = vpack.c.b16 %v3582, %v3558
        %v6535 = vpack.c.b16 %v3583, %v3559
        %v6536 = vpack.c.b16 %v3584, %v3560
        %v6537 = vpack.c.b16 %v3585, %v3561
        %v6538 = vpack.c.b16 %v3586, %v3562
        %v6539 = vpack.c.b16 %v3587, %v3563
        %v6540 = vpack.c.b16 %v3588, %v3564
        %v6541 = vpack.c.b16 %v3589, %v3565
        %v6542 = vpack.c.b16 %v3590, %v3566
        %v6543 = vpack.c.b16 %v3591, %v3567
        %v6544 = vpack.c.b16 %v3592, %v3568
        %v6545 = vpack.c.b16 %v3593, %v3569
        %v6546 = vpack.c.b16 %v3594, %v3570
        %v6547 = vpack.c.b16 %v3595, %v3571
        %v6548 = vpack.c.b16 %v3596, %v3572
        %v6549 = vpack.c.b16 %v3621, %v3597
        %v6550 = vpack.c.b16 %v3622, %v3598
        %v6551 = vpack.c.b16 %v3623, %v3599
        %v6552 = vpack.c.b16 %v3624, %v3600
        %v6553 = vpack.c.b16 %v3625, %v3601
        %v6554 = vpack.c.b16 %v3626, %v3602
        %v6555 = vpack.c.b16 %v3627, %v3603
        %v6556 = vpack.c.b16 %v3628, %v3604
        %v6557 = vpack.c.b16 %v3629, %v3605
        %v6558 = vpack.c.b16 %v3630, %v3606
        %v6559 = vpack.c.b16 %v3631, %v3607
        %v6560 = vpack.c.b16 %v3632, %v3608
        %v6561 = vpack.c.b16 %v3633, %v3609
        %v6562 = vpack.c.b16 %v3634, %v3610
        %v6563 = vpack.c.b16 %v3635, %v3611
        %v6564 = vpack.c.b16 %v3636, %v3612
        %v6565 = vpack.c.b16 %v3637, %v3613
        %v6566 = vpack.c.b16 %v3638, %v3614
        %v6567 = vpack.c.b16 %v3639, %v3615
        %v6568 = vpack.c.b16 %v3640, %v3616
        %v6569 = vpack.c.b16 %v3641, %v3617
        %v6570 = vpack.c.b16 %v3642, %v3618
        %v6571 = vpack.c.b16 %v3643, %v3619
        %v6572 = vpack.c.b16 %v3644, %v3620
        %v6573 = vpack.c.b16 %v3669, %v3645
        %v6574 = vpack.c.b16 %v3670, %v3646
        %v6575 = vpack.c.b16 %v3671, %v3647
        %v6576 = vpack.c.b16 %v3672, %v3648
        %v6577 = vpack.c.b16 %v3673, %v3649
        %v6578 = vpack.c.b16 %v3674, %v3650
        %v6579 = vpack.c.b16 %v3675, %v3651
        %v6580 = vpack.c.b16 %v3676, %v3652
        %v6581 = vpack.c.b16 %v3677, %v3653
        %v6582 = vpack.c.b16 %v3678, %v3654
        %v6583 = vpack.c.b16 %v3679, %v3655
        %v6584 = vpack.c.b16 %v3680, %v3656
        %v6585 = vpack.c.b16 %v3681, %v3657
        %v6586 = vpack.c.b16 %v3682, %v3658
        %v6587 = vpack.c.b16 %v3683, %v3659
        %v6588 = vpack.c.b16 %v3684, %v3660
        %v6589 = vpack.c.b16 %v3685, %v3661
        %v6590 = vpack.c.b16 %v3686, %v3662
        %v6591 = vpack.c.b16 %v3687, %v3663
        %v6592 = vpack.c.b16 %v3688, %v3664
        %v6593 = vpack.c.b16 %v3689, %v3665
        %v6594 = vpack.c.b16 %v3690, %v3666
        %v6595 = vpack.c.b16 %v3691, %v3667
        %v6596 = vpack.c.b16 %v3692, %v3668
        %v6597 = vpack.c.b16 %v3717, %v3693
        %v6598 = vpack.c.b16 %v3718, %v3694
        %v6599 = vpack.c.b16 %v3719, %v3695
        %v6600 = vpack.c.b16 %v3720, %v3696
        %v6601 = vpack.c.b16 %v3721, %v3697
        %v6602 = vpack.c.b16 %v3722, %v3698
        %v6603 = vpack.c.b16 %v3723, %v3699
        %v6604 = vpack.c.b16 %v3724, %v3700
        %v6605 = vpack.c.b16 %v3725, %v3701
        %v6606 = vpack.c.b16 %v3726, %v3702
        %v6607 = vpack.c.b16 %v3727, %v3703
        %v6608 = vpack.c.b16 %v3728, %v3704
        %v6609 = vpack.c.b16 %v3729, %v3705
        %v6610 = vpack.c.b16 %v3730, %v3706
        %v6611 = vpack.c.b16 %v3731, %v3707
        %v6612 = vpack.c.b16 %v3732, %v3708
        %v6613 = vpack.c.b16 %v3733, %v3709
        %v6614 = vpack.c.b16 %v3734, %v3710
        %v6615 = vpack.c.b16 %v3735, %v3711
        %v6616 = vpack.c.b16 %v3736, %v3712
        %v6617 = vpack.c.b16 %v3737, %v3713
        %v6618 = vpack.c.b16 %v3738, %v3714
        %v6619 = vpack.c.b16 %v3739, %v3715
        %v6620 = vpack.c.b16 %v3740, %v3716
        %v6621 = vpack.c.b16 %v3765, %v3741
        %v6622 = vpack.c.b16 %v3766, %v3742
        %v6623 = vpack.c.b16 %v3767, %v3743
        %v6624 = vpack.c.b16 %v3768, %v3744
        %v6625 = vpack.c.b16 %v3769, %v3745
        %v6626 = vpack.c.b16 %v3770, %v3746
        %v6627 = vpack.c.b16 %v3771, %v3747
        %v6628 = vpack.c.b16 %v3772, %v3748
        %v6629 = vpack.c.b16 %v3773, %v3749
        %v6630 = vpack.c.b16 %v3774, %v3750
        %v6631 = vpack.c.b16 %v3775, %v3751
        %v6632 = vpack.c.b16 %v3776, %v3752
        %v6633 = vpack.c.b16 %v3777, %v3753
        %v6634 = vpack.c.b16 %v3778, %v3754
        %v6635 = vpack.c.b16 %v3779, %v3755
        %v6636 = vpack.c.b16 %v3780, %v3756
        %v6637 = vpack.c.b16 %v3781, %v3757
        %v6638 = vpack.c.b16 %v3782, %v3758
        %v6639 = vpack.c.b16 %v3783, %v3759
        %v6640 = vpack.c.b16 %v3784, %v3760
        %v6641 = vpack.c.b16 %v3785, %v3761
        %v6642 = vpack.c.b16 %v3786, %v3762
        %v6643 = vpack.c.b16 %v3787, %v3763
        %v6644 = vpack.c.b16 %v3788, %v3764
        %v6645 = vpack.c.b16 %v3813, %v3789
        %v6646 = vpack.c.b16 %v3814, %v3790
        %v6647 = vpack.c.b16 %v3815, %v3791
        %v6648 = vpack.c.b16 %v3816, %v3792
        %v6649 = vpack.c.b16 %v3817, %v3793
        %v6650 = vpack.c.b16 %v3818, %v3794
        %v6651 = vpack.c.b16 %v3819, %v3795
        %v6652 = vpack.c.b16 %v3820, %v3796
        %v6653 = vpack.c.b16 %v3821, %v3797
        %v6654 = vpack.c.b16 %v3822, %v3798
        %v6655 = vpack.c.b16 %v3823, %v3799
        %v6656 = vpack.c.b16 %v3824, %v3800
        %v6657 = vpack.c.b16 %v3825, %v3801
        %v6658 = vpack.c.b16 %v3826, %v3802
        %v6659 = vpack.c.b16 %v3827, %v3803
        %v6660 = vpack.c.b16 %v3828, %v3804
        %v6661 = vpack.c.b16 %v3829, %v3805
        %v6662 = vpack.c.b16 %v3830, %v3806
        %v6663 = vpack.c.b16 %v3831, %v3807
        %v6664 = vpack.c.b16 %v3832, %v3808
        %v6665 = vpack.c.b16 %v3833, %v3809
        %v6666 = vpack.c.b16 %v3834, %v3810
        %v6667 = vpack.c.b16 %v3835, %v3811
        %v6668 = vpack.c.b16 %v3836, %v3812
        %v6669 = vpack.c.b16 %v3861, %v3837
        %v6670 = vpack.c.b16 %v3862, %v3838
        %v6671 = vpack.c.b16 %v3863, %v3839
        %v6672 = vpack.c.b16 %v3864, %v3840
        %v6673 = vpack.c.b16 %v3865, %v3841
        %v6674 = vpack.c.b16 %v3866, %v3842
        %v6675 = vpack.c.b16 %v3867, %v3843
        %v6676 = vpack.c.b16 %v3868, %v3844
        %v6677 = vpack.c.b16 %v3869, %v3845
        %v6678 = vpack.c.b16 %v3870, %v3846
        %v6679 = vpack.c.b16 %v3871, %v3847
        %v6680 = vpack.c.b16 %v3872, %v3848
        %v6681 = vpack.c.b16 %v3873, %v3849
        %v6682 = vpack.c.b16 %v3874, %v3850
        %v6683 = vpack.c.b16 %v3875, %v3851
        %v6684 = vpack.c.b16 %v3876, %v3852
        %v6685 = vpack.c.b16 %v3877, %v3853
        %v6686 = vpack.c.b16 %v3878, %v3854
        %v6687 = vpack.c.b16 %v3879, %v3855
        %v6688 = vpack.c.b16 %v3880, %v3856
        %v6689 = vpack.c.b16 %v3881, %v3857
        %v6690 = vpack.c.b16 %v3882, %v3858
        %v6691 = vpack.c.b16 %v3883, %v3859
        %v6692 = vpack.c.b16 %v3884, %v3860
        %v6693 = vpack.c.b16 %v3909, %v3885
        %v6694 = vpack.c.b16 %v3910, %v3886
        %v6695 = vpack.c.b16 %v3911, %v3887
        %v6696 = vpack.c.b16 %v3912, %v3888
        %v6697 = vpack.c.b16 %v3913, %v3889
        %v6698 = vpack.c.b16 %v3914, %v3890
        %v6699 = vpack.c.b16 %v3915, %v3891
        %v6700 = vpack.c.b16 %v3916, %v3892
        %v6701 = vpack.c.b16 %v3917, %v3893
        %v6702 = vpack.c.b16 %v3918, %v3894
        %v6703 = vpack.c.b16 %v3919, %v3895
        %v6704 = vpack.c.b16 %v3920, %v3896
        %v6705 = vpack.c.b16 %v3921, %v3897
        %v6706 = vpack.c.b16 %v3922, %v3898
        %v6707 = vpack.c.b16 %v3923, %v3899
        %v6708 = vpack.c.b16 %v3924, %v3900
        %v6709 = vpack.c.b16 %v3925, %v3901
        %v6710 = vpack.c.b16 %v3926, %v3902
        %v6711 = vpack.c.b16 %v3927, %v3903
        %v6712 = vpack.c.b16 %v3928, %v3904
        %v6713 = vpack.c.b16 %v3929, %v3905
        %v6714 = vpack.c.b16 %v3930, %v3906
        %v6715 = vpack.c.b16 %v3931, %v3907
        %v6716 = vpack.c.b16 %v3932, %v3908
        %v6717 = vpack.c.b16 %v3957, %v3933
        %v6718 = vpack.c.b16 %v3958, %v3934
        %v6719 = vpack.c.b16 %v3959, %v3935
        %v6720 = vpack.c.b16 %v3960, %v3936
        %v6721 = vpack.c.b16 %v3961, %v3937
        %v6722 = vpack.c.b16 %v3962, %v3938
        %v6723 = vpack.c.b16 %v3963, %v3939
        %v6724 = vpack.c.b16 %v3964, %v3940
        %v6725 = vpack.c.b16 %v3965, %v3941
        %v6726 = vpack.c.b16 %v3966, %v3942
        %v6727 = vpack.c.b16 %v3967, %v3943
        %v6728 = vpack.c.b16 %v3968, %v3944
        %v6729 = vpack.c.b16 %v3969, %v3945
        %v6730 = vpack.c.b16 %v3970, %v3946
        %v6731 = vpack.c.b16 %v3971, %v3947
        %v6732 = vpack.c.b16 %v3972, %v3948
        %v6733 = vpack.c.b16 %v3973, %v3949
        %v6734 = vpack.c.b16 %v3974, %v3950
        %v6735 = vpack.c.b16 %v3975, %v3951
        %v6736 = vpack.c.b16 %v3976, %v3952
        %v6737 = vpack.c.b16 %v3977, %v3953
        %v6738 = vpack.c.b16 %v3978, %v3954
        %v6739 = vpack.c.b16 %v3979, %v3955
        %v6740 = vpack.c.b16 %v3980, %v3956
        %v6741 = vpack.c.b16 %v4005, %v3981
        %v6742 = vpack.c.b16 %v4006, %v3982
        %v6743 = vpack.c.b16 %v4007, %v3983
        %v6744 = vpack.c.b16 %v4008, %v3984
        %v6745 = vpack.c.b16 %v4009, %v3985
        %v6746 = vpack.c.b16 %v4010, %v3986
        %v6747 = vpack.c.b16 %v4011, %v3987
        %v6748 = vpack.c.b16 %v4012, %v3988
        %v6749 = vpack.c.b16 %v4013, %v3989
        %v6750 = vpack.c.b16 %v4014, %v3990
        %v6751 = vpack.c.b16 %v4015, %v3991
        %v6752 = vpack.c.b16 %v4016, %v3992
        %v6753 = vpack.c.b16 %v4017, %v3993
        %v6754 = vpack.c.b16 %v4018, %v3994
        %v6755 = vpack.c.b16 %v4019, %v3995
        %v6756 = vpack.c.b16 %v4020, %v3996
        %v6757 = vpack.c.b16 %v4021, %v3997
        %v6758 = vpack.c.b16 %v4022, %v3998
        %v6759 = vpack.c.b16 %v4023, %v3999
        %v6760 = vpack.c.b16 %v4024, %v4000
        %v6761 = vpack.c.b16 %v4025, %v4001
        %v6762 = vpack.c.b16 %v4026, %v4002
        %v6763 = vpack.c.b16 %v4027, %v4003
        %v6764 = vpack.c.b16 %v4028, %v4004
        %v6765 = vpack.c.b16 %v4053, %v4029
        %v6766 = vpack.c.b16 %v4054, %v4030
        %v6767 = vpack.c.b16 %v4055, %v4031
        %v6768 = vpack.c.b16 %v4056, %v4032
        %v6769 = vpack.c.b16 %v4057, %v4033
        %v6770 = vpack.c.b16 %v4058, %v4034
        %v6771 = vpack.c.b16 %v4059, %v4035
        %v6772 = vpack.c.b16 %v4060, %v4036
        %v6773 = vpack.c.b16 %v4061, %v4037
        %v6774 = vpack.c.b16 %v4062, %v4038
        %v6775 = vpack.c.b16 %v4063, %v4039
        %v6776 = vpack.c.b16 %v4064, %v4040
        %v6777 = vpack.c.b16 %v4065, %v4041
        %v6778 = vpack.c.b16 %v4066, %v4042
        %v6779 = vpack.c.b16 %v4067, %v4043
        %v6780 = vpack.c.b16 %v4068, %v4044
        %v6781 = vpack.c.b16 %v4069, %v4045
        %v6782 = vpack.c.b16 %v4070, %v4046
        %v6783 = vpack.c.b16 %v4071, %v4047
        %v6784 = vpack.c.b16 %v4072, %v4048
        %v6785 = vpack.c.b16 %v4073, %v4049
        %v6786 = vpack.c.b16 %v4074, %v4050
        %v6787 = vpack.c.b16 %v4075, %v4051
        %v6788 = vpack.c.b16 %v4076, %v4052
        %v6789 = vpack.c.b16 %v4101, %v4077
        %v6790 = vpack.c.b16 %v4102, %v4078
        %v6791 = vpack.c.b16 %v4103, %v4079
        %v6792 = vpack.c.b16 %v4104, %v4080
        %v6793 = vpack.c.b16 %v4105, %v4081
        %v6794 = vpack.c.b16 %v4106, %v4082
        %v6795 = vpack.c.b16 %v4107, %v4083
        %v6796 = vpack.c.b16 %v4108, %v4084
        %v6797 = vpack.c.b16 %v4109, %v4085
        %v6798 = vpack.c.b16 %v4110, %v4086
        %v6799 = vpack.c.b16 %v4111, %v4087
        %v6800 = vpack.c.b16 %v4112, %v4088
        %v6801 = vpack.c.b16 %v4113, %v4089
        %v6802 = vpack.c.b16 %v4114, %v4090
        %v6803 = vpack.c.b16 %v4115, %v4091
        %v6804 = vpack.c.b16 %v4116, %v4092
        %v6805 = vpack.c.b16 %v4117, %v4093
        %v6806 = vpack.c.b16 %v4118, %v4094
        %v6807 = vpack.c.b16 %v4119, %v4095
        %v6808 = vpack.c.b16 %v4120, %v4096
        %v6809 = vpack.c.b16 %v4121, %v4097
        %v6810 = vpack.c.b16 %v4122, %v4098
        %v6811 = vpack.c.b16 %v4123, %v4099
        %v6812 = vpack.c.b16 %v4124, %v4100
        %v6813 = vpack.c.b16 %v4149, %v4125
        %v6814 = vpack.c.b16 %v4150, %v4126
        %v6815 = vpack.c.b16 %v4151, %v4127
        %v6816 = vpack.c.b16 %v4152, %v4128
        %v6817 = vpack.c.b16 %v4153, %v4129
        %v6818 = vpack.c.b16 %v4154, %v4130
        %v6819 = vpack.c.b16 %v4155, %v4131
        %v6820 = vpack.c.b16 %v4156, %v4132
        %v6821 = vpack.c.b16 %v4157, %v4133
        %v6822 = vpack.c.b16 %v4158, %v4134
        %v6823 = vpack.c.b16 %v4159, %v4135
        %v6824 = vpack.c.b16 %v4160, %v4136
        %v6825 = vpack.c.b16 %v4161, %v4137
        %v6826 = vpack.c.b16 %v4162, %v4138
        %v6827 = vpack.c.b16 %v4163, %v4139
        %v6828 = vpack.c.b16 %v4164, %v4140
        %v6829 = vpack.c.b16 %v4165, %v4141
        %v6830 = vpack.c.b16 %v4166, %v4142
        %v6831 = vpack.c.b16 %v4167, %v4143
        %v6832 = vpack.c.b16 %v4168, %v4144
        %v6833 = vpack.c.b16 %v4169, %v4145
        %v6834 = vpack.c.b16 %v4170, %v4146
        %v6835 = vpack.c.b16 %v4171, %v4147
        %v6836 = vpack.c.b16 %v4172, %v4148
        %v6837 = vpack.c.b16 %v4197, %v4173
        %v6838 = vpack.c.b16 %v4198, %v4174
        %v6839 = vpack.c.b16 %v4199, %v4175
        %v6840 = vpack.c.b16 %v4200, %v4176
        %v6841 = vpack.c.b16 %v4201, %v4177
        %v6842 = vpack.c.b16 %v4202, %v4178
        %v6843 = vpack.c.b16 %v4203, %v4179
        %v6844 = vpack.c.b16 %v4204, %v4180
        %v6845 = vpack.c.b16 %v4205, %v4181
        %v6846 = vpack.c.b16 %v4206, %v4182
        %v6847 = vpack.c.b16 %v4207, %v4183
        %v6848 = vpack.c.b16 %v4208, %v4184
        %v6849 = vpack.c.b16 %v4209, %v4185
        %v6850 = vpack.c.b16 %v4210, %v4186
        %v6851 = vpack.c.b16 %v4211, %v4187
        %v6852 = vpack.c.b16 %v4212, %v4188
        %v6853 = vpack.c.b16 %v4213, %v4189
        %v6854 = vpack.c.b16 %v4214, %v4190
        %v6855 = vpack.c.b16 %v4215, %v4191
        %v6856 = vpack.c.b16 %v4216, %v4192
        %v6857 = vpack.c.b16 %v4217, %v4193
        %v6858 = vpack.c.b16 %v4218, %v4194
        %v6859 = vpack.c.b16 %v4219, %v4195
        %v6860 = vpack.c.b16 %v4220, %v4196
        %v6861 = vpack.c.b16 %v4245, %v4221
        %v6862 = vpack.c.b16 %v4246, %v4222
        %v6863 = vpack.c.b16 %v4247, %v4223
        %v6864 = vpack.c.b16 %v4248, %v4224
        %v6865 = vpack.c.b16 %v4249, %v4225
        %v6866 = vpack.c.b16 %v4250, %v4226
        %v6867 = vpack.c.b16 %v4251, %v4227
        %v6868 = vpack.c.b16 %v4252, %v4228
        %v6869 = vpack.c.b16 %v4253, %v4229
        %v6870 = vpack.c.b16 %v4254, %v4230
        %v6871 = vpack.c.b16 %v4255, %v4231
        %v6872 = vpack.c.b16 %v4256, %v4232
        %v6873 = vpack.c.b16 %v4257, %v4233
        %v6874 = vpack.c.b16 %v4258, %v4234
        %v6875 = vpack.c.b16 %v4259, %v4235
        %v6876 = vpack.c.b16 %v4260, %v4236
        %v6877 = vpack.c.b16 %v4261, %v4237
        %v6878 = vpack.c.b16 %v4262, %v4238
        %v6879 = vpack.c.b16 %v4263, %v4239
        %v6880 = vpack.c.b16 %v4264, %v4240
        %v6881 = vpack.c.b16 %v4265, %v4241
        %v6882 = vpack.c.b16 %v4266, %v4242
        %v6883 = vpack.c.b16 %v4267, %v4243
        %v6884 = vpack.c.b16 %v4268, %v4244
        %v6885 = vpack.c.b16 %v4293, %v4269
        %v6886 = vpack.c.b16 %v4294, %v4270
        %v6887 = vpack.c.b16 %v4295, %v4271
        %v6888 = vpack.c.b16 %v4296, %v4272
        %v6889 = vpack.c.b16 %v4297, %v4273
        %v6890 = vpack.c.b16 %v4298, %v4274
        %v6891 = vpack.c.b16 %v4299, %v4275
        %v6892 = vpack.c.b16 %v4300, %v4276
        %v6893 = vpack.c.b16 %v4301, %v4277
        %v6894 = vpack.c.b16 %v4302, %v4278
        %v6895 = vpack.c.b16 %v4303, %v4279
        %v6896 = vpack.c.b16 %v4304, %v4280
        %v6897 = vpack.c.b16 %v4305, %v4281
        %v6898 = vpack.c.b16 %v4306, %v4282
        %v6899 = vpack.c.b16 %v4307, %v4283
        %v6900 = vpack.c.b16 %v4308, %v4284
        %v6901 = vpack.c.b16 %v4309, %v4285
        %v6902 = vpack.c.b16 %v4310, %v4286
        %v6903 = vpack.c.b16 %v4311, %v4287
        %v6904 = vpack.c.b16 %v4312, %v4288
        %v6905 = vpack.c.b16 %v4313, %v4289
        %v6906 = vpack.c.b16 %v4314, %v4290
        %v6907 = vpack.c.b16 %v4315, %v4291
        %v6908 = vpack.c.b16 %v4316, %v4292
        %v6909 = vpack.c.b16 %v4341, %v4317
        %v6910 = vpack.c.b16 %v4342, %v4318
        %v6911 = vpack.c.b16 %v4343, %v4319
        %v6912 = vpack.c.b16 %v4344, %v4320
        %v6913 = vpack.c.b16 %v4345, %v4321
        %v6914 = vpack.c.b16 %v4346, %v4322
        %v6915 = vpack.c.b16 %v4347, %v4323
        %v6916 = vpack.c.b16 %v4348, %v4324
        %v6917 = vpack.c.b16 %v4349, %v4325
        %v6918 = vpack.c.b16 %v4350, %v4326
        %v6919 = vpack.c.b16 %v4351, %v4327
        %v6920 = vpack.c.b16 %v4352, %v4328
        %v6921 = vpack.c.b16 %v4353, %v4329
        %v6922 = vpack.c.b16 %v4354, %v4330
        %v6923 = vpack.c.b16 %v4355, %v4331
        %v6924 = vpack.c.b16 %v4356, %v4332
        %v6925 = vpack.c.b16 %v4357, %v4333
        %v6926 = vpack.c.b16 %v4358, %v4334
        %v6927 = vpack.c.b16 %v4359, %v4335
        %v6928 = vpack.c.b16 %v4360, %v4336
        %v6929 = vpack.c.b16 %v4361, %v4337
        %v6930 = vpack.c.b16 %v4362, %v4338
        %v6931 = vpack.c.b16 %v4363, %v4339
        %v6932 = vpack.c.b16 %v4364, %v4340
        %v6933 = vpack.c.b16 %v4389, %v4365
        %v6934 = vpack.c.b16 %v4390, %v4366
        %v6935 = vpack.c.b16 %v4391, %v4367
        %v6936 = vpack.c.b16 %v4392, %v4368
        %v6937 = vpack.c.b16 %v4393, %v4369
        %v6938 = vpack.c.b16 %v4394, %v4370
        %v6939 = vpack.c.b16 %v4395, %v4371
        %v6940 = vpack.c.b16 %v4396, %v4372
        %v6941 = vpack.c.b16 %v4397, %v4373
        %v6942 = vpack.c.b16 %v4398, %v4374
        %v6943 = vpack.c.b16 %v4399, %v4375
        %v6944 = vpack.c.b16 %v4400, %v4376
        %v6945 = vpack.c.b16 %v4401, %v4377
        %v6946 = vpack.c.b16 %v4402, %v4378
        %v6947 = vpack.c.b16 %v4403, %v4379
        %v6948 = vpack.c.b16 %v4404, %v4380
        %v6949 = vpack.c.b16 %v4405, %v4381
        %v6950 = vpack.c.b16 %v4406, %v4382
        %v6951 = vpack.c.b16 %v4407, %v4383
        %v6952 = vpack.c.b16 %v4408, %v4384
        %v6953 = vpack.c.b16 %v4409, %v4385
        %v6954 = vpack.c.b16 %v4410, %v4386
        %v6955 = vpack.c.b16 %v4411, %v4387
        %v6956 = vpack.c.b16 %v4412, %v4388
        %v6957 = vpack.c.b16 %v4437, %v4413
        %v6958 = vpack.c.b16 %v4438, %v4414
        %v6959 = vpack.c.b16 %v4439, %v4415
        %v6960 = vpack.c.b16 %v4440, %v4416
        %v6961 = vpack.c.b16 %v4441, %v4417
        %v6962 = vpack.c.b16 %v4442, %v4418
        %v6963 = vpack.c.b16 %v4443, %v4419
        %v6964 = vpack.c.b16 %v4444, %v4420
        %v6965 = vpack.c.b16 %v4445, %v4421
        %v6966 = vpack.c.b16 %v4446, %v4422
        %v6967 = vpack.c.b16 %v4447, %v4423
        %v6968 = vpack.c.b16 %v4448, %v4424
        %v6969 = vpack.c.b16 %v4449, %v4425
        %v6970 = vpack.c.b16 %v4450, %v4426
        %v6971 = vpack.c.b16 %v4451, %v4427
        %v6972 = vpack.c.b16 %v4452, %v4428
        %v6973 = vpack.c.b16 %v4453, %v4429
        %v6974 = vpack.c.b16 %v4454, %v4430
        %v6975 = vpack.c.b16 %v4455, %v4431
        %v6976 = vpack.c.b16 %v4456, %v4432
        %v6977 = vpack.c.b16 %v4457, %v4433
        %v6978 = vpack.c.b16 %v4458, %v4434
        %v6979 = vpack.c.b16 %v4459, %v4435
        %v6980 = vpack.c.b16 %v4460, %v4436
        %v6981 = vpack.c.b16 %v4485, %v4461
        %v6982 = vpack.c.b16 %v4486, %v4462
        %v6983 = vpack.c.b16 %v4487, %v4463
        %v6984 = vpack.c.b16 %v4488, %v4464
        %v6985 = vpack.c.b16 %v4489, %v4465
        %v6986 = vpack.c.b16 %v4490, %v4466
        %v6987 = vpack.c.b16 %v4491, %v4467
        %v6988 = vpack.c.b16 %v4492, %v4468
        %v6989 = vpack.c.b16 %v4493, %v4469
        %v6990 = vpack.c.b16 %v4494, %v4470
        %v6991 = vpack.c.b16 %v4495, %v4471
        %v6992 = vpack.c.b16 %v4496, %v4472
        %v6993 = vpack.c.b16 %v4497, %v4473
        %v6994 = vpack.c.b16 %v4498, %v4474
        %v6995 = vpack.c.b16 %v4499, %v4475
        %v6996 = vpack.c.b16 %v4500, %v4476
        %v6997 = vpack.c.b16 %v4501, %v4477
        %v6998 = vpack.c.b16 %v4502, %v4478
        %v6999 = vpack.c.b16 %v4503, %v4479
        %v7000 = vpack.c.b16 %v4504, %v4480
        %v7001 = vpack.c.b16 %v4505, %v4481
        %v7002 = vpack.c.b16 %v4506, %v4482
        %v7003 = vpack.c.b16 %v4507, %v4483
        %v7004 = vpack.c.b16 %v4508, %v4484
        %v7005 = vpack.c.b16 %v4533, %v4509
        %v7006 = vpack.c.b16 %v4534, %v4510
        %v7007 = vpack.c.b16 %v4535, %v4511
        %v7008 = vpack.c.b16 %v4536, %v4512
        %v7009 = vpack.c.b16 %v4537, %v4513
        %v7010 = vpack.c.b16 %v4538, %v4514
        %v7011 = vpack.c.b16 %v4539, %v4515
        %v7012 = vpack.c.b16 %v4540, %v4516
        %v7013 = vpack.c.b16 %v4541, %v4517
        %v7014 = vpack.c.b16 %v4542, %v4518
        %v7015 = vpack.c.b16 %v4543, %v4519
        %v7016 = vpack.c.b16 %v4544, %v4520
        %v7017 = vpack.c.b16 %v4545, %v4521
        %v7018 = vpack.c.b16 %v4546, %v4522
        %v7019 = vpack.c.b16 %v4547, %v4523
        %v7020 = vpack.c.b16 %v4548, %v4524
        %v7021 = vpack.c.b16 %v4549, %v4525
        %v7022 = vpack.c.b16 %v4550, %v4526
        %v7023 = vpack.c.b16 %v4551, %v4527
        %v7024 = vpack.c.b16 %v4552, %v4528
        %v7025 = vpack.c.b16 %v4553, %v4529
        %v7026 = vpack.c.b16 %v4554, %v4530
        %v7027 = vpack.c.b16 %v4555, %v4531
        %v7028 = vpack.c.b16 %v4556, %v4532
        %v7029 = vpack.c.b16 %v4581, %v4557
        %v7030 = vpack.c.b16 %v4582, %v4558
        %v7031 = vpack.c.b16 %v4583, %v4559
        %v7032 = vpack.c.b16 %v4584, %v4560
        %v7033 = vpack.c.b16 %v4585, %v4561
        %v7034 = vpack.c.b16 %v4586, %v4562
        %v7035 = vpack.c.b16 %v4587, %v4563
        %v7036 = vpack.c.b16 %v4588, %v4564
        %v7037 = vpack.c.b16 %v4589, %v4565
        %v7038 = vpack.c.b16 %v4590, %v4566
        %v7039 = vpack.c.b16 %v4591, %v4567
        %v7040 = vpack.c.b16 %v4592, %v4568
        %v7041 = vpack.c.b16 %v4593, %v4569
        %v7042 = vpack.c.b16 %v4594, %v4570
        %v7043 = vpack.c.b16 %v4595, %v4571
        %v7044 = vpack.c.b16 %v4596, %v4572
        %v7045 = vpack.c.b16 %v4597, %v4573
        %v7046 = vpack.c.b16 %v4598, %v4574
        %v7047 = vpack.c.b16 %v4599, %v4575
        %v7048 = vpack.c.b16 %v4600, %v4576
        %v7049 = vpack.c.b16 %v4601, %v4577
        %v7050 = vpack.c.b16 %v4602, %v4578
        %v7051 = vpack.c.b16 %v4603, %v4579
        %v7052 = vpack.c.b16 %v4604, %v4580
        %v7053 = vpack.c.b16 %v4629, %v4605
        %v7054 = vpack.c.b16 %v4630, %v4606
        %v7055 = vpack.c.b16 %v4631, %v4607
        %v7056 = vpack.c.b16 %v4632, %v4608
        %v7057 = vpack.c.b16 %v4633, %v4609
        %v7058 = vpack.c.b16 %v4634, %v4610
        %v7059 = vpack.c.b16 %v4635, %v4611
        %v7060 = vpack.c.b16 %v4636, %v4612
        %v7061 = vpack.c.b16 %v4637, %v4613
        %v7062 = vpack.c.b16 %v4638, %v4614
        %v7063 = vpack.c.b16 %v4639, %v4615
        %v7064 = vpack.c.b16 %v4640, %v4616
        %v7065 = vpack.c.b16 %v4641, %v4617
        %v7066 = vpack.c.b16 %v4642, %v4618
        %v7067 = vpack.c.b16 %v4643, %v4619
        %v7068 = vpack.c.b16 %v4644, %v4620
        %v7069 = vpack.c.b16 %v4645, %v4621
        %v7070 = vpack.c.b16 %v4646, %v4622
        %v7071 = vpack.c.b16 %v4647, %v4623
        %v7072 = vpack.c.b16 %v4648, %v4624
        %v7073 = vpack.c.b16 %v4649, %v4625
        %v7074 = vpack.c.b16 %v4650, %v4626
        %v7075 = vpack.c.b16 %v4651, %v4627
        %v7076 = vpack.c.b16 %v4652, %v4628
        %v7077 = vpack.c.b16 %v4677, %v4653
        %v7078 = vpack.c.b16 %v4678, %v4654
        %v7079 = vpack.c.b16 %v4679, %v4655
        %v7080 = vpack.c.b16 %v4680, %v4656
        %v7081 = vpack.c.b16 %v4681, %v4657
        %v7082 = vpack.c.b16 %v4682, %v4658
        %v7083 = vpack.c.b16 %v4683, %v4659
        %v7084 = vpack.c.b16 %v4684, %v4660
        %v7085 = vpack.c.b16 %v4685, %v4661
        %v7086 = vpack.c.b16 %v4686, %v4662
        %v7087 = vpack.c.b16 %v4687, %v4663
        %v7088 = vpack.c.b16 %v4688, %v4664
        %v7089 = vpack.c.b16 %v4689, %v4665
        %v7090 = vpack.c.b16 %v4690, %v4666
        %v7091 = vpack.c.b16 %v4691, %v4667
        %v7092 = vpack.c.b16 %v4692, %v4668
        %v7093 = vpack.c.b16 %v4693, %v4669
        %v7094 = vpack.c.b16 %v4694, %v4670
        %v7095 = vpack.c.b16 %v4695, %v4671
        %v7096 = vpack.c.b16 %v4696, %v4672
        %v7097 = vpack.c.b16 %v4697, %v4673
        %v7098 = vpack.c.b16 %v4698, %v4674
        %v7099 = vpack.c.b16 %v4699, %v4675
        %v7100 = vpack.c.b16 %v4700, %v4676
        %v7101 = vpack.c.b16 %v4725, %v4701
        %v7102 = vpack.c.b16 %v4726, %v4702
        %v7103 = vpack.c.b16 %v4727, %v4703
        %v7104 = vpack.c.b16 %v4728, %v4704
        %v7105 = vpack.c.b16 %v4729, %v4705
        %v7106 = vpack.c.b16 %v4730, %v4706
        %v7107 = vpack.c.b16 %v4731, %v4707
        %v7108 = vpack.c.b16 %v4732, %v4708
        %v7109 = vpack.c.b16 %v4733, %v4709
        %v7110 = vpack.c.b16 %v4734, %v4710
        %v7111 = vpack.c.b16 %v4735, %v4711
        %v7112 = vpack.c.b16 %v4736, %v4712
        %v7113 = vpack.c.b16 %v4737, %v4713
        %v7114 = vpack.c.b16 %v4738, %v4714
        %v7115 = vpack.c.b16 %v4739, %v4715
        %v7116 = vpack.c.b16 %v4740, %v4716
        %v7117 = vpack.c.b16 %v4741, %v4717
        %v7118 = vpack.c.b16 %v4742, %v4718
        %v7119 = vpack.c.b16 %v4743, %v4719
        %v7120 = vpack.c.b16 %v4744, %v4720
        %v7121 = vpack.c.b16 %v4745, %v4721
        %v7122 = vpack.c.b16 %v4746, %v4722
        %v7123 = vpack.c.b16 %v4747, %v4723
        %v7124 = vpack.c.b16 %v4748, %v4724
        %v7125 = vpack.c.b16 %v4773, %v4749
        %v7126 = vpack.c.b16 %v4774, %v4750
        %v7127 = vpack.c.b16 %v4775, %v4751
        %v7128 = vpack.c.b16 %v4776, %v4752
        %v7129 = vpack.c.b16 %v4777, %v4753
        %v7130 = vpack.c.b16 %v4778, %v4754
        %v7131 = vpack.c.b16 %v4779, %v4755
        %v7132 = vpack.c.b16 %v4780, %v4756
        %v7133 = vpack.c.b16 %v4781, %v4757
        %v7134 = vpack.c.b16 %v4782, %v4758
        %v7135 = vpack.c.b16 %v4783, %v4759
        %v7136 = vpack.c.b16 %v4784, %v4760
        %v7137 = vpack.c.b16 %v4785, %v4761
        %v7138 = vpack.c.b16 %v4786, %v4762
        %v7139 = vpack.c.b16 %v4787, %v4763
        %v7140 = vpack.c.b16 %v4788, %v4764
        %v7141 = vpack.c.b16 %v4789, %v4765
        %v7142 = vpack.c.b16 %v4790, %v4766
        %v7143 = vpack.c.b16 %v4791, %v4767
        %v7144 = vpack.c.b16 %v4792, %v4768
        %v7145 = vpack.c.b16 %v4793, %v4769
        %v7146 = vpack.c.b16 %v4794, %v4770
        %v7147 = vpack.c.b16 %v4795, %v4771
        %v7148 = vpack.c.b16 %v4796, %v4772
        %v7149 = vpack.c.b16 %v4821, %v4797
        %v7150 = vpack.c.b16 %v4822, %v4798
        %v7151 = vpack.c.b16 %v4823, %v4799
        %v7152 = vpack.c.b16 %v4824, %v4800
        %v7153 = vpack.c.b16 %v4825, %v4801
        %v7154 = vpack.c.b16 %v4826, %v4802
        %v7155 = vpack.c.b16 %v4827, %v4803
        %v7156 = vpack.c.b16 %v4828, %v4804
        %v7157 = vpack.c.b16 %v4829, %v4805
        %v7158 = vpack.c.b16 %v4830, %v4806
        %v7159 = vpack.c.b16 %v4831, %v4807
        %v7160 = vpack.c.b16 %v4832, %v4808
        %v7161 = vpack.c.b16 %v4833, %v4809
        %v7162 = vpack.c.b16 %v4834, %v4810
        %v7163 = vpack.c.b16 %v4835, %v4811
        %v7164 = vpack.c.b16 %v4836, %v4812
        %v7165 = vpack.c.b16 %v4837, %v4813
        %v7166 = vpack.c.b16 %v4838, %v4814
        %v7167 = vpack.c.b16 %v4839, %v4815
        %v7168 = vpack.c.b16 %v4840, %v4816
        %v7169 = vpack.c.b16 %v4841, %v4817
        %v7170 = vpack.c.b16 %v4842, %v4818
        %v7171 = vpack.c.b16 %v4843, %v4819
        %v7172 = vpack.c.b16 %v4844, %v4820
        %v7173 = vpack.c.b16 %v4869, %v4845
        %v7174 = vpack.c.b16 %v4870, %v4846
        %v7175 = vpack.c.b16 %v4871, %v4847
        %v7176 = vpack.c.b16 %v4872, %v4848
        %v7177 = vpack.c.b16 %v4873, %v4849
        %v7178 = vpack.c.b16 %v4874, %v4850
        %v7179 = vpack.c.b16 %v4875, %v4851
        %v7180 = vpack.c.b16 %v4876, %v4852
        %v7181 = vpack.c.b16 %v4877, %v4853
        %v7182 = vpack.c.b16 %v4878, %v4854
        %v7183 = vpack.c.b16 %v4879, %v4855
        %v7184 = vpack.c.b16 %v4880, %v4856
        %v7185 = vpack.c.b16 %v4881, %v4857
        %v7186 = vpack.c.b16 %v4882, %v4858
        %v7187 = vpack.c.b16 %v4883, %v4859
        %v7188 = vpack.c.b16 %v4884, %v4860
        %v7189 = vpack.c.b16 %v4885, %v4861
        %v7190 = vpack.c.b16 %v4886, %v4862
        %v7191 = vpack.c.b16 %v4887, %v4863
        %v7192 = vpack.c.b16 %v4888, %v4864
        %v7193 = vpack.c.b16 %v4889, %v4865
        %v7194 = vpack.c.b16 %v4890, %v4866
        %v7195 = vpack.c.b16 %v4891, %v4867
        %v7196 = vpack.c.b16 %v4892, %v4868
        %v7197 = vpack.c.b16 %v4917, %v4893
        %v7198 = vpack.c.b16 %v4918, %v4894
        %v7199 = vpack.c.b16 %v4919, %v4895
        %v7200 = vpack.c.b16 %v4920, %v4896
        %v7201 = vpack.c.b16 %v4921, %v4897
        %v7202 = vpack.c.b16 %v4922, %v4898
        %v7203 = vpack.c.b16 %v4923, %v4899
        %v7204 = vpack.c.b16 %v4924, %v4900
        %v7205 = vpack.c.b16 %v4925, %v4901
        %v7206 = vpack.c.b16 %v4926, %v4902
        %v7207 = vpack.c.b16 %v4927, %v4903
        %v7208 = vpack.c.b16 %v4928, %v4904
        %v7209 = vpack.c.b16 %v4929, %v4905
        %v7210 = vpack.c.b16 %v4930, %v4906
        %v7211 = vpack.c.b16 %v4931, %v4907
        %v7212 = vpack.c.b16 %v4932, %v4908
        %v7213 = vpack.c.b16 %v4933, %v4909
        %v7214 = vpack.c.b16 %v4934, %v4910
        %v7215 = vpack.c.b16 %v4935, %v4911
        %v7216 = vpack.c.b16 %v4936, %v4912
        %v7217 = vpack.c.b16 %v4937, %v4913
        %v7218 = vpack.c.b16 %v4938, %v4914
        %v7219 = vpack.c.b16 %v4939, %v4915
        %v7220 = vpack.c.b16 %v4940, %v4916
        %v7221 = vpack.c.b16 %v4965, %v4941
        %v7222 = vpack.c.b16 %v4966, %v4942
        %v7223 = vpack.c.b16 %v4967, %v4943
        %v7224 = vpack.c.b16 %v4968, %v4944
        %v7225 = vpack.c.b16 %v4969, %v4945
        %v7226 = vpack.c.b16 %v4970, %v4946
        %v7227 = vpack.c.b16 %v4971, %v4947
        %v7228 = vpack.c.b16 %v4972, %v4948
        %v7229 = vpack.c.b16 %v4973, %v4949
        %v7230 = vpack.c.b16 %v4974, %v4950
        %v7231 = vpack.c.b16 %v4975, %v4951
        %v7232 = vpack.c.b16 %v4976, %v4952
        %v7233 = vpack.c.b16 %v4977, %v4953
        %v7234 = vpack.c.b16 %v4978, %v4954
        %v7235 = vpack.c.b16 %v4979, %v4955
        %v7236 = vpack.c.b16 %v4980, %v4956
        %v7237 = vpack.c.b16 %v4981, %v4957
        %v7238 = vpack.c.b16 %v4982, %v4958
        %v7239 = vpack.c.b16 %v4983, %v4959
        %v7240 = vpack.c.b16 %v4984, %v4960
        %v7241 = vpack.c.b16 %v4985, %v4961
        %v7242 = vpack.c.b16 %v4986, %v4962
        %v7243 = vpack.c.b16 %v4987, %v4963
        %v7244 = vpack.c.b16 %v4988, %v4964
        %v7245 = vpack.c.b16 %v5013, %v4989
        %v7246 = vpack.c.b16 %v5014, %v4990
        %v7247 = vpack.c.b16 %v5015, %v4991
        %v7248 = vpack.c.b16 %v5016, %v4992
        %v7249 = vpack.c.b16 %v5017, %v4993
        %v7250 = vpack.c.b16 %v5018, %v4994
        %v7251 = vpack.c.b16 %v5019, %v4995
        %v7252 = vpack.c.b16 %v5020, %v4996
        %v7253 = vpack.c.b16 %v5021, %v4997
        %v7254 = vpack.c.b16 %v5022, %v4998
        %v7255 = vpack.c.b16 %v5023, %v4999
        %v7256 = vpack.c.b16 %v5024, %v5000
        %v7257 = vpack.c.b16 %v5025, %v5001
        %v7258 = vpack.c.b16 %v5026, %v5002
        %v7259 = vpack.c.b16 %v5027, %v5003
        %v7260 = vpack.c.b16 %v5028, %v5004
        %v7261 = vpack.c.b16 %v5029, %v5005
        %v7262 = vpack.c.b16 %v5030, %v5006
        %v7263 = vpack.c.b16 %v5031, %v5007
        %v7264 = vpack.c.b16 %v5032, %v5008
        %v7265 = vpack.c.b16 %v5033, %v5009
        %v7266 = vpack.c.b16 %v5034, %v5010
        %v7267 = vpack.c.b16 %v5035, %v5011
        %v7268 = vpack.c.b16 %v5036, %v5012
        %v7269 = vpack.c.b16 %v5061, %v5037
        %v7270 = vpack.c.b16 %v5062, %v5038
        %v7271 = vpack.c.b16 %v5063, %v5039
        %v7272 = vpack.c.b16 %v5064, %v5040
        %v7273 = vpack.c.b16 %v5065, %v5041
        %v7274 = vpack.c.b16 %v5066, %v5042
        %v7275 = vpack.c.b16 %v5067, %v5043
        %v7276 = vpack.c.b16 %v5068, %v5044
        %v7277 = vpack.c.b16 %v5069, %v5045
        %v7278 = vpack.c.b16 %v5070, %v5046
        %v7279 = vpack.c.b16 %v5071, %v5047
        %v7280 = vpack.c.b16 %v5072, %v5048
        %v7281 = vpack.c.b16 %v5073, %v5049
        %v7282 = vpack.c.b16 %v5074, %v5050
        %v7283 = vpack.c.b16 %v5075, %v5051
        %v7284 = vpack.c.b16 %v5076, %v5052
        %v7285 = vpack.c.b16 %v5077, %v5053
        %v7286 = vpack.c.b16 %v5078, %v5054
        %v7287 = vpack.c.b16 %v5079, %v5055
        %v7288 = vpack.c.b16 %v5080, %v5056
        %v7289 = vpack.c.b16 %v5081, %v5057
        %v7290 = vpack.c.b16 %v5082, %v5058
        %v7291 = vpack.c.b16 %v5083, %v5059
        %v7292 = vpack.c.b16 %v5084, %v5060
        %v7293 = vpack.c.b16 %v5109, %v5085
        %v7294 = vpack.c.b16 %v5110, %v5086
        %v7295 = vpack.c.b16 %v5111, %v5087
        %v7296 = vpack.c.b16 %v5112, %v5088
        %v7297 = vpack.c.b16 %v5113, %v5089
        %v7298 = vpack.c.b16 %v5114, %v5090
        %v7299 = vpack.c.b16 %v5115, %v5091
        %v7300 = vpack.c.b16 %v5116, %v5092
        %v7301 = vpack.c.b16 %v5117, %v5093
        %v7302 = vpack.c.b16 %v5118, %v5094
        %v7303 = vpack.c.b16 %v5119, %v5095
        %v7304 = vpack.c.b16 %v5120, %v5096
        %v7305 = vpack.c.b16 %v5121, %v5097
        %v7306 = vpack.c.b16 %v5122, %v5098
        %v7307 = vpack.c.b16 %v5123, %v5099
        %v7308 = vpack.c.b16 %v5124, %v5100
        %v7309 = vpack.c.b16 %v5125, %v5101
        %v7310 = vpack.c.b16 %v5126, %v5102
        %v7311 = vpack.c.b16 %v5127, %v5103
        %v7312 = vpack.c.b16 %v5128, %v5104
        %v7313 = vpack.c.b16 %v5129, %v5105
        %v7314 = vpack.c.b16 %v5130, %v5106
        %v7315 = vpack.c.b16 %v5131, %v5107
        %v7316 = vpack.c.b16 %v5132, %v5108
        %v7317 = vpack.c.b16 %v5157, %v5133
        %v7318 = vpack.c.b16 %v5158, %v5134
        %v7319 = vpack.c.b16 %v5159, %v5135
        %v7320 = vpack.c.b16 %v5160, %v5136
        %v7321 = vpack.c.b16 %v5161, %v5137
        %v7322 = vpack.c.b16 %v5162, %v5138
        %v7323 = vpack.c.b16 %v5163, %v5139
        %v7324 = vpack.c.b16 %v5164, %v5140
        %v7325 = vpack.c.b16 %v5165, %v5141
        %v7326 = vpack.c.b16 %v5166, %v5142
        %v7327 = vpack.c.b16 %v5167, %v5143
        %v7328 = vpack.c.b16 %v5168, %v5144
        %v7329 = vpack.c.b16 %v5169, %v5145
        %v7330 = vpack.c.b16 %v5170, %v5146
        %v7331 = vpack.c.b16 %v5171, %v5147
        %v7332 = vpack.c.b16 %v5172, %v5148
        %v7333 = vpack.c.b16 %v5173, %v5149
        %v7334 = vpack.c.b16 %v5174, %v5150
        %v7335 = vpack.c.b16 %v5175, %v5151
        %v7336 = vpack.c.b16 %v5176, %v5152
        %v7337 = vpack.c.b16 %v5177, %v5153
        %v7338 = vpack.c.b16 %v5178, %v5154
        %v7339 = vpack.c.b16 %v5179, %v5155
        %v7340 = vpack.c.b16 %v5180, %v5156
        %v7341 = vpack.c.b16 %v5205, %v5181
        %v7342 = vpack.c.b16 %v5206, %v5182
        %v7343 = vpack.c.b16 %v5207, %v5183
        %v7344 = vpack.c.b16 %v5208, %v5184
        %v7345 = vpack.c.b16 %v5209, %v5185
        %v7346 = vpack.c.b16 %v5210, %v5186
        %v7347 = vpack.c.b16 %v5211, %v5187
        %v7348 = vpack.c.b16 %v5212, %v5188
        %v7349 = vpack.c.b16 %v5213, %v5189
        %v7350 = vpack.c.b16 %v5214, %v5190
        %v7351 = vpack.c.b16 %v5215, %v5191
        %v7352 = vpack.c.b16 %v5216, %v5192
        %v7353 = vpack.c.b16 %v5217, %v5193
        %v7354 = vpack.c.b16 %v5218, %v5194
        %v7355 = vpack.c.b16 %v5219, %v5195
        %v7356 = vpack.c.b16 %v5220, %v5196
        %v7357 = vpack.c.b16 %v5221, %v5197
        %v7358 = vpack.c.b16 %v5222, %v5198
        %v7359 = vpack.c.b16 %v5223, %v5199
        %v7360 = vpack.c.b16 %v5224, %v5200
        %v7361 = vpack.c.b16 %v5225, %v5201
        %v7362 = vpack.c.b16 %v5226, %v5202
        %v7363 = vpack.c.b16 %v5227, %v5203
        %v7364 = vpack.c.b16 %v5228, %v5204
        %v7365 = vpack.c.b16 %v5253, %v5229
        %v7366 = vpack.c.b16 %v5254, %v5230
        %v7367 = vpack.c.b16 %v5255, %v5231
        %v7368 = vpack.c.b16 %v5256, %v5232
        %v7369 = vpack.c.b16 %v5257, %v5233
        %v7370 = vpack.c.b16 %v5258, %v5234
        %v7371 = vpack.c.b16 %v5259, %v5235
        %v7372 = vpack.c.b16 %v5260, %v5236
        %v7373 = vpack.c.b16 %v5261, %v5237
        %v7374 = vpack.c.b16 %v5262, %v5238
        %v7375 = vpack.c.b16 %v5263, %v5239
        %v7376 = vpack.c.b16 %v5264, %v5240
        %v7377 = vpack.c.b16 %v5265, %v5241
        %v7378 = vpack.c.b16 %v5266, %v5242
        %v7379 = vpack.c.b16 %v5267, %v5243
        %v7380 = vpack.c.b16 %v5268, %v5244
        %v7381 = vpack.c.b16 %v5269, %v5245
        %v7382 = vpack.c.b16 %v5270, %v5246
        %v7383 = vpack.c.b16 %v5271, %v5247
        %v7384 = vpack.c.b16 %v5272, %v5248
        %v7385 = vpack.c.b16 %v5273, %v5249
        %v7386 = vpack.c.b16 %v5274, %v5250
        %v7387 = vpack.c.b16 %v5275, %v5251
        %v7388 = vpack.c.b16 %v5276, %v5252
        %v7389 = vpack.c.b16 %v5301, %v5277
        %v7390 = vpack.c.b16 %v5302, %v5278
        %v7391 = vpack.c.b16 %v5303, %v5279
        %v7392 = vpack.c.b16 %v5304, %v5280
        %v7393 = vpack.c.b16 %v5305, %v5281
        %v7394 = vpack.c.b16 %v5306, %v5282
        %v7395 = vpack.c.b16 %v5307, %v5283
        %v7396 = vpack.c.b16 %v5308, %v5284
        %v7397 = vpack.c.b16 %v5309, %v5285
        %v7398 = vpack.c.b16 %v5310, %v5286
        %v7399 = vpack.c.b16 %v5311, %v5287
        %v7400 = vpack.c.b16 %v5312, %v5288
        %v7401 = vpack.c.b16 %v5313, %v5289
        %v7402 = vpack.c.b16 %v5314, %v5290
        %v7403 = vpack.c.b16 %v5315, %v5291
        %v7404 = vpack.c.b16 %v5316, %v5292
        %v7405 = vpack.c.b16 %v5317, %v5293
        %v7406 = vpack.c.b16 %v5318, %v5294
        %v7407 = vpack.c.b16 %v5319, %v5295
        %v7408 = vpack.c.b16 %v5320, %v5296
        %v7409 = vpack.c.b16 %v5321, %v5297
        %v7410 = vpack.c.b16 %v5322, %v5298
        %v7411 = vpack.c.b16 %v5323, %v5299
        %v7412 = vpack.c.b16 %v5324, %v5300
        %v7413 = vpack.c.b16 %v5349, %v5325
        %v7414 = vpack.c.b16 %v5350, %v5326
        %v7415 = vpack.c.b16 %v5351, %v5327
        %v7416 = vpack.c.b16 %v5352, %v5328
        %v7417 = vpack.c.b16 %v5353, %v5329
        %v7418 = vpack.c.b16 %v5354, %v5330
        %v7419 = vpack.c.b16 %v5355, %v5331
        %v7420 = vpack.c.b16 %v5356, %v5332
        %v7421 = vpack.c.b16 %v5357, %v5333
        %v7422 = vpack.c.b16 %v5358, %v5334
        %v7423 = vpack.c.b16 %v5359, %v5335
        %v7424 = vpack.c.b16 %v5360, %v5336
        %v7425 = vpack.c.b16 %v5361, %v5337
        %v7426 = vpack.c.b16 %v5362, %v5338
        %v7427 = vpack.c.b16 %v5363, %v5339
        %v7428 = vpack.c.b16 %v5364, %v5340
        %v7429 = vpack.c.b16 %v5365, %v5341
        %v7430 = vpack.c.b16 %v5366, %v5342
        %v7431 = vpack.c.b16 %v5367, %v5343
        %v7432 = vpack.c.b16 %v5368, %v5344
        %v7433 = vpack.c.b16 %v5369, %v5345
        %v7434 = vpack.c.b16 %v5370, %v5346
        %v7435 = vpack.c.b16 %v5371, %v5347
        %v7436 = vpack.c.b16 %v5372, %v5348
        %v7437 = vpack.c.b16 %v5397, %v5373
        %v7438 = vpack.c.b16 %v5398, %v5374
        %v7439 = vpack.c.b16 %v5399, %v5375
        %v7440 = vpack.c.b16 %v5400, %v5376
        %v7441 = vpack.c.b16 %v5401, %v5377
        %v7442 = vpack.c.b16 %v5402, %v5378
        %v7443 = vpack.c.b16 %v5403, %v5379
        %v7444 = vpack.c.b16 %v5404, %v5380
        %v7445 = vpack.c.b16 %v5405, %v5381
        %v7446 = vpack.c.b16 %v5406, %v5382
        %v7447 = vpack.c.b16 %v5407, %v5383
        %v7448 = vpack.c.b16 %v5408, %v5384
        %v7449 = vpack.c.b16 %v5409, %v5385
        %v7450 = vpack.c.b16 %v5410, %v5386
        %v7451 = vpack.c.b16 %v5411, %v5387
        %v7452 = vpack.c.b16 %v5412, %v5388
        %v7453 = vpack.c.b16 %v5413, %v5389
        %v7454 = vpack.c.b16 %v5414, %v5390
        %v7455 = vpack.c.b16 %v5415, %v5391
        %v7456 = vpack.c.b16 %v5416, %v5392
        %v7457 = vpack.c.b16 %v5417, %v5393
        %v7458 = vpack.c.b16 %v5418, %v5394
        %v7459 = vpack.c.b16 %v5419, %v5395
        %v7460 = vpack.c.b16 %v5420, %v5396
        %v7461 = vpack.c.b16 %v5445, %v5421
        %v7462 = vpack.c.b16 %v5446, %v5422
        %v7463 = vpack.c.b16 %v5447, %v5423
        %v7464 = vpack.c.b16 %v5448, %v5424
        %v7465 = vpack.c.b16 %v5449, %v5425
        %v7466 = vpack.c.b16 %v5450, %v5426
        %v7467 = vpack.c.b16 %v5451, %v5427
        %v7468 = vpack.c.b16 %v5452, %v5428
        %v7469 = vpack.c.b16 %v5453, %v5429
        %v7470 = vpack.c.b16 %v5454, %v5430
        %v7471 = vpack.c.b16 %v5455, %v5431
        %v7472 = vpack.c.b16 %v5456, %v5432
        %v7473 = vpack.c.b16 %v5457, %v5433
        %v7474 = vpack.c.b16 %v5458, %v5434
        %v7475 = vpack.c.b16 %v5459, %v5435
        %v7476 = vpack.c.b16 %v5460, %v5436
        %v7477 = vpack.c.b16 %v5461, %v5437
        %v7478 = vpack.c.b16 %v5462, %v5438
        %v7479 = vpack.c.b16 %v5463, %v5439
        %v7480 = vpack.c.b16 %v5464, %v5440
        %v7481 = vpack.c.b16 %v5465, %v5441
        %v7482 = vpack.c.b16 %v5466, %v5442
        %v7483 = vpack.c.b16 %v5467, %v5443
        %v7484 = vpack.c.b16 %v5468, %v5444
        %v7485 = vpack.c.b16 %v5493, %v5469
        %v7486 = vpack.c.b16 %v5494, %v5470
        %v7487 = vpack.c.b16 %v5495, %v5471
        %v7488 = vpack.c.b16 %v5496, %v5472
        %v7489 = vpack.c.b16 %v5497, %v5473
        %v7490 = vpack.c.b16 %v5498, %v5474
        %v7491 = vpack.c.b16 %v5499, %v5475
        %v7492 = vpack.c.b16 %v5500, %v5476
        %v7493 = vpack.c.b16 %v5501, %v5477
        %v7494 = vpack.c.b16 %v5502, %v5478
        %v7495 = vpack.c.b16 %v5503, %v5479
        %v7496 = vpack.c.b16 %v5504, %v5480
        %v7497 = vpack.c.b16 %v5505, %v5481
        %v7498 = vpack.c.b16 %v5506, %v5482
        %v7499 = vpack.c.b16 %v5507, %v5483
        %v7500 = vpack.c.b16 %v5508, %v5484
        %v7501 = vpack.c.b16 %v5509, %v5485
        %v7502 = vpack.c.b16 %v5510, %v5486
        %v7503 = vpack.c.b16 %v5511, %v5487
        %v7504 = vpack.c.b16 %v5512, %v5488
        %v7505 = vpack.c.b16 %v5513, %v5489
        %v7506 = vpack.c.b16 %v5514, %v5490
        %v7507 = vpack.c.b16 %v5515, %v5491
        %v7508 = vpack.c.b16 %v5516, %v5492
        %v7509 = vpack.c.b16 %v5541, %v5517
        %v7510 = vpack.c.b16 %v5542, %v5518
        %v7511 = vpack.c.b16 %v5543, %v5519
        %v7512 = vpack.c.b16 %v5544, %v5520
        %v7513 = vpack.c.b16 %v5545, %v5521
        %v7514 = vpack.c.b16 %v5546, %v5522
        %v7515 = vpack.c.b16 %v5547, %v5523
        %v7516 = vpack.c.b16 %v5548, %v5524
        %v7517 = vpack.c.b16 %v5549, %v5525
        %v7518 = vpack.c.b16 %v5550, %v5526
        %v7519 = vpack.c.b16 %v5551, %v5527
        %v7520 = vpack.c.b16 %v5552, %v5528
        %v7521 = vpack.c.b16 %v5553, %v5529
        %v7522 = vpack.c.b16 %v5554, %v5530
        %v7523 = vpack.c.b16 %v5555, %v5531
        %v7524 = vpack.c.b16 %v5556, %v5532
        %v7525 = vpack.c.b16 %v5557, %v5533
        %v7526 = vpack.c.b16 %v5558, %v5534
        %v7527 = vpack.c.b16 %v5559, %v5535
        %v7528 = vpack.c.b16 %v5560, %v5536
        %v7529 = vpack.c.b16 %v5561, %v5537
        %v7530 = vpack.c.b16 %v5562, %v5538
        %v7531 = vpack.c.b16 %v5563, %v5539
        %v7532 = vpack.c.b16 %v5564, %v5540
        %v7533 = vpack.c.b16 %v5589, %v5565
        %v7534 = vpack.c.b16 %v5590, %v5566
        %v7535 = vpack.c.b16 %v5591, %v5567
        %v7536 = vpack.c.b16 %v5592, %v5568
        %v7537 = vpack.c.b16 %v5593, %v5569
        %v7538 = vpack.c.b16 %v5594, %v5570
        %v7539 = vpack.c.b16 %v5595, %v5571
        %v7540 = vpack.c.b16 %v5596, %v5572
        %v7541 = vpack.c.b16 %v5597, %v5573
        %v7542 = vpack.c.b16 %v5598, %v5574
        %v7543 = vpack.c.b16 %v5599, %v5575
        %v7544 = vpack.c.b16 %v5600, %v5576
        %v7545 = vpack.c.b16 %v5601, %v5577
        %v7546 = vpack.c.b16 %v5602, %v5578
        %v7547 = vpack.c.b16 %v5603, %v5579
        %v7548 = vpack.c.b16 %v5604, %v5580
        %v7549 = vpack.c.b16 %v5605, %v5581
        %v7550 = vpack.c.b16 %v5606, %v5582
        %v7551 = vpack.c.b16 %v5607, %v5583
        %v7552 = vpack.c.b16 %v5608, %v5584
        %v7553 = vpack.c.b16 %v5609, %v5585
        %v7554 = vpack.c.b16 %v5610, %v5586
        %v7555 = vpack.c.b16 %v5611, %v5587
        %v7556 = vpack.c.b16 %v5612, %v5588
        %v7557 = vpack.c.b16 %v5637, %v5613
        %v7558 = vpack.c.b16 %v5638, %v5614
        %v7559 = vpack.c.b16 %v5639, %v5615
        %v7560 = vpack.c.b16 %v5640, %v5616
        %v7561 = vpack.c.b16 %v5641, %v5617
        %v7562 = vpack.c.b16 %v5642, %v5618
        %v7563 = vpack.c.b16 %v5643, %v5619
        %v7564 = vpack.c.b16 %v5644, %v5620
        %v7565 = vpack.c.b16 %v5645, %v5621
        %v7566 = vpack.c.b16 %v5646, %v5622
        %v7567 = vpack.c.b16 %v5647, %v5623
        %v7568 = vpack.c.b16 %v5648, %v5624
        %v7569 = vpack.c.b16 %v5649, %v5625
        %v7570 = vpack.c.b16 %v5650, %v5626
        %v7571 = vpack.c.b16 %v5651, %v5627
        %v7572 = vpack.c.b16 %v5652, %v5628
        %v7573 = vpack.c.b16 %v5653, %v5629
        %v7574 = vpack.c.b16 %v5654, %v5630
        %v7575 = vpack.c.b16 %v5655, %v5631
        %v7576 = vpack.c.b16 %v5656, %v5632
        %v7577 = vpack.c.b16 %v5657, %v5633
        %v7578 = vpack.c.b16 %v5658, %v5634
        %v7579 = vpack.c.b16 %v5659, %v5635
        %v7580 = vpack.c.b16 %v5660, %v5636
        %v7581 = vpack.c.b16 %v5685, %v5661
        %v7582 = vpack.c.b16 %v5686, %v5662
        %v7583 = vpack.c.b16 %v5687, %v5663
        %v7584 = vpack.c.b16 %v5688, %v5664
        %v7585 = vpack.c.b16 %v5689, %v5665
        %v7586 = vpack.c.b16 %v5690, %v5666
        %v7587 = vpack.c.b16 %v5691, %v5667
        %v7588 = vpack.c.b16 %v5692, %v5668
        %v7589 = vpack.c.b16 %v5693, %v5669
        %v7590 = vpack.c.b16 %v5694, %v5670
        %v7591 = vpack.c.b16 %v5695, %v5671
        %v7592 = vpack.c.b16 %v5696, %v5672
        %v7593 = vpack.c.b16 %v5697, %v5673
        %v7594 = vpack.c.b16 %v5698, %v5674
        %v7595 = vpack.c.b16 %v5699, %v5675
        %v7596 = vpack.c.b16 %v5700, %v5676
        %v7597 = vpack.c.b16 %v5701, %v5677
        %v7598 = vpack.c.b16 %v5702, %v5678
        %v7599 = vpack.c.b16 %v5703, %v5679
        %v7600 = vpack.c.b16 %v5704, %v5680
        %v7601 = vpack.c.b16 %v5705, %v5681
        %v7602 = vpack.c.b16 %v5706, %v5682
        %v7603 = vpack.c.b16 %v5707, %v5683
        %v7604 = vpack.c.b16 %v5708, %v5684
        %v7605 = vpack.c.b16 %v5733, %v5709
        %v7606 = vpack.c.b16 %v5734, %v5710
        %v7607 = vpack.c.b16 %v5735, %v5711
        %v7608 = vpack.c.b16 %v5736, %v5712
        %v7609 = vpack.c.b16 %v5737, %v5713
        %v7610 = vpack.c.b16 %v5738, %v5714
        %v7611 = vpack.c.b16 %v5739, %v5715
        %v7612 = vpack.c.b16 %v5740, %v5716
        %v7613 = vpack.c.b16 %v5741, %v5717
        %v7614 = vpack.c.b16 %v5742, %v5718
        %v7615 = vpack.c.b16 %v5743, %v5719
        %v7616 = vpack.c.b16 %v5744, %v5720
        %v7617 = vpack.c.b16 %v5745, %v5721
        %v7618 = vpack.c.b16 %v5746, %v5722
        %v7619 = vpack.c.b16 %v5747, %v5723
        %v7620 = vpack.c.b16 %v5748, %v5724
        %v7621 = vpack.c.b16 %v5749, %v5725
        %v7622 = vpack.c.b16 %v5750, %v5726
        %v7623 = vpack.c.b16 %v5751, %v5727
        %v7624 = vpack.c.b16 %v5752, %v5728
        %v7625 = vpack.c.b16 %v5753, %v5729
        %v7626 = vpack.c.b16 %v5754, %v5730
        %v7627 = vpack.c.b16 %v5755, %v5731
        %v7628 = vpack.c.b16 %v5756, %v5732
        %v7629 = vpack.c.b16 %v5781, %v5757
        %v7630 = vpack.c.b16 %v5782, %v5758
        %v7631 = vpack.c.b16 %v5783, %v5759
        %v7632 = vpack.c.b16 %v5784, %v5760
        %v7633 = vpack.c.b16 %v5785, %v5761
        %v7634 = vpack.c.b16 %v5786, %v5762
        %v7635 = vpack.c.b16 %v5787, %v5763
        %v7636 = vpack.c.b16 %v5788, %v5764
        %v7637 = vpack.c.b16 %v5789, %v5765
        %v7638 = vpack.c.b16 %v5790, %v5766
        %v7639 = vpack.c.b16 %v5791, %v5767
        %v7640 = vpack.c.b16 %v5792, %v5768
        %v7641 = vpack.c.b16 %v5793, %v5769
        %v7642 = vpack.c.b16 %v5794, %v5770
        %v7643 = vpack.c.b16 %v5795, %v5771
        %v7644 = vpack.c.b16 %v5796, %v5772
        %v7645 = vpack.c.b16 %v5797, %v5773
        %v7646 = vpack.c.b16 %v5798, %v5774
        %v7647 = vpack.c.b16 %v5799, %v5775
        %v7648 = vpack.c.b16 %v5800, %v5776
        %v7649 = vpack.c.b16 %v5801, %v5777
        %v7650 = vpack.c.b16 %v5802, %v5778
        %v7651 = vpack.c.b16 %v5803, %v5779
        %v7652 = vpack.c.b16 %v5804, %v5780
        %v7653 = vpack.c.b16 %v5829, %v5805
        %v7654 = vpack.c.b16 %v5830, %v5806
        %v7655 = vpack.c.b16 %v5831, %v5807
        %v7656 = vpack.c.b16 %v5832, %v5808
        %v7657 = vpack.c.b16 %v5833, %v5809
        %v7658 = vpack.c.b16 %v5834, %v5810
        %v7659 = vpack.c.b16 %v5835, %v5811
        %v7660 = vpack.c.b16 %v5836, %v5812
        %v7661 = vpack.c.b16 %v5837, %v5813
        %v7662 = vpack.c.b16 %v5838, %v5814
        %v7663 = vpack.c.b16 %v5839, %v5815
        %v7664 = vpack.c.b16 %v5840, %v5816
        %v7665 = vpack.c.b16 %v5841, %v5817
        %v7666 = vpack.c.b16 %v5842, %v5818
        %v7667 = vpack.c.b16 %v5843, %v5819
        %v7668 = vpack.c.b16 %v5844, %v5820
        %v7669 = vpack.c.b16 %v5845, %v5821
        %v7670 = vpack.c.b16 %v5846, %v5822
        %v7671 = vpack.c.b16 %v5847, %v5823
        %v7672 = vpack.c.b16 %v5848, %v5824
        %v7673 = vpack.c.b16 %v5849, %v5825
        %v7674 = vpack.c.b16 %v5850, %v5826
        %v7675 = vpack.c.b16 %v5851, %v5827
        %v7676 = vpack.c.b16 %v5852, %v5828
        %v7677 = vpack.c.b16 %v5877, %v5853
        %v7678 = vpack.c.b16 %v5878, %v5854
        %v7679 = vpack.c.b16 %v5879, %v5855
        %v7680 = vpack.c.b16 %v5880, %v5856
        %v7681 = vpack.c.b16 %v5881, %v5857
        %v7682 = vpack.c.b16 %v5882, %v5858
        %v7683 = vpack.c.b16 %v5883, %v5859
        %v7684 = vpack.c.b16 %v5884, %v5860
        %v7685 = vpack.c.b16 %v5885, %v5861
        %v7686 = vpack.c.b16 %v5886, %v5862
        %v7687 = vpack.c.b16 %v5887, %v5863
        %v7688 = vpack.c.b16 %v5888, %v5864
        %v7689 = vpack.c.b16 %v5889, %v5865
        %v7690 = vpack.c.b16 %v5890, %v5866
        %v7691 = vpack.c.b16 %v5891, %v5867
        %v7692 = vpack.c.b16 %v5892, %v5868
        %v7693 = vpack.c.b16 %v5893, %v5869
        %v7694 = vpack.c.b16 %v5894, %v5870
        %v7695 = vpack.c.b16 %v5895, %v5871
        %v7696 = vpack.c.b16 %v5896, %v5872
        %v7697 = vpack.c.b16 %v5897, %v5873
        %v7698 = vpack.c.b16 %v5898, %v5874
        %v7699 = vpack.c.b16 %v5899, %v5875
        %v7700 = vpack.c.b16 %v5900, %v5876
        %v7701 = vpack.c.b16 %v5925, %v5901
        %v7702 = vpack.c.b16 %v5926, %v5902
        %v7703 = vpack.c.b16 %v5927, %v5903
        %v7704 = vpack.c.b16 %v5928, %v5904
        %v7705 = vpack.c.b16 %v5929, %v5905
        %v7706 = vpack.c.b16 %v5930, %v5906
        %v7707 = vpack.c.b16 %v5931, %v5907
        %v7708 = vpack.c.b16 %v5932, %v5908
        %v7709 = vpack.c.b16 %v5933, %v5909
        %v7710 = vpack.c.b16 %v5934, %v5910
        %v7711 = vpack.c.b16 %v5935, %v5911
        %v7712 = vpack.c.b16 %v5936, %v5912
        %v7713 = vpack.c.b16 %v5937, %v5913
        %v7714 = vpack.c.b16 %v5938, %v5914
        %v7715 = vpack.c.b16 %v5939, %v5915
        %v7716 = vpack.c.b16 %v5940, %v5916
        %v7717 = vpack.c.b16 %v5941, %v5917
        %v7718 = vpack.c.b16 %v5942, %v5918
        %v7719 = vpack.c.b16 %v5943, %v5919
        %v7720 = vpack.c.b16 %v5944, %v5920
        %v7721 = vpack.c.b16 %v5945, %v5921
        %v7722 = vpack.c.b16 %v5946, %v5922
        %v7723 = vpack.c.b16 %v5947, %v5923
        %v7724 = vpack.c.b16 %v5948, %v5924
        %v7725 = vpack.c.b16 %v5973, %v5949
        %v7726 = vpack.c.b16 %v5974, %v5950
        %v7727 = vpack.c.b16 %v5975, %v5951
        %v7728 = vpack.c.b16 %v5976, %v5952
        %v7729 = vpack.c.b16 %v5977, %v5953
        %v7730 = vpack.c.b16 %v5978, %v5954
        %v7731 = vpack.c.b16 %v5979, %v5955
        %v7732 = vpack.c.b16 %v5980, %v5956
        %v7733 = vpack.c.b16 %v5981, %v5957
        %v7734 = vpack.c.b16 %v5982, %v5958
        %v7735 = vpack.c.b16 %v5983, %v5959
        %v7736 = vpack.c.b16 %v5984, %v5960
        %v7737 = vpack.c.b16 %v5985, %v5961
        %v7738 = vpack.c.b16 %v5986, %v5962
        %v7739 = vpack.c.b16 %v5987, %v5963
        %v7740 = vpack.c.b16 %v5988, %v5964
        %v7741 = vpack.c.b16 %v5989, %v5965
        %v7742 = vpack.c.b16 %v5990, %v5966
        %v7743 = vpack.c.b16 %v5991, %v5967
        %v7744 = vpack.c.b16 %v5992, %v5968
        %v7745 = vpack.c.b16 %v5993, %v5969
        %v7746 = vpack.c.b16 %v5994, %v5970
        %v7747 = vpack.c.b16 %v5995, %v5971
        %v7748 = vpack.c.b16 %v5996, %v5972
        %v7749 = vpack.c.b16 %v6021, %v5997
        %v7750 = vpack.c.b16 %v6022, %v5998
        %v7751 = vpack.c.b16 %v6023, %v5999
        %v7752 = vpack.c.b16 %v6024, %v6000
        %v7753 = vpack.c.b16 %v6025, %v6001
        %v7754 = vpack.c.b16 %v6026, %v6002
        %v7755 = vpack.c.b16 %v6027, %v6003
        %v7756 = vpack.c.b16 %v6028, %v6004
        %v7757 = vpack.c.b16 %v6029, %v6005
        %v7758 = vpack.c.b16 %v6030, %v6006
        %v7759 = vpack.c.b16 %v6031, %v6007
        %v7760 = vpack.c.b16 %v6032, %v6008
        %v7761 = vpack.c.b16 %v6033, %v6009
        %v7762 = vpack.c.b16 %v6034, %v6010
        %v7763 = vpack.c.b16 %v6035, %v6011
        %v7764 = vpack.c.b16 %v6036, %v6012
        %v7765 = vpack.c.b16 %v6037, %v6013
        %v7766 = vpack.c.b16 %v6038, %v6014
        %v7767 = vpack.c.b16 %v6039, %v6015
        %v7768 = vpack.c.b16 %v6040, %v6016
        %v7769 = vpack.c.b16 %v6041, %v6017
        %v7770 = vpack.c.b16 %v6042, %v6018
        %v7771 = vpack.c.b16 %v6043, %v6019
        %v7772 = vpack.c.b16 %v6044, %v6020
        %v7773 = vpack.c.b16 %v6069, %v6045
        %v7774 = vpack.c.b16 %v6070, %v6046
        %v7775 = vpack.c.b16 %v6071, %v6047
        %v7776 = vpack.c.b16 %v6072, %v6048
        %v7777 = vpack.c.b16 %v6073, %v6049
        %v7778 = vpack.c.b16 %v6074, %v6050
        %v7779 = vpack.c.b16 %v6075, %v6051
        %v7780 = vpack.c.b16 %v6076, %v6052
        %v7781 = vpack.c.b16 %v6077, %v6053
        %v7782 = vpack.c.b16 %v6078, %v6054
        %v7783 = vpack.c.b16 %v6079, %v6055
        %v7784 = vpack.c.b16 %v6080, %v6056
        %v7785 = vpack.c.b16 %v6081, %v6057
        %v7786 = vpack.c.b16 %v6082, %v6058
        %v7787 = vpack.c.b16 %v6083, %v6059
        %v7788 = vpack.c.b16 %v6084, %v6060
        %v7789 = vpack.c.b16 %v6085, %v6061
        %v7790 = vpack.c.b16 %v6086, %v6062
        %v7791 = vpack.c.b16 %v6087, %v6063
        %v7792 = vpack.c.b16 %v6088, %v6064
        %v7793 = vpack.c.b16 %v6089, %v6065
        %v7794 = vpack.c.b16 %v6090, %v6066
        %v7795 = vpack.c.b16 %v6091, %v6067
        %v7796 = vpack.c.b16 %v6092, %v6068
        %v7797 = vpack.c.b16 %v6117, %v6093
        %v7798 = vpack.c.b16 %v6118, %v6094
        %v7799 = vpack.c.b16 %v6119, %v6095
        %v7800 = vpack.c.b16 %v6120, %v6096
        %v7801 = vpack.c.b16 %v6121, %v6097
        %v7802 = vpack.c.b16 %v6122, %v6098
        %v7803 = vpack.c.b16 %v6123, %v6099
        %v7804 = vpack.c.b16 %v6124, %v6100
        %v7805 = vpack.c.b16 %v6125, %v6101
        %v7806 = vpack.c.b16 %v6126, %v6102
        %v7807 = vpack.c.b16 %v6127, %v6103
        %v7808 = vpack.c.b16 %v6128, %v6104
        %v7809 = vpack.c.b16 %v6129, %v6105
        %v7810 = vpack.c.b16 %v6130, %v6106
        %v7811 = vpack.c.b16 %v6131, %v6107
        %v7812 = vpack.c.b16 %v6132, %v6108
        %v7813 = vpack.c.b16 %v6133, %v6109
        %v7814 = vpack.c.b16 %v6134, %v6110
        %v7815 = vpack.c.b16 %v6135, %v6111
        %v7816 = vpack.c.b16 %v6136, %v6112
        %v7817 = vpack.c.b16 %v6137, %v6113
        %v7818 = vpack.c.b16 %v6138, %v6114
        %v7819 = vpack.c.b16 %v6139, %v6115
        %v7820 = vpack.c.b16 %v6140, %v6116
        %v7821 = vpack.c.b16 %v6165, %v6141
        %v7822 = vpack.c.b16 %v6166, %v6142
        %v7823 = vpack.c.b16 %v6167, %v6143
        %v7824 = vpack.c.b16 %v6168, %v6144
        %v7825 = vpack.c.b16 %v6169, %v6145
        %v7826 = vpack.c.b16 %v6170, %v6146
        %v7827 = vpack.c.b16 %v6171, %v6147
        %v7828 = vpack.c.b16 %v6172, %v6148
        %v7829 = vpack.c.b16 %v6173, %v6149
        %v7830 = vpack.c.b16 %v6174, %v6150
        %v7831 = vpack.c.b16 %v6175, %v6151
        %v7832 = vpack.c.b16 %v6176, %v6152
        %v7833 = vpack.c.b16 %v6177, %v6153
        %v7834 = vpack.c.b16 %v6178, %v6154
        %v7835 = vpack.c.b16 %v6179, %v6155
        %v7836 = vpack.c.b16 %v6180, %v6156
        %v7837 = vpack.c.b16 %v6181, %v6157
        %v7838 = vpack.c.b16 %v6182, %v6158
        %v7839 = vpack.c.b16 %v6183, %v6159
        %v7840 = vpack.c.b16 %v6184, %v6160
        %v7841 = vpack.c.b16 %v6185, %v6161
        %v7842 = vpack.c.b16 %v6186, %v6162
        %v7843 = vpack.c.b16 %v6187, %v6163
        %v7844 = vpack.c.b16 %v6188, %v6164
        %v7845 = vpack.c.b16 %v6213, %v6189
        %v7846 = vpack.c.b16 %v6214, %v6190
        %v7847 = vpack.c.b16 %v6215, %v6191
        %v7848 = vpack.c.b16 %v6216, %v6192
        %v7849 = vpack.c.b16 %v6217, %v6193
        %v7850 = vpack.c.b16 %v6218, %v6194
        %v7851 = vpack.c.b16 %v6219, %v6195
        %v7852 = vpack.c.b16 %v6220, %v6196
        %v7853 = vpack.c.b16 %v6221, %v6197
        %v7854 = vpack.c.b16 %v6222, %v6198
        %v7855 = vpack.c.b16 %v6223, %v6199
        %v7856 = vpack.c.b16 %v6224, %v6200
        %v7857 = vpack.c.b16 %v6225, %v6201
        %v7858 = vpack.c.b16 %v6226, %v6202
        %v7859 = vpack.c.b16 %v6227, %v6203
        %v7860 = vpack.c.b16 %v6228, %v6204
        %v7861 = vpack.c.b16 %v6229, %v6205
        %v7862 = vpack.c.b16 %v6230, %v6206
        %v7863 = vpack.c.b16 %v6231, %v6207
        %v7864 = vpack.c.b16 %v6232, %v6208
        %v7865 = vpack.c.b16 %v6233, %v6209
        %v7866 = vpack.c.b16 %v6234, %v6210
        %v7867 = vpack.c.b16 %v6235, %v6211
        %v7868 = vpack.c.b16 %v6236, %v6212
        %v7869 = vpack.c.b16 %v6261, %v6237
        %v7870 = vpack.c.b16 %v6262, %v6238
        %v7871 = vpack.c.b16 %v6263, %v6239
        %v7872 = vpack.c.b16 %v6264, %v6240
        %v7873 = vpack.c.b16 %v6265, %v6241
        %v7874 = vpack.c.b16 %v6266, %v6242
        %v7875 = vpack.c.b16 %v6267, %v6243
        %v7876 = vpack.c.b16 %v6268, %v6244
        %v7877 = vpack.c.b16 %v6269, %v6245
        %v7878 = vpack.c.b16 %v6270, %v6246
        %v7879 = vpack.c.b16 %v6271, %v6247
        %v7880 = vpack.c.b16 %v6272, %v6248
        %v7881 = vpack.c.b16 %v6273, %v6249
        %v7882 = vpack.c.b16 %v6274, %v6250
        %v7883 = vpack.c.b16 %v6275, %v6251
        %v7884 = vpack.c.b16 %v6276, %v6252
        %v7885 = vpack.c.b16 %v6277, %v6253
        %v7886 = vpack.c.b16 %v6278, %v6254
        %v7887 = vpack.c.b16 %v6279, %v6255
        %v7888 = vpack.c.b16 %v6280, %v6256
        %v7889 = vpack.c.b16 %v6281, %v6257
        %v7890 = vpack.c.b16 %v6282, %v6258
        %v7891 = vpack.c.b16 %v6283, %v6259
        %v7892 = vpack.c.b16 %v6284, %v6260
        %v7893 = vpack.c.b16 %v6309, %v6285
        %v7894 = vpack.c.b16 %v6310, %v6286
        %v7895 = vpack.c.b16 %v6311, %v6287
        %v7896 = vpack.c.b16 %v6312, %v6288
        %v7897 = vpack.c.b16 %v6313, %v6289
        %v7898 = vpack.c.b16 %v6314, %v6290
        %v7899 = vpack.c.b16 %v6315, %v6291
        %v7900 = vpack.c.b16 %v6316, %v6292
        %v7901 = vpack.c.b16 %v6317, %v6293
        %v7902 = vpack.c.b16 %v6318, %v6294
        %v7903 = vpack.c.b16 %v6319, %v6295
        %v7904 = vpack.c.b16 %v6320, %v6296
        %v7905 = vpack.c.b16 %v6321, %v6297
        %v7906 = vpack.c.b16 %v6322, %v6298
        %v7907 = vpack.c.b16 %v6323, %v6299
        %v7908 = vpack.c.b16 %v6324, %v6300
        %v7909 = vpack.c.b16 %v6325, %v6301
        %v7910 = vpack.c.b16 %v6326, %v6302
        %v7911 = vpack.c.b16 %v6327, %v6303
        %v7912 = vpack.c.b16 %v6328, %v6304
        %v7913 = vpack.c.b16 %v6329, %v6305
        %v7914 = vpack.c.b16 %v6330, %v6306
        %v7915 = vpack.c.b16 %v6331, %v6307
        %v7916 = vpack.c.b16 %v6332, %v6308
        %v7917 = vpack.c.b16 %v6357, %v6333
        %v7918 = vpack.c.b16 %v6358, %v6334
        %v7919 = vpack.c.b16 %v6359, %v6335
        %v7920 = vpack.c.b16 %v6360, %v6336
        %v7921 = vpack.c.b16 %v6361, %v6337
        %v7922 = vpack.c.b16 %v6362, %v6338
        %v7923 = vpack.c.b16 %v6363, %v6339
        %v7924 = vpack.c.b16 %v6364, %v6340
        %v7925 = vpack.c.b16 %v6365, %v6341
        %v7926 = vpack.c.b16 %v6366, %v6342
        %v7927 = vpack.c.b16 %v6367, %v6343
        %v7928 = vpack.c.b16 %v6368, %v6344
        %v7929 = vpack.c.b16 %v6369, %v6345
        %v7930 = vpack.c.b16 %v6370, %v6346
        %v7931 = vpack.c.b16 %v6371, %v6347
        %v7932 = vpack.c.b16 %v6372, %v6348
        %v7933 = vpack.c.b16 %v6373, %v6349
        %v7934 = vpack.c.b16 %v6374, %v6350
        %v7935 = vpack.c.b16 %v6375, %v6351
        %v7936 = vpack.c.b16 %v6376, %v6352
        %v7937 = vpack.c.b16 %v6377, %v6353
        %v7938 = vpack.c.b16 %v6378, %v6354
        %v7939 = vpack.c.b16 %v6379, %v6355
        %v7940 = vpack.c.b16 %v6380, %v6356
        %v7941 = vpack.c.b16 %v6405, %v6381
        %v7942 = vpack.c.b16 %v6406, %v6382
        %v7943 = vpack.c.b16 %v6407, %v6383
        %v7944 = vpack.c.b16 %v6408, %v6384
        %v7945 = vpack.c.b16 %v6409, %v6385
        %v7946 = vpack.c.b16 %v6410, %v6386
        %v7947 = vpack.c.b16 %v6411, %v6387
        %v7948 = vpack.c.b16 %v6412, %v6388
        %v7949 = vpack.c.b16 %v6413, %v6389
        %v7950 = vpack.c.b16 %v6414, %v6390
        %v7951 = vpack.c.b16 %v6415, %v6391
        %v7952 = vpack.c.b16 %v6416, %v6392
        %v7953 = vpack.c.b16 %v6417, %v6393
        %v7954 = vpack.c.b16 %v6418, %v6394
        %v7955 = vpack.c.b16 %v6419, %v6395
        %v7956 = vpack.c.b16 %v6420, %v6396
        %v7957 = vpack.c.b16 %v6421, %v6397
        %v7958 = vpack.c.b16 %v6422, %v6398
        %v7959 = vpack.c.b16 %v6423, %v6399
        %v7960 = vpack.c.b16 %v6424, %v6400
        %v7961 = vpack.c.b16 %v6425, %v6401
        %v7962 = vpack.c.b16 %v6426, %v6402
        %v7963 = vpack.c.b16 %v6427, %v6403
        %v7964 = vpack.c.b16 %v6428, %v6404
        %9501 = vmatprep.subr.bf16.mxu0 %v6598
        %9502 = vmatpush1.bf16.msra.mxu0 %v6597
        %9503 = vmatprep.subr.bf16.mxu0 %v6574
        %9504 = vmatpush1.bf16.msra.mxu0 %v6573
        %9505 = vmatprep.subr.bf16.mxu0 %v6550
        %9506 = vmatpush1.bf16.msra.mxu0 %v6549
        %9507 = vmatprep.subr.bf16.mxu0 %v6526
        %9508 = vmatpush1.bf16.msra.mxu0 %v6525
        %9509 = vmatprep.subr.bf16.mxu0 %v6502
        %9510 = vmatpush1.bf16.msra.mxu0 %v6501
        %9511 = vmatprep.subr.bf16.mxu0 %v6478
        %9512 = vmatpush1.bf16.msra.mxu0 %v6477
        %9513 = vmatprep.subr.bf16.mxu0 %v6454
        %9514 = vmatpush1.bf16.msra.mxu0 %v6453
        %9515 = vmatprep.subr.bf16.mxu0 %v6430
        %9516 = vmatpush1.bf16.msra.mxu0 %v6429
        %9517 = vmatprep.subr.bf16.mxu0 %v6790
        %9518 = vmatpush2.bf16.msra.mxu0 %v6789
        %9519 = vmatprep.subr.bf16.mxu0 %v6766
        %9520 = vmatpush2.bf16.msra.mxu0 %v6765
        %9521 = vmatprep.subr.bf16.mxu0 %v6742
        %9522 = vmatpush2.bf16.msra.mxu0 %v6741
        %9523 = vmatprep.subr.bf16.mxu0 %v6718
        %9524 = vmatpush2.bf16.msra.mxu0 %v6717
        %9525 = vmatprep.subr.bf16.mxu0 %v6694
        %9526 = vmatpush2.bf16.msra.mxu0 %v6693
        %9527 = vmatprep.subr.bf16.mxu0 %v6670
        %9528 = vmatpush2.bf16.msra.mxu0 %v6669
        %9529 = vmatprep.subr.bf16.mxu0 %v6646
        %9530 = vmatpush2.bf16.msra.mxu0 %v6645
        %9531 = vmatprep.subr.bf16.mxu0 %v6622
        %9532 = vmatpush2.bf16.msra.mxu0 %v6621
        %9533 = vmatprep.mubr.bf16.mxu0 %v278
        %9534 = vmatmul.mubr.bf16.gmra.mxu0 %v277
        %v9535 = vpop.f32.mrf.mxu0
        %v9536 = vadd.f32 0.0, %v9535
        %v9537 = vpop.f32.mrf.mxu0
        %v9538 = vadd.f32 0.0, %v9537
        %v9539 = vpop.f32.mrf.mxu0
        %v9540 = vpop.f32.mrf.mxu0
        %9541 = vdwg.mxu0
        %9542 = vmatprep.subr.bf16.mxu0 %v6982
        %9543 = vmatpush1.bf16.msra.mxu0 %v6981
        %9544 = vmatprep.subr.bf16.mxu0 %v6958
        %9545 = vmatpush1.bf16.msra.mxu0 %v6957
        %9546 = vmatprep.subr.bf16.mxu0 %v6934
        %9547 = vmatpush1.bf16.msra.mxu0 %v6933
        %9548 = vmatprep.subr.bf16.mxu0 %v6910
        %9549 = vmatpush1.bf16.msra.mxu0 %v6909
        %9550 = vmatprep.subr.bf16.mxu0 %v6886
        %9551 = vmatpush1.bf16.msra.mxu0 %v6885
        %9552 = vmatprep.subr.bf16.mxu0 %v6862
        %9553 = vmatpush1.bf16.msra.mxu0 %v6861
        %9554 = vmatprep.subr.bf16.mxu0 %v6838
        %9555 = vmatpush1.bf16.msra.mxu0 %v6837
        %9556 = vmatprep.subr.bf16.mxu0 %v6814
        %9557 = vmatpush1.bf16.msra.mxu0 %v6813
        %9558 = vmatprep.subr.bf16.mxu0 %v7174
        %9559 = vmatpush2.bf16.msra.mxu0 %v7173
        %9560 = vmatprep.subr.bf16.mxu0 %v7150
        %9561 = vmatpush2.bf16.msra.mxu0 %v7149
        %9562 = vmatprep.subr.bf16.mxu0 %v7126
        %9563 = vmatpush2.bf16.msra.mxu0 %v7125
        %9564 = vmatprep.subr.bf16.mxu0 %v7102
        %9565 = vmatpush2.bf16.msra.mxu0 %v7101
        %9566 = vmatprep.subr.bf16.mxu0 %v7078
        %9567 = vmatpush2.bf16.msra.mxu0 %v7077
        %9568 = vmatprep.subr.bf16.mxu0 %v7054
        %9569 = vmatpush2.bf16.msra.mxu0 %v7053
        %9570 = vmatprep.subr.bf16.mxu0 %v7030
        %9571 = vmatpush2.bf16.msra.mxu0 %v7029
        %9572 = vmatprep.subr.bf16.mxu0 %v7006
        %9573 = vmatpush2.bf16.msra.mxu0 %v7005
        %9574 = vmatprep.mubr.bf16.mxu0 %v280
        %9575 = vmatmul.mubr.bf16.gmra.mxu0 %v279
        %v9576 = vpop.f32.mrf.mxu0
        %v9577 = vadd.f32 %v9536, %v9576
        %v9578 = vpop.f32.mrf.mxu0
        %v9579 = vadd.f32 %v9538, %v9578
        %v9580 = vpop.f32.mrf.mxu0
        %v9581 = vpop.f32.mrf.mxu0
        %9582 = vdwg.mxu0
        %9583 = vmatprep.subr.bf16.mxu0 %v7366
        %9584 = vmatpush1.bf16.msra.mxu0 %v7365
        %9585 = vmatprep.subr.bf16.mxu0 %v7342
        %9586 = vmatpush1.bf16.msra.mxu0 %v7341
        %9587 = vmatprep.subr.bf16.mxu0 %v7318
        %9588 = vmatpush1.bf16.msra.mxu0 %v7317
        %9589 = vmatprep.subr.bf16.mxu0 %v7294
        %9590 = vmatpush1.bf16.msra.mxu0 %v7293
        %9591 = vmatprep.subr.bf16.mxu0 %v7270
        %9592 = vmatpush1.bf16.msra.mxu0 %v7269
        %9593 = vmatprep.subr.bf16.mxu0 %v7246
        %9594 = vmatpush1.bf16.msra.mxu0 %v7245
        %9595 = vmatprep.subr.bf16.mxu0 %v7222
        %9596 = vmatpush1.bf16.msra.mxu0 %v7221
        %9597 = vmatprep.subr.bf16.mxu0 %v7198
        %9598 = vmatpush1.bf16.msra.mxu0 %v7197
        %9599 = vmatprep.subr.bf16.mxu0 %v7558
        %9600 = vmatpush2.bf16.msra.mxu0 %v7557
        %9601 = vmatprep.subr.bf16.mxu0 %v7534
        %9602 = vmatpush2.bf16.msra.mxu0 %v7533
        %9603 = vmatprep.subr.bf16.mxu0 %v7510
        %9604 = vmatpush2.bf16.msra.mxu0 %v7509
        %9605 = vmatprep.subr.bf16.mxu0 %v7486
        %9606 = vmatpush2.bf16.msra.mxu0 %v7485
        %9607 = vmatprep.subr.bf16.mxu0 %v7462
        %9608 = vmatpush2.bf16.msra.mxu0 %v7461
        %9609 = vmatprep.subr.bf16.mxu0 %v7438
        %9610 = vmatpush2.bf16.msra.mxu0 %v7437
        %9611 = vmatprep.subr.bf16.mxu0 %v7414
        %9612 = vmatpush2.bf16.msra.mxu0 %v7413
        %9613 = vmatprep.subr.bf16.mxu0 %v7390
        %9614 = vmatpush2.bf16.msra.mxu0 %v7389
        %9615 = vmatprep.mubr.bf16.mxu0 %v282
        %9616 = vmatmul.mubr.bf16.gmra.mxu0 %v281
        %v9617 = vpop.f32.mrf.mxu0
        %v9618 = vadd.f32 %v9577, %v9617
        %v9619 = vpop.f32.mrf.mxu0
        %v9620 = vadd.f32 %v9579, %v9619
        %v9621 = vpop.f32.mrf.mxu0
        %v9622 = vpop.f32.mrf.mxu0
        %9623 = vdwg.mxu0
        %9624 = vmatprep.subr.bf16.mxu0 %v7750
        %9625 = vmatpush1.bf16.msra.mxu0 %v7749
        %9626 = vmatprep.subr.bf16.mxu0 %v7726
        %9627 = vmatpush1.bf16.msra.mxu0 %v7725
        %9628 = vmatprep.subr.bf16.mxu0 %v7702
        %9629 = vmatpush1.bf16.msra.mxu0 %v7701
        %9630 = vmatprep.subr.bf16.mxu0 %v7678
        %9631 = vmatpush1.bf16.msra.mxu0 %v7677
        %9632 = vmatprep.subr.bf16.mxu0 %v7654
        %9633 = vmatpush1.bf16.msra.mxu0 %v7653
        %9634 = vmatprep.subr.bf16.mxu0 %v7630
        %9635 = vmatpush1.bf16.msra.mxu0 %v7629
        %9636 = vmatprep.subr.bf16.mxu0 %v7606
        %9637 = vmatpush1.bf16.msra.mxu0 %v7605
        %9638 = vmatprep.subr.bf16.mxu0 %v7582
        %9639 = vmatpush1.bf16.msra.mxu0 %v7581
        %9640 = vmatprep.subr.bf16.mxu0 %v7942
        %9641 = vmatpush2.bf16.msra.mxu0 %v7941
        %9642 = vmatprep.subr.bf16.mxu0 %v7918
        %9643 = vmatpush2.bf16.msra.mxu0 %v7917
        %9644 = vmatprep.subr.bf16.mxu0 %v7894
        %9645 = vmatpush2.bf16.msra.mxu0 %v7893
        %9646 = vmatprep.subr.bf16.mxu0 %v7870
        %9647 = vmatpush2.bf16.msra.mxu0 %v7869
        %9648 = vmatprep.subr.bf16.mxu0 %v7846
        %9649 = vmatpush2.bf16.msra.mxu0 %v7845
        %9650 = vmatprep.subr.bf16.mxu0 %v7822
        %9651 = vmatpush2.bf16.msra.mxu0 %v7821
        %9652 = vmatprep.subr.bf16.mxu0 %v7798
        %9653 = vmatpush2.bf16.msra.mxu0 %v7797
        %9654 = vmatprep.subr.bf16.mxu0 %v7774
        %9655 = vmatpush2.bf16.msra.mxu0 %v7773
        %9656 = vmatprep.mubr.bf16.mxu0 %v284
        %9657 = vmatmul.mubr.bf16.gmra.mxu0 %v283
        %v9658 = vpop.f32.mrf.mxu0
        %v9659 = vadd.f32 %v9618, %v9658
        %v9660 = vpop.f32.mrf.mxu0
        %v9661 = vadd.f32 %v9620, %v9660
        %v9662 = vpop.f32.mrf.mxu0
        %v9663 = vpop.f32.mrf.mxu0
        %9664 = vdwg.mxu0
        %9665 = vmatprep.subr.bf16.mxu0 %v6600
        %9666 = vmatpush1.bf16.msra.mxu0 %v6599
        %9667 = vmatprep.subr.bf16.mxu0 %v6576
        %9668 = vmatpush1.bf16.msra.mxu0 %v6575
        %9669 = vmatprep.subr.bf16.mxu0 %v6552
        %9670 = vmatpush1.bf16.msra.mxu0 %v6551
        %9671 = vmatprep.subr.bf16.mxu0 %v6528
        %9672 = vmatpush1.bf16.msra.mxu0 %v6527
        %9673 = vmatprep.subr.bf16.mxu0 %v6504
        %9674 = vmatpush1.bf16.msra.mxu0 %v6503
        %9675 = vmatprep.subr.bf16.mxu0 %v6480
        %9676 = vmatpush1.bf16.msra.mxu0 %v6479
        %9677 = vmatprep.subr.bf16.mxu0 %v6456
        %9678 = vmatpush1.bf16.msra.mxu0 %v6455
        %9679 = vmatprep.subr.bf16.mxu0 %v6432
        %9680 = vmatpush1.bf16.msra.mxu0 %v6431
        %9681 = vmatprep.subr.bf16.mxu0 %v6792
        %9682 = vmatpush2.bf16.msra.mxu0 %v6791
        %9683 = vmatprep.subr.bf16.mxu0 %v6768
        %9684 = vmatpush2.bf16.msra.mxu0 %v6767
        %9685 = vmatprep.subr.bf16.mxu0 %v6744
        %9686 = vmatpush2.bf16.msra.mxu0 %v6743
        %9687 = vmatprep.subr.bf16.mxu0 %v6720
        %9688 = vmatpush2.bf16.msra.mxu0 %v6719
        %9689 = vmatprep.subr.bf16.mxu0 %v6696
        %9690 = vmatpush2.bf16.msra.mxu0 %v6695
        %9691 = vmatprep.subr.bf16.mxu0 %v6672
        %9692 = vmatpush2.bf16.msra.mxu0 %v6671
        %9693 = vmatprep.subr.bf16.mxu0 %v6648
        %9694 = vmatpush2.bf16.msra.mxu0 %v6647
        %9695 = vmatprep.subr.bf16.mxu0 %v6624
        %9696 = vmatpush2.bf16.msra.mxu0 %v6623
        %9697 = vmatprep.mubr.bf16.mxu0 %v278
        %9698 = vmatmul.mubr.bf16.gmra.mxu0 %v277
        %v9699 = vpop.f32.mrf.mxu0
        %v9700 = vadd.f32 0.0, %v9699
        %v9701 = vpop.f32.mrf.mxu0
        %v9702 = vadd.f32 0.0, %v9701
        %v9703 = vpop.f32.mrf.mxu0
        %v9704 = vpop.f32.mrf.mxu0
        %9705 = vdwg.mxu0
        %9706 = vmatprep.subr.bf16.mxu0 %v6984
        %9707 = vmatpush1.bf16.msra.mxu0 %v6983
        %9708 = vmatprep.subr.bf16.mxu0 %v6960
        %9709 = vmatpush1.bf16.msra.mxu0 %v6959
        %9710 = vmatprep.subr.bf16.mxu0 %v6936
        %9711 = vmatpush1.bf16.msra.mxu0 %v6935
        %9712 = vmatprep.subr.bf16.mxu0 %v6912
        %9713 = vmatpush1.bf16.msra.mxu0 %v6911
        %9714 = vmatprep.subr.bf16.mxu0 %v6888
        %9715 = vmatpush1.bf16.msra.mxu0 %v6887
        %9716 = vmatprep.subr.bf16.mxu0 %v6864
        %9717 = vmatpush1.bf16.msra.mxu0 %v6863
        %9718 = vmatprep.subr.bf16.mxu0 %v6840
        %9719 = vmatpush1.bf16.msra.mxu0 %v6839
        %9720 = vmatprep.subr.bf16.mxu0 %v6816
        %9721 = vmatpush1.bf16.msra.mxu0 %v6815
        %9722 = vmatprep.subr.bf16.mxu0 %v7176
        %9723 = vmatpush2.bf16.msra.mxu0 %v7175
        %9724 = vmatprep.subr.bf16.mxu0 %v7152
        %9725 = vmatpush2.bf16.msra.mxu0 %v7151
        %9726 = vmatprep.subr.bf16.mxu0 %v7128
        %9727 = vmatpush2.bf16.msra.mxu0 %v7127
        %9728 = vmatprep.subr.bf16.mxu0 %v7104
        %9729 = vmatpush2.bf16.msra.mxu0 %v7103
        %9730 = vmatprep.subr.bf16.mxu0 %v7080
        %9731 = vmatpush2.bf16.msra.mxu0 %v7079
        %9732 = vmatprep.subr.bf16.mxu0 %v7056
        %9733 = vmatpush2.bf16.msra.mxu0 %v7055
        %9734 = vmatprep.subr.bf16.mxu0 %v7032
        %9735 = vmatpush2.bf16.msra.mxu0 %v7031
        %9736 = vmatprep.subr.bf16.mxu0 %v7008
        %9737 = vmatpush2.bf16.msra.mxu0 %v7007
        %9738 = vmatprep.mubr.bf16.mxu0 %v280
        %9739 = vmatmul.mubr.bf16.gmra.mxu0 %v279
        %v9740 = vpop.f32.mrf.mxu0
        %v9741 = vadd.f32 %v9700, %v9740
        %v9742 = vpop.f32.mrf.mxu0
        %v9743 = vadd.f32 %v9702, %v9742
        %v9744 = vpop.f32.mrf.mxu0
        %v9745 = vpop.f32.mrf.mxu0
        %9746 = vdwg.mxu0
        %9747 = vmatprep.subr.bf16.mxu0 %v7368
        %9748 = vmatpush1.bf16.msra.mxu0 %v7367
        %9749 = vmatprep.subr.bf16.mxu0 %v7344
        %9750 = vmatpush1.bf16.msra.mxu0 %v7343
        %9751 = vmatprep.subr.bf16.mxu0 %v7320
        %9752 = vmatpush1.bf16.msra.mxu0 %v7319
        %9753 = vmatprep.subr.bf16.mxu0 %v7296
        %9754 = vmatpush1.bf16.msra.mxu0 %v7295
        %9755 = vmatprep.subr.bf16.mxu0 %v7272
        %9756 = vmatpush1.bf16.msra.mxu0 %v7271
        %9757 = vmatprep.subr.bf16.mxu0 %v7248
        %9758 = vmatpush1.bf16.msra.mxu0 %v7247
        %9759 = vmatprep.subr.bf16.mxu0 %v7224
        %9760 = vmatpush1.bf16.msra.mxu0 %v7223
        %9761 = vmatprep.subr.bf16.mxu0 %v7200
        %9762 = vmatpush1.bf16.msra.mxu0 %v7199
        %9763 = vmatprep.subr.bf16.mxu0 %v7560
        %9764 = vmatpush2.bf16.msra.mxu0 %v7559
        %9765 = vmatprep.subr.bf16.mxu0 %v7536
        %9766 = vmatpush2.bf16.msra.mxu0 %v7535
        %9767 = vmatprep.subr.bf16.mxu0 %v7512
        %9768 = vmatpush2.bf16.msra.mxu0 %v7511
        %9769 = vmatprep.subr.bf16.mxu0 %v7488
        %9770 = vmatpush2.bf16.msra.mxu0 %v7487
        %9771 = vmatprep.subr.bf16.mxu0 %v7464
        %9772 = vmatpush2.bf16.msra.mxu0 %v7463
        %9773 = vmatprep.subr.bf16.mxu0 %v7440
        %9774 = vmatpush2.bf16.msra.mxu0 %v7439
        %9775 = vmatprep.subr.bf16.mxu0 %v7416
        %9776 = vmatpush2.bf16.msra.mxu0 %v7415
        %9777 = vmatprep.subr.bf16.mxu0 %v7392
        %9778 = vmatpush2.bf16.msra.mxu0 %v7391
        %9779 = vmatprep.mubr.bf16.mxu0 %v282
        %9780 = vmatmul.mubr.bf16.gmra.mxu0 %v281
        %v9781 = vpop.f32.mrf.mxu0
        %v9782 = vadd.f32 %v9741, %v9781
        %v9783 = vpop.f32.mrf.mxu0
        %v9784 = vadd.f32 %v9743, %v9783
        %v9785 = vpop.f32.mrf.mxu0
        %v9786 = vpop.f32.mrf.mxu0
        %9787 = vdwg.mxu0
        %9788 = vmatprep.subr.bf16.mxu0 %v7752
        %9789 = vmatpush1.bf16.msra.mxu0 %v7751
        %9790 = vmatprep.subr.bf16.mxu0 %v7728
        %9791 = vmatpush1.bf16.msra.mxu0 %v7727
        %9792 = vmatprep.subr.bf16.mxu0 %v7704
        %9793 = vmatpush1.bf16.msra.mxu0 %v7703
        %9794 = vmatprep.subr.bf16.mxu0 %v7680
        %9795 = vmatpush1.bf16.msra.mxu0 %v7679
        %9796 = vmatprep.subr.bf16.mxu0 %v7656
        %9797 = vmatpush1.bf16.msra.mxu0 %v7655
        %9798 = vmatprep.subr.bf16.mxu0 %v7632
        %9799 = vmatpush1.bf16.msra.mxu0 %v7631
        %9800 = vmatprep.subr.bf16.mxu0 %v7608
        %9801 = vmatpush1.bf16.msra.mxu0 %v7607
        %9802 = vmatprep.subr.bf16.mxu0 %v7584
        %9803 = vmatpush1.bf16.msra.mxu0 %v7583
        %9804 = vmatprep.subr.bf16.mxu0 %v7944
        %9805 = vmatpush2.bf16.msra.mxu0 %v7943
        %9806 = vmatprep.subr.bf16.mxu0 %v7920
        %9807 = vmatpush2.bf16.msra.mxu0 %v7919
        %9808 = vmatprep.subr.bf16.mxu0 %v7896
        %9809 = vmatpush2.bf16.msra.mxu0 %v7895
        %9810 = vmatprep.subr.bf16.mxu0 %v7872
        %9811 = vmatpush2.bf16.msra.mxu0 %v7871
        %9812 = vmatprep.subr.bf16.mxu0 %v7848
        %9813 = vmatpush2.bf16.msra.mxu0 %v7847
        %9814 = vmatprep.subr.bf16.mxu0 %v7824
        %9815 = vmatpush2.bf16.msra.mxu0 %v7823
        %9816 = vmatprep.subr.bf16.mxu0 %v7800
        %9817 = vmatpush2.bf16.msra.mxu0 %v7799
        %9818 = vmatprep.subr.bf16.mxu0 %v7776
        %9819 = vmatpush2.bf16.msra.mxu0 %v7775
        %9820 = vmatprep.mubr.bf16.mxu0 %v284
        %9821 = vmatmul.mubr.bf16.gmra.mxu0 %v283
        %v9822 = vpop.f32.mrf.mxu0
        %v9823 = vadd.f32 %v9782, %v9822
        %v9824 = vpop.f32.mrf.mxu0
        %v9825 = vadd.f32 %v9784, %v9824
        %v9826 = vpop.f32.mrf.mxu0
        %v9827 = vpop.f32.mrf.mxu0
        %9828 = vdwg.mxu0
        %9829 = vmatprep.subr.bf16.mxu0 %v6602
        %9830 = vmatpush1.bf16.msra.mxu0 %v6601
        %9831 = vmatprep.subr.bf16.mxu0 %v6578
        %9832 = vmatpush1.bf16.msra.mxu0 %v6577
        %9833 = vmatprep.subr.bf16.mxu0 %v6554
        %9834 = vmatpush1.bf16.msra.mxu0 %v6553
        %9835 = vmatprep.subr.bf16.mxu0 %v6530
        %9836 = vmatpush1.bf16.msra.mxu0 %v6529
        %9837 = vmatprep.subr.bf16.mxu0 %v6506
        %9838 = vmatpush1.bf16.msra.mxu0 %v6505
        %9839 = vmatprep.subr.bf16.mxu0 %v6482
        %9840 = vmatpush1.bf16.msra.mxu0 %v6481
        %9841 = vmatprep.subr.bf16.mxu0 %v6458
        %9842 = vmatpush1.bf16.msra.mxu0 %v6457
        %9843 = vmatprep.subr.bf16.mxu0 %v6434
        %9844 = vmatpush1.bf16.msra.mxu0 %v6433
        %9845 = vmatprep.subr.bf16.mxu0 %v6794
        %9846 = vmatpush2.bf16.msra.mxu0 %v6793
        %9847 = vmatprep.subr.bf16.mxu0 %v6770
        %9848 = vmatpush2.bf16.msra.mxu0 %v6769
        %9849 = vmatprep.subr.bf16.mxu0 %v6746
        %9850 = vmatpush2.bf16.msra.mxu0 %v6745
        %9851 = vmatprep.subr.bf16.mxu0 %v6722
        %9852 = vmatpush2.bf16.msra.mxu0 %v6721
        %9853 = vmatprep.subr.bf16.mxu0 %v6698
        %9854 = vmatpush2.bf16.msra.mxu0 %v6697
        %9855 = vmatprep.subr.bf16.mxu0 %v6674
        %9856 = vmatpush2.bf16.msra.mxu0 %v6673
        %9857 = vmatprep.subr.bf16.mxu0 %v6650
        %9858 = vmatpush2.bf16.msra.mxu0 %v6649
        %9859 = vmatprep.subr.bf16.mxu0 %v6626
        %9860 = vmatpush2.bf16.msra.mxu0 %v6625
        %9861 = vmatprep.mubr.bf16.mxu0 %v278
        %9862 = vmatmul.mubr.bf16.gmra.mxu0 %v277
        %v9863 = vpop.f32.mrf.mxu0
        %v9864 = vadd.f32 0.0, %v9863
        %v9865 = vpop.f32.mrf.mxu0
        %v9866 = vadd.f32 0.0, %v9865
        %v9867 = vpop.f32.mrf.mxu0
        %v9868 = vpop.f32.mrf.mxu0
        %9869 = vdwg.mxu0
        %9870 = vmatprep.subr.bf16.mxu0 %v6986
        %9871 = vmatpush1.bf16.msra.mxu0 %v6985
        %9872 = vmatprep.subr.bf16.mxu0 %v6962
        %9873 = vmatpush1.bf16.msra.mxu0 %v6961
        %9874 = vmatprep.subr.bf16.mxu0 %v6938
        %9875 = vmatpush1.bf16.msra.mxu0 %v6937
        %9876 = vmatprep.subr.bf16.mxu0 %v6914
        %9877 = vmatpush1.bf16.msra.mxu0 %v6913
        %9878 = vmatprep.subr.bf16.mxu0 %v6890
        %9879 = vmatpush1.bf16.msra.mxu0 %v6889
        %9880 = vmatprep.subr.bf16.mxu0 %v6866
        %9881 = vmatpush1.bf16.msra.mxu0 %v6865
        %9882 = vmatprep.subr.bf16.mxu0 %v6842
        %9883 = vmatpush1.bf16.msra.mxu0 %v6841
        %9884 = vmatprep.subr.bf16.mxu0 %v6818
        %9885 = vmatpush1.bf16.msra.mxu0 %v6817
        %9886 = vmatprep.subr.bf16.mxu0 %v7178
        %9887 = vmatpush2.bf16.msra.mxu0 %v7177
        %9888 = vmatprep.subr.bf16.mxu0 %v7154
        %9889 = vmatpush2.bf16.msra.mxu0 %v7153
        %9890 = vmatprep.subr.bf16.mxu0 %v7130
        %9891 = vmatpush2.bf16.msra.mxu0 %v7129
        %9892 = vmatprep.subr.bf16.mxu0 %v7106
        %9893 = vmatpush2.bf16.msra.mxu0 %v7105
        %9894 = vmatprep.subr.bf16.mxu0 %v7082
        %9895 = vmatpush2.bf16.msra.mxu0 %v7081
        %9896 = vmatprep.subr.bf16.mxu0 %v7058
        %9897 = vmatpush2.bf16.msra.mxu0 %v7057
        %9898 = vmatprep.subr.bf16.mxu0 %v7034
        %9899 = vmatpush2.bf16.msra.mxu0 %v7033
        %9900 = vmatprep.subr.bf16.mxu0 %v7010
        %9901 = vmatpush2.bf16.msra.mxu0 %v7009
        %9902 = vmatprep.mubr.bf16.mxu0 %v280
        %9903 = vmatmul.mubr.bf16.gmra.mxu0 %v279
        %v9904 = vpop.f32.mrf.mxu0
        %v9905 = vadd.f32 %v9864, %v9904
        %v9906 = vpop.f32.mrf.mxu0
        %v9907 = vadd.f32 %v9866, %v9906
        %v9908 = vpop.f32.mrf.mxu0
        %v9909 = vpop.f32.mrf.mxu0
        %9910 = vdwg.mxu0
        %9911 = vmatprep.subr.bf16.mxu0 %v7370
        %9912 = vmatpush1.bf16.msra.mxu0 %v7369
        %9913 = vmatprep.subr.bf16.mxu0 %v7346
        %9914 = vmatpush1.bf16.msra.mxu0 %v7345
        %9915 = vmatprep.subr.bf16.mxu0 %v7322
        %9916 = vmatpush1.bf16.msra.mxu0 %v7321
        %9917 = vmatprep.subr.bf16.mxu0 %v7298
        %9918 = vmatpush1.bf16.msra.mxu0 %v7297
        %9919 = vmatprep.subr.bf16.mxu0 %v7274
        %9920 = vmatpush1.bf16.msra.mxu0 %v7273
        %9921 = vmatprep.subr.bf16.mxu0 %v7250
        %9922 = vmatpush1.bf16.msra.mxu0 %v7249
        %9923 = vmatprep.subr.bf16.mxu0 %v7226
        %9924 = vmatpush1.bf16.msra.mxu0 %v7225
        %9925 = vmatprep.subr.bf16.mxu0 %v7202
        %9926 = vmatpush1.bf16.msra.mxu0 %v7201
        %9927 = vmatprep.subr.bf16.mxu0 %v7562
        %9928 = vmatpush2.bf16.msra.mxu0 %v7561
        %9929 = vmatprep.subr.bf16.mxu0 %v7538
        %9930 = vmatpush2.bf16.msra.mxu0 %v7537
        %9931 = vmatprep.subr.bf16.mxu0 %v7514
        %9932 = vmatpush2.bf16.msra.mxu0 %v7513
        %9933 = vmatprep.subr.bf16.mxu0 %v7490
        %9934 = vmatpush2.bf16.msra.mxu0 %v7489
        %9935 = vmatprep.subr.bf16.mxu0 %v7466
        %9936 = vmatpush2.bf16.msra.mxu0 %v7465
        %9937 = vmatprep.subr.bf16.mxu0 %v7442
        %9938 = vmatpush2.bf16.msra.mxu0 %v7441
        %9939 = vmatprep.subr.bf16.mxu0 %v7418
        %9940 = vmatpush2.bf16.msra.mxu0 %v7417
        %9941 = vmatprep.subr.bf16.mxu0 %v7394
        %9942 = vmatpush2.bf16.msra.mxu0 %v7393
        %9943 = vmatprep.mubr.bf16.mxu0 %v282
        %9944 = vmatmul.mubr.bf16.gmra.mxu0 %v281
        %v9945 = vpop.f32.mrf.mxu0
        %v9946 = vadd.f32 %v9905, %v9945
        %v9947 = vpop.f32.mrf.mxu0
        %v9948 = vadd.f32 %v9907, %v9947
        %v9949 = vpop.f32.mrf.mxu0
        %v9950 = vpop.f32.mrf.mxu0
        %9951 = vdwg.mxu0
        %9952 = vmatprep.subr.bf16.mxu0 %v7754
        %9953 = vmatpush1.bf16.msra.mxu0 %v7753
        %9954 = vmatprep.subr.bf16.mxu0 %v7730
        %9955 = vmatpush1.bf16.msra.mxu0 %v7729
        %9956 = vmatprep.subr.bf16.mxu0 %v7706
        %9957 = vmatpush1.bf16.msra.mxu0 %v7705
        %9958 = vmatprep.subr.bf16.mxu0 %v7682
        %9959 = vmatpush1.bf16.msra.mxu0 %v7681
        %9960 = vmatprep.subr.bf16.mxu0 %v7658
        %9961 = vmatpush1.bf16.msra.mxu0 %v7657
        %9962 = vmatprep.subr.bf16.mxu0 %v7634
        %9963 = vmatpush1.bf16.msra.mxu0 %v7633
        %9964 = vmatprep.subr.bf16.mxu0 %v7610
        %9965 = vmatpush1.bf16.msra.mxu0 %v7609
        %9966 = vmatprep.subr.bf16.mxu0 %v7586
        %9967 = vmatpush1.bf16.msra.mxu0 %v7585
        %9968 = vmatprep.subr.bf16.mxu0 %v7946
        %9969 = vmatpush2.bf16.msra.mxu0 %v7945
        %9970 = vmatprep.subr.bf16.mxu0 %v7922
        %9971 = vmatpush2.bf16.msra.mxu0 %v7921
        %9972 = vmatprep.subr.bf16.mxu0 %v7898
        %9973 = vmatpush2.bf16.msra.mxu0 %v7897
        %9974 = vmatprep.subr.bf16.mxu0 %v7874
        %9975 = vmatpush2.bf16.msra.mxu0 %v7873
        %9976 = vmatprep.subr.bf16.mxu0 %v7850
        %9977 = vmatpush2.bf16.msra.mxu0 %v7849
        %9978 = vmatprep.subr.bf16.mxu0 %v7826
        %9979 = vmatpush2.bf16.msra.mxu0 %v7825
        %9980 = vmatprep.subr.bf16.mxu0 %v7802
        %9981 = vmatpush2.bf16.msra.mxu0 %v7801
        %9982 = vmatprep.subr.bf16.mxu0 %v7778
        %9983 = vmatpush2.bf16.msra.mxu0 %v7777
        %9984 = vmatprep.mubr.bf16.mxu0 %v284
        %9985 = vmatmul.mubr.bf16.gmra.mxu0 %v283
        %v9986 = vpop.f32.mrf.mxu0
        %v9987 = vadd.f32 %v9946, %v9986
        %v9988 = vpop.f32.mrf.mxu0
        %v9989 = vadd.f32 %v9948, %v9988
        %v9990 = vpop.f32.mrf.mxu0
        %v9991 = vpop.f32.mrf.mxu0
        %9992 = vdwg.mxu0
        %9993 = vmatprep.subr.bf16.mxu0 %v6604
        %9994 = vmatpush1.bf16.msra.mxu0 %v6603
        %9995 = vmatprep.subr.bf16.mxu0 %v6580
        %9996 = vmatpush1.bf16.msra.mxu0 %v6579
        %9997 = vmatprep.subr.bf16.mxu0 %v6556
        %9998 = vmatpush1.bf16.msra.mxu0 %v6555
        %9999 = vmatprep.subr.bf16.mxu0 %v6532
        %10000 = vmatpush1.bf16.msra.mxu0 %v6531
        %10001 = vmatprep.subr.bf16.mxu0 %v6508
        %10002 = vmatpush1.bf16.msra.mxu0 %v6507
        %10003 = vmatprep.subr.bf16.mxu0 %v6484
        %10004 = vmatpush1.bf16.msra.mxu0 %v6483
        %10005 = vmatprep.subr.bf16.mxu0 %v6460
        %10006 = vmatpush1.bf16.msra.mxu0 %v6459
        %10007 = vmatprep.subr.bf16.mxu0 %v6436
        %10008 = vmatpush1.bf16.msra.mxu0 %v6435
        %10009 = vmatprep.subr.bf16.mxu0 %v6796
        %10010 = vmatpush2.bf16.msra.mxu0 %v6795
        %10011 = vmatprep.subr.bf16.mxu0 %v6772
        %10012 = vmatpush2.bf16.msra.mxu0 %v6771
        %10013 = vmatprep.subr.bf16.mxu0 %v6748
        %10014 = vmatpush2.bf16.msra.mxu0 %v6747
        %10015 = vmatprep.subr.bf16.mxu0 %v6724
        %10016 = vmatpush2.bf16.msra.mxu0 %v6723
        %10017 = vmatprep.subr.bf16.mxu0 %v6700
        %10018 = vmatpush2.bf16.msra.mxu0 %v6699
        %10019 = vmatprep.subr.bf16.mxu0 %v6676
        %10020 = vmatpush2.bf16.msra.mxu0 %v6675
        %10021 = vmatprep.subr.bf16.mxu0 %v6652
        %10022 = vmatpush2.bf16.msra.mxu0 %v6651
        %10023 = vmatprep.subr.bf16.mxu0 %v6628
        %10024 = vmatpush2.bf16.msra.mxu0 %v6627
        %10025 = vmatprep.mubr.bf16.mxu0 %v278
        %10026 = vmatmul.mubr.bf16.gmra.mxu0 %v277
        %v10027 = vpop.f32.mrf.mxu0
        %v10028 = vadd.f32 0.0, %v10027
        %v10029 = vpop.f32.mrf.mxu0
        %v10030 = vadd.f32 0.0, %v10029
        %v10031 = vpop.f32.mrf.mxu0
        %v10032 = vpop.f32.mrf.mxu0
        %10033 = vdwg.mxu0
        %10034 = vmatprep.subr.bf16.mxu0 %v6988
        %10035 = vmatpush1.bf16.msra.mxu0 %v6987
        %10036 = vmatprep.subr.bf16.mxu0 %v6964
        %10037 = vmatpush1.bf16.msra.mxu0 %v6963
        %10038 = vmatprep.subr.bf16.mxu0 %v6940
        %10039 = vmatpush1.bf16.msra.mxu0 %v6939
        %10040 = vmatprep.subr.bf16.mxu0 %v6916
        %10041 = vmatpush1.bf16.msra.mxu0 %v6915
        %10042 = vmatprep.subr.bf16.mxu0 %v6892
        %10043 = vmatpush1.bf16.msra.mxu0 %v6891
        %10044 = vmatprep.subr.bf16.mxu0 %v6868
        %10045 = vmatpush1.bf16.msra.mxu0 %v6867
        %10046 = vmatprep.subr.bf16.mxu0 %v6844
        %10047 = vmatpush1.bf16.msra.mxu0 %v6843
        %10048 = vmatprep.subr.bf16.mxu0 %v6820
        %10049 = vmatpush1.bf16.msra.mxu0 %v6819
        %10050 = vmatprep.subr.bf16.mxu0 %v7180
        %10051 = vmatpush2.bf16.msra.mxu0 %v7179
        %10052 = vmatprep.subr.bf16.mxu0 %v7156
        %10053 = vmatpush2.bf16.msra.mxu0 %v7155
        %10054 = vmatprep.subr.bf16.mxu0 %v7132
        %10055 = vmatpush2.bf16.msra.mxu0 %v7131
        %10056 = vmatprep.subr.bf16.mxu0 %v7108
        %10057 = vmatpush2.bf16.msra.mxu0 %v7107
        %10058 = vmatprep.subr.bf16.mxu0 %v7084
        %10059 = vmatpush2.bf16.msra.mxu0 %v7083
        %10060 = vmatprep.subr.bf16.mxu0 %v7060
        %10061 = vmatpush2.bf16.msra.mxu0 %v7059
        %10062 = vmatprep.subr.bf16.mxu0 %v7036
        %10063 = vmatpush2.bf16.msra.mxu0 %v7035
        %10064 = vmatprep.subr.bf16.mxu0 %v7012
        %10065 = vmatpush2.bf16.msra.mxu0 %v7011
        %10066 = vmatprep.mubr.bf16.mxu0 %v280
        %10067 = vmatmul.mubr.bf16.gmra.mxu0 %v279
        %v10068 = vpop.f32.mrf.mxu0
        %v10069 = vadd.f32 %v10028, %v10068
        %v10070 = vpop.f32.mrf.mxu0
        %v10071 = vadd.f32 %v10030, %v10070
        %v10072 = vpop.f32.mrf.mxu0
        %v10073 = vpop.f32.mrf.mxu0
        %10074 = vdwg.mxu0
        %10075 = vmatprep.subr.bf16.mxu0 %v7372
        %10076 = vmatpush1.bf16.msra.mxu0 %v7371
        %10077 = vmatprep.subr.bf16.mxu0 %v7348
        %10078 = vmatpush1.bf16.msra.mxu0 %v7347
        %10079 = vmatprep.subr.bf16.mxu0 %v7324
        %10080 = vmatpush1.bf16.msra.mxu0 %v7323
        %10081 = vmatprep.subr.bf16.mxu0 %v7300
        %10082 = vmatpush1.bf16.msra.mxu0 %v7299
        %10083 = vmatprep.subr.bf16.mxu0 %v7276
        %10084 = vmatpush1.bf16.msra.mxu0 %v7275
        %10085 = vmatprep.subr.bf16.mxu0 %v7252
        %10086 = vmatpush1.bf16.msra.mxu0 %v7251
        %10087 = vmatprep.subr.bf16.mxu0 %v7228
        %10088 = vmatpush1.bf16.msra.mxu0 %v7227
        %10089 = vmatprep.subr.bf16.mxu0 %v7204
        %10090 = vmatpush1.bf16.msra.mxu0 %v7203
        %10091 = vmatprep.subr.bf16.mxu0 %v7564
        %10092 = vmatpush2.bf16.msra.mxu0 %v7563
        %10093 = vmatprep.subr.bf16.mxu0 %v7540
        %10094 = vmatpush2.bf16.msra.mxu0 %v7539
        %10095 = vmatprep.subr.bf16.mxu0 %v7516
        %10096 = vmatpush2.bf16.msra.mxu0 %v7515
        %10097 = vmatprep.subr.bf16.mxu0 %v7492
        %10098 = vmatpush2.bf16.msra.mxu0 %v7491
        %10099 = vmatprep.subr.bf16.mxu0 %v7468
        %10100 = vmatpush2.bf16.msra.mxu0 %v7467
        %10101 = vmatprep.subr.bf16.mxu0 %v7444
        %10102 = vmatpush2.bf16.msra.mxu0 %v7443
        %10103 = vmatprep.subr.bf16.mxu0 %v7420
        %10104 = vmatpush2.bf16.msra.mxu0 %v7419
        %10105 = vmatprep.subr.bf16.mxu0 %v7396
        %10106 = vmatpush2.bf16.msra.mxu0 %v7395
        %10107 = vmatprep.mubr.bf16.mxu0 %v282
        %10108 = vmatmul.mubr.bf16.gmra.mxu0 %v281
        %v10109 = vpop.f32.mrf.mxu0
        %v10110 = vadd.f32 %v10069, %v10109
        %v10111 = vpop.f32.mrf.mxu0
        %v10112 = vadd.f32 %v10071, %v10111
        %v10113 = vpop.f32.mrf.mxu0
        %v10114 = vpop.f32.mrf.mxu0
        %10115 = vdwg.mxu0
        %10116 = vmatprep.subr.bf16.mxu0 %v7756
        %10117 = vmatpush1.bf16.msra.mxu0 %v7755
        %10118 = vmatprep.subr.bf16.mxu0 %v7732
        %10119 = vmatpush1.bf16.msra.mxu0 %v7731
        %10120 = vmatprep.subr.bf16.mxu0 %v7708
        %10121 = vmatpush1.bf16.msra.mxu0 %v7707
        %10122 = vmatprep.subr.bf16.mxu0 %v7684
        %10123 = vmatpush1.bf16.msra.mxu0 %v7683
        %10124 = vmatprep.subr.bf16.mxu0 %v7660
        %10125 = vmatpush1.bf16.msra.mxu0 %v7659
        %10126 = vmatprep.subr.bf16.mxu0 %v7636
        %10127 = vmatpush1.bf16.msra.mxu0 %v7635
        %10128 = vmatprep.subr.bf16.mxu0 %v7612
        %10129 = vmatpush1.bf16.msra.mxu0 %v7611
        %10130 = vmatprep.subr.bf16.mxu0 %v7588
        %10131 = vmatpush1.bf16.msra.mxu0 %v7587
        %10132 = vmatprep.subr.bf16.mxu0 %v7948
        %10133 = vmatpush2.bf16.msra.mxu0 %v7947
        %10134 = vmatprep.subr.bf16.mxu0 %v7924
        %10135 = vmatpush2.bf16.msra.mxu0 %v7923
        %10136 = vmatprep.subr.bf16.mxu0 %v7900
        %10137 = vmatpush2.bf16.msra.mxu0 %v7899
        %10138 = vmatprep.subr.bf16.mxu0 %v7876
        %10139 = vmatpush2.bf16.msra.mxu0 %v7875
        %10140 = vmatprep.subr.bf16.mxu0 %v7852
        %10141 = vmatpush2.bf16.msra.mxu0 %v7851
        %10142 = vmatprep.subr.bf16.mxu0 %v7828
        %10143 = vmatpush2.bf16.msra.mxu0 %v7827
        %10144 = vmatprep.subr.bf16.mxu0 %v7804
        %10145 = vmatpush2.bf16.msra.mxu0 %v7803
        %10146 = vmatprep.subr.bf16.mxu0 %v7780
        %10147 = vmatpush2.bf16.msra.mxu0 %v7779
        %10148 = vmatprep.mubr.bf16.mxu0 %v284
        %10149 = vmatmul.mubr.bf16.gmra.mxu0 %v283
        %v10150 = vpop.f32.mrf.mxu0
        %v10151 = vadd.f32 %v10110, %v10150
        %v10152 = vpop.f32.mrf.mxu0
        %v10153 = vadd.f32 %v10112, %v10152
        %v10154 = vpop.f32.mrf.mxu0
        %v10155 = vpop.f32.mrf.mxu0
        %10156 = vdwg.mxu0
        %10157 = vmatprep.subr.bf16.mxu0 %v6606
        %10158 = vmatpush1.bf16.msra.mxu0 %v6605
        %10159 = vmatprep.subr.bf16.mxu0 %v6582
        %10160 = vmatpush1.bf16.msra.mxu0 %v6581
        %10161 = vmatprep.subr.bf16.mxu0 %v6558
        %10162 = vmatpush1.bf16.msra.mxu0 %v6557
        %10163 = vmatprep.subr.bf16.mxu0 %v6534
        %10164 = vmatpush1.bf16.msra.mxu0 %v6533
        %10165 = vmatprep.subr.bf16.mxu0 %v6510
        %10166 = vmatpush1.bf16.msra.mxu0 %v6509
        %10167 = vmatprep.subr.bf16.mxu0 %v6486
        %10168 = vmatpush1.bf16.msra.mxu0 %v6485
        %10169 = vmatprep.subr.bf16.mxu0 %v6462
        %10170 = vmatpush1.bf16.msra.mxu0 %v6461
        %10171 = vmatprep.subr.bf16.mxu0 %v6438
        %10172 = vmatpush1.bf16.msra.mxu0 %v6437
        %10173 = vmatprep.subr.bf16.mxu0 %v6798
        %10174 = vmatpush2.bf16.msra.mxu0 %v6797
        %10175 = vmatprep.subr.bf16.mxu0 %v6774
        %10176 = vmatpush2.bf16.msra.mxu0 %v6773
        %10177 = vmatprep.subr.bf16.mxu0 %v6750
        %10178 = vmatpush2.bf16.msra.mxu0 %v6749
        %10179 = vmatprep.subr.bf16.mxu0 %v6726
        %10180 = vmatpush2.bf16.msra.mxu0 %v6725
        %10181 = vmatprep.subr.bf16.mxu0 %v6702
        %10182 = vmatpush2.bf16.msra.mxu0 %v6701
        %10183 = vmatprep.subr.bf16.mxu0 %v6678
        %10184 = vmatpush2.bf16.msra.mxu0 %v6677
        %10185 = vmatprep.subr.bf16.mxu0 %v6654
        %10186 = vmatpush2.bf16.msra.mxu0 %v6653
        %10187 = vmatprep.subr.bf16.mxu0 %v6630
        %10188 = vmatpush2.bf16.msra.mxu0 %v6629
        %10189 = vmatprep.mubr.bf16.mxu0 %v278
        %10190 = vmatmul.mubr.bf16.gmra.mxu0 %v277
        %v10191 = vpop.f32.mrf.mxu0
        %v10192 = vadd.f32 0.0, %v10191
        %v10193 = vpop.f32.mrf.mxu0
        %v10194 = vadd.f32 0.0, %v10193
        %v10195 = vpop.f32.mrf.mxu0
        %v10196 = vpop.f32.mrf.mxu0
        %10197 = vdwg.mxu0
        %10198 = vmatprep.subr.bf16.mxu0 %v6990
        %10199 = vmatpush1.bf16.msra.mxu0 %v6989
        %10200 = vmatprep.subr.bf16.mxu0 %v6966
        %10201 = vmatpush1.bf16.msra.mxu0 %v6965
        %10202 = vmatprep.subr.bf16.mxu0 %v6942
        %10203 = vmatpush1.bf16.msra.mxu0 %v6941
        %10204 = vmatprep.subr.bf16.mxu0 %v6918
        %10205 = vmatpush1.bf16.msra.mxu0 %v6917
        %10206 = vmatprep.subr.bf16.mxu0 %v6894
        %10207 = vmatpush1.bf16.msra.mxu0 %v6893
        %10208 = vmatprep.subr.bf16.mxu0 %v6870
        %10209 = vmatpush1.bf16.msra.mxu0 %v6869
        %10210 = vmatprep.subr.bf16.mxu0 %v6846
        %10211 = vmatpush1.bf16.msra.mxu0 %v6845
        %10212 = vmatprep.subr.bf16.mxu0 %v6822
        %10213 = vmatpush1.bf16.msra.mxu0 %v6821
        %10214 = vmatprep.subr.bf16.mxu0 %v7182
        %10215 = vmatpush2.bf16.msra.mxu0 %v7181
        %10216 = vmatprep.subr.bf16.mxu0 %v7158
        %10217 = vmatpush2.bf16.msra.mxu0 %v7157
        %10218 = vmatprep.subr.bf16.mxu0 %v7134
        %10219 = vmatpush2.bf16.msra.mxu0 %v7133
        %10220 = vmatprep.subr.bf16.mxu0 %v7110
        %10221 = vmatpush2.bf16.msra.mxu0 %v7109
        %10222 = vmatprep.subr.bf16.mxu0 %v7086
        %10223 = vmatpush2.bf16.msra.mxu0 %v7085
        %10224 = vmatprep.subr.bf16.mxu0 %v7062
        %10225 = vmatpush2.bf16.msra.mxu0 %v7061
        %10226 = vmatprep.subr.bf16.mxu0 %v7038
        %10227 = vmatpush2.bf16.msra.mxu0 %v7037
        %10228 = vmatprep.subr.bf16.mxu0 %v7014
        %10229 = vmatpush2.bf16.msra.mxu0 %v7013
        %10230 = vmatprep.mubr.bf16.mxu0 %v280
        %10231 = vmatmul.mubr.bf16.gmra.mxu0 %v279
        %v10232 = vpop.f32.mrf.mxu0
        %v10233 = vadd.f32 %v10192, %v10232
        %v10234 = vpop.f32.mrf.mxu0
        %v10235 = vadd.f32 %v10194, %v10234
        %v10236 = vpop.f32.mrf.mxu0
        %v10237 = vpop.f32.mrf.mxu0
        %10238 = vdwg.mxu0
        %10239 = vmatprep.subr.bf16.mxu0 %v7374
        %10240 = vmatpush1.bf16.msra.mxu0 %v7373
        %10241 = vmatprep.subr.bf16.mxu0 %v7350
        %10242 = vmatpush1.bf16.msra.mxu0 %v7349
        %10243 = vmatprep.subr.bf16.mxu0 %v7326
        %10244 = vmatpush1.bf16.msra.mxu0 %v7325
        %10245 = vmatprep.subr.bf16.mxu0 %v7302
        %10246 = vmatpush1.bf16.msra.mxu0 %v7301
        %10247 = vmatprep.subr.bf16.mxu0 %v7278
        %10248 = vmatpush1.bf16.msra.mxu0 %v7277
        %10249 = vmatprep.subr.bf16.mxu0 %v7254
        %10250 = vmatpush1.bf16.msra.mxu0 %v7253
        %10251 = vmatprep.subr.bf16.mxu0 %v7230
        %10252 = vmatpush1.bf16.msra.mxu0 %v7229
        %10253 = vmatprep.subr.bf16.mxu0 %v7206
        %10254 = vmatpush1.bf16.msra.mxu0 %v7205
        %10255 = vmatprep.subr.bf16.mxu0 %v7566
        %10256 = vmatpush2.bf16.msra.mxu0 %v7565
        %10257 = vmatprep.subr.bf16.mxu0 %v7542
        %10258 = vmatpush2.bf16.msra.mxu0 %v7541
        %10259 = vmatprep.subr.bf16.mxu0 %v7518
        %10260 = vmatpush2.bf16.msra.mxu0 %v7517
        %10261 = vmatprep.subr.bf16.mxu0 %v7494
        %10262 = vmatpush2.bf16.msra.mxu0 %v7493
        %10263 = vmatprep.subr.bf16.mxu0 %v7470
        %10264 = vmatpush2.bf16.msra.mxu0 %v7469
        %10265 = vmatprep.subr.bf16.mxu0 %v7446
        %10266 = vmatpush2.bf16.msra.mxu0 %v7445
        %10267 = vmatprep.subr.bf16.mxu0 %v7422
        %10268 = vmatpush2.bf16.msra.mxu0 %v7421
        %10269 = vmatprep.subr.bf16.mxu0 %v7398
        %10270 = vmatpush2.bf16.msra.mxu0 %v7397
        %10271 = vmatprep.mubr.bf16.mxu0 %v282
        %10272 = vmatmul.mubr.bf16.gmra.mxu0 %v281
        %v10273 = vpop.f32.mrf.mxu0
        %v10274 = vadd.f32 %v10233, %v10273
        %v10275 = vpop.f32.mrf.mxu0
        %v10276 = vadd.f32 %v10235, %v10275
        %v10277 = vpop.f32.mrf.mxu0
        %v10278 = vpop.f32.mrf.mxu0
        %10279 = vdwg.mxu0
        %10280 = vmatprep.subr.bf16.mxu0 %v7758
        %10281 = vmatpush1.bf16.msra.mxu0 %v7757
        %10282 = vmatprep.subr.bf16.mxu0 %v7734
        %10283 = vmatpush1.bf16.msra.mxu0 %v7733
        %10284 = vmatprep.subr.bf16.mxu0 %v7710
        %10285 = vmatpush1.bf16.msra.mxu0 %v7709
        %10286 = vmatprep.subr.bf16.mxu0 %v7686
        %10287 = vmatpush1.bf16.msra.mxu0 %v7685
        %10288 = vmatprep.subr.bf16.mxu0 %v7662
        %10289 = vmatpush1.bf16.msra.mxu0 %v7661
        %10290 = vmatprep.subr.bf16.mxu0 %v7638
        %10291 = vmatpush1.bf16.msra.mxu0 %v7637
        %10292 = vmatprep.subr.bf16.mxu0 %v7614
        %10293 = vmatpush1.bf16.msra.mxu0 %v7613
        %10294 = vmatprep.subr.bf16.mxu0 %v7590
        %10295 = vmatpush1.bf16.msra.mxu0 %v7589
        %10296 = vmatprep.subr.bf16.mxu0 %v7950
        %10297 = vmatpush2.bf16.msra.mxu0 %v7949
        %10298 = vmatprep.subr.bf16.mxu0 %v7926
        %10299 = vmatpush2.bf16.msra.mxu0 %v7925
        %10300 = vmatprep.subr.bf16.mxu0 %v7902
        %10301 = vmatpush2.bf16.msra.mxu0 %v7901
        %10302 = vmatprep.subr.bf16.mxu0 %v7878
        %10303 = vmatpush2.bf16.msra.mxu0 %v7877
        %10304 = vmatprep.subr.bf16.mxu0 %v7854
        %10305 = vmatpush2.bf16.msra.mxu0 %v7853
        %10306 = vmatprep.subr.bf16.mxu0 %v7830
        %10307 = vmatpush2.bf16.msra.mxu0 %v7829
        %10308 = vmatprep.subr.bf16.mxu0 %v7806
        %10309 = vmatpush2.bf16.msra.mxu0 %v7805
        %10310 = vmatprep.subr.bf16.mxu0 %v7782
        %10311 = vmatpush2.bf16.msra.mxu0 %v7781
        %10312 = vmatprep.mubr.bf16.mxu0 %v284
        %10313 = vmatmul.mubr.bf16.gmra.mxu0 %v283
        %v10314 = vpop.f32.mrf.mxu0
        %v10315 = vadd.f32 %v10274, %v10314
        %v10316 = vpop.f32.mrf.mxu0
        %v10317 = vadd.f32 %v10276, %v10316
        %v10318 = vpop.f32.mrf.mxu0
        %v10319 = vpop.f32.mrf.mxu0
        %10320 = vdwg.mxu0
        %10321 = vmatprep.subr.bf16.mxu0 %v6608
        %10322 = vmatpush1.bf16.msra.mxu0 %v6607
        %10323 = vmatprep.subr.bf16.mxu0 %v6584
        %10324 = vmatpush1.bf16.msra.mxu0 %v6583
        %10325 = vmatprep.subr.bf16.mxu0 %v6560
        %10326 = vmatpush1.bf16.msra.mxu0 %v6559
        %10327 = vmatprep.subr.bf16.mxu0 %v6536
        %10328 = vmatpush1.bf16.msra.mxu0 %v6535
        %10329 = vmatprep.subr.bf16.mxu0 %v6512
        %10330 = vmatpush1.bf16.msra.mxu0 %v6511
        %10331 = vmatprep.subr.bf16.mxu0 %v6488
        %10332 = vmatpush1.bf16.msra.mxu0 %v6487
        %10333 = vmatprep.subr.bf16.mxu0 %v6464
        %10334 = vmatpush1.bf16.msra.mxu0 %v6463
        %10335 = vmatprep.subr.bf16.mxu0 %v6440
        %10336 = vmatpush1.bf16.msra.mxu0 %v6439
        %10337 = vmatprep.subr.bf16.mxu0 %v6800
        %10338 = vmatpush2.bf16.msra.mxu0 %v6799
        %10339 = vmatprep.subr.bf16.mxu0 %v6776
        %10340 = vmatpush2.bf16.msra.mxu0 %v6775
        %10341 = vmatprep.subr.bf16.mxu0 %v6752
        %10342 = vmatpush2.bf16.msra.mxu0 %v6751
        %10343 = vmatprep.subr.bf16.mxu0 %v6728
        %10344 = vmatpush2.bf16.msra.mxu0 %v6727
        %10345 = vmatprep.subr.bf16.mxu0 %v6704
        %10346 = vmatpush2.bf16.msra.mxu0 %v6703
        %10347 = vmatprep.subr.bf16.mxu0 %v6680
        %10348 = vmatpush2.bf16.msra.mxu0 %v6679
        %10349 = vmatprep.subr.bf16.mxu0 %v6656
        %10350 = vmatpush2.bf16.msra.mxu0 %v6655
        %10351 = vmatprep.subr.bf16.mxu0 %v6632
        %10352 = vmatpush2.bf16.msra.mxu0 %v6631
        %10353 = vmatprep.mubr.bf16.mxu0 %v278
        %10354 = vmatmul.mubr.bf16.gmra.mxu0 %v277
        %v10355 = vpop.f32.mrf.mxu0
        %v10356 = vadd.f32 0.0, %v10355
        %v10357 = vpop.f32.mrf.mxu0
        %v10358 = vadd.f32 0.0, %v10357
        %v10359 = vpop.f32.mrf.mxu0
        %v10360 = vpop.f32.mrf.mxu0
        %10361 = vdwg.mxu0
        %10362 = vmatprep.subr.bf16.mxu0 %v6992
        %10363 = vmatpush1.bf16.msra.mxu0 %v6991
        %10364 = vmatprep.subr.bf16.mxu0 %v6968
        %10365 = vmatpush1.bf16.msra.mxu0 %v6967
        %10366 = vmatprep.subr.bf16.mxu0 %v6944
        %10367 = vmatpush1.bf16.msra.mxu0 %v6943
        %10368 = vmatprep.subr.bf16.mxu0 %v6920
        %10369 = vmatpush1.bf16.msra.mxu0 %v6919
        %10370 = vmatprep.subr.bf16.mxu0 %v6896
        %10371 = vmatpush1.bf16.msra.mxu0 %v6895
        %10372 = vmatprep.subr.bf16.mxu0 %v6872
        %10373 = vmatpush1.bf16.msra.mxu0 %v6871
        %10374 = vmatprep.subr.bf16.mxu0 %v6848
        %10375 = vmatpush1.bf16.msra.mxu0 %v6847
        %10376 = vmatprep.subr.bf16.mxu0 %v6824
        %10377 = vmatpush1.bf16.msra.mxu0 %v6823
        %10378 = vmatprep.subr.bf16.mxu0 %v7184
        %10379 = vmatpush2.bf16.msra.mxu0 %v7183
        %10380 = vmatprep.subr.bf16.mxu0 %v7160
        %10381 = vmatpush2.bf16.msra.mxu0 %v7159
        %10382 = vmatprep.subr.bf16.mxu0 %v7136
        %10383 = vmatpush2.bf16.msra.mxu0 %v7135
        %10384 = vmatprep.subr.bf16.mxu0 %v7112
        %10385 = vmatpush2.bf16.msra.mxu0 %v7111
        %10386 = vmatprep.subr.bf16.mxu0 %v7088
        %10387 = vmatpush2.bf16.msra.mxu0 %v7087
        %10388 = vmatprep.subr.bf16.mxu0 %v7064
        %10389 = vmatpush2.bf16.msra.mxu0 %v7063
        %10390 = vmatprep.subr.bf16.mxu0 %v7040
        %10391 = vmatpush2.bf16.msra.mxu0 %v7039
        %10392 = vmatprep.subr.bf16.mxu0 %v7016
        %10393 = vmatpush2.bf16.msra.mxu0 %v7015
        %10394 = vmatprep.mubr.bf16.mxu0 %v280
        %10395 = vmatmul.mubr.bf16.gmra.mxu0 %v279
        %v10396 = vpop.f32.mrf.mxu0
        %v10397 = vadd.f32 %v10356, %v10396
        %v10398 = vpop.f32.mrf.mxu0
        %v10399 = vadd.f32 %v10358, %v10398
        %v10400 = vpop.f32.mrf.mxu0
        %v10401 = vpop.f32.mrf.mxu0
        %10402 = vdwg.mxu0
        %10403 = vmatprep.subr.bf16.mxu0 %v7376
        %10404 = vmatpush1.bf16.msra.mxu0 %v7375
        %10405 = vmatprep.subr.bf16.mxu0 %v7352
        %10406 = vmatpush1.bf16.msra.mxu0 %v7351
        %10407 = vmatprep.subr.bf16.mxu0 %v7328
        %10408 = vmatpush1.bf16.msra.mxu0 %v7327
        %10409 = vmatprep.subr.bf16.mxu0 %v7304
        %10410 = vmatpush1.bf16.msra.mxu0 %v7303
        %10411 = vmatprep.subr.bf16.mxu0 %v7280
        %10412 = vmatpush1.bf16.msra.mxu0 %v7279
        %10413 = vmatprep.subr.bf16.mxu0 %v7256
        %10414 = vmatpush1.bf16.msra.mxu0 %v7255
        %10415 = vmatprep.subr.bf16.mxu0 %v7232
        %10416 = vmatpush1.bf16.msra.mxu0 %v7231
        %10417 = vmatprep.subr.bf16.mxu0 %v7208
        %10418 = vmatpush1.bf16.msra.mxu0 %v7207
        %10419 = vmatprep.subr.bf16.mxu0 %v7568
        %10420 = vmatpush2.bf16.msra.mxu0 %v7567
        %10421 = vmatprep.subr.bf16.mxu0 %v7544
        %10422 = vmatpush2.bf16.msra.mxu0 %v7543
        %10423 = vmatprep.subr.bf16.mxu0 %v7520
        %10424 = vmatpush2.bf16.msra.mxu0 %v7519
        %10425 = vmatprep.subr.bf16.mxu0 %v7496
        %10426 = vmatpush2.bf16.msra.mxu0 %v7495
        %10427 = vmatprep.subr.bf16.mxu0 %v7472
        %10428 = vmatpush2.bf16.msra.mxu0 %v7471
        %10429 = vmatprep.subr.bf16.mxu0 %v7448
        %10430 = vmatpush2.bf16.msra.mxu0 %v7447
        %10431 = vmatprep.subr.bf16.mxu0 %v7424
        %10432 = vmatpush2.bf16.msra.mxu0 %v7423
        %10433 = vmatprep.subr.bf16.mxu0 %v7400
        %10434 = vmatpush2.bf16.msra.mxu0 %v7399
        %10435 = vmatprep.mubr.bf16.mxu0 %v282
        %10436 = vmatmul.mubr.bf16.gmra.mxu0 %v281
        %v10437 = vpop.f32.mrf.mxu0
        %v10438 = vadd.f32 %v10397, %v10437
        %v10439 = vpop.f32.mrf.mxu0
        %v10440 = vadd.f32 %v10399, %v10439
        %v10441 = vpop.f32.mrf.mxu0
        %v10442 = vpop.f32.mrf.mxu0
        %10443 = vdwg.mxu0
        %10444 = vmatprep.subr.bf16.mxu0 %v7760
        %10445 = vmatpush1.bf16.msra.mxu0 %v7759
        %10446 = vmatprep.subr.bf16.mxu0 %v7736
        %10447 = vmatpush1.bf16.msra.mxu0 %v7735
        %10448 = vmatprep.subr.bf16.mxu0 %v7712
        %10449 = vmatpush1.bf16.msra.mxu0 %v7711
        %10450 = vmatprep.subr.bf16.mxu0 %v7688
        %10451 = vmatpush1.bf16.msra.mxu0 %v7687
        %10452 = vmatprep.subr.bf16.mxu0 %v7664
        %10453 = vmatpush1.bf16.msra.mxu0 %v7663
        %10454 = vmatprep.subr.bf16.mxu0 %v7640
        %10455 = vmatpush1.bf16.msra.mxu0 %v7639
        %10456 = vmatprep.subr.bf16.mxu0 %v7616
        %10457 = vmatpush1.bf16.msra.mxu0 %v7615
        %10458 = vmatprep.subr.bf16.mxu0 %v7592
        %10459 = vmatpush1.bf16.msra.mxu0 %v7591
        %10460 = vmatprep.subr.bf16.mxu0 %v7952
        %10461 = vmatpush2.bf16.msra.mxu0 %v7951
        %10462 = vmatprep.subr.bf16.mxu0 %v7928
        %10463 = vmatpush2.bf16.msra.mxu0 %v7927
        %10464 = vmatprep.subr.bf16.mxu0 %v7904
        %10465 = vmatpush2.bf16.msra.mxu0 %v7903
        %10466 = vmatprep.subr.bf16.mxu0 %v7880
        %10467 = vmatpush2.bf16.msra.mxu0 %v7879
        %10468 = vmatprep.subr.bf16.mxu0 %v7856
        %10469 = vmatpush2.bf16.msra.mxu0 %v7855
        %10470 = vmatprep.subr.bf16.mxu0 %v7832
        %10471 = vmatpush2.bf16.msra.mxu0 %v7831
        %10472 = vmatprep.subr.bf16.mxu0 %v7808
        %10473 = vmatpush2.bf16.msra.mxu0 %v7807
        %10474 = vmatprep.subr.bf16.mxu0 %v7784
        %10475 = vmatpush2.bf16.msra.mxu0 %v7783
        %10476 = vmatprep.mubr.bf16.mxu0 %v284
        %10477 = vmatmul.mubr.bf16.gmra.mxu0 %v283
        %v10478 = vpop.f32.mrf.mxu0
        %v10479 = vadd.f32 %v10438, %v10478
        %v10480 = vpop.f32.mrf.mxu0
        %v10481 = vadd.f32 %v10440, %v10480
        %v10482 = vpop.f32.mrf.mxu0
        %v10483 = vpop.f32.mrf.mxu0
        %10484 = vdwg.mxu0
        %10485 = vmatprep.subr.bf16.mxu0 %v6610
        %10486 = vmatpush1.bf16.msra.mxu0 %v6609
        %10487 = vmatprep.subr.bf16.mxu0 %v6586
        %10488 = vmatpush1.bf16.msra.mxu0 %v6585
        %10489 = vmatprep.subr.bf16.mxu0 %v6562
        %10490 = vmatpush1.bf16.msra.mxu0 %v6561
        %10491 = vmatprep.subr.bf16.mxu0 %v6538
        %10492 = vmatpush1.bf16.msra.mxu0 %v6537
        %10493 = vmatprep.subr.bf16.mxu0 %v6514
        %10494 = vmatpush1.bf16.msra.mxu0 %v6513
        %10495 = vmatprep.subr.bf16.mxu0 %v6490
        %10496 = vmatpush1.bf16.msra.mxu0 %v6489
        %10497 = vmatprep.subr.bf16.mxu0 %v6466
        %10498 = vmatpush1.bf16.msra.mxu0 %v6465
        %10499 = vmatprep.subr.bf16.mxu0 %v6442
        %10500 = vmatpush1.bf16.msra.mxu0 %v6441
        %10501 = vmatprep.subr.bf16.mxu0 %v6802
        %10502 = vmatpush2.bf16.msra.mxu0 %v6801
        %10503 = vmatprep.subr.bf16.mxu0 %v6778
        %10504 = vmatpush2.bf16.msra.mxu0 %v6777
        %10505 = vmatprep.subr.bf16.mxu0 %v6754
        %10506 = vmatpush2.bf16.msra.mxu0 %v6753
        %10507 = vmatprep.subr.bf16.mxu0 %v6730
        %10508 = vmatpush2.bf16.msra.mxu0 %v6729
        %10509 = vmatprep.subr.bf16.mxu0 %v6706
        %10510 = vmatpush2.bf16.msra.mxu0 %v6705
        %10511 = vmatprep.subr.bf16.mxu0 %v6682
        %10512 = vmatpush2.bf16.msra.mxu0 %v6681
        %10513 = vmatprep.subr.bf16.mxu0 %v6658
        %10514 = vmatpush2.bf16.msra.mxu0 %v6657
        %10515 = vmatprep.subr.bf16.mxu0 %v6634
        %10516 = vmatpush2.bf16.msra.mxu0 %v6633
        %10517 = vmatprep.mubr.bf16.mxu0 %v278
        %10518 = vmatmul.mubr.bf16.gmra.mxu0 %v277
        %v10519 = vpop.f32.mrf.mxu0
        %v10520 = vadd.f32 0.0, %v10519
        %v10521 = vpop.f32.mrf.mxu0
        %v10522 = vadd.f32 0.0, %v10521
        %v10523 = vpop.f32.mrf.mxu0
        %v10524 = vpop.f32.mrf.mxu0
        %10525 = vdwg.mxu0
        %10526 = vmatprep.subr.bf16.mxu0 %v6994
        %10527 = vmatpush1.bf16.msra.mxu0 %v6993
        %10528 = vmatprep.subr.bf16.mxu0 %v6970
        %10529 = vmatpush1.bf16.msra.mxu0 %v6969
        %10530 = vmatprep.subr.bf16.mxu0 %v6946
        %10531 = vmatpush1.bf16.msra.mxu0 %v6945
        %10532 = vmatprep.subr.bf16.mxu0 %v6922
        %10533 = vmatpush1.bf16.msra.mxu0 %v6921
        %10534 = vmatprep.subr.bf16.mxu0 %v6898
        %10535 = vmatpush1.bf16.msra.mxu0 %v6897
        %10536 = vmatprep.subr.bf16.mxu0 %v6874
        %10537 = vmatpush1.bf16.msra.mxu0 %v6873
        %10538 = vmatprep.subr.bf16.mxu0 %v6850
        %10539 = vmatpush1.bf16.msra.mxu0 %v6849
        %10540 = vmatprep.subr.bf16.mxu0 %v6826
        %10541 = vmatpush1.bf16.msra.mxu0 %v6825
        %10542 = vmatprep.subr.bf16.mxu0 %v7186
        %10543 = vmatpush2.bf16.msra.mxu0 %v7185
        %10544 = vmatprep.subr.bf16.mxu0 %v7162
        %10545 = vmatpush2.bf16.msra.mxu0 %v7161
        %10546 = vmatprep.subr.bf16.mxu0 %v7138
        %10547 = vmatpush2.bf16.msra.mxu0 %v7137
        %10548 = vmatprep.subr.bf16.mxu0 %v7114
        %10549 = vmatpush2.bf16.msra.mxu0 %v7113
        %10550 = vmatprep.subr.bf16.mxu0 %v7090
        %10551 = vmatpush2.bf16.msra.mxu0 %v7089
        %10552 = vmatprep.subr.bf16.mxu0 %v7066
        %10553 = vmatpush2.bf16.msra.mxu0 %v7065
        %10554 = vmatprep.subr.bf16.mxu0 %v7042
        %10555 = vmatpush2.bf16.msra.mxu0 %v7041
        %10556 = vmatprep.subr.bf16.mxu0 %v7018
        %10557 = vmatpush2.bf16.msra.mxu0 %v7017
        %10558 = vmatprep.mubr.bf16.mxu0 %v280
        %10559 = vmatmul.mubr.bf16.gmra.mxu0 %v279
        %v10560 = vpop.f32.mrf.mxu0
        %v10561 = vadd.f32 %v10520, %v10560
        %v10562 = vpop.f32.mrf.mxu0
        %v10563 = vadd.f32 %v10522, %v10562
        %v10564 = vpop.f32.mrf.mxu0
        %v10565 = vpop.f32.mrf.mxu0
        %10566 = vdwg.mxu0
        %10567 = vmatprep.subr.bf16.mxu0 %v7378
        %10568 = vmatpush1.bf16.msra.mxu0 %v7377
        %10569 = vmatprep.subr.bf16.mxu0 %v7354
        %10570 = vmatpush1.bf16.msra.mxu0 %v7353
        %10571 = vmatprep.subr.bf16.mxu0 %v7330
        %10572 = vmatpush1.bf16.msra.mxu0 %v7329
        %10573 = vmatprep.subr.bf16.mxu0 %v7306
        %10574 = vmatpush1.bf16.msra.mxu0 %v7305
        %10575 = vmatprep.subr.bf16.mxu0 %v7282
        %10576 = vmatpush1.bf16.msra.mxu0 %v7281
        %10577 = vmatprep.subr.bf16.mxu0 %v7258
        %10578 = vmatpush1.bf16.msra.mxu0 %v7257
        %10579 = vmatprep.subr.bf16.mxu0 %v7234
        %10580 = vmatpush1.bf16.msra.mxu0 %v7233
        %10581 = vmatprep.subr.bf16.mxu0 %v7210
        %10582 = vmatpush1.bf16.msra.mxu0 %v7209
        %10583 = vmatprep.subr.bf16.mxu0 %v7570
        %10584 = vmatpush2.bf16.msra.mxu0 %v7569
        %10585 = vmatprep.subr.bf16.mxu0 %v7546
        %10586 = vmatpush2.bf16.msra.mxu0 %v7545
        %10587 = vmatprep.subr.bf16.mxu0 %v7522
        %10588 = vmatpush2.bf16.msra.mxu0 %v7521
        %10589 = vmatprep.subr.bf16.mxu0 %v7498
        %10590 = vmatpush2.bf16.msra.mxu0 %v7497
        %10591 = vmatprep.subr.bf16.mxu0 %v7474
        %10592 = vmatpush2.bf16.msra.mxu0 %v7473
        %10593 = vmatprep.subr.bf16.mxu0 %v7450
        %10594 = vmatpush2.bf16.msra.mxu0 %v7449
        %10595 = vmatprep.subr.bf16.mxu0 %v7426
        %10596 = vmatpush2.bf16.msra.mxu0 %v7425
        %10597 = vmatprep.subr.bf16.mxu0 %v7402
        %10598 = vmatpush2.bf16.msra.mxu0 %v7401
        %10599 = vmatprep.mubr.bf16.mxu0 %v282
        %10600 = vmatmul.mubr.bf16.gmra.mxu0 %v281
        %v10601 = vpop.f32.mrf.mxu0
        %v10602 = vadd.f32 %v10561, %v10601
        %v10603 = vpop.f32.mrf.mxu0
        %v10604 = vadd.f32 %v10563, %v10603
        %v10605 = vpop.f32.mrf.mxu0
        %v10606 = vpop.f32.mrf.mxu0
        %10607 = vdwg.mxu0
        %10608 = vmatprep.subr.bf16.mxu0 %v7762
        %10609 = vmatpush1.bf16.msra.mxu0 %v7761
        %10610 = vmatprep.subr.bf16.mxu0 %v7738
        %10611 = vmatpush1.bf16.msra.mxu0 %v7737
        %10612 = vmatprep.subr.bf16.mxu0 %v7714
        %10613 = vmatpush1.bf16.msra.mxu0 %v7713
        %10614 = vmatprep.subr.bf16.mxu0 %v7690
        %10615 = vmatpush1.bf16.msra.mxu0 %v7689
        %10616 = vmatprep.subr.bf16.mxu0 %v7666
        %10617 = vmatpush1.bf16.msra.mxu0 %v7665
        %10618 = vmatprep.subr.bf16.mxu0 %v7642
        %10619 = vmatpush1.bf16.msra.mxu0 %v7641
        %10620 = vmatprep.subr.bf16.mxu0 %v7618
        %10621 = vmatpush1.bf16.msra.mxu0 %v7617
        %10622 = vmatprep.subr.bf16.mxu0 %v7594
        %10623 = vmatpush1.bf16.msra.mxu0 %v7593
        %10624 = vmatprep.subr.bf16.mxu0 %v7954
        %10625 = vmatpush2.bf16.msra.mxu0 %v7953
        %10626 = vmatprep.subr.bf16.mxu0 %v7930
        %10627 = vmatpush2.bf16.msra.mxu0 %v7929
        %10628 = vmatprep.subr.bf16.mxu0 %v7906
        %10629 = vmatpush2.bf16.msra.mxu0 %v7905
        %10630 = vmatprep.subr.bf16.mxu0 %v7882
        %10631 = vmatpush2.bf16.msra.mxu0 %v7881
        %10632 = vmatprep.subr.bf16.mxu0 %v7858
        %10633 = vmatpush2.bf16.msra.mxu0 %v7857
        %10634 = vmatprep.subr.bf16.mxu0 %v7834
        %10635 = vmatpush2.bf16.msra.mxu0 %v7833
        %10636 = vmatprep.subr.bf16.mxu0 %v7810
        %10637 = vmatpush2.bf16.msra.mxu0 %v7809
        %10638 = vmatprep.subr.bf16.mxu0 %v7786
        %10639 = vmatpush2.bf16.msra.mxu0 %v7785
        %10640 = vmatprep.mubr.bf16.mxu0 %v284
        %10641 = vmatmul.mubr.bf16.gmra.mxu0 %v283
        %v10642 = vpop.f32.mrf.mxu0
        %v10643 = vadd.f32 %v10602, %v10642
        %v10644 = vpop.f32.mrf.mxu0
        %v10645 = vadd.f32 %v10604, %v10644
        %v10646 = vpop.f32.mrf.mxu0
        %v10647 = vpop.f32.mrf.mxu0
        %10648 = vdwg.mxu0
        %10649 = vmatprep.subr.bf16.mxu0 %v6612
        %10650 = vmatpush1.bf16.msra.mxu0 %v6611
        %10651 = vmatprep.subr.bf16.mxu0 %v6588
        %10652 = vmatpush1.bf16.msra.mxu0 %v6587
        %10653 = vmatprep.subr.bf16.mxu0 %v6564
        %10654 = vmatpush1.bf16.msra.mxu0 %v6563
        %10655 = vmatprep.subr.bf16.mxu0 %v6540
        %10656 = vmatpush1.bf16.msra.mxu0 %v6539
        %10657 = vmatprep.subr.bf16.mxu0 %v6516
        %10658 = vmatpush1.bf16.msra.mxu0 %v6515
        %10659 = vmatprep.subr.bf16.mxu0 %v6492
        %10660 = vmatpush1.bf16.msra.mxu0 %v6491
        %10661 = vmatprep.subr.bf16.mxu0 %v6468
        %10662 = vmatpush1.bf16.msra.mxu0 %v6467
        %10663 = vmatprep.subr.bf16.mxu0 %v6444
        %10664 = vmatpush1.bf16.msra.mxu0 %v6443
        %10665 = vmatprep.subr.bf16.mxu0 %v6804
        %10666 = vmatpush2.bf16.msra.mxu0 %v6803
        %10667 = vmatprep.subr.bf16.mxu0 %v6780
        %10668 = vmatpush2.bf16.msra.mxu0 %v6779
        %10669 = vmatprep.subr.bf16.mxu0 %v6756
        %10670 = vmatpush2.bf16.msra.mxu0 %v6755
        %10671 = vmatprep.subr.bf16.mxu0 %v6732
        %10672 = vmatpush2.bf16.msra.mxu0 %v6731
        %10673 = vmatprep.subr.bf16.mxu0 %v6708
        %10674 = vmatpush2.bf16.msra.mxu0 %v6707
        %10675 = vmatprep.subr.bf16.mxu0 %v6684
        %10676 = vmatpush2.bf16.msra.mxu0 %v6683
        %10677 = vmatprep.subr.bf16.mxu0 %v6660
        %10678 = vmatpush2.bf16.msra.mxu0 %v6659
        %10679 = vmatprep.subr.bf16.mxu0 %v6636
        %10680 = vmatpush2.bf16.msra.mxu0 %v6635
        %10681 = vmatprep.mubr.bf16.mxu0 %v278
        %10682 = vmatmul.mubr.bf16.gmra.mxu0 %v277
        %v10683 = vpop.f32.mrf.mxu0
        %v10684 = vadd.f32 0.0, %v10683
        %v10685 = vpop.f32.mrf.mxu0
        %v10686 = vadd.f32 0.0, %v10685
        %v10687 = vpop.f32.mrf.mxu0
        %v10688 = vpop.f32.mrf.mxu0
        %10689 = vdwg.mxu0
        %10690 = vmatprep.subr.bf16.mxu0 %v6996
        %10691 = vmatpush1.bf16.msra.mxu0 %v6995
        %10692 = vmatprep.subr.bf16.mxu0 %v6972
        %10693 = vmatpush1.bf16.msra.mxu0 %v6971
        %10694 = vmatprep.subr.bf16.mxu0 %v6948
        %10695 = vmatpush1.bf16.msra.mxu0 %v6947
        %10696 = vmatprep.subr.bf16.mxu0 %v6924
        %10697 = vmatpush1.bf16.msra.mxu0 %v6923
        %10698 = vmatprep.subr.bf16.mxu0 %v6900
        %10699 = vmatpush1.bf16.msra.mxu0 %v6899
        %10700 = vmatprep.subr.bf16.mxu0 %v6876
        %10701 = vmatpush1.bf16.msra.mxu0 %v6875
        %10702 = vmatprep.subr.bf16.mxu0 %v6852
        %10703 = vmatpush1.bf16.msra.mxu0 %v6851
        %10704 = vmatprep.subr.bf16.mxu0 %v6828
        %10705 = vmatpush1.bf16.msra.mxu0 %v6827
        %10706 = vmatprep.subr.bf16.mxu0 %v7188
        %10707 = vmatpush2.bf16.msra.mxu0 %v7187
        %10708 = vmatprep.subr.bf16.mxu0 %v7164
        %10709 = vmatpush2.bf16.msra.mxu0 %v7163
        %10710 = vmatprep.subr.bf16.mxu0 %v7140
        %10711 = vmatpush2.bf16.msra.mxu0 %v7139
        %10712 = vmatprep.subr.bf16.mxu0 %v7116
        %10713 = vmatpush2.bf16.msra.mxu0 %v7115
        %10714 = vmatprep.subr.bf16.mxu0 %v7092
        %10715 = vmatpush2.bf16.msra.mxu0 %v7091
        %10716 = vmatprep.subr.bf16.mxu0 %v7068
        %10717 = vmatpush2.bf16.msra.mxu0 %v7067
        %10718 = vmatprep.subr.bf16.mxu0 %v7044
        %10719 = vmatpush2.bf16.msra.mxu0 %v7043
        %10720 = vmatprep.subr.bf16.mxu0 %v7020
        %10721 = vmatpush2.bf16.msra.mxu0 %v7019
        %10722 = vmatprep.mubr.bf16.mxu0 %v280
        %10723 = vmatmul.mubr.bf16.gmra.mxu0 %v279
        %v10724 = vpop.f32.mrf.mxu0
        %v10725 = vadd.f32 %v10684, %v10724
        %v10726 = vpop.f32.mrf.mxu0
        %v10727 = vadd.f32 %v10686, %v10726
        %v10728 = vpop.f32.mrf.mxu0
        %v10729 = vpop.f32.mrf.mxu0
        %10730 = vdwg.mxu0
        %10731 = vmatprep.subr.bf16.mxu0 %v7380
        %10732 = vmatpush1.bf16.msra.mxu0 %v7379
        %10733 = vmatprep.subr.bf16.mxu0 %v7356
        %10734 = vmatpush1.bf16.msra.mxu0 %v7355
        %10735 = vmatprep.subr.bf16.mxu0 %v7332
        %10736 = vmatpush1.bf16.msra.mxu0 %v7331
        %10737 = vmatprep.subr.bf16.mxu0 %v7308
        %10738 = vmatpush1.bf16.msra.mxu0 %v7307
        %10739 = vmatprep.subr.bf16.mxu0 %v7284
        %10740 = vmatpush1.bf16.msra.mxu0 %v7283
        %10741 = vmatprep.subr.bf16.mxu0 %v7260
        %10742 = vmatpush1.bf16.msra.mxu0 %v7259
        %10743 = vmatprep.subr.bf16.mxu0 %v7236
        %10744 = vmatpush1.bf16.msra.mxu0 %v7235
        %10745 = vmatprep.subr.bf16.mxu0 %v7212
        %10746 = vmatpush1.bf16.msra.mxu0 %v7211
        %10747 = vmatprep.subr.bf16.mxu0 %v7572
        %10748 = vmatpush2.bf16.msra.mxu0 %v7571
        %10749 = vmatprep.subr.bf16.mxu0 %v7548
        %10750 = vmatpush2.bf16.msra.mxu0 %v7547
        %10751 = vmatprep.subr.bf16.mxu0 %v7524
        %10752 = vmatpush2.bf16.msra.mxu0 %v7523
        %10753 = vmatprep.subr.bf16.mxu0 %v7500
        %10754 = vmatpush2.bf16.msra.mxu0 %v7499
        %10755 = vmatprep.subr.bf16.mxu0 %v7476
        %10756 = vmatpush2.bf16.msra.mxu0 %v7475
        %10757 = vmatprep.subr.bf16.mxu0 %v7452
        %10758 = vmatpush2.bf16.msra.mxu0 %v7451
        %10759 = vmatprep.subr.bf16.mxu0 %v7428
        %10760 = vmatpush2.bf16.msra.mxu0 %v7427
        %10761 = vmatprep.subr.bf16.mxu0 %v7404
        %10762 = vmatpush2.bf16.msra.mxu0 %v7403
        %10763 = vmatprep.mubr.bf16.mxu0 %v282
        %10764 = vmatmul.mubr.bf16.gmra.mxu0 %v281
        %v10765 = vpop.f32.mrf.mxu0
        %v10766 = vadd.f32 %v10725, %v10765
        %v10767 = vpop.f32.mrf.mxu0
        %v10768 = vadd.f32 %v10727, %v10767
        %v10769 = vpop.f32.mrf.mxu0
        %v10770 = vpop.f32.mrf.mxu0
        %10771 = vdwg.mxu0
        %10772 = vmatprep.subr.bf16.mxu0 %v7764
        %10773 = vmatpush1.bf16.msra.mxu0 %v7763
        %10774 = vmatprep.subr.bf16.mxu0 %v7740
        %10775 = vmatpush1.bf16.msra.mxu0 %v7739
        %10776 = vmatprep.subr.bf16.mxu0 %v7716
        %10777 = vmatpush1.bf16.msra.mxu0 %v7715
        %10778 = vmatprep.subr.bf16.mxu0 %v7692
        %10779 = vmatpush1.bf16.msra.mxu0 %v7691
        %10780 = vmatprep.subr.bf16.mxu0 %v7668
        %10781 = vmatpush1.bf16.msra.mxu0 %v7667
        %10782 = vmatprep.subr.bf16.mxu0 %v7644
        %10783 = vmatpush1.bf16.msra.mxu0 %v7643
        %10784 = vmatprep.subr.bf16.mxu0 %v7620
        %10785 = vmatpush1.bf16.msra.mxu0 %v7619
        %10786 = vmatprep.subr.bf16.mxu0 %v7596
        %10787 = vmatpush1.bf16.msra.mxu0 %v7595
        %10788 = vmatprep.subr.bf16.mxu0 %v7956
        %10789 = vmatpush2.bf16.msra.mxu0 %v7955
        %10790 = vmatprep.subr.bf16.mxu0 %v7932
        %10791 = vmatpush2.bf16.msra.mxu0 %v7931
        %10792 = vmatprep.subr.bf16.mxu0 %v7908
        %10793 = vmatpush2.bf16.msra.mxu0 %v7907
        %10794 = vmatprep.subr.bf16.mxu0 %v7884
        %10795 = vmatpush2.bf16.msra.mxu0 %v7883
        %10796 = vmatprep.subr.bf16.mxu0 %v7860
        %10797 = vmatpush2.bf16.msra.mxu0 %v7859
        %10798 = vmatprep.subr.bf16.mxu0 %v7836
        %10799 = vmatpush2.bf16.msra.mxu0 %v7835
        %10800 = vmatprep.subr.bf16.mxu0 %v7812
        %10801 = vmatpush2.bf16.msra.mxu0 %v7811
        %10802 = vmatprep.subr.bf16.mxu0 %v7788
        %10803 = vmatpush2.bf16.msra.mxu0 %v7787
        %10804 = vmatprep.mubr.bf16.mxu0 %v284
        %10805 = vmatmul.mubr.bf16.gmra.mxu0 %v283
        %v10806 = vpop.f32.mrf.mxu0
        %v10807 = vadd.f32 %v10766, %v10806
        %v10808 = vpop.f32.mrf.mxu0
        %v10809 = vadd.f32 %v10768, %v10808
        %v10810 = vpop.f32.mrf.mxu0
        %v10811 = vpop.f32.mrf.mxu0
        %10812 = vdwg.mxu0
        %10813 = vmatprep.subr.bf16.mxu0 %v6614
        %10814 = vmatpush1.bf16.msra.mxu0 %v6613
        %10815 = vmatprep.subr.bf16.mxu0 %v6590
        %10816 = vmatpush1.bf16.msra.mxu0 %v6589
        %10817 = vmatprep.subr.bf16.mxu0 %v6566
        %10818 = vmatpush1.bf16.msra.mxu0 %v6565
        %10819 = vmatprep.subr.bf16.mxu0 %v6542
        %10820 = vmatpush1.bf16.msra.mxu0 %v6541
        %10821 = vmatprep.subr.bf16.mxu0 %v6518
        %10822 = vmatpush1.bf16.msra.mxu0 %v6517
        %10823 = vmatprep.subr.bf16.mxu0 %v6494
        %10824 = vmatpush1.bf16.msra.mxu0 %v6493
        %10825 = vmatprep.subr.bf16.mxu0 %v6470
        %10826 = vmatpush1.bf16.msra.mxu0 %v6469
        %10827 = vmatprep.subr.bf16.mxu0 %v6446
        %10828 = vmatpush1.bf16.msra.mxu0 %v6445
        %10829 = vmatprep.subr.bf16.mxu0 %v6806
        %10830 = vmatpush2.bf16.msra.mxu0 %v6805
        %10831 = vmatprep.subr.bf16.mxu0 %v6782
        %10832 = vmatpush2.bf16.msra.mxu0 %v6781
        %10833 = vmatprep.subr.bf16.mxu0 %v6758
        %10834 = vmatpush2.bf16.msra.mxu0 %v6757
        %10835 = vmatprep.subr.bf16.mxu0 %v6734
        %10836 = vmatpush2.bf16.msra.mxu0 %v6733
        %10837 = vmatprep.subr.bf16.mxu0 %v6710
        %10838 = vmatpush2.bf16.msra.mxu0 %v6709
        %10839 = vmatprep.subr.bf16.mxu0 %v6686
        %10840 = vmatpush2.bf16.msra.mxu0 %v6685
        %10841 = vmatprep.subr.bf16.mxu0 %v6662
        %10842 = vmatpush2.bf16.msra.mxu0 %v6661
        %10843 = vmatprep.subr.bf16.mxu0 %v6638
        %10844 = vmatpush2.bf16.msra.mxu0 %v6637
        %10845 = vmatprep.mubr.bf16.mxu0 %v278
        %10846 = vmatmul.mubr.bf16.gmra.mxu0 %v277
        %v10847 = vpop.f32.mrf.mxu0
        %v10848 = vadd.f32 0.0, %v10847
        %v10849 = vpop.f32.mrf.mxu0
        %v10850 = vadd.f32 0.0, %v10849
        %v10851 = vpop.f32.mrf.mxu0
        %v10852 = vpop.f32.mrf.mxu0
        %10853 = vdwg.mxu0
        %10854 = vmatprep.subr.bf16.mxu0 %v6998
        %10855 = vmatpush1.bf16.msra.mxu0 %v6997
        %10856 = vmatprep.subr.bf16.mxu0 %v6974
        %10857 = vmatpush1.bf16.msra.mxu0 %v6973
        %10858 = vmatprep.subr.bf16.mxu0 %v6950
        %10859 = vmatpush1.bf16.msra.mxu0 %v6949
        %10860 = vmatprep.subr.bf16.mxu0 %v6926
        %10861 = vmatpush1.bf16.msra.mxu0 %v6925
        %10862 = vmatprep.subr.bf16.mxu0 %v6902
        %10863 = vmatpush1.bf16.msra.mxu0 %v6901
        %10864 = vmatprep.subr.bf16.mxu0 %v6878
        %10865 = vmatpush1.bf16.msra.mxu0 %v6877
        %10866 = vmatprep.subr.bf16.mxu0 %v6854
        %10867 = vmatpush1.bf16.msra.mxu0 %v6853
        %10868 = vmatprep.subr.bf16.mxu0 %v6830
        %10869 = vmatpush1.bf16.msra.mxu0 %v6829
        %10870 = vmatprep.subr.bf16.mxu0 %v7190
        %10871 = vmatpush2.bf16.msra.mxu0 %v7189
        %10872 = vmatprep.subr.bf16.mxu0 %v7166
        %10873 = vmatpush2.bf16.msra.mxu0 %v7165
        %10874 = vmatprep.subr.bf16.mxu0 %v7142
        %10875 = vmatpush2.bf16.msra.mxu0 %v7141
        %10876 = vmatprep.subr.bf16.mxu0 %v7118
        %10877 = vmatpush2.bf16.msra.mxu0 %v7117
        %10878 = vmatprep.subr.bf16.mxu0 %v7094
        %10879 = vmatpush2.bf16.msra.mxu0 %v7093
        %10880 = vmatprep.subr.bf16.mxu0 %v7070
        %10881 = vmatpush2.bf16.msra.mxu0 %v7069
        %10882 = vmatprep.subr.bf16.mxu0 %v7046
        %10883 = vmatpush2.bf16.msra.mxu0 %v7045
        %10884 = vmatprep.subr.bf16.mxu0 %v7022
        %10885 = vmatpush2.bf16.msra.mxu0 %v7021
        %10886 = vmatprep.mubr.bf16.mxu0 %v280
        %10887 = vmatmul.mubr.bf16.gmra.mxu0 %v279
        %v10888 = vpop.f32.mrf.mxu0
        %v10889 = vadd.f32 %v10848, %v10888
        %v10890 = vpop.f32.mrf.mxu0
        %v10891 = vadd.f32 %v10850, %v10890
        %v10892 = vpop.f32.mrf.mxu0
        %v10893 = vpop.f32.mrf.mxu0
        %10894 = vdwg.mxu0
        %10895 = vmatprep.subr.bf16.mxu0 %v7382
        %10896 = vmatpush1.bf16.msra.mxu0 %v7381
        %10897 = vmatprep.subr.bf16.mxu0 %v7358
        %10898 = vmatpush1.bf16.msra.mxu0 %v7357
        %10899 = vmatprep.subr.bf16.mxu0 %v7334
        %10900 = vmatpush1.bf16.msra.mxu0 %v7333
        %10901 = vmatprep.subr.bf16.mxu0 %v7310
        %10902 = vmatpush1.bf16.msra.mxu0 %v7309
        %10903 = vmatprep.subr.bf16.mxu0 %v7286
        %10904 = vmatpush1.bf16.msra.mxu0 %v7285
        %10905 = vmatprep.subr.bf16.mxu0 %v7262
        %10906 = vmatpush1.bf16.msra.mxu0 %v7261
        %10907 = vmatprep.subr.bf16.mxu0 %v7238
        %10908 = vmatpush1.bf16.msra.mxu0 %v7237
        %10909 = vmatprep.subr.bf16.mxu0 %v7214
        %10910 = vmatpush1.bf16.msra.mxu0 %v7213
        %10911 = vmatprep.subr.bf16.mxu0 %v7574
        %10912 = vmatpush2.bf16.msra.mxu0 %v7573
        %10913 = vmatprep.subr.bf16.mxu0 %v7550
        %10914 = vmatpush2.bf16.msra.mxu0 %v7549
        %10915 = vmatprep.subr.bf16.mxu0 %v7526
        %10916 = vmatpush2.bf16.msra.mxu0 %v7525
        %10917 = vmatprep.subr.bf16.mxu0 %v7502
        %10918 = vmatpush2.bf16.msra.mxu0 %v7501
        %10919 = vmatprep.subr.bf16.mxu0 %v7478
        %10920 = vmatpush2.bf16.msra.mxu0 %v7477
        %10921 = vmatprep.subr.bf16.mxu0 %v7454
        %10922 = vmatpush2.bf16.msra.mxu0 %v7453
        %10923 = vmatprep.subr.bf16.mxu0 %v7430
        %10924 = vmatpush2.bf16.msra.mxu0 %v7429
        %10925 = vmatprep.subr.bf16.mxu0 %v7406
        %10926 = vmatpush2.bf16.msra.mxu0 %v7405
        %10927 = vmatprep.mubr.bf16.mxu0 %v282
        %10928 = vmatmul.mubr.bf16.gmra.mxu0 %v281
        %v10929 = vpop.f32.mrf.mxu0
        %v10930 = vadd.f32 %v10889, %v10929
        %v10931 = vpop.f32.mrf.mxu0
        %v10932 = vadd.f32 %v10891, %v10931
        %v10933 = vpop.f32.mrf.mxu0
        %v10934 = vpop.f32.mrf.mxu0
        %10935 = vdwg.mxu0
        %10936 = vmatprep.subr.bf16.mxu0 %v7766
        %10937 = vmatpush1.bf16.msra.mxu0 %v7765
        %10938 = vmatprep.subr.bf16.mxu0 %v7742
        %10939 = vmatpush1.bf16.msra.mxu0 %v7741
        %10940 = vmatprep.subr.bf16.mxu0 %v7718
        %10941 = vmatpush1.bf16.msra.mxu0 %v7717
        %10942 = vmatprep.subr.bf16.mxu0 %v7694
        %10943 = vmatpush1.bf16.msra.mxu0 %v7693
        %10944 = vmatprep.subr.bf16.mxu0 %v7670
        %10945 = vmatpush1.bf16.msra.mxu0 %v7669
        %10946 = vmatprep.subr.bf16.mxu0 %v7646
        %10947 = vmatpush1.bf16.msra.mxu0 %v7645
        %10948 = vmatprep.subr.bf16.mxu0 %v7622
        %10949 = vmatpush1.bf16.msra.mxu0 %v7621
        %10950 = vmatprep.subr.bf16.mxu0 %v7598
        %10951 = vmatpush1.bf16.msra.mxu0 %v7597
        %10952 = vmatprep.subr.bf16.mxu0 %v7958
        %10953 = vmatpush2.bf16.msra.mxu0 %v7957
        %10954 = vmatprep.subr.bf16.mxu0 %v7934
        %10955 = vmatpush2.bf16.msra.mxu0 %v7933
        %10956 = vmatprep.subr.bf16.mxu0 %v7910
        %10957 = vmatpush2.bf16.msra.mxu0 %v7909
        %10958 = vmatprep.subr.bf16.mxu0 %v7886
        %10959 = vmatpush2.bf16.msra.mxu0 %v7885
        %10960 = vmatprep.subr.bf16.mxu0 %v7862
        %10961 = vmatpush2.bf16.msra.mxu0 %v7861
        %10962 = vmatprep.subr.bf16.mxu0 %v7838
        %10963 = vmatpush2.bf16.msra.mxu0 %v7837
        %10964 = vmatprep.subr.bf16.mxu0 %v7814
        %10965 = vmatpush2.bf16.msra.mxu0 %v7813
        %10966 = vmatprep.subr.bf16.mxu0 %v7790
        %10967 = vmatpush2.bf16.msra.mxu0 %v7789
        %10968 = vmatprep.mubr.bf16.mxu0 %v284
        %10969 = vmatmul.mubr.bf16.gmra.mxu0 %v283
        %v10970 = vpop.f32.mrf.mxu0
        %v10971 = vadd.f32 %v10930, %v10970
        %v10972 = vpop.f32.mrf.mxu0
        %v10973 = vadd.f32 %v10932, %v10972
        %v10974 = vpop.f32.mrf.mxu0
        %v10975 = vpop.f32.mrf.mxu0
        %10976 = vdwg.mxu0
        %10977 = vmatprep.subr.bf16.mxu0 %v6616
        %10978 = vmatpush1.bf16.msra.mxu0 %v6615
        %10979 = vmatprep.subr.bf16.mxu0 %v6592
        %10980 = vmatpush1.bf16.msra.mxu0 %v6591
        %10981 = vmatprep.subr.bf16.mxu0 %v6568
        %10982 = vmatpush1.bf16.msra.mxu0 %v6567
        %10983 = vmatprep.subr.bf16.mxu0 %v6544
        %10984 = vmatpush1.bf16.msra.mxu0 %v6543
        %10985 = vmatprep.subr.bf16.mxu0 %v6520
        %10986 = vmatpush1.bf16.msra.mxu0 %v6519
        %10987 = vmatprep.subr.bf16.mxu0 %v6496
        %10988 = vmatpush1.bf16.msra.mxu0 %v6495
        %10989 = vmatprep.subr.bf16.mxu0 %v6472
        %10990 = vmatpush1.bf16.msra.mxu0 %v6471
        %10991 = vmatprep.subr.bf16.mxu0 %v6448
        %10992 = vmatpush1.bf16.msra.mxu0 %v6447
        %10993 = vmatprep.subr.bf16.mxu0 %v6808
        %10994 = vmatpush2.bf16.msra.mxu0 %v6807
        %10995 = vmatprep.subr.bf16.mxu0 %v6784
        %10996 = vmatpush2.bf16.msra.mxu0 %v6783
        %10997 = vmatprep.subr.bf16.mxu0 %v6760
        %10998 = vmatpush2.bf16.msra.mxu0 %v6759
        %10999 = vmatprep.subr.bf16.mxu0 %v6736
        %11000 = vmatpush2.bf16.msra.mxu0 %v6735
        %11001 = vmatprep.subr.bf16.mxu0 %v6712
        %11002 = vmatpush2.bf16.msra.mxu0 %v6711
        %11003 = vmatprep.subr.bf16.mxu0 %v6688
        %11004 = vmatpush2.bf16.msra.mxu0 %v6687
        %11005 = vmatprep.subr.bf16.mxu0 %v6664
        %11006 = vmatpush2.bf16.msra.mxu0 %v6663
        %11007 = vmatprep.subr.bf16.mxu0 %v6640
        %11008 = vmatpush2.bf16.msra.mxu0 %v6639
        %11009 = vmatprep.mubr.bf16.mxu0 %v278
        %11010 = vmatmul.mubr.bf16.gmra.mxu0 %v277
        %v11011 = vpop.f32.mrf.mxu0
        %v11012 = vadd.f32 0.0, %v11011
        %v11013 = vpop.f32.mrf.mxu0
        %v11014 = vadd.f32 0.0, %v11013
        %v11015 = vpop.f32.mrf.mxu0
        %v11016 = vpop.f32.mrf.mxu0
        %11017 = vdwg.mxu0
        %11018 = vmatprep.subr.bf16.mxu0 %v7000
        %11019 = vmatpush1.bf16.msra.mxu0 %v6999
        %11020 = vmatprep.subr.bf16.mxu0 %v6976
        %11021 = vmatpush1.bf16.msra.mxu0 %v6975
        %11022 = vmatprep.subr.bf16.mxu0 %v6952
        %11023 = vmatpush1.bf16.msra.mxu0 %v6951
        %11024 = vmatprep.subr.bf16.mxu0 %v6928
        %11025 = vmatpush1.bf16.msra.mxu0 %v6927
        %11026 = vmatprep.subr.bf16.mxu0 %v6904
        %11027 = vmatpush1.bf16.msra.mxu0 %v6903
        %11028 = vmatprep.subr.bf16.mxu0 %v6880
        %11029 = vmatpush1.bf16.msra.mxu0 %v6879
        %11030 = vmatprep.subr.bf16.mxu0 %v6856
        %11031 = vmatpush1.bf16.msra.mxu0 %v6855
        %11032 = vmatprep.subr.bf16.mxu0 %v6832
        %11033 = vmatpush1.bf16.msra.mxu0 %v6831
        %11034 = vmatprep.subr.bf16.mxu0 %v7192
        %11035 = vmatpush2.bf16.msra.mxu0 %v7191
        %11036 = vmatprep.subr.bf16.mxu0 %v7168
        %11037 = vmatpush2.bf16.msra.mxu0 %v7167
        %11038 = vmatprep.subr.bf16.mxu0 %v7144
        %11039 = vmatpush2.bf16.msra.mxu0 %v7143
        %11040 = vmatprep.subr.bf16.mxu0 %v7120
        %11041 = vmatpush2.bf16.msra.mxu0 %v7119
        %11042 = vmatprep.subr.bf16.mxu0 %v7096
        %11043 = vmatpush2.bf16.msra.mxu0 %v7095
        %11044 = vmatprep.subr.bf16.mxu0 %v7072
        %11045 = vmatpush2.bf16.msra.mxu0 %v7071
        %11046 = vmatprep.subr.bf16.mxu0 %v7048
        %11047 = vmatpush2.bf16.msra.mxu0 %v7047
        %11048 = vmatprep.subr.bf16.mxu0 %v7024
        %11049 = vmatpush2.bf16.msra.mxu0 %v7023
        %11050 = vmatprep.mubr.bf16.mxu0 %v280
        %11051 = vmatmul.mubr.bf16.gmra.mxu0 %v279
        %v11052 = vpop.f32.mrf.mxu0
        %v11053 = vadd.f32 %v11012, %v11052
        %v11054 = vpop.f32.mrf.mxu0
        %v11055 = vadd.f32 %v11014, %v11054
        %v11056 = vpop.f32.mrf.mxu0
        %v11057 = vpop.f32.mrf.mxu0
        %11058 = vdwg.mxu0
        %11059 = vmatprep.subr.bf16.mxu0 %v7384
        %11060 = vmatpush1.bf16.msra.mxu0 %v7383
        %11061 = vmatprep.subr.bf16.mxu0 %v7360
        %11062 = vmatpush1.bf16.msra.mxu0 %v7359
        %11063 = vmatprep.subr.bf16.mxu0 %v7336
        %11064 = vmatpush1.bf16.msra.mxu0 %v7335
        %11065 = vmatprep.subr.bf16.mxu0 %v7312
        %11066 = vmatpush1.bf16.msra.mxu0 %v7311
        %11067 = vmatprep.subr.bf16.mxu0 %v7288
        %11068 = vmatpush1.bf16.msra.mxu0 %v7287
        %11069 = vmatprep.subr.bf16.mxu0 %v7264
        %11070 = vmatpush1.bf16.msra.mxu0 %v7263
        %11071 = vmatprep.subr.bf16.mxu0 %v7240
        %11072 = vmatpush1.bf16.msra.mxu0 %v7239
        %11073 = vmatprep.subr.bf16.mxu0 %v7216
        %11074 = vmatpush1.bf16.msra.mxu0 %v7215
        %11075 = vmatprep.subr.bf16.mxu0 %v7576
        %11076 = vmatpush2.bf16.msra.mxu0 %v7575
        %11077 = vmatprep.subr.bf16.mxu0 %v7552
        %11078 = vmatpush2.bf16.msra.mxu0 %v7551
        %11079 = vmatprep.subr.bf16.mxu0 %v7528
        %11080 = vmatpush2.bf16.msra.mxu0 %v7527
        %11081 = vmatprep.subr.bf16.mxu0 %v7504
        %11082 = vmatpush2.bf16.msra.mxu0 %v7503
        %11083 = vmatprep.subr.bf16.mxu0 %v7480
        %11084 = vmatpush2.bf16.msra.mxu0 %v7479
        %11085 = vmatprep.subr.bf16.mxu0 %v7456
        %11086 = vmatpush2.bf16.msra.mxu0 %v7455
        %11087 = vmatprep.subr.bf16.mxu0 %v7432
        %11088 = vmatpush2.bf16.msra.mxu0 %v7431
        %11089 = vmatprep.subr.bf16.mxu0 %v7408
        %11090 = vmatpush2.bf16.msra.mxu0 %v7407
        %11091 = vmatprep.mubr.bf16.mxu0 %v282
        %11092 = vmatmul.mubr.bf16.gmra.mxu0 %v281
        %v11093 = vpop.f32.mrf.mxu0
        %v11094 = vadd.f32 %v11053, %v11093
        %v11095 = vpop.f32.mrf.mxu0
        %v11096 = vadd.f32 %v11055, %v11095
        %v11097 = vpop.f32.mrf.mxu0
        %v11098 = vpop.f32.mrf.mxu0
        %11099 = vdwg.mxu0
        %11100 = vmatprep.subr.bf16.mxu0 %v7768
        %11101 = vmatpush1.bf16.msra.mxu0 %v7767
        %11102 = vmatprep.subr.bf16.mxu0 %v7744
        %11103 = vmatpush1.bf16.msra.mxu0 %v7743
        %11104 = vmatprep.subr.bf16.mxu0 %v7720
        %11105 = vmatpush1.bf16.msra.mxu0 %v7719
        %11106 = vmatprep.subr.bf16.mxu0 %v7696
        %11107 = vmatpush1.bf16.msra.mxu0 %v7695
        %11108 = vmatprep.subr.bf16.mxu0 %v7672
        %11109 = vmatpush1.bf16.msra.mxu0 %v7671
        %11110 = vmatprep.subr.bf16.mxu0 %v7648
        %11111 = vmatpush1.bf16.msra.mxu0 %v7647
        %11112 = vmatprep.subr.bf16.mxu0 %v7624
        %11113 = vmatpush1.bf16.msra.mxu0 %v7623
        %11114 = vmatprep.subr.bf16.mxu0 %v7600
        %11115 = vmatpush1.bf16.msra.mxu0 %v7599
        %11116 = vmatprep.subr.bf16.mxu0 %v7960
        %11117 = vmatpush2.bf16.msra.mxu0 %v7959
        %11118 = vmatprep.subr.bf16.mxu0 %v7936
        %11119 = vmatpush2.bf16.msra.mxu0 %v7935
        %11120 = vmatprep.subr.bf16.mxu0 %v7912
        %11121 = vmatpush2.bf16.msra.mxu0 %v7911
        %11122 = vmatprep.subr.bf16.mxu0 %v7888
        %11123 = vmatpush2.bf16.msra.mxu0 %v7887
        %11124 = vmatprep.subr.bf16.mxu0 %v7864
        %11125 = vmatpush2.bf16.msra.mxu0 %v7863
        %11126 = vmatprep.subr.bf16.mxu0 %v7840
        %11127 = vmatpush2.bf16.msra.mxu0 %v7839
        %11128 = vmatprep.subr.bf16.mxu0 %v7816
        %11129 = vmatpush2.bf16.msra.mxu0 %v7815
        %11130 = vmatprep.subr.bf16.mxu0 %v7792
        %11131 = vmatpush2.bf16.msra.mxu0 %v7791
        %11132 = vmatprep.mubr.bf16.mxu0 %v284
        %11133 = vmatmul.mubr.bf16.gmra.mxu0 %v283
        %v11134 = vpop.f32.mrf.mxu0
        %v11135 = vadd.f32 %v11094, %v11134
        %v11136 = vpop.f32.mrf.mxu0
        %v11137 = vadd.f32 %v11096, %v11136
        %v11138 = vpop.f32.mrf.mxu0
        %v11139 = vpop.f32.mrf.mxu0
        %11140 = vdwg.mxu0
        %11141 = vmatprep.subr.bf16.mxu0 %v6618
        %11142 = vmatpush1.bf16.msra.mxu0 %v6617
        %11143 = vmatprep.subr.bf16.mxu0 %v6594
        %11144 = vmatpush1.bf16.msra.mxu0 %v6593
        %11145 = vmatprep.subr.bf16.mxu0 %v6570
        %11146 = vmatpush1.bf16.msra.mxu0 %v6569
        %11147 = vmatprep.subr.bf16.mxu0 %v6546
        %11148 = vmatpush1.bf16.msra.mxu0 %v6545
        %11149 = vmatprep.subr.bf16.mxu0 %v6522
        %11150 = vmatpush1.bf16.msra.mxu0 %v6521
        %11151 = vmatprep.subr.bf16.mxu0 %v6498
        %11152 = vmatpush1.bf16.msra.mxu0 %v6497
        %11153 = vmatprep.subr.bf16.mxu0 %v6474
        %11154 = vmatpush1.bf16.msra.mxu0 %v6473
        %11155 = vmatprep.subr.bf16.mxu0 %v6450
        %11156 = vmatpush1.bf16.msra.mxu0 %v6449
        %11157 = vmatprep.subr.bf16.mxu0 %v6810
        %11158 = vmatpush2.bf16.msra.mxu0 %v6809
        %11159 = vmatprep.subr.bf16.mxu0 %v6786
        %11160 = vmatpush2.bf16.msra.mxu0 %v6785
        %11161 = vmatprep.subr.bf16.mxu0 %v6762
        %11162 = vmatpush2.bf16.msra.mxu0 %v6761
        %11163 = vmatprep.subr.bf16.mxu0 %v6738
        %11164 = vmatpush2.bf16.msra.mxu0 %v6737
        %11165 = vmatprep.subr.bf16.mxu0 %v6714
        %11166 = vmatpush2.bf16.msra.mxu0 %v6713
        %11167 = vmatprep.subr.bf16.mxu0 %v6690
        %11168 = vmatpush2.bf16.msra.mxu0 %v6689
        %11169 = vmatprep.subr.bf16.mxu0 %v6666
        %11170 = vmatpush2.bf16.msra.mxu0 %v6665
        %11171 = vmatprep.subr.bf16.mxu0 %v6642
        %11172 = vmatpush2.bf16.msra.mxu0 %v6641
        %11173 = vmatprep.mubr.bf16.mxu0 %v278
        %11174 = vmatmul.mubr.bf16.gmra.mxu0 %v277
        %v11175 = vpop.f32.mrf.mxu0
        %v11176 = vadd.f32 0.0, %v11175
        %v11177 = vpop.f32.mrf.mxu0
        %v11178 = vadd.f32 0.0, %v11177
        %v11179 = vpop.f32.mrf.mxu0
        %v11180 = vpop.f32.mrf.mxu0
        %11181 = vdwg.mxu0
        %11182 = vmatprep.subr.bf16.mxu0 %v7002
        %11183 = vmatpush1.bf16.msra.mxu0 %v7001
        %11184 = vmatprep.subr.bf16.mxu0 %v6978
        %11185 = vmatpush1.bf16.msra.mxu0 %v6977
        %11186 = vmatprep.subr.bf16.mxu0 %v6954
        %11187 = vmatpush1.bf16.msra.mxu0 %v6953
        %11188 = vmatprep.subr.bf16.mxu0 %v6930
        %11189 = vmatpush1.bf16.msra.mxu0 %v6929
        %11190 = vmatprep.subr.bf16.mxu0 %v6906
        %11191 = vmatpush1.bf16.msra.mxu0 %v6905
        %11192 = vmatprep.subr.bf16.mxu0 %v6882
        %11193 = vmatpush1.bf16.msra.mxu0 %v6881
        %11194 = vmatprep.subr.bf16.mxu0 %v6858
        %11195 = vmatpush1.bf16.msra.mxu0 %v6857
        %11196 = vmatprep.subr.bf16.mxu0 %v6834
        %11197 = vmatpush1.bf16.msra.mxu0 %v6833
        %11198 = vmatprep.subr.bf16.mxu0 %v7194
        %11199 = vmatpush2.bf16.msra.mxu0 %v7193
        %11200 = vmatprep.subr.bf16.mxu0 %v7170
        %11201 = vmatpush2.bf16.msra.mxu0 %v7169
        %11202 = vmatprep.subr.bf16.mxu0 %v7146
        %11203 = vmatpush2.bf16.msra.mxu0 %v7145
        %11204 = vmatprep.subr.bf16.mxu0 %v7122
        %11205 = vmatpush2.bf16.msra.mxu0 %v7121
        %11206 = vmatprep.subr.bf16.mxu0 %v7098
        %11207 = vmatpush2.bf16.msra.mxu0 %v7097
        %11208 = vmatprep.subr.bf16.mxu0 %v7074
        %11209 = vmatpush2.bf16.msra.mxu0 %v7073
        %11210 = vmatprep.subr.bf16.mxu0 %v7050
        %11211 = vmatpush2.bf16.msra.mxu0 %v7049
        %11212 = vmatprep.subr.bf16.mxu0 %v7026
        %11213 = vmatpush2.bf16.msra.mxu0 %v7025
        %11214 = vmatprep.mubr.bf16.mxu0 %v280
        %11215 = vmatmul.mubr.bf16.gmra.mxu0 %v279
        %v11216 = vpop.f32.mrf.mxu0
        %v11217 = vadd.f32 %v11176, %v11216
        %v11218 = vpop.f32.mrf.mxu0
        %v11219 = vadd.f32 %v11178, %v11218
        %v11220 = vpop.f32.mrf.mxu0
        %v11221 = vpop.f32.mrf.mxu0
        %11222 = vdwg.mxu0
        %11223 = vmatprep.subr.bf16.mxu0 %v7386
        %11224 = vmatpush1.bf16.msra.mxu0 %v7385
        %11225 = vmatprep.subr.bf16.mxu0 %v7362
        %11226 = vmatpush1.bf16.msra.mxu0 %v7361
        %11227 = vmatprep.subr.bf16.mxu0 %v7338
        %11228 = vmatpush1.bf16.msra.mxu0 %v7337
        %11229 = vmatprep.subr.bf16.mxu0 %v7314
        %11230 = vmatpush1.bf16.msra.mxu0 %v7313
        %11231 = vmatprep.subr.bf16.mxu0 %v7290
        %11232 = vmatpush1.bf16.msra.mxu0 %v7289
        %11233 = vmatprep.subr.bf16.mxu0 %v7266
        %11234 = vmatpush1.bf16.msra.mxu0 %v7265
        %11235 = vmatprep.subr.bf16.mxu0 %v7242
        %11236 = vmatpush1.bf16.msra.mxu0 %v7241
        %11237 = vmatprep.subr.bf16.mxu0 %v7218
        %11238 = vmatpush1.bf16.msra.mxu0 %v7217
        %11239 = vmatprep.subr.bf16.mxu0 %v7578
        %11240 = vmatpush2.bf16.msra.mxu0 %v7577
        %11241 = vmatprep.subr.bf16.mxu0 %v7554
        %11242 = vmatpush2.bf16.msra.mxu0 %v7553
        %11243 = vmatprep.subr.bf16.mxu0 %v7530
        %11244 = vmatpush2.bf16.msra.mxu0 %v7529
        %11245 = vmatprep.subr.bf16.mxu0 %v7506
        %11246 = vmatpush2.bf16.msra.mxu0 %v7505
        %11247 = vmatprep.subr.bf16.mxu0 %v7482
        %11248 = vmatpush2.bf16.msra.mxu0 %v7481
        %11249 = vmatprep.subr.bf16.mxu0 %v7458
        %11250 = vmatpush2.bf16.msra.mxu0 %v7457
        %11251 = vmatprep.subr.bf16.mxu0 %v7434
        %11252 = vmatpush2.bf16.msra.mxu0 %v7433
        %11253 = vmatprep.subr.bf16.mxu0 %v7410
        %11254 = vmatpush2.bf16.msra.mxu0 %v7409
        %11255 = vmatprep.mubr.bf16.mxu0 %v282
        %11256 = vmatmul.mubr.bf16.gmra.mxu0 %v281
        %v11257 = vpop.f32.mrf.mxu0
        %v11258 = vadd.f32 %v11217, %v11257
        %v11259 = vpop.f32.mrf.mxu0
        %v11260 = vadd.f32 %v11219, %v11259
        %v11261 = vpop.f32.mrf.mxu0
        %v11262 = vpop.f32.mrf.mxu0
        %11263 = vdwg.mxu0
        %11264 = vmatprep.subr.bf16.mxu0 %v7770
        %11265 = vmatpush1.bf16.msra.mxu0 %v7769
        %11266 = vmatprep.subr.bf16.mxu0 %v7746
        %11267 = vmatpush1.bf16.msra.mxu0 %v7745
        %11268 = vmatprep.subr.bf16.mxu0 %v7722
        %11269 = vmatpush1.bf16.msra.mxu0 %v7721
        %11270 = vmatprep.subr.bf16.mxu0 %v7698
        %11271 = vmatpush1.bf16.msra.mxu0 %v7697
        %11272 = vmatprep.subr.bf16.mxu0 %v7674
        %11273 = vmatpush1.bf16.msra.mxu0 %v7673
        %11274 = vmatprep.subr.bf16.mxu0 %v7650
        %11275 = vmatpush1.bf16.msra.mxu0 %v7649
        %11276 = vmatprep.subr.bf16.mxu0 %v7626
        %11277 = vmatpush1.bf16.msra.mxu0 %v7625
        %11278 = vmatprep.subr.bf16.mxu0 %v7602
        %11279 = vmatpush1.bf16.msra.mxu0 %v7601
        %11280 = vmatprep.subr.bf16.mxu0 %v7962
        %11281 = vmatpush2.bf16.msra.mxu0 %v7961
        %11282 = vmatprep.subr.bf16.mxu0 %v7938
        %11283 = vmatpush2.bf16.msra.mxu0 %v7937
        %11284 = vmatprep.subr.bf16.mxu0 %v7914
        %11285 = vmatpush2.bf16.msra.mxu0 %v7913
        %11286 = vmatprep.subr.bf16.mxu0 %v7890
        %11287 = vmatpush2.bf16.msra.mxu0 %v7889
        %11288 = vmatprep.subr.bf16.mxu0 %v7866
        %11289 = vmatpush2.bf16.msra.mxu0 %v7865
        %11290 = vmatprep.subr.bf16.mxu0 %v7842
        %11291 = vmatpush2.bf16.msra.mxu0 %v7841
        %11292 = vmatprep.subr.bf16.mxu0 %v7818
        %11293 = vmatpush2.bf16.msra.mxu0 %v7817
        %11294 = vmatprep.subr.bf16.mxu0 %v7794
        %11295 = vmatpush2.bf16.msra.mxu0 %v7793
        %11296 = vmatprep.mubr.bf16.mxu0 %v284
        %11297 = vmatmul.mubr.bf16.gmra.mxu0 %v283
        %v11298 = vpop.f32.mrf.mxu0
        %v11299 = vadd.f32 %v11258, %v11298
        %v11300 = vpop.f32.mrf.mxu0
        %v11301 = vadd.f32 %v11260, %v11300
        %v11302 = vpop.f32.mrf.mxu0
        %v11303 = vpop.f32.mrf.mxu0
        %11304 = vdwg.mxu0
        %11305 = vmatprep.subr.bf16.mxu0 %v6620
        %11306 = vmatpush1.bf16.msra.mxu0 %v6619
        %11307 = vmatprep.subr.bf16.mxu0 %v6596
        %11308 = vmatpush1.bf16.msra.mxu0 %v6595
        %11309 = vmatprep.subr.bf16.mxu0 %v6572
        %11310 = vmatpush1.bf16.msra.mxu0 %v6571
        %11311 = vmatprep.subr.bf16.mxu0 %v6548
        %11312 = vmatpush1.bf16.msra.mxu0 %v6547
        %11313 = vmatprep.subr.bf16.mxu0 %v6524
        %11314 = vmatpush1.bf16.msra.mxu0 %v6523
        %11315 = vmatprep.subr.bf16.mxu0 %v6500
        %11316 = vmatpush1.bf16.msra.mxu0 %v6499
        %11317 = vmatprep.subr.bf16.mxu0 %v6476
        %11318 = vmatpush1.bf16.msra.mxu0 %v6475
        %11319 = vmatprep.subr.bf16.mxu0 %v6452
        %11320 = vmatpush1.bf16.msra.mxu0 %v6451
        %11321 = vmatprep.subr.bf16.mxu0 %v6812
        %11322 = vmatpush2.bf16.msra.mxu0 %v6811
        %11323 = vmatprep.subr.bf16.mxu0 %v6788
        %11324 = vmatpush2.bf16.msra.mxu0 %v6787
        %11325 = vmatprep.subr.bf16.mxu0 %v6764
        %11326 = vmatpush2.bf16.msra.mxu0 %v6763
        %11327 = vmatprep.subr.bf16.mxu0 %v6740
        %11328 = vmatpush2.bf16.msra.mxu0 %v6739
        %11329 = vmatprep.subr.bf16.mxu0 %v6716
        %11330 = vmatpush2.bf16.msra.mxu0 %v6715
        %11331 = vmatprep.subr.bf16.mxu0 %v6692
        %11332 = vmatpush2.bf16.msra.mxu0 %v6691
        %11333 = vmatprep.subr.bf16.mxu0 %v6668
        %11334 = vmatpush2.bf16.msra.mxu0 %v6667
        %11335 = vmatprep.subr.bf16.mxu0 %v6644
        %11336 = vmatpush2.bf16.msra.mxu0 %v6643
        %11337 = vmatprep.mubr.bf16.mxu0 %v278
        %11338 = vmatmul.mubr.bf16.gmra.mxu0 %v277
        %v11339 = vpop.f32.mrf.mxu0
        %v11340 = vadd.f32 0.0, %v11339
        %v11341 = vpop.f32.mrf.mxu0
        %v11342 = vadd.f32 0.0, %v11341
        %v11343 = vpop.f32.mrf.mxu0
        %v11344 = vpop.f32.mrf.mxu0
        %11345 = vdwg.mxu0
        %11346 = vmatprep.subr.bf16.mxu0 %v7004
        %11347 = vmatpush1.bf16.msra.mxu0 %v7003
        %11348 = vmatprep.subr.bf16.mxu0 %v6980
        %11349 = vmatpush1.bf16.msra.mxu0 %v6979
        %11350 = vmatprep.subr.bf16.mxu0 %v6956
        %11351 = vmatpush1.bf16.msra.mxu0 %v6955
        %11352 = vmatprep.subr.bf16.mxu0 %v6932
        %11353 = vmatpush1.bf16.msra.mxu0 %v6931
        %11354 = vmatprep.subr.bf16.mxu0 %v6908
        %11355 = vmatpush1.bf16.msra.mxu0 %v6907
        %11356 = vmatprep.subr.bf16.mxu0 %v6884
        %11357 = vmatpush1.bf16.msra.mxu0 %v6883
        %11358 = vmatprep.subr.bf16.mxu0 %v6860
        %11359 = vmatpush1.bf16.msra.mxu0 %v6859
        %11360 = vmatprep.subr.bf16.mxu0 %v6836
        %11361 = vmatpush1.bf16.msra.mxu0 %v6835
        %11362 = vmatprep.subr.bf16.mxu0 %v7196
        %11363 = vmatpush2.bf16.msra.mxu0 %v7195
        %11364 = vmatprep.subr.bf16.mxu0 %v7172
        %11365 = vmatpush2.bf16.msra.mxu0 %v7171
        %11366 = vmatprep.subr.bf16.mxu0 %v7148
        %11367 = vmatpush2.bf16.msra.mxu0 %v7147
        %11368 = vmatprep.subr.bf16.mxu0 %v7124
        %11369 = vmatpush2.bf16.msra.mxu0 %v7123
        %11370 = vmatprep.subr.bf16.mxu0 %v7100
        %11371 = vmatpush2.bf16.msra.mxu0 %v7099
        %11372 = vmatprep.subr.bf16.mxu0 %v7076
        %11373 = vmatpush2.bf16.msra.mxu0 %v7075
        %11374 = vmatprep.subr.bf16.mxu0 %v7052
        %11375 = vmatpush2.bf16.msra.mxu0 %v7051
        %11376 = vmatprep.subr.bf16.mxu0 %v7028
        %11377 = vmatpush2.bf16.msra.mxu0 %v7027
        %11378 = vmatprep.mubr.bf16.mxu0 %v280
        %11379 = vmatmul.mubr.bf16.gmra.mxu0 %v279
        %v11380 = vpop.f32.mrf.mxu0
        %v11381 = vadd.f32 %v11340, %v11380
        %v11382 = vpop.f32.mrf.mxu0
        %v11383 = vadd.f32 %v11342, %v11382
        %v11384 = vpop.f32.mrf.mxu0
        %v11385 = vpop.f32.mrf.mxu0
        %11386 = vdwg.mxu0
        %11387 = vmatprep.subr.bf16.mxu0 %v7388
        %11388 = vmatpush1.bf16.msra.mxu0 %v7387
        %11389 = vmatprep.subr.bf16.mxu0 %v7364
        %11390 = vmatpush1.bf16.msra.mxu0 %v7363
        %11391 = vmatprep.subr.bf16.mxu0 %v7340
        %11392 = vmatpush1.bf16.msra.mxu0 %v7339
        %11393 = vmatprep.subr.bf16.mxu0 %v7316
        %11394 = vmatpush1.bf16.msra.mxu0 %v7315
        %11395 = vmatprep.subr.bf16.mxu0 %v7292
        %11396 = vmatpush1.bf16.msra.mxu0 %v7291
        %11397 = vmatprep.subr.bf16.mxu0 %v7268
        %11398 = vmatpush1.bf16.msra.mxu0 %v7267
        %11399 = vmatprep.subr.bf16.mxu0 %v7244
        %11400 = vmatpush1.bf16.msra.mxu0 %v7243
        %11401 = vmatprep.subr.bf16.mxu0 %v7220
        %11402 = vmatpush1.bf16.msra.mxu0 %v7219
        %11403 = vmatprep.subr.bf16.mxu0 %v7580
        %11404 = vmatpush2.bf16.msra.mxu0 %v7579
        %11405 = vmatprep.subr.bf16.mxu0 %v7556
        %11406 = vmatpush2.bf16.msra.mxu0 %v7555
        %11407 = vmatprep.subr.bf16.mxu0 %v7532
        %11408 = vmatpush2.bf16.msra.mxu0 %v7531
        %11409 = vmatprep.subr.bf16.mxu0 %v7508
        %11410 = vmatpush2.bf16.msra.mxu0 %v7507
        %11411 = vmatprep.subr.bf16.mxu0 %v7484
        %11412 = vmatpush2.bf16.msra.mxu0 %v7483
        %11413 = vmatprep.subr.bf16.mxu0 %v7460
        %11414 = vmatpush2.bf16.msra.mxu0 %v7459
        %11415 = vmatprep.subr.bf16.mxu0 %v7436
        %11416 = vmatpush2.bf16.msra.mxu0 %v7435
        %11417 = vmatprep.subr.bf16.mxu0 %v7412
        %11418 = vmatpush2.bf16.msra.mxu0 %v7411
        %11419 = vmatprep.mubr.bf16.mxu0 %v282
        %11420 = vmatmul.mubr.bf16.gmra.mxu0 %v281
        %v11421 = vpop.f32.mrf.mxu0
        %v11422 = vadd.f32 %v11381, %v11421
        %v11423 = vpop.f32.mrf.mxu0
        %v11424 = vadd.f32 %v11383, %v11423
        %v11425 = vpop.f32.mrf.mxu0
        %v11426 = vpop.f32.mrf.mxu0
        %11427 = vdwg.mxu0
        %11428 = vmatprep.subr.bf16.mxu0 %v7772
        %11429 = vmatpush1.bf16.msra.mxu0 %v7771
        %11430 = vmatprep.subr.bf16.mxu0 %v7748
        %11431 = vmatpush1.bf16.msra.mxu0 %v7747
        %11432 = vmatprep.subr.bf16.mxu0 %v7724
        %11433 = vmatpush1.bf16.msra.mxu0 %v7723
        %11434 = vmatprep.subr.bf16.mxu0 %v7700
        %11435 = vmatpush1.bf16.msra.mxu0 %v7699
        %11436 = vmatprep.subr.bf16.mxu0 %v7676
        %11437 = vmatpush1.bf16.msra.mxu0 %v7675
        %11438 = vmatprep.subr.bf16.mxu0 %v7652
        %11439 = vmatpush1.bf16.msra.mxu0 %v7651
        %11440 = vmatprep.subr.bf16.mxu0 %v7628
        %11441 = vmatpush1.bf16.msra.mxu0 %v7627
        %11442 = vmatprep.subr.bf16.mxu0 %v7604
        %11443 = vmatpush1.bf16.msra.mxu0 %v7603
        %11444 = vmatprep.subr.bf16.mxu0 %v7964
        %11445 = vmatpush2.bf16.msra.mxu0 %v7963
        %11446 = vmatprep.subr.bf16.mxu0 %v7940
        %11447 = vmatpush2.bf16.msra.mxu0 %v7939
        %11448 = vmatprep.subr.bf16.mxu0 %v7916
        %11449 = vmatpush2.bf16.msra.mxu0 %v7915
        %11450 = vmatprep.subr.bf16.mxu0 %v7892
        %11451 = vmatpush2.bf16.msra.mxu0 %v7891
        %11452 = vmatprep.subr.bf16.mxu0 %v7868
        %11453 = vmatpush2.bf16.msra.mxu0 %v7867
        %11454 = vmatprep.subr.bf16.mxu0 %v7844
        %11455 = vmatpush2.bf16.msra.mxu0 %v7843
        %11456 = vmatprep.subr.bf16.mxu0 %v7820
        %11457 = vmatpush2.bf16.msra.mxu0 %v7819
        %11458 = vmatprep.subr.bf16.mxu0 %v7796
        %11459 = vmatpush2.bf16.msra.mxu0 %v7795
        %11460 = vmatprep.mubr.bf16.mxu0 %v284
        %11461 = vmatmul.mubr.bf16.gmra.mxu0 %v283
        %v11462 = vpop.f32.mrf.mxu0
        %v11463 = vadd.f32 %v11422, %v11462
        %v11464 = vpop.f32.mrf.mxu0
        %v11465 = vadd.f32 %v11424, %v11464
        %v11466 = vpop.f32.mrf.mxu0
        %v11467 = vpop.f32.mrf.mxu0
        %11468 = vdwg.mxu0
        %s11469 = smul.u32 %s21, 3
        %s11470 = smul.u32 %s11469, 8
        %s11471 = scalar_lea.vmem [#allocation7], %s11470
        %v11472 = vld [vmem:[%s11471] sm:$0xff]
        %v11473 = vld [vmem:[%s11471 + $0x8] sm:$0xff]
        %v11474 = vld [vmem:[%s11471 + $0x10] sm:$0xff]
        %v11476 = vlaneseq
        %v11477 = vshrl.u32 %v11476, 7
        %v11478 = vsub.s32 0, %v11477
        %v11479 = vrot.slane %v11472, %v11478
        %v11480 = vlaneseq
        %v11481 = vshrl.u32 %v11480, 7
        %v11482 = vsub.s32 1, %v11481
        %v11483 = vrot.slane %v11472, %v11482
        %v11484 = vlaneseq
        %v11485 = vshrl.u32 %v11484, 7
        %v11486 = vsub.s32 2, %v11485
        %v11487 = vrot.slane %v11472, %v11486
        %v11488 = vlaneseq
        %v11489 = vshrl.u32 %v11488, 7
        %v11490 = vsub.s32 3, %v11489
        %v11491 = vrot.slane %v11472, %v11490
        %v11492 = vlaneseq
        %v11493 = vshrl.u32 %v11492, 7
        %v11494 = vsub.s32 4, %v11493
        %v11495 = vrot.slane %v11472, %v11494
        %v11496 = vlaneseq
        %v11497 = vshrl.u32 %v11496, 7
        %v11498 = vsub.s32 5, %v11497
        %v11499 = vrot.slane %v11472, %v11498
        %v11500 = vlaneseq
        %v11501 = vshrl.u32 %v11500, 7
        %v11502 = vsub.s32 6, %v11501
        %v11503 = vrot.slane %v11472, %v11502
        %v11504 = vlaneseq
        %v11505 = vshrl.u32 %v11504, 7
        %v11506 = vsub.s32 7, %v11505
        %v11507 = vrot.slane %v11472, %v11506
        %v11516 = vadd.f32 %v9659, %v11479
        %v11517 = vadd.f32 %v9661, %v11483
        %v11518 = vadd.f32 %v9823, %v11487
        %v11519 = vadd.f32 %v9825, %v11491
        %v11520 = vadd.f32 %v9987, %v11495
        %v11521 = vadd.f32 %v9989, %v11499
        %v11522 = vadd.f32 %v10151, %v11503
        %v11523 = vadd.f32 %v10153, %v11507
        %v11532 = vcombine.low %v11516, %v11517
        %v11533 = vcombine.low %v11518, %v11519
        %v11535 = vunpack.c.l.s4 1983009808
        %v11536 = vunpack.c.0.s8 %v11535
        %v11537 = vlaneseq
        %v11538 = vshrl.u32 %v11537, 7
        %v11539 = vsub.s32 %v11536, %v11538
        %v11540 = vrot.slane %v11532, %v11539
        %v11542 = vunpack.c.l.s4 1983009808
        %v11543 = vunpack.c.0.s8 %v11542
        %v11544 = vlaneseq
        %v11545 = vshrl.u32 %v11544, 7
        %v11546 = vsub.s32 %v11543, %v11545
        %v11547 = vrot.slane %v11533, %v11546
        %v11548 = vcombine.low %v11540, %v11547
        %v11549 = vcombine.low %v11520, %v11521
        %v11550 = vcombine.low %v11522, %v11523
        %v11552 = vunpack.c.l.s4 1983009808
        %v11553 = vunpack.c.0.s8 %v11552
        %v11554 = vlaneseq
        %v11555 = vshrl.u32 %v11554, 7
        %v11556 = vsub.s32 %v11553, %v11555
        %v11557 = vrot.slane %v11549, %v11556
        %v11559 = vunpack.c.l.s4 1983009808
        %v11560 = vunpack.c.0.s8 %v11559
        %v11561 = vlaneseq
        %v11562 = vshrl.u32 %v11561, 7
        %v11563 = vsub.s32 %v11560, %v11562
        %v11564 = vrot.slane %v11550, %v11563
        %v11565 = vcombine.low %v11557, %v11564
        %11568 = vst [vmem:[%s215] sm:$0xff] %v11548
        %11569 = vst [vmem:[%s215 + $0x8] sm:$0xff] %v11565
        %v11571 = vlaneseq
        %v11572 = vshrl.u32 %v11571, 7
        %v11573 = vsub.s32 0, %v11572
        %v11574 = vrot.slane %v11473, %v11573
        %v11575 = vlaneseq
        %v11576 = vshrl.u32 %v11575, 7
        %v11577 = vsub.s32 1, %v11576
        %v11578 = vrot.slane %v11473, %v11577
        %v11579 = vlaneseq
        %v11580 = vshrl.u32 %v11579, 7
        %v11581 = vsub.s32 2, %v11580
        %v11582 = vrot.slane %v11473, %v11581
        %v11583 = vlaneseq
        %v11584 = vshrl.u32 %v11583, 7
        %v11585 = vsub.s32 3, %v11584
        %v11586 = vrot.slane %v11473, %v11585
        %v11587 = vlaneseq
        %v11588 = vshrl.u32 %v11587, 7
        %v11589 = vsub.s32 4, %v11588
        %v11590 = vrot.slane %v11473, %v11589
        %v11591 = vlaneseq
        %v11592 = vshrl.u32 %v11591, 7
        %v11593 = vsub.s32 5, %v11592
        %v11594 = vrot.slane %v11473, %v11593
        %v11595 = vlaneseq
        %v11596 = vshrl.u32 %v11595, 7
        %v11597 = vsub.s32 6, %v11596
        %v11598 = vrot.slane %v11473, %v11597
        %v11599 = vlaneseq
        %v11600 = vshrl.u32 %v11599, 7
        %v11601 = vsub.s32 7, %v11600
        %v11602 = vrot.slane %v11473, %v11601
        %v11611 = vadd.f32 %v10315, %v11574
        %v11612 = vadd.f32 %v10317, %v11578
        %v11613 = vadd.f32 %v10479, %v11582
        %v11614 = vadd.f32 %v10481, %v11586
        %v11615 = vadd.f32 %v10643, %v11590
        %v11616 = vadd.f32 %v10645, %v11594
        %v11617 = vadd.f32 %v10807, %v11598
        %v11618 = vadd.f32 %v10809, %v11602
        %v11627 = vcombine.low %v11611, %v11612
        %v11628 = vcombine.low %v11613, %v11614
        %v11630 = vunpack.c.l.s4 1983009808
        %v11631 = vunpack.c.0.s8 %v11630
        %v11632 = vlaneseq
        %v11633 = vshrl.u32 %v11632, 7
        %v11634 = vsub.s32 %v11631, %v11633
        %v11635 = vrot.slane %v11627, %v11634
        %v11637 = vunpack.c.l.s4 1983009808
        %v11638 = vunpack.c.0.s8 %v11637
        %v11639 = vlaneseq
        %v11640 = vshrl.u32 %v11639, 7
        %v11641 = vsub.s32 %v11638, %v11640
        %v11642 = vrot.slane %v11628, %v11641
        %v11643 = vcombine.low %v11635, %v11642
        %v11644 = vcombine.low %v11615, %v11616
        %v11645 = vcombine.low %v11617, %v11618
        %v11647 = vunpack.c.l.s4 1983009808
        %v11648 = vunpack.c.0.s8 %v11647
        %v11649 = vlaneseq
        %v11650 = vshrl.u32 %v11649, 7
        %v11651 = vsub.s32 %v11648, %v11650
        %v11652 = vrot.slane %v11644, %v11651
        %v11654 = vunpack.c.l.s4 1983009808
        %v11655 = vunpack.c.0.s8 %v11654
        %v11656 = vlaneseq
        %v11657 = vshrl.u32 %v11656, 7
        %v11658 = vsub.s32 %v11655, %v11657
        %v11659 = vrot.slane %v11645, %v11658
        %v11660 = vcombine.low %v11652, %v11659
        %s11663 = scalar_lea.vmem %s215, 16 [#allocation8]
        %11664 = vst [vmem:[%s11663] sm:$0xff] %v11643
        %11665 = vst [vmem:[%s11663 + $0x8] sm:$0xff] %v11660
        %v11667 = vlaneseq
        %v11668 = vshrl.u32 %v11667, 7
        %v11669 = vsub.s32 0, %v11668
        %v11670 = vrot.slane %v11474, %v11669
        %v11671 = vlaneseq
        %v11672 = vshrl.u32 %v11671, 7
        %v11673 = vsub.s32 1, %v11672
        %v11674 = vrot.slane %v11474, %v11673
        %v11675 = vlaneseq
        %v11676 = vshrl.u32 %v11675, 7
        %v11677 = vsub.s32 2, %v11676
        %v11678 = vrot.slane %v11474, %v11677
        %v11679 = vlaneseq
        %v11680 = vshrl.u32 %v11679, 7
        %v11681 = vsub.s32 3, %v11680
        %v11682 = vrot.slane %v11474, %v11681
        %v11683 = vlaneseq
        %v11684 = vshrl.u32 %v11683, 7
        %v11685 = vsub.s32 4, %v11684
        %v11686 = vrot.slane %v11474, %v11685
        %v11687 = vlaneseq
        %v11688 = vshrl.u32 %v11687, 7
        %v11689 = vsub.s32 5, %v11688
        %v11690 = vrot.slane %v11474, %v11689
        %v11691 = vlaneseq
        %v11692 = vshrl.u32 %v11691, 7
        %v11693 = vsub.s32 6, %v11692
        %v11694 = vrot.slane %v11474, %v11693
        %v11695 = vlaneseq
        %v11696 = vshrl.u32 %v11695, 7
        %v11697 = vsub.s32 7, %v11696
        %v11698 = vrot.slane %v11474, %v11697
        %v11707 = vadd.f32 %v10971, %v11670
        %v11708 = vadd.f32 %v10973, %v11674
        %v11709 = vadd.f32 %v11135, %v11678
        %v11710 = vadd.f32 %v11137, %v11682
        %v11711 = vadd.f32 %v11299, %v11686
        %v11712 = vadd.f32 %v11301, %v11690
        %v11713 = vadd.f32 %v11463, %v11694
        %v11714 = vadd.f32 %v11465, %v11698
        %v11723 = vcombine.low %v11707, %v11708
        %v11724 = vcombine.low %v11709, %v11710
        %v11726 = vunpack.c.l.s4 1983009808
        %v11727 = vunpack.c.0.s8 %v11726
        %v11728 = vlaneseq
        %v11729 = vshrl.u32 %v11728, 7
        %v11730 = vsub.s32 %v11727, %v11729
        %v11731 = vrot.slane %v11723, %v11730
        %v11733 = vunpack.c.l.s4 1983009808
        %v11734 = vunpack.c.0.s8 %v11733
        %v11735 = vlaneseq
        %v11736 = vshrl.u32 %v11735, 7
        %v11737 = vsub.s32 %v11734, %v11736
        %v11738 = vrot.slane %v11724, %v11737
        %v11739 = vcombine.low %v11731, %v11738
        %v11740 = vcombine.low %v11711, %v11712
        %v11741 = vcombine.low %v11713, %v11714
        %v11743 = vunpack.c.l.s4 1983009808
        %v11744 = vunpack.c.0.s8 %v11743
        %v11745 = vlaneseq
        %v11746 = vshrl.u32 %v11745, 7
        %v11747 = vsub.s32 %v11744, %v11746
        %v11748 = vrot.slane %v11740, %v11747
        %v11750 = vunpack.c.l.s4 1983009808
        %v11751 = vunpack.c.0.s8 %v11750
        %v11752 = vlaneseq
        %v11753 = vshrl.u32 %v11752, 7
        %v11754 = vsub.s32 %v11751, %v11753
        %v11755 = vrot.slane %v11741, %v11754
        %v11756 = vcombine.low %v11748, %v11755
        %s11759 = scalar_lea.vmem %s215, 32 [#allocation8]
        %11760 = vst [vmem:[%s11759] sm:$0xff] %v11739
        %11761 = vst [vmem:[%s11759 + $0x8] sm:$0xff] %v11756
        %s11762 = sand.u32 %s97, 1
        %s11763 = scalar_lea.sflag [#allocation4], %s11762
        %s11764 = sand.u32 %s97, 1
        %s11765 = smul.addr %s11764, 48
        %s11766 = scalar_lea.vmem [#allocation8], %s11765
        // Predicated region
        $region45: #{tpu_custom_call.1} parent=31 // pred_check
          %p11767 = pneg %p107
        $region46: #{tpu_custom_call.1} parent=31 // pred_check_branch
          %11769 = sbr.rel (%p11767) target = $region48
        $region47: #{tpu_custom_call.1} parent=31 // pred_region
          %s11770 = smul.u32 3, %s21
          %s11772 = ssub.s32 768, 768
          %11773 = vsyncadd %s11763, %s11772
          %s11774 = smul.addr %s11770, 8
          %s11775 = smul.addr %s11774, 32
          %s11776 = scalar_lea.hbm %s3, %s11775
          %s11777 = sshll.u32 %s11766, 4
          %s11778 = int_to_ptr.vmem [resolvable:$true] %s11777
          %11783 = dma.vmem_to_hbm [thread:$0]  %s11778, 768, %s11776, %s11763, 256, 256, 16
        $region48: #{tpu_custom_call.1} parent=31 // pred_fallthru
          _
      $region32: #{tpu_custom_call.1} parent=5 // pred_fallthru
        _
      %p11784 = scmp.le.s32.totalorder 2, %s16
      // Predicated region
      $region49: #{tpu_custom_call.1} parent=5 // pred_check
        %p11785 = pneg %p11784
      $region50: #{tpu_custom_call.1} parent=5 // pred_check_branch
        %11787 = sbr.rel (%p11785) target = $region52
      $region51: #{tpu_custom_call.1} parent=5 // pred_region
        %s11788 = ssub.s32 %s16, 2
        // Predicated region
        $region53: #{tpu_custom_call.1} parent=51 // pred_check
          %p11789 = pneg %p113
        $region54: #{tpu_custom_call.1} parent=51 // pred_check_branch
          %11791 = sbr.rel (%p11789) target = $region56
        $region55: #{tpu_custom_call.1} parent=51 // pred_region
          %s11792 = sand.u32 %s98, 1
          %s11793 = scalar_lea.sflag [#allocation4], %s11792
          %s11794 = sand.u32 %s98, 1
          %s11795 = smul.addr %s11794, 48
          %s11796 = scalar_lea.vmem [#allocation8], %s11795
          %11797 = dma.done %s11793, 768
        $region56: #{tpu_custom_call.1} parent=51 // pred_fallthru
          _
      $region52: #{tpu_custom_call.1} parent=5 // pred_fallthru
        _
    $region6: #{tpu_custom_call.1} parent=1 // loop_footer
      %s20 = sadd.s32 1, %s16
    $region7: #{tpu_custom_call.1} parent=1 // loop_footer_branch
      %15 = sbr.rel target = $region3
    $region8: #{tpu_custom_call.1} parent=1 // loop_exit
      _
    %11798 = vsyncpa [#allocation3], 1
    %s11799 = scalar_lea.sflag [#allocation3], 1
    %11800 = vsyncpa %s11799, 1
    %11801 = vsyncpa [#allocation6], 1
    %s11802 = scalar_lea.sflag [#allocation6], 1
    %11803 = vsyncpa %s11802, 1
    %11804 = vsyncpa [#allocation4], 1
    %s11805 = scalar_lea.sflag [#allocation4], 1
    %11806 = vsyncpa %s11805, 1

</llo_original>
